<compile_context>
chip_gen: v7x
topology: tpu7x:2x2x1
jax: 0.10.0
libtpu: 0.0.40
codegen_flags: <defaults>
</compile_context>

<pallas_src>
import math
import functools

import jax
import jax.numpy as jnp
from jax import lax
from jax.experimental import pallas as pl
from jax.experimental.pallas import tpu as pltpu

# ----------------------------- configuration --------------------------------
INPUT_DIM = 4          # small-shape analogue of default 12
HIDDEN_DIM = 32        # small-shape analogue of default 256 (power of two)
NUM_LAYERS = 2
NUM_FREQUENCIES = 3    # small-shape analogue of default 10
BATCH = 2
SEQ_LEN = 8
LIFTED_DIM = INPUT_DIM + INPUT_DIM * 2 * NUM_FREQUENCIES   # = 28
LIFT_PAD = ((LIFTED_DIM + 7) // 8) * 8                      # = 32 (8-row aligned)
TOTAL_LAYERS = 2 * NUM_LAYERS                               # lstm1 + lstm2 = 4 bidir layers


def _weight_layout():
    """Row layout of the packed (W_ROWS, 8H) weight slab; all offsets % 8 == 0."""
    offs = []
    r = 0
    for l in range(TOTAL_LAYERS):
        din = LIFT_PAD if l == 0 else 2 * HIDDEN_DIM
        offs.append((r, din, r + din, r + din + 2 * HIDDEN_DIM))  # (wih_row, din, whh_row, bias_row)
        r += din + 2 * HIDDEN_DIM + 8                              # bias padded to 8 rows
    return offs, r


W_LAYOUT, W_ROWS = _weight_layout()


# ------------------------------ fused kernel ---------------------------------
def _fused_imunet_kernel(x_ref, w_ref, out_ref, seq_ref):
    """Whole IMUNet forward for one batch tile.

    x_ref   : (T, Bt, D)        time-major input tile
    w_ref   : (W_ROWS, 8H)      packed fused weights (all 4 bidirectional layers)
    out_ref : (Bt, 2H)          out[:, -1, :]
    seq_ref : (T, Bt, 2H) VMEM  per-layer output sequence scratch
    """
    T, Bt, D = x_ref.shape
    H = HIDDEN_DIM
    H2, H8 = 2 * H, 8 * H

    # Forward-direction lane mask over the interleaved gate layout
    # [i_f i_b f_f f_b g_f g_b o_f o_b]; H is a power of two here, so
    # (lane // H) % 2 == 0  <=>  (lane & H) == 0.
    lanes = lax.broadcasted_iota(jnp.int32, (1, H8), 1)
    fwd_mask = (lanes & H) == 0

    # ---- Fourier lifting: one sin + one cos over a pre-scaled block ----------
    x = x_ref[...].reshape(T * Bt, D)
    scaled = jnp.concatenate(
        [((2.0 ** k) * math.pi) * x for k in range(NUM_FREQUENCIES)], axis=-1)
    parts = [x, jnp.sin(scaled), jnp.cos(scaled)]
    if LIFT_PAD > LIFTED_DIM:
        parts.append(jnp.zeros((T * Bt, LIFT_PAD - LIFTED_DIM), jnp.float32))
    seq = jnp.concatenate(parts, axis=-1)          # (T*Bt, LIFT_PAD)

    for layer, (wih_r, din, whh_r, b_r) in enumerate(W_LAYOUT):
        wih = w_ref[wih_r:wih_r + din, :]          # (din, 8H) fused fwd/bwd
        whh = w_ref[whh_r:whh_r + H2, :]           # (2H, 8H) block-diagonal per gate
        b = w_ref[b_r:b_r + 1, :]                  # (1, 8H)
        last = layer == TOTAL_LAYERS - 1

        # Hoisted input projection (+ bias) for both directions and all T steps.
        xproj = (jnp.dot(seq, wih, preferred_element_type=jnp.float32) + b
                 ).reshape(T, Bt, H8)

        h = jnp.zeros((Bt, H2), jnp.float32)       # [h_f | h_b]
        c = jnp.zeros((Bt, H2), jnp.float32)       # [c_f | c_b]

        for s in range(T):                         # fully unrolled (T static)
            tb = T - 1 - s                         # backward-direction time index
            # Forward gates read x @ W at time s, backward at time tb.
            xg = jnp.where(fwd_mask, xproj[s], xproj[tb])
            if s == 0:
                gates = xg                         # h == 0 -> skip h @ W_hh
            else:
                gates = xg + jnp.dot(h, whh, preferred_element_type=jnp.float32)
            # sigmoid/tanh once over the full 8H gate block, then lane slices.
            sig = jax.nn.sigmoid(gates)
            th = jnp.tanh(gates)
            c = sig[:, H2:2 * H2] * c + sig[:, 0:H2] * th[:, 2 * H2:3 * H2]
            h = sig[:, 3 * H2:4 * H2] * jnp.tanh(c)
            # Store per-step outputs into the sequence scratch (last layer only
            # needs the halves that make up out[:, -1, :]).
            if (not last) or s == T - 1:
                seq_ref[s, :, 0:H] = h[:, 0:H]
            if (not last) or s == 0:
                seq_ref[tb, :, H:H2] = h[:, H:H2]

        if not last:
            seq = seq_ref[...].reshape(T * Bt, H2)     # next layer's input

    # out[:, -1, :] = [h_fwd(T-1) | h_bwd(T-1)], both stored at scratch row T-1.
    out_ref[...] = seq_ref[T - 1]


# -------------------------------- wrapper ------------------------------------
def imunet_forward(x, w_packed, batch_tile=None):
    """x: (B, T, INPUT_DIM) -> (B, 2*HIDDEN_DIM). Single fused Pallas kernel."""
    B, T, D = x.shape
    H = HIDDEN_DIM
    # Default: fold the whole (small) batch into one block (best on 1-TC chips).
    # On v7x with small B, pass batch_tile=ceil(B/2) to keep both TCs busy.
    Bt = batch_tile if batch_tile is not None else min(B, 8)
    Bpad = ((B + Bt - 1) // Bt) * Bt

    x_tm = jnp.transpose(x, (1, 0, 2)).astype(jnp.float32)   # (T, B, D) time-major
    if Bpad != B:
        x_tm = jnp.pad(x_tm, ((0, 0), (0, Bpad - B), (0, 0)))

    w_bytes = int(w_packed.size) * 4
    vmem_limit = min(
        128 * 1024 * 1024,
        2 * w_bytes                          # weight slab (double-buffered)
        + 2 * (T * Bt * D * 4)               # input block
        + 2 * (Bt * 2 * H * 4)               # output block
        + (T * Bt * 2 * H * 4)               # sequence scratch
        + 8 * (T * Bt * 8 * H * 4)           # xproj / gate temporaries
        + (4 << 20),                         # compiler headroom
    )

    out = pl.pallas_call(
        _fused_imunet_kernel,
        out_shape=jax.ShapeDtypeStruct((Bpad, 2 * H), jnp.float32),
        grid=(Bpad // Bt,),
        in_specs=[
            pl.BlockSpec((T, Bt, D), lambda i: (0, i, 0)),
            pl.BlockSpec((W_ROWS, 8 * H), lambda i: (0, 0)),
        ],
        out_specs=pl.BlockSpec((Bt, 2 * H), lambda i: (i, 0)),
        scratch_shapes=[pltpu.VMEM((T, Bt, 2 * H), jnp.float32)],
        compiler_params=pltpu.CompilerParams(
            dimension_semantics=("parallel",),     # megacore across batch tiles
            vmem_limit_bytes=int(vmem_limit),
        ),
    )(x_tm, w_packed)
    return out[:B]


# ------------------------------- parameters ----------------------------------
def _init_lstm_params(key, input_size, hidden_size, num_layers):
    """Per layer: (wih_f^T, whh_f^T, b_f, wih_b^T, whh_b^T, b_b) with b = b_ih + b_hh."""
    k = 1.0 / math.sqrt(hidden_size)
    params = []
    for layer in range(num_layers):
        d_in = input_size if layer == 0 else 2 * hidden_size
        dir_params = []
        for _direction in range(2):
            key, k1, k2, k3, k4 = jax.random.split(key, 5)
            w_ih = jax.random.uniform(k1, (4 * hidden_size, d_in), jnp.float32, -k, k)
            w_hh = jax.random.uniform(k2, (4 * hidden_size, hidden_size), jnp.float32, -k, k)
            b_ih = jax.random.uniform(k3, (4 * hidden_size,), jnp.float32, -k, k)
            b_hh = jax.random.uniform(k4, (4 * hidden_size,), jnp.float32, -k, k)
            dir_params.extend([w_ih.T, w_hh.T, (b_ih + b_hh)[None, :]])
        params.append(tuple(dir_params))
    return params, key


def init_imunet_params(seed=0):
    key = jax.random.PRNGKey(seed)
    key, sub = jax.random.split(key)
    lstm1, sub = _init_lstm_params(sub, LIFTED_DIM, HIDDEN_DIM, NUM_LAYERS)
    lstm2, _ = _init_lstm_params(sub, 2 * HIDDEN_DIM, HIDDEN_DIM, NUM_LAYERS)
    return {"lstm1": lstm1, "lstm2": lstm2}


def pack_params(params):
    """Pack all layers into one (W_ROWS, 8H) slab with fused fwd/bwd gate layout."""
    H = HIDDEN_DIM
    D, NF = INPUT_DIM, NUM_FREQUENCIES
    layers = list(params["lstm1"]) + list(params["lstm2"])
    assert len(layers) == TOTAL_LAYERS

    # Kernel lifting feature order: [x, sin(f0 x)..sin(fK x), cos(f0 x)..cos(fK x)]
    # PyTorch order:                [x, sin(f0 x), cos(f0 x), sin(f1 x), ...]
    perm = list(range(D))
    perm += [D + 2 * k * D + j for k in range(NF) for j in range(D)]          # sin
    perm += [D + (2 * k + 1) * D + j for k in range(NF) for j in range(D)]    # cos
    perm = jnp.asarray(perm, jnp.int32)

    blocks = []
    for l, (wih_f, whh_f, b_f, wih_b, whh_b, b_b) in enumerate(layers):
        if l == 0:
            wih_f = wih_f[perm, :]
            wih_b = wih_b[perm, :]
        din = wih_f.shape[0]
        din_pad = W_LAYOUT[l][1]
        wih = jnp.zeros((din_pad, 8 * H), jnp.float32)
        whh = jnp.zeros((2 * H, 8 * H), jnp.float32)
        bias = jnp.zeros((8, 8 * H), jnp.float32)
        for g in range(4):                                    # PyTorch gate order i,f,g,o
            fc = slice(2 * g * H, (2 * g + 1) * H)            # fused forward columns
            bc = slice((2 * g + 1) * H, (2 * g + 2) * H)      # fused backward columns
            sc = slice(g * H, (g + 1) * H)                    # source columns in (.,4H)
            wih = wih.at[:din, fc].set(wih_f[:, sc])
            wih = wih.at[:din, bc].set(wih_b[:, sc])
            whh = whh.at[0:H, fc].set(whh_f[:, sc])
            whh = whh.at[H:2 * H, bc].set(whh_b[:, sc])
            bias = bias.at[0, fc].set(b_f[0, sc])
            bias = bias.at[0, bc].set(b_b[0, sc])
        blocks += [wih, whh, bias]
    packed = jnp.concatenate(blocks, axis=0)
    assert packed.shape == (W_ROWS, 8 * HIDDEN_DIM), packed.shape
    return packed


# ---------------------- pure-JAX reference (correctness) ---------------------
def _ref_lstm_direction(x_btd, wih_t, whh_t, b):
    B, T, Din = x_btd.shape
    H = whh_t.shape[0]
    hi = jax.lax.Precision.HIGHEST

    def step(carry, x_t):
        h, c = carry
        gates = (jnp.dot(x_t, wih_t, precision=hi)
                 + jnp.dot(h, whh_t, precision=hi) + b)
        i_g = jax.nn.sigmoid(gates[:, 0:H])
        f_g = jax.nn.sigmoid(gates[:, H:2 * H])
        g_g = jnp.tanh(gates[:, 2 * H:3 * H])
        o_g = jax.nn.sigmoid(gates[:, 3 * H:4 * H])
        c = f_g * c + i_g * g_g
        h = o_g * jnp.tanh(c)
        return (h, c), h

    h0 = jnp.zeros((B, H), jnp.float32)
    c0 = jnp.zeros((B, H), jnp.float32)
    _, ys = lax.scan(step, (h0, c0), jnp.transpose(x_btd, (1, 0, 2)))
    return jnp.transpose(ys, (1, 0, 2))


def _ref_bidir_stack(x, layers):
    out = x
    for (wih_f, whh_f, b_f, wih_b, whh_b, b_b) in layers:
        y_f = _ref_lstm_direction(out, wih_f, whh_f, b_f)
        y_b = jnp.flip(_ref_lstm_direction(jnp.flip(out, 1), wih_b, whh_b, b_b), 1)
        out = jnp.concatenate([y_f, y_b], axis=-1)
    return out


def imunet_reference(x, params):
    parts = [x]
    for k in range(NUM_FREQUENCIES):
        f = (2.0 ** k) * math.pi
        parts.append(jnp.sin(f * x))
        parts.append(jnp.cos(f * x))
    xl = jnp.concatenate(parts, axis=-1)
    out = _ref_bidir_stack(xl, params["lstm1"])
    out = _ref_bidir_stack(out, params["lstm2"])
    return out[:, -1, :]


# ---------------------------------- main --------------------------------------
if __name__ == "__main__":
    params = init_imunet_params(seed=0)
    w_packed = pack_params(params)                       # host-side, once
    x = jax.random.normal(
        jax.random.PRNGKey(0), (BATCH, SEQ_LEN, INPUT_DIM), dtype=jnp.float32
    )

    fwd = jax.jit(imunet_forward)
    out = fwd(x, w_packed)
    jax.block_until_ready(out)

    assert out.shape == (BATCH, 2 * HIDDEN_DIM), out.shape
    assert bool(jnp.all(jnp.isfinite(out)))

    # Correctness vs. HIGHEST-precision JAX reference.  Kernel matmuls use the
    # MXU's default f32 decomposition, so allow a small tolerance (a real
    # wiring bug would produce O(0.1-1) errors).
    ref = imunet_reference(x, params)
    err = float(jnp.max(jnp.abs(out - ref)))
    assert err < 1.5e-2, f"max abs err vs reference: {err}"

    print("KERNEL_OK")
</pallas_src>

<mosaic_0001>
module attributes {stable_mosaic.version = 11 : i64} {
  func.func @_fused_imunet_kernel(%arg0: i32, %arg1: memref<8x2x4xf32, #tpu.memory_space<vmem>>, %arg2: memref<512x256xf32, #tpu.memory_space<vmem>>, %arg3: memref<2x64xf32, #tpu.memory_space<vmem>>, %arg4: memref<8x2x64xf32, #tpu.memory_space<vmem>>) attributes {dimension_semantics = [#tpu.dimension_semantics<parallel>], iteration_bounds = array<i64: 1>, scalar_prefetch = 0 : i64, scratch_operands = 1 : i64, tpu.core_type = #tpu.core_type<tc>, window_params = [{transform_indices = @transform_0, window_bounds = array<i64: 8, 2, 4>}, {pipeline_mode = #tpu.pipeline_mode<synchronous>, transform_indices = @transform_1, window_bounds = array<i64: 512, 256>}, {transform_indices = @transform_2, window_bounds = array<i64: 2, 64>}]} {
    %0 = tpu.iota {dimensions = array<i32: 1>} : vector<1x256xi32>
    %c32_i32 = arith.constant 32 : i32
    %1 = vector.broadcast %c32_i32 : i32 to vector<1x256xi32>
    %2 = arith.andi %0, %1 : vector<1x256xi32>
    %c0_i32 = arith.constant 0 : i32
    %3 = vector.broadcast %c0_i32 : i32 to vector<1x256xi32>
    %4 = arith.cmpi eq, %2, %3 : vector<1x256xi32>
    %c0 = arith.constant 0 : index
    %c0_0 = arith.constant 0 : index
    %c0_1 = arith.constant 0 : index
    %5 = vector.load %arg1[%c0, %c0_0, %c0_1] : memref<8x2x4xf32, #tpu.memory_space<vmem>>, vector<8x2x4xf32>
    %6 = vector.shape_cast %5 : vector<8x2x4xf32> to vector<16x4xf32>
    %cst = arith.constant 3.14159274 : f32
    %7 = vector.broadcast %cst : f32 to vector<16x4xf32>
    %8 = arith.mulf %7, %6 : vector<16x4xf32>
    %cst_2 = arith.constant 6.28318548 : f32
    %9 = vector.broadcast %cst_2 : f32 to vector<16x4xf32>
    %10 = arith.mulf %9, %6 : vector<16x4xf32>
    %cst_3 = arith.constant 12.566371 : f32
    %11 = vector.broadcast %cst_3 : f32 to vector<16x4xf32>
    %12 = arith.mulf %11, %6 : vector<16x4xf32>
    %13 = tpu.concatenate %8, %10, %12 in 1 : vector<16x4xf32>, vector<16x4xf32>, vector<16x4xf32> -> vector<16x12xf32>
    %14 = math.sin %13 : vector<16x12xf32>
    %15 = math.cos %13 : vector<16x12xf32>
    %cst_4 = arith.constant 0.000000e+00 : f32
    %16 = vector.broadcast %cst_4 : f32 to vector<16x4xf32>
    %17 = tpu.concatenate %6, %14, %15, %16 in 1 : vector<16x4xf32>, vector<16x12xf32>, vector<16x12xf32>, vector<16x4xf32> -> vector<16x32xf32>
    %c0_5 = arith.constant 0 : index
    %c0_6 = arith.constant 0 : index
    %18 = vector.load %arg2[%c0_5, %c0_6] : memref<512x256xf32, #tpu.memory_space<vmem>>, vector<32x256xf32>
    %c32 = arith.constant 32 : index
    %c0_7 = arith.constant 0 : index
    %19 = vector.load %arg2[%c32, %c0_7] : memref<512x256xf32, #tpu.memory_space<vmem>>, vector<64x256xf32>
    %c96 = arith.constant 96 : index
    %c0_8 = arith.constant 0 : index
    %20 = vector.load %arg2[%c96, %c0_8] : memref<512x256xf32, #tpu.memory_space<vmem>>, vector<1x256xf32>
    %cst_9 = arith.constant dense<0.000000e+00> : vector<16x256xf32>
    %21 = tpu.matmul %17, %18, %cst_9 {dimension_numbers = #tpu.dot_dimension_numbers<[1], [0], [0], [1], [0, 0, 1, 1], [], []>} : vector<16x32xf32>, vector<32x256xf32>, vector<16x256xf32> -> vector<16x256xf32>
    %22 = vector.broadcast %20 : vector<1x256xf32> to vector<16x256xf32>
    %23 = arith.addf %21, %22 : vector<16x256xf32>
    %24 = vector.shape_cast %23 : vector<16x256xf32> to vector<8x2x256xf32>
    %cst_10 = arith.constant 0.000000e+00 : f32
    %25 = vector.broadcast %cst_10 : f32 to vector<2x64xf32>
    %26 = vector.extract_strided_slice %24 {offsets = [0, 0, 0], sizes = [1, 2, 256], strides = [1, 1, 1]} : vector<8x2x256xf32> to vector<1x2x256xf32>
    %27 = vector.shape_cast %26 : vector<1x2x256xf32> to vector<2x256xf32>
    %28 = vector.extract_strided_slice %24 {offsets = [7, 0, 0], sizes = [1, 2, 256], strides = [1, 1, 1]} : vector<8x2x256xf32> to vector<1x2x256xf32>
    %29 = vector.shape_cast %28 : vector<1x2x256xf32> to vector<2x256xf32>
    %30 = vector.shape_cast %4 : vector<1x256xi1> to vector<1x256xi1>
    %31 = vector.broadcast %30 : vector<1x256xi1> to vector<2x256xi1>
    %32 = arith.select %31, %27, %29 : vector<2x256xi1>, vector<2x256xf32>
    %33 = arith.negf %32 : vector<2x256xf32>
    %34 = math.exp %33 : vector<2x256xf32>
    %cst_11 = arith.constant 1.000000e+00 : f32
    %35 = vector.broadcast %cst_11 : f32 to vector<2x256xf32>
    %36 = arith.addf %35, %34 : vector<2x256xf32>
    %37 = arith.divf %35, %36 : vector<2x256xf32>
    %38 = math.tanh %32 : vector<2x256xf32>
    %39 = vector.extract_strided_slice %37 {offsets = [0, 64], sizes = [2, 64], strides = [1, 1]} : vector<2x256xf32> to vector<2x64xf32>
    %40 = arith.mulf %39, %25 : vector<2x64xf32>
    %41 = vector.extract_strided_slice %37 {offsets = [0, 0], sizes = [2, 64], strides = [1, 1]} : vector<2x256xf32> to vector<2x64xf32>
    %42 = vector.extract_strided_slice %38 {offsets = [0, 128], sizes = [2, 64], strides = [1, 1]} : vector<2x256xf32> to vector<2x64xf32>
    %43 = arith.mulf %41, %42 : vector<2x64xf32>
    %44 = arith.addf %40, %43 : vector<2x64xf32>
    %45 = vector.extract_strided_slice %37 {offsets = [0, 192], sizes = [2, 64], strides = [1, 1]} : vector<2x256xf32> to vector<2x64xf32>
    %46 = math.tanh %44 : vector<2x64xf32>
    %47 = arith.mulf %45, %46 : vector<2x64xf32>
    %48 = vector.extract_strided_slice %47 {offsets = [0, 0], sizes = [2, 32], strides = [1, 1]} : vector<2x64xf32> to vector<2x32xf32>
    %c0_12 = arith.constant 0 : index
    %c0_13 = arith.constant 0 : index
    %c0_14 = arith.constant 0 : index
    %49 = vector.load %arg4[%c0_12, %c0_13, %c0_14] : memref<8x2x64xf32, #tpu.memory_space<vmem>>, vector<1x2x32xf32>
    %50 = vector.shape_cast %49 : vector<1x2x32xf32> to vector<2x32xf32>
    %51 = vector.shape_cast %48 : vector<2x32xf32> to vector<1x2x32xf32>
    tpu.vector_store %arg4[%c0_12, %c0_13, %c0_14], %51 {strides = array<i32>} : memref<8x2x64xf32, #tpu.memory_space<vmem>>, vector<1x2x32xf32>,
    %52 = vector.extract_strided_slice %47 {offsets = [0, 32], sizes = [2, 32], strides = [1, 1]} : vector<2x64xf32> to vector<2x32xf32>
    %c7 = arith.constant 7 : index
    %c0_15 = arith.constant 0 : index
    %c32_16 = arith.constant 32 : index
    %53 = vector.load %arg4[%c7, %c0_15, %c32_16] : memref<8x2x64xf32, #tpu.memory_space<vmem>>, vector<1x2x32xf32>
    %54 = vector.shape_cast %53 : vector<1x2x32xf32> to vector<2x32xf32>
    %55 = vector.shape_cast %52 : vector<2x32xf32> to vector<1x2x32xf32>
    tpu.vector_store %arg4[%c7, %c0_15, %c32_16], %55 {strides = array<i32>} : memref<8x2x64xf32, #tpu.memory_space<vmem>>, vector<1x2x32xf32>,
    %56 = vector.extract_strided_slice %24 {offsets = [1, 0, 0], sizes = [1, 2, 256], strides = [1, 1, 1]} : vector<8x2x256xf32> to vector<1x2x256xf32>
    %57 = vector.shape_cast %56 : vector<1x2x256xf32> to vector<2x256xf32>
    %58 = vector.extract_strided_slice %24 {offsets = [6, 0, 0], sizes = [1, 2, 256], strides = [1, 1, 1]} : vector<8x2x256xf32> to vector<1x2x256xf32>
    %59 = vector.shape_cast %58 : vector<1x2x256xf32> to vector<2x256xf32>
    %60 = vector.shape_cast %4 : vector<1x256xi1> to vector<1x256xi1>
    %61 = vector.broadcast %60 : vector<1x256xi1> to vector<2x256xi1>
    %62 = arith.select %61, %57, %59 : vector<2x256xi1>, vector<2x256xf32>
    %cst_17 = arith.constant dense<0.000000e+00> : vector<2x256xf32>
    %63 = tpu.matmul %47, %19, %cst_17 {dimension_numbers = #tpu.dot_dimension_numbers<[1], [0], [0], [1], [0, 0, 1, 1], [], []>} : vector<2x64xf32>, vector<64x256xf32>, vector<2x256xf32> -> vector<2x256xf32>
    %64 = arith.addf %62, %63 : vector<2x256xf32>
    %65 = arith.negf %64 : vector<2x256xf32>
    %66 = math.exp %65 : vector<2x256xf32>
    %cst_18 = arith.constant 1.000000e+00 : f32
    %67 = vector.broadcast %cst_18 : f32 to vector<2x256xf32>
    %68 = arith.addf %67, %66 : vector<2x256xf32>
    %69 = arith.divf %67, %68 : vector<2x256xf32>
    %70 = math.tanh %64 : vector<2x256xf32>
    %71 = vector.extract_strided_slice %69 {offsets = [0, 64], sizes = [2, 64], strides = [1, 1]} : vector<2x256xf32> to vector<2x64xf32>
    %72 = arith.mulf %71, %44 : vector<2x64xf32>
    %73 = vector.extract_strided_slice %69 {offsets = [0, 0], sizes = [2, 64], strides = [1, 1]} : vector<2x256xf32> to vector<2x64xf32>
    %74 = vector.extract_strided_slice %70 {offsets = [0, 128], sizes = [2, 64], strides = [1, 1]} : vector<2x256xf32> to vector<2x64xf32>
    %75 = arith.mulf %73, %74 : vector<2x64xf32>
    %76 = arith.addf %72, %75 : vector<2x64xf32>
    %77 = vector.extract_strided_slice %69 {offsets = [0, 192], sizes = [2, 64], strides = [1, 1]} : vector<2x256xf32> to vector<2x64xf32>
    %78 = math.tanh %76 : vector<2x64xf32>
    %79 = arith.mulf %77, %78 : vector<2x64xf32>
    %80 = vector.extract_strided_slice %79 {offsets = [0, 0], sizes = [2, 32], strides = [1, 1]} : vector<2x64xf32> to vector<2x32xf32>
    %c1 = arith.constant 1 : index
    %c0_19 = arith.constant 0 : index
    %c0_20 = arith.constant 0 : index
    %81 = vector.load %arg4[%c1, %c0_19, %c0_20] : memref<8x2x64xf32, #tpu.memory_space<vmem>>, vector<1x2x32xf32>
    %82 = vector.shape_cast %81 : vector<1x2x32xf32> to vector<2x32xf32>
    %83 = vector.shape_cast %80 : vector<2x32xf32> to vector<1x2x32xf32>
    tpu.vector_store %arg4[%c1, %c0_19, %c0_20], %83 {strides = array<i32>} : memref<8x2x64xf32, #tpu.memory_space<vmem>>, vector<1x2x32xf32>,
    %84 = vector.extract_strided_slice %79 {offsets = [0, 32], sizes = [2, 32], strides = [1, 1]} : vector<2x64xf32> to vector<2x32xf32>
    %c6 = arith.constant 6 : index
    %c0_21 = arith.constant 0 : index
    %c32_22 = arith.constant 32 : index
    %85 = vector.load %arg4[%c6, %c0_21, %c32_22] : memref<8x2x64xf32, #tpu.memory_space<vmem>>, vector<1x2x32xf32>
    %86 = vector.shape_cast %85 : vector<1x2x32xf32> to vector<2x32xf32>
    %87 = vector.shape_cast %84 : vector<2x32xf32> to vector<1x2x32xf32>
    tpu.vector_store %arg4[%c6, %c0_21, %c32_22], %87 {strides = array<i32>} : memref<8x2x64xf32, #tpu.memory_space<vmem>>, vector<1x2x32xf32>,
    %88 = vector.extract_strided_slice %24 {offsets = [2, 0, 0], sizes = [1, 2, 256], strides = [1, 1, 1]} : vector<8x2x256xf32> to vector<1x2x256xf32>
    %89 = vector.shape_cast %88 : vector<1x2x256xf32> to vector<2x256xf32>
    %90 = vector.extract_strided_slice %24 {offsets = [5, 0, 0], sizes = [1, 2, 256], strides = [1, 1, 1]} : vector<8x2x256xf32> to vector<1x2x256xf32>
    %91 = vector.shape_cast %90 : vector<1x2x256xf32> to vector<2x256xf32>
    %92 = vector.shape_cast %4 : vector<1x256xi1> to vector<1x256xi1>
    %93 = vector.broadcast %92 : vector<1x256xi1> to vector<2x256xi1>
    %94 = arith.select %93, %89, %91 : vector<2x256xi1>, vector<2x256xf32>
    %cst_23 = arith.constant dense<0.000000e+00> : vector<2x256xf32>
    %95 = tpu.matmul %79, %19, %cst_23 {dimension_numbers = #tpu.dot_dimension_numbers<[1], [0], [0], [1], [0, 0, 1, 1], [], []>} : vector<2x64xf32>, vector<64x256xf32>, vector<2x256xf32> -> vector<2x256xf32>
    %96 = arith.addf %94, %95 : vector<2x256xf32>
    %97 = arith.negf %96 : vector<2x256xf32>
    %98 = math.exp %97 : vector<2x256xf32>
    %cst_24 = arith.constant 1.000000e+00 : f32
    %99 = vector.broadcast %cst_24 : f32 to vector<2x256xf32>
    %100 = arith.addf %99, %98 : vector<2x256xf32>
    %101 = arith.divf %99, %100 : vector<2x256xf32>
    %102 = math.tanh %96 : vector<2x256xf32>
    %103 = vector.extract_strided_slice %101 {offsets = [0, 64], sizes = [2, 64], strides = [1, 1]} : vector<2x256xf32> to vector<2x64xf32>
    %104 = arith.mulf %103, %76 : vector<2x64xf32>
    %105 = vector.extract_strided_slice %101 {offsets = [0, 0], sizes = [2, 64], strides = [1, 1]} : vector<2x256xf32> to vector<2x64xf32>
    %106 = vector.extract_strided_slice %102 {offsets = [0, 128], sizes = [2, 64], strides = [1, 1]} : vector<2x256xf32> to vector<2x64xf32>
    %107 = arith.mulf %105, %106 : vector<2x64xf32>
    %108 = arith.addf %104, %107 : vector<2x64xf32>
    %109 = vector.extract_strided_slice %101 {offsets = [0, 192], sizes = [2, 64], strides = [1, 1]} : vector<2x256xf32> to vector<2x64xf32>
    %110 = math.tanh %108 : vector<2x64xf32>
    %111 = arith.mulf %109, %110 : vector<2x64xf32>
    %112 = vector.extract_strided_slice %111 {offsets = [0, 0], sizes = [2, 32], strides = [1, 1]} : vector<2x64xf32> to vector<2x32xf32>
    %c2 = arith.constant 2 : index
    %c0_25 = arith.constant 0 : index
    %c0_26 = arith.constant 0 : index
    %113 = vector.load %arg4[%c2, %c0_25, %c0_26] : memref<8x2x64xf32, #tpu.memory_space<vmem>>, vector<1x2x32xf32>
    %114 = vector.shape_cast %113 : vector<1x2x32xf32> to vector<2x32xf32>
    %115 = vector.shape_cast %112 : vector<2x32xf32> to vector<1x2x32xf32>
    tpu.vector_store %arg4[%c2, %c0_25, %c0_26], %115 {strides = array<i32>} : memref<8x2x64xf32, #tpu.memory_space<vmem>>, vector<1x2x32xf32>,
    %116 = vector.extract_strided_slice %111 {offsets = [0, 32], sizes = [2, 32], strides = [1, 1]} : vector<2x64xf32> to vector<2x32xf32>
    %c5 = arith.constant 5 : index
    %c0_27 = arith.constant 0 : index
    %c32_28 = arith.constant 32 : index
    %117 = vector.load %arg4[%c5, %c0_27, %c32_28] : memref<8x2x64xf32, #tpu.memory_space<vmem>>, vector<1x2x32xf32>
    %118 = vector.shape_cast %117 : vector<1x2x32xf32> to vector<2x32xf32>
    %119 = vector.shape_cast %116 : vector<2x32xf32> to vector<1x2x32xf32>
    tpu.vector_store %arg4[%c5, %c0_27, %c32_28], %119 {strides = array<i32>} : memref<8x2x64xf32, #tpu.memory_space<vmem>>, vector<1x2x32xf32>,
    %120 = vector.extract_strided_slice %24 {offsets = [3, 0, 0], sizes = [1, 2, 256], strides = [1, 1, 1]} : vector<8x2x256xf32> to vector<1x2x256xf32>
    %121 = vector.shape_cast %120 : vector<1x2x256xf32> to vector<2x256xf32>
    %122 = vector.extract_strided_slice %24 {offsets = [4, 0, 0], sizes = [1, 2, 256], strides = [1, 1, 1]} : vector<8x2x256xf32> to vector<1x2x256xf32>
    %123 = vector.shape_cast %122 : vector<1x2x256xf32> to vector<2x256xf32>
    %124 = vector.shape_cast %4 : vector<1x256xi1> to vector<1x256xi1>
    %125 = vector.broadcast %124 : vector<1x256xi1> to vector<2x256xi1>
    %126 = arith.select %125, %121, %123 : vector<2x256xi1>, vector<2x256xf32>
    %cst_29 = arith.constant dense<0.000000e+00> : vector<2x256xf32>
    %127 = tpu.matmul %111, %19, %cst_29 {dimension_numbers = #tpu.dot_dimension_numbers<[1], [0], [0], [1], [0, 0, 1, 1], [], []>} : vector<2x64xf32>, vector<64x256xf32>, vector<2x256xf32> -> vector<2x256xf32>
    %128 = arith.addf %126, %127 : vector<2x256xf32>
    %129 = arith.negf %128 : vector<2x256xf32>
    %130 = math.exp %129 : vector<2x256xf32>
    %cst_30 = arith.constant 1.000000e+00 : f32
    %131 = vector.broadcast %cst_30 : f32 to vector<2x256xf32>
    %132 = arith.addf %131, %130 : vector<2x256xf32>
    %133 = arith.divf %131, %132 : vector<2x256xf32>
    %134 = math.tanh %128 : vector<2x256xf32>
    %135 = vector.extract_strided_slice %133 {offsets = [0, 64], sizes = [2, 64], strides = [1, 1]} : vector<2x256xf32> to vector<2x64xf32>
    %136 = arith.mulf %135, %108 : vector<2x64xf32>
    %137 = vector.extract_strided_slice %133 {offsets = [0, 0], sizes = [2, 64], strides = [1, 1]} : vector<2x256xf32> to vector<2x64xf32>
    %138 = vector.extract_strided_slice %134 {offsets = [0, 128], sizes = [2, 64], strides = [1, 1]} : vector<2x256xf32> to vector<2x64xf32>
    %139 = arith.mulf %137, %138 : vector<2x64xf32>
    %140 = arith.addf %136, %139 : vector<2x64xf32>
    %141 = vector.extract_strided_slice %133 {offsets = [0, 192], sizes = [2, 64], strides = [1, 1]} : vector<2x256xf32> to vector<2x64xf32>
    %142 = math.tanh %140 : vector<2x64xf32>
    %143 = arith.mulf %141, %142 : vector<2x64xf32>
    %144 = vector.extract_strided_slice %143 {offsets = [0, 0], sizes = [2, 32], strides = [1, 1]} : vector<2x64xf32> to vector<2x32xf32>
    %c3 = arith.constant 3 : index
    %c0_31 = arith.constant 0 : index
    %c0_32 = arith.constant 0 : index
    %145 = vector.load %arg4[%c3, %c0_31, %c0_32] : memref<8x2x64xf32, #tpu.memory_space<vmem>>, vector<1x2x32xf32>
    %146 = vector.shape_cast %145 : vector<1x2x32xf32> to vector<2x32xf32>
    %147 = vector.shape_cast %144 : vector<2x32xf32> to vector<1x2x32xf32>
    tpu.vector_store %arg4[%c3, %c0_31, %c0_32], %147 {strides = array<i32>} : memref<8x2x64xf32, #tpu.memory_space<vmem>>, vector<1x2x32xf32>,
    %148 = vector.extract_strided_slice %143 {offsets = [0, 32], sizes = [2, 32], strides = [1, 1]} : vector<2x64xf32> to vector<2x32xf32>
    %c4 = arith.constant 4 : index
    %c0_33 = arith.constant 0 : index
    %c32_34 = arith.constant 32 : index
    %149 = vector.load %arg4[%c4, %c0_33, %c32_34] : memref<8x2x64xf32, #tpu.memory_space<vmem>>, vector<1x2x32xf32>
    %150 = vector.shape_cast %149 : vector<1x2x32xf32> to vector<2x32xf32>
    %151 = vector.shape_cast %148 : vector<2x32xf32> to vector<1x2x32xf32>
    tpu.vector_store %arg4[%c4, %c0_33, %c32_34], %151 {strides = array<i32>} : memref<8x2x64xf32, #tpu.memory_space<vmem>>, vector<1x2x32xf32>,
    %152 = vector.extract_strided_slice %24 {offsets = [4, 0, 0], sizes = [1, 2, 256], strides = [1, 1, 1]} : vector<8x2x256xf32> to vector<1x2x256xf32>
    %153 = vector.shape_cast %152 : vector<1x2x256xf32> to vector<2x256xf32>
    %154 = vector.extract_strided_slice %24 {offsets = [3, 0, 0], sizes = [1, 2, 256], strides = [1, 1, 1]} : vector<8x2x256xf32> to vector<1x2x256xf32>
    %155 = vector.shape_cast %154 : vector<1x2x256xf32> to vector<2x256xf32>
    %156 = vector.shape_cast %4 : vector<1x256xi1> to vector<1x256xi1>
    %157 = vector.broadcast %156 : vector<1x256xi1> to vector<2x256xi1>
    %158 = arith.select %157, %153, %155 : vector<2x256xi1>, vector<2x256xf32>
    %cst_35 = arith.constant dense<0.000000e+00> : vector<2x256xf32>
    %159 = tpu.matmul %143, %19, %cst_35 {dimension_numbers = #tpu.dot_dimension_numbers<[1], [0], [0], [1], [0, 0, 1, 1], [], []>} : vector<2x64xf32>, vector<64x256xf32>, vector<2x256xf32> -> vector<2x256xf32>
    %160 = arith.addf %158, %159 : vector<2x256xf32>
    %161 = arith.negf %160 : vector<2x256xf32>
    %162 = math.exp %161 : vector<2x256xf32>
    %cst_36 = arith.constant 1.000000e+00 : f32
    %163 = vector.broadcast %cst_36 : f32 to vector<2x256xf32>
    %164 = arith.addf %163, %162 : vector<2x256xf32>
    %165 = arith.divf %163, %164 : vector<2x256xf32>
    %166 = math.tanh %160 : vector<2x256xf32>
    %167 = vector.extract_strided_slice %165 {offsets = [0, 64], sizes = [2, 64], strides = [1, 1]} : vector<2x256xf32> to vector<2x64xf32>
    %168 = arith.mulf %167, %140 : vector<2x64xf32>
    %169 = vector.extract_strided_slice %165 {offsets = [0, 0], sizes = [2, 64], strides = [1, 1]} : vector<2x256xf32> to vector<2x64xf32>
    %170 = vector.extract_strided_slice %166 {offsets = [0, 128], sizes = [2, 64], strides = [1, 1]} : vector<2x256xf32> to vector<2x64xf32>
    %171 = arith.mulf %169, %170 : vector<2x64xf32>
    %172 = arith.addf %168, %171 : vector<2x64xf32>
    %173 = vector.extract_strided_slice %165 {offsets = [0, 192], sizes = [2, 64], strides = [1, 1]} : vector<2x256xf32> to vector<2x64xf32>
    %174 = math.tanh %172 : vector<2x64xf32>
    %175 = arith.mulf %173, %174 : vector<2x64xf32>
    %176 = vector.extract_strided_slice %175 {offsets = [0, 0], sizes = [2, 32], strides = [1, 1]} : vector<2x64xf32> to vector<2x32xf32>
    %c4_37 = arith.constant 4 : index
    %c0_38 = arith.constant 0 : index
    %c0_39 = arith.constant 0 : index
    %177 = vector.load %arg4[%c4_37, %c0_38, %c0_39] : memref<8x2x64xf32, #tpu.memory_space<vmem>>, vector<1x2x32xf32>
    %178 = vector.shape_cast %177 : vector<1x2x32xf32> to vector<2x32xf32>
    %179 = vector.shape_cast %176 : vector<2x32xf32> to vector<1x2x32xf32>
    tpu.vector_store %arg4[%c4_37, %c0_38, %c0_39], %179 {strides = array<i32>} : memref<8x2x64xf32, #tpu.memory_space<vmem>>, vector<1x2x32xf32>,
    %180 = vector.extract_strided_slice %175 {offsets = [0, 32], sizes = [2, 32], strides = [1, 1]} : vector<2x64xf32> to vector<2x32xf32>
    %c3_40 = arith.constant 3 : index
    %c0_41 = arith.constant 0 : index
    %c32_42 = arith.constant 32 : index
    %181 = vector.load %arg4[%c3_40, %c0_41, %c32_42] : memref<8x2x64xf32, #tpu.memory_space<vmem>>, vector<1x2x32xf32>
    %182 = vector.shape_cast %181 : vector<1x2x32xf32> to vector<2x32xf32>
    %183 = vector.shape_cast %180 : vector<2x32xf32> to vector<1x2x32xf32>
    tpu.vector_store %arg4[%c3_40, %c0_41, %c32_42], %183 {strides = array<i32>} : memref<8x2x64xf32, #tpu.memory_space<vmem>>, vector<1x2x32xf32>,
    %184 = vector.extract_strided_slice %24 {offsets = [5, 0, 0], sizes = [1, 2, 256], strides = [1, 1, 1]} : vector<8x2x256xf32> to vector<1x2x256xf32>
    %185 = vector.shape_cast %184 : vector<1x2x256xf32> to vector<2x256xf32>
    %186 = vector.extract_strided_slice %24 {offsets = [2, 0, 0], sizes = [1, 2, 256], strides = [1, 1, 1]} : vector<8x2x256xf32> to vector<1x2x256xf32>
    %187 = vector.shape_cast %186 : vector<1x2x256xf32> to vector<2x256xf32>
    %188 = vector.shape_cast %4 : vector<1x256xi1> to vector<1x256xi1>
    %189 = vector.broadcast %188 : vector<1x256xi1> to vector<2x256xi1>
    %190 = arith.select %189, %185, %187 : vector<2x256xi1>, vector<2x256xf32>
    %cst_43 = arith.constant dense<0.000000e+00> : vector<2x256xf32>
    %191 = tpu.matmul %175, %19, %cst_43 {dimension_numbers = #tpu.dot_dimension_numbers<[1], [0], [0], [1], [0, 0, 1, 1], [], []>} : vector<2x64xf32>, vector<64x256xf32>, vector<2x256xf32> -> vector<2x256xf32>
    %192 = arith.addf %190, %191 : vector<2x256xf32>
    %193 = arith.negf %192 : vector<2x256xf32>
    %194 = math.exp %193 : vector<2x256xf32>
    %cst_44 = arith.constant 1.000000e+00 : f32
    %195 = vector.broadcast %cst_44 : f32 to vector<2x256xf32>
    %196 = arith.addf %195, %194 : vector<2x256xf32>
    %197 = arith.divf %195, %196 : vector<2x256xf32>
    %198 = math.tanh %192 : vector<2x256xf32>
    %199 = vector.extract_strided_slice %197 {offsets = [0, 64], sizes = [2, 64], strides = [1, 1]} : vector<2x256xf32> to vector<2x64xf32>
    %200 = arith.mulf %199, %172 : vector<2x64xf32>
    %201 = vector.extract_strided_slice %197 {offsets = [0, 0], sizes = [2, 64], strides = [1, 1]} : vector<2x256xf32> to vector<2x64xf32>
    %202 = vector.extract_strided_slice %198 {offsets = [0, 128], sizes = [2, 64], strides = [1, 1]} : vector<2x256xf32> to vector<2x64xf32>
    %203 = arith.mulf %201, %202 : vector<2x64xf32>
    %204 = arith.addf %200, %203 : vector<2x64xf32>
    %205 = vector.extract_strided_slice %197 {offsets = [0, 192], sizes = [2, 64], strides = [1, 1]} : vector<2x256xf32> to vector<2x64xf32>
    %206 = math.tanh %204 : vector<2x64xf32>
    %207 = arith.mulf %205, %206 : vector<2x64xf32>
    %208 = vector.extract_strided_slice %207 {offsets = [0, 0], sizes = [2, 32], strides = [1, 1]} : vector<2x64xf32> to vector<2x32xf32>
    %c5_45 = arith.constant 5 : index
    %c0_46 = arith.constant 0 : index
    %c0_47 = arith.constant 0 : index
    %209 = vector.load %arg4[%c5_45, %c0_46, %c0_47] : memref<8x2x64xf32, #tpu.memory_space<vmem>>, vector<1x2x32xf32>
    %210 = vector.shape_cast %209 : vector<1x2x32xf32> to vector<2x32xf32>
    %211 = vector.shape_cast %208 : vector<2x32xf32> to vector<1x2x32xf32>
    tpu.vector_store %arg4[%c5_45, %c0_46, %c0_47], %211 {strides = array<i32>} : memref<8x2x64xf32, #tpu.memory_space<vmem>>, vector<1x2x32xf32>,
    %212 = vector.extract_strided_slice %207 {offsets = [0, 32], sizes = [2, 32], strides = [1, 1]} : vector<2x64xf32> to vector<2x32xf32>
    %c2_48 = arith.constant 2 : index
    %c0_49 = arith.constant 0 : index
    %c32_50 = arith.constant 32 : index
    %213 = vector.load %arg4[%c2_48, %c0_49, %c32_50] : memref<8x2x64xf32, #tpu.memory_space<vmem>>, vector<1x2x32xf32>
    %214 = vector.shape_cast %213 : vector<1x2x32xf32> to vector<2x32xf32>
    %215 = vector.shape_cast %212 : vector<2x32xf32> to vector<1x2x32xf32>
    tpu.vector_store %arg4[%c2_48, %c0_49, %c32_50], %215 {strides = array<i32>} : memref<8x2x64xf32, #tpu.memory_space<vmem>>, vector<1x2x32xf32>,
    %216 = vector.extract_strided_slice %24 {offsets = [6, 0, 0], sizes = [1, 2, 256], strides = [1, 1, 1]} : vector<8x2x256xf32> to vector<1x2x256xf32>
    %217 = vector.shape_cast %216 : vector<1x2x256xf32> to vector<2x256xf32>
    %218 = vector.extract_strided_slice %24 {offsets = [1, 0, 0], sizes = [1, 2, 256], strides = [1, 1, 1]} : vector<8x2x256xf32> to vector<1x2x256xf32>
    %219 = vector.shape_cast %218 : vector<1x2x256xf32> to vector<2x256xf32>
    %220 = vector.shape_cast %4 : vector<1x256xi1> to vector<1x256xi1>
    %221 = vector.broadcast %220 : vector<1x256xi1> to vector<2x256xi1>
    %222 = arith.select %221, %217, %219 : vector<2x256xi1>, vector<2x256xf32>
    %cst_51 = arith.constant dense<0.000000e+00> : vector<2x256xf32>
    %223 = tpu.matmul %207, %19, %cst_51 {dimension_numbers = #tpu.dot_dimension_numbers<[1], [0], [0], [1], [0, 0, 1, 1], [], []>} : vector<2x64xf32>, vector<64x256xf32>, vector<2x256xf32> -> vector<2x256xf32>
    %224 = arith.addf %222, %223 : vector<2x256xf32>
    %225 = arith.negf %224 : vector<2x256xf32>
    %226 = math.exp %225 : vector<2x256xf32>
    %cst_52 = arith.constant 1.000000e+00 : f32
    %227 = vector.broadcast %cst_52 : f32 to vector<2x256xf32>
    %228 = arith.addf %227, %226 : vector<2x256xf32>
    %229 = arith.divf %227, %228 : vector<2x256xf32>
    %230 = math.tanh %224 : vector<2x256xf32>
    %231 = vector.extract_strided_slice %229 {offsets = [0, 64], sizes = [2, 64], strides = [1, 1]} : vector<2x256xf32> to vector<2x64xf32>
    %232 = arith.mulf %231, %204 : vector<2x64xf32>
    %233 = vector.extract_strided_slice %229 {offsets = [0, 0], sizes = [2, 64], strides = [1, 1]} : vector<2x256xf32> to vector<2x64xf32>
    %234 = vector.extract_strided_slice %230 {offsets = [0, 128], sizes = [2, 64], strides = [1, 1]} : vector<2x256xf32> to vector<2x64xf32>
    %235 = arith.mulf %233, %234 : vector<2x64xf32>
    %236 = arith.addf %232, %235 : vector<2x64xf32>
    %237 = vector.extract_strided_slice %229 {offsets = [0, 192], sizes = [2, 64], strides = [1, 1]} : vector<2x256xf32> to vector<2x64xf32>
    %238 = math.tanh %236 : vector<2x64xf32>
    %239 = arith.mulf %237, %238 : vector<2x64xf32>
    %240 = vector.extract_strided_slice %239 {offsets = [0, 0], sizes = [2, 32], strides = [1, 1]} : vector<2x64xf32> to vector<2x32xf32>
    %c6_53 = arith.constant 6 : index
    %c0_54 = arith.constant 0 : index
    %c0_55 = arith.constant 0 : index
    %241 = vector.load %arg4[%c6_53, %c0_54, %c0_55] : memref<8x2x64xf32, #tpu.memory_space<vmem>>, vector<1x2x32xf32>
    %242 = vector.shape_cast %241 : vector<1x2x32xf32> to vector<2x32xf32>
    %243 = vector.shape_cast %240 : vector<2x32xf32> to vector<1x2x32xf32>
    tpu.vector_store %arg4[%c6_53, %c0_54, %c0_55], %243 {strides = array<i32>} : memref<8x2x64xf32, #tpu.memory_space<vmem>>, vector<1x2x32xf32>,
    %244 = vector.extract_strided_slice %239 {offsets = [0, 32], sizes = [2, 32], strides = [1, 1]} : vector<2x64xf32> to vector<2x32xf32>
    %c1_56 = arith.constant 1 : index
    %c0_57 = arith.constant 0 : index
    %c32_58 = arith.constant 32 : index
    %245 = vector.load %arg4[%c1_56, %c0_57, %c32_58] : memref<8x2x64xf32, #tpu.memory_space<vmem>>, vector<1x2x32xf32>
    %246 = vector.shape_cast %245 : vector<1x2x32xf32> to vector<2x32xf32>
    %247 = vector.shape_cast %244 : vector<2x32xf32> to vector<1x2x32xf32>
    tpu.vector_store %arg4[%c1_56, %c0_57, %c32_58], %247 {strides = array<i32>} : memref<8x2x64xf32, #tpu.memory_space<vmem>>, vector<1x2x32xf32>,
    %248 = vector.extract_strided_slice %24 {offsets = [7, 0, 0], sizes = [1, 2, 256], strides = [1, 1, 1]} : vector<8x2x256xf32> to vector<1x2x256xf32>
    %249 = vector.shape_cast %248 : vector<1x2x256xf32> to vector<2x256xf32>
    %250 = vector.extract_strided_slice %24 {offsets = [0, 0, 0], sizes = [1, 2, 256], strides = [1, 1, 1]} : vector<8x2x256xf32> to vector<1x2x256xf32>
    %251 = vector.shape_cast %250 : vector<1x2x256xf32> to vector<2x256xf32>
    %252 = vector.shape_cast %4 : vector<1x256xi1> to vector<1x256xi1>
    %253 = vector.broadcast %252 : vector<1x256xi1> to vector<2x256xi1>
    %254 = arith.select %253, %249, %251 : vector<2x256xi1>, vector<2x256xf32>
    %cst_59 = arith.constant dense<0.000000e+00> : vector<2x256xf32>
    %255 = tpu.matmul %239, %19, %cst_59 {dimension_numbers = #tpu.dot_dimension_numbers<[1], [0], [0], [1], [0, 0, 1, 1], [], []>} : vector<2x64xf32>, vector<64x256xf32>, vector<2x256xf32> -> vector<2x256xf32>
    %256 = arith.addf %254, %255 : vector<2x256xf32>
    %257 = arith.negf %256 : vector<2x256xf32>
    %258 = math.exp %257 : vector<2x256xf32>
    %cst_60 = arith.constant 1.000000e+00 : f32
    %259 = vector.broadcast %cst_60 : f32 to vector<2x256xf32>
    %260 = arith.addf %259, %258 : vector<2x256xf32>
    %261 = arith.divf %259, %260 : vector<2x256xf32>
    %262 = math.tanh %256 : vector<2x256xf32>
    %263 = vector.extract_strided_slice %261 {offsets = [0, 64], sizes = [2, 64], strides = [1, 1]} : vector<2x256xf32> to vector<2x64xf32>
    %264 = arith.mulf %263, %236 : vector<2x64xf32>
    %265 = vector.extract_strided_slice %261 {offsets = [0, 0], sizes = [2, 64], strides = [1, 1]} : vector<2x256xf32> to vector<2x64xf32>
    %266 = vector.extract_strided_slice %262 {offsets = [0, 128], sizes = [2, 64], strides = [1, 1]} : vector<2x256xf32> to vector<2x64xf32>
    %267 = arith.mulf %265, %266 : vector<2x64xf32>
    %268 = arith.addf %264, %267 : vector<2x64xf32>
    %269 = vector.extract_strided_slice %261 {offsets = [0, 192], sizes = [2, 64], strides = [1, 1]} : vector<2x256xf32> to vector<2x64xf32>
    %270 = math.tanh %268 : vector<2x64xf32>
    %271 = arith.mulf %269, %270 : vector<2x64xf32>
    %272 = vector.extract_strided_slice %271 {offsets = [0, 0], sizes = [2, 32], strides = [1, 1]} : vector<2x64xf32> to vector<2x32xf32>
    %c7_61 = arith.constant 7 : index
    %c0_62 = arith.constant 0 : index
    %c0_63 = arith.constant 0 : index
    %273 = vector.load %arg4[%c7_61, %c0_62, %c0_63] : memref<8x2x64xf32, #tpu.memory_space<vmem>>, vector<1x2x32xf32>
    %274 = vector.shape_cast %273 : vector<1x2x32xf32> to vector<2x32xf32>
    %275 = vector.shape_cast %272 : vector<2x32xf32> to vector<1x2x32xf32>
    tpu.vector_store %arg4[%c7_61, %c0_62, %c0_63], %275 {strides = array<i32>} : memref<8x2x64xf32, #tpu.memory_space<vmem>>, vector<1x2x32xf32>,
    %276 = vector.extract_strided_slice %271 {offsets = [0, 32], sizes = [2, 32], strides = [1, 1]} : vector<2x64xf32> to vector<2x32xf32>
    %c0_64 = arith.constant 0 : index
    %c0_65 = arith.constant 0 : index
    %c32_66 = arith.constant 32 : index
    %277 = vector.load %arg4[%c0_64, %c0_65, %c32_66] : memref<8x2x64xf32, #tpu.memory_space<vmem>>, vector<1x2x32xf32>
    %278 = vector.shape_cast %277 : vector<1x2x32xf32> to vector<2x32xf32>
    %279 = vector.shape_cast %276 : vector<2x32xf32> to vector<1x2x32xf32>
    tpu.vector_store %arg4[%c0_64, %c0_65, %c32_66], %279 {strides = array<i32>} : memref<8x2x64xf32, #tpu.memory_space<vmem>>, vector<1x2x32xf32>,
    %c0_67 = arith.constant 0 : index
    %c0_68 = arith.constant 0 : index
    %c0_69 = arith.constant 0 : index
    %280 = vector.load %arg4[%c0_67, %c0_68, %c0_69] : memref<8x2x64xf32, #tpu.memory_space<vmem>>, vector<8x2x64xf32>
    %281 = vector.shape_cast %280 : vector<8x2x64xf32> to vector<16x64xf32>
    %c104 = arith.constant 104 : index
    %c0_70 = arith.constant 0 : index
    %282 = vector.load %arg2[%c104, %c0_70] : memref<512x256xf32, #tpu.memory_space<vmem>>, vector<64x256xf32>
    %c168 = arith.constant 168 : index
    %c0_71 = arith.constant 0 : index
    %283 = vector.load %arg2[%c168, %c0_71] : memref<512x256xf32, #tpu.memory_space<vmem>>, vector<64x256xf32>
    %c232 = arith.constant 232 : index
    %c0_72 = arith.constant 0 : index
    %284 = vector.load %arg2[%c232, %c0_72] : memref<512x256xf32, #tpu.memory_space<vmem>>, vector<1x256xf32>
    %cst_73 = arith.constant dense<0.000000e+00> : vector<16x256xf32>
    %285 = tpu.matmul %281, %282, %cst_73 {dimension_numbers = #tpu.dot_dimension_numbers<[1], [0], [0], [1], [0, 0, 1, 1], [], []>} : vector<16x64xf32>, vector<64x256xf32>, vector<16x256xf32> -> vector<16x256xf32>
    %286 = vector.broadcast %284 : vector<1x256xf32> to vector<16x256xf32>
    %287 = arith.addf %285, %286 : vector<16x256xf32>
    %288 = vector.shape_cast %287 : vector<16x256xf32> to vector<8x2x256xf32>
    %cst_74 = arith.constant 0.000000e+00 : f32
    %289 = vector.broadcast %cst_74 : f32 to vector<2x64xf32>
    %290 = vector.extract_strided_slice %288 {offsets = [0, 0, 0], sizes = [1, 2, 256], strides = [1, 1, 1]} : vector<8x2x256xf32> to vector<1x2x256xf32>
    %291 = vector.shape_cast %290 : vector<1x2x256xf32> to vector<2x256xf32>
    %292 = vector.extract_strided_slice %288 {offsets = [7, 0, 0], sizes = [1, 2, 256], strides = [1, 1, 1]} : vector<8x2x256xf32> to vector<1x2x256xf32>
    %293 = vector.shape_cast %292 : vector<1x2x256xf32> to vector<2x256xf32>
    %294 = vector.shape_cast %4 : vector<1x256xi1> to vector<1x256xi1>
    %295 = vector.broadcast %294 : vector<1x256xi1> to vector<2x256xi1>
    %296 = arith.select %295, %291, %293 : vector<2x256xi1>, vector<2x256xf32>
    %297 = arith.negf %296 : vector<2x256xf32>
    %298 = math.exp %297 : vector<2x256xf32>
    %cst_75 = arith.constant 1.000000e+00 : f32
    %299 = vector.broadcast %cst_75 : f32 to vector<2x256xf32>
    %300 = arith.addf %299, %298 : vector<2x256xf32>
    %301 = arith.divf %299, %300 : vector<2x256xf32>
    %302 = math.tanh %296 : vector<2x256xf32>
    %303 = vector.extract_strided_slice %301 {offsets = [0, 64], sizes = [2, 64], strides = [1, 1]} : vector<2x256xf32> to vector<2x64xf32>
    %304 = arith.mulf %303, %289 : vector<2x64xf32>
    %305 = vector.extract_strided_slice %301 {offsets = [0, 0], sizes = [2, 64], strides = [1, 1]} : vector<2x256xf32> to vector<2x64xf32>
    %306 = vector.extract_strided_slice %302 {offsets = [0, 128], sizes = [2, 64], strides = [1, 1]} : vector<2x256xf32> to vector<2x64xf32>
    %307 = arith.mulf %305, %306 : vector<2x64xf32>
    %308 = arith.addf %304, %307 : vector<2x64xf32>
    %309 = vector.extract_strided_slice %301 {offsets = [0, 192], sizes = [2, 64], strides = [1, 1]} : vector<2x256xf32> to vector<2x64xf32>
    %310 = math.tanh %308 : vector<2x64xf32>
    %311 = arith.mulf %309, %310 : vector<2x64xf32>
    %312 = vector.extract_strided_slice %311 {offsets = [0, 0], sizes = [2, 32], strides = [1, 1]} : vector<2x64xf32> to vector<2x32xf32>
    %c0_76 = arith.constant 0 : index
    %c0_77 = arith.constant 0 : index
    %c0_78 = arith.constant 0 : index
    %313 = vector.load %arg4[%c0_76, %c0_77, %c0_78] : memref<8x2x64xf32, #tpu.memory_space<vmem>>, vector<1x2x32xf32>
    %314 = vector.shape_cast %313 : vector<1x2x32xf32> to vector<2x32xf32>
    %315 = vector.shape_cast %312 : vector<2x32xf32> to vector<1x2x32xf32>
    tpu.vector_store %arg4[%c0_76, %c0_77, %c0_78], %315 {strides = array<i32>} : memref<8x2x64xf32, #tpu.memory_space<vmem>>, vector<1x2x32xf32>,
    %316 = vector.extract_strided_slice %311 {offsets = [0, 32], sizes = [2, 32], strides = [1, 1]} : vector<2x64xf32> to vector<2x32xf32>
    %c7_79 = arith.constant 7 : index
    %c0_80 = arith.constant 0 : index
    %c32_81 = arith.constant 32 : index
    %317 = vector.load %arg4[%c7_79, %c0_80, %c32_81] : memref<8x2x64xf32, #tpu.memory_space<vmem>>, vector<1x2x32xf32>
    %318 = vector.shape_cast %317 : vector<1x2x32xf32> to vector<2x32xf32>
    %319 = vector.shape_cast %316 : vector<2x32xf32> to vector<1x2x32xf32>
    tpu.vector_store %arg4[%c7_79, %c0_80, %c32_81], %319 {strides = array<i32>} : memref<8x2x64xf32, #tpu.memory_space<vmem>>, vector<1x2x32xf32>,
    %320 = vector.extract_strided_slice %288 {offsets = [1, 0, 0], sizes = [1, 2, 256], strides = [1, 1, 1]} : vector<8x2x256xf32> to vector<1x2x256xf32>
    %321 = vector.shape_cast %320 : vector<1x2x256xf32> to vector<2x256xf32>
    %322 = vector.extract_strided_slice %288 {offsets = [6, 0, 0], sizes = [1, 2, 256], strides = [1, 1, 1]} : vector<8x2x256xf32> to vector<1x2x256xf32>
    %323 = vector.shape_cast %322 : vector<1x2x256xf32> to vector<2x256xf32>
    %324 = vector.shape_cast %4 : vector<1x256xi1> to vector<1x256xi1>
    %325 = vector.broadcast %324 : vector<1x256xi1> to vector<2x256xi1>
    %326 = arith.select %325, %321, %323 : vector<2x256xi1>, vector<2x256xf32>
    %cst_82 = arith.constant dense<0.000000e+00> : vector<2x256xf32>
    %327 = tpu.matmul %311, %283, %cst_82 {dimension_numbers = #tpu.dot_dimension_numbers<[1], [0], [0], [1], [0, 0, 1, 1], [], []>} : vector<2x64xf32>, vector<64x256xf32>, vector<2x256xf32> -> vector<2x256xf32>
    %328 = arith.addf %326, %327 : vector<2x256xf32>
    %329 = arith.negf %328 : vector<2x256xf32>
    %330 = math.exp %329 : vector<2x256xf32>
    %cst_83 = arith.constant 1.000000e+00 : f32
    %331 = vector.broadcast %cst_83 : f32 to vector<2x256xf32>
    %332 = arith.addf %331, %330 : vector<2x256xf32>
    %333 = arith.divf %331, %332 : vector<2x256xf32>
    %334 = math.tanh %328 : vector<2x256xf32>
    %335 = vector.extract_strided_slice %333 {offsets = [0, 64], sizes = [2, 64], strides = [1, 1]} : vector<2x256xf32> to vector<2x64xf32>
    %336 = arith.mulf %335, %308 : vector<2x64xf32>
    %337 = vector.extract_strided_slice %333 {offsets = [0, 0], sizes = [2, 64], strides = [1, 1]} : vector<2x256xf32> to vector<2x64xf32>
    %338 = vector.extract_strided_slice %334 {offsets = [0, 128], sizes = [2, 64], strides = [1, 1]} : vector<2x256xf32> to vector<2x64xf32>
    %339 = arith.mulf %337, %338 : vector<2x64xf32>
    %340 = arith.addf %336, %339 : vector<2x64xf32>
    %341 = vector.extract_strided_slice %333 {offsets = [0, 192], sizes = [2, 64], strides = [1, 1]} : vector<2x256xf32> to vector<2x64xf32>
    %342 = math.tanh %340 : vector<2x64xf32>
    %343 = arith.mulf %341, %342 : vector<2x64xf32>
    %344 = vector.extract_strided_slice %343 {offsets = [0, 0], sizes = [2, 32], strides = [1, 1]} : vector<2x64xf32> to vector<2x32xf32>
    %c1_84 = arith.constant 1 : index
    %c0_85 = arith.constant 0 : index
    %c0_86 = arith.constant 0 : index
    %345 = vector.load %arg4[%c1_84, %c0_85, %c0_86] : memref<8x2x64xf32, #tpu.memory_space<vmem>>, vector<1x2x32xf32>
    %346 = vector.shape_cast %345 : vector<1x2x32xf32> to vector<2x32xf32>
    %347 = vector.shape_cast %344 : vector<2x32xf32> to vector<1x2x32xf32>
    tpu.vector_store %arg4[%c1_84, %c0_85, %c0_86], %347 {strides = array<i32>} : memref<8x2x64xf32, #tpu.memory_space<vmem>>, vector<1x2x32xf32>,
    %348 = vector.extract_strided_slice %343 {offsets = [0, 32], sizes = [2, 32], strides = [1, 1]} : vector<2x64xf32> to vector<2x32xf32>
    %c6_87 = arith.constant 6 : index
    %c0_88 = arith.constant 0 : index
    %c32_89 = arith.constant 32 : index
    %349 = vector.load %arg4[%c6_87, %c0_88, %c32_89] : memref<8x2x64xf32, #tpu.memory_space<vmem>>, vector<1x2x32xf32>
    %350 = vector.shape_cast %349 : vector<1x2x32xf32> to vector<2x32xf32>
    %351 = vector.shape_cast %348 : vector<2x32xf32> to vector<1x2x32xf32>
    tpu.vector_store %arg4[%c6_87, %c0_88, %c32_89], %351 {strides = array<i32>} : memref<8x2x64xf32, #tpu.memory_space<vmem>>, vector<1x2x32xf32>,
    %352 = vector.extract_strided_slice %288 {offsets = [2, 0, 0], sizes = [1, 2, 256], strides = [1, 1, 1]} : vector<8x2x256xf32> to vector<1x2x256xf32>
    %353 = vector.shape_cast %352 : vector<1x2x256xf32> to vector<2x256xf32>
    %354 = vector.extract_strided_slice %288 {offsets = [5, 0, 0], sizes = [1, 2, 256], strides = [1, 1, 1]} : vector<8x2x256xf32> to vector<1x2x256xf32>
    %355 = vector.shape_cast %354 : vector<1x2x256xf32> to vector<2x256xf32>
    %356 = vector.shape_cast %4 : vector<1x256xi1> to vector<1x256xi1>
    %357 = vector.broadcast %356 : vector<1x256xi1> to vector<2x256xi1>
    %358 = arith.select %357, %353, %355 : vector<2x256xi1>, vector<2x256xf32>
    %cst_90 = arith.constant dense<0.000000e+00> : vector<2x256xf32>
    %359 = tpu.matmul %343, %283, %cst_90 {dimension_numbers = #tpu.dot_dimension_numbers<[1], [0], [0], [1], [0, 0, 1, 1], [], []>} : vector<2x64xf32>, vector<64x256xf32>, vector<2x256xf32> -> vector<2x256xf32>
    %360 = arith.addf %358, %359 : vector<2x256xf32>
    %361 = arith.negf %360 : vector<2x256xf32>
    %362 = math.exp %361 : vector<2x256xf32>
    %cst_91 = arith.constant 1.000000e+00 : f32
    %363 = vector.broadcast %cst_91 : f32 to vector<2x256xf32>
    %364 = arith.addf %363, %362 : vector<2x256xf32>
    %365 = arith.divf %363, %364 : vector<2x256xf32>
    %366 = math.tanh %360 : vector<2x256xf32>
    %367 = vector.extract_strided_slice %365 {offsets = [0, 64], sizes = [2, 64], strides = [1, 1]} : vector<2x256xf32> to vector<2x64xf32>
    %368 = arith.mulf %367, %340 : vector<2x64xf32>
    %369 = vector.extract_strided_slice %365 {offsets = [0, 0], sizes = [2, 64], strides = [1, 1]} : vector<2x256xf32> to vector<2x64xf32>
    %370 = vector.extract_strided_slice %366 {offsets = [0, 128], sizes = [2, 64], strides = [1, 1]} : vector<2x256xf32> to vector<2x64xf32>
    %371 = arith.mulf %369, %370 : vector<2x64xf32>
    %372 = arith.addf %368, %371 : vector<2x64xf32>
    %373 = vector.extract_strided_slice %365 {offsets = [0, 192], sizes = [2, 64], strides = [1, 1]} : vector<2x256xf32> to vector<2x64xf32>
    %374 = math.tanh %372 : vector<2x64xf32>
    %375 = arith.mulf %373, %374 : vector<2x64xf32>
    %376 = vector.extract_strided_slice %375 {offsets = [0, 0], sizes = [2, 32], strides = [1, 1]} : vector<2x64xf32> to vector<2x32xf32>
    %c2_92 = arith.constant 2 : index
    %c0_93 = arith.constant 0 : index
    %c0_94 = arith.constant 0 : index
    %377 = vector.load %arg4[%c2_92, %c0_93, %c0_94] : memref<8x2x64xf32, #tpu.memory_space<vmem>>, vector<1x2x32xf32>
    %378 = vector.shape_cast %377 : vector<1x2x32xf32> to vector<2x32xf32>
    %379 = vector.shape_cast %376 : vector<2x32xf32> to vector<1x2x32xf32>
    tpu.vector_store %arg4[%c2_92, %c0_93, %c0_94], %379 {strides = array<i32>} : memref<8x2x64xf32, #tpu.memory_space<vmem>>, vector<1x2x32xf32>,
    %380 = vector.extract_strided_slice %375 {offsets = [0, 32], sizes = [2, 32], strides = [1, 1]} : vector<2x64xf32> to vector<2x32xf32>
    %c5_95 = arith.constant 5 : index
    %c0_96 = arith.constant 0 : index
    %c32_97 = arith.constant 32 : index
    %381 = vector.load %arg4[%c5_95, %c0_96, %c32_97] : memref<8x2x64xf32, #tpu.memory_space<vmem>>, vector<1x2x32xf32>
    %382 = vector.shape_cast %381 : vector<1x2x32xf32> to vector<2x32xf32>
    %383 = vector.shape_cast %380 : vector<2x32xf32> to vector<1x2x32xf32>
    tpu.vector_store %arg4[%c5_95, %c0_96, %c32_97], %383 {strides = array<i32>} : memref<8x2x64xf32, #tpu.memory_space<vmem>>, vector<1x2x32xf32>,
    %384 = vector.extract_strided_slice %288 {offsets = [3, 0, 0], sizes = [1, 2, 256], strides = [1, 1, 1]} : vector<8x2x256xf32> to vector<1x2x256xf32>
    %385 = vector.shape_cast %384 : vector<1x2x256xf32> to vector<2x256xf32>
    %386 = vector.extract_strided_slice %288 {offsets = [4, 0, 0], sizes = [1, 2, 256], strides = [1, 1, 1]} : vector<8x2x256xf32> to vector<1x2x256xf32>
    %387 = vector.shape_cast %386 : vector<1x2x256xf32> to vector<2x256xf32>
    %388 = vector.shape_cast %4 : vector<1x256xi1> to vector<1x256xi1>
    %389 = vector.broadcast %388 : vector<1x256xi1> to vector<2x256xi1>
    %390 = arith.select %389, %385, %387 : vector<2x256xi1>, vector<2x256xf32>
    %cst_98 = arith.constant dense<0.000000e+00> : vector<2x256xf32>
    %391 = tpu.matmul %375, %283, %cst_98 {dimension_numbers = #tpu.dot_dimension_numbers<[1], [0], [0], [1], [0, 0, 1, 1], [], []>} : vector<2x64xf32>, vector<64x256xf32>, vector<2x256xf32> -> vector<2x256xf32>
    %392 = arith.addf %390, %391 : vector<2x256xf32>
    %393 = arith.negf %392 : vector<2x256xf32>
    %394 = math.exp %393 : vector<2x256xf32>
    %cst_99 = arith.constant 1.000000e+00 : f32
    %395 = vector.broadcast %cst_99 : f32 to vector<2x256xf32>
    %396 = arith.addf %395, %394 : vector<2x256xf32>
    %397 = arith.divf %395, %396 : vector<2x256xf32>
    %398 = math.tanh %392 : vector<2x256xf32>
    %399 = vector.extract_strided_slice %397 {offsets = [0, 64], sizes = [2, 64], strides = [1, 1]} : vector<2x256xf32> to vector<2x64xf32>
    %400 = arith.mulf %399, %372 : vector<2x64xf32>
    %401 = vector.extract_strided_slice %397 {offsets = [0, 0], sizes = [2, 64], strides = [1, 1]} : vector<2x256xf32> to vector<2x64xf32>
    %402 = vector.extract_strided_slice %398 {offsets = [0, 128], sizes = [2, 64], strides = [1, 1]} : vector<2x256xf32> to vector<2x64xf32>
    %403 = arith.mulf %401, %402 : vector<2x64xf32>
    %404 = arith.addf %400, %403 : vector<2x64xf32>
    %405 = vector.extract_strided_slice %397 {offsets = [0, 192], sizes = [2, 64], strides = [1, 1]} : vector<2x256xf32> to vector<2x64xf32>
    %406 = math.tanh %404 : vector<2x64xf32>
    %407 = arith.mulf %405, %406 : vector<2x64xf32>
    %408 = vector.extract_strided_slice %407 {offsets = [0, 0], sizes = [2, 32], strides = [1, 1]} : vector<2x64xf32> to vector<2x32xf32>
    %c3_100 = arith.constant 3 : index
    %c0_101 = arith.constant 0 : index
    %c0_102 = arith.constant 0 : index
    %409 = vector.load %arg4[%c3_100, %c0_101, %c0_102] : memref<8x2x64xf32, #tpu.memory_space<vmem>>, vector<1x2x32xf32>
    %410 = vector.shape_cast %409 : vector<1x2x32xf32> to vector<2x32xf32>
    %411 = vector.shape_cast %408 : vector<2x32xf32> to vector<1x2x32xf32>
    tpu.vector_store %arg4[%c3_100, %c0_101, %c0_102], %411 {strides = array<i32>} : memref<8x2x64xf32, #tpu.memory_space<vmem>>, vector<1x2x32xf32>,
    %412 = vector.extract_strided_slice %407 {offsets = [0, 32], sizes = [2, 32], strides = [1, 1]} : vector<2x64xf32> to vector<2x32xf32>
    %c4_103 = arith.constant 4 : index
    %c0_104 = arith.constant 0 : index
    %c32_105 = arith.constant 32 : index
    %413 = vector.load %arg4[%c4_103, %c0_104, %c32_105] : memref<8x2x64xf32, #tpu.memory_space<vmem>>, vector<1x2x32xf32>
    %414 = vector.shape_cast %413 : vector<1x2x32xf32> to vector<2x32xf32>
    %415 = vector.shape_cast %412 : vector<2x32xf32> to vector<1x2x32xf32>
    tpu.vector_store %arg4[%c4_103, %c0_104, %c32_105], %415 {strides = array<i32>} : memref<8x2x64xf32, #tpu.memory_space<vmem>>, vector<1x2x32xf32>,
    %416 = vector.extract_strided_slice %288 {offsets = [4, 0, 0], sizes = [1, 2, 256], strides = [1, 1, 1]} : vector<8x2x256xf32> to vector<1x2x256xf32>
    %417 = vector.shape_cast %416 : vector<1x2x256xf32> to vector<2x256xf32>
    %418 = vector.extract_strided_slice %288 {offsets = [3, 0, 0], sizes = [1, 2, 256], strides = [1, 1, 1]} : vector<8x2x256xf32> to vector<1x2x256xf32>
    %419 = vector.shape_cast %418 : vector<1x2x256xf32> to vector<2x256xf32>
    %420 = vector.shape_cast %4 : vector<1x256xi1> to vector<1x256xi1>
    %421 = vector.broadcast %420 : vector<1x256xi1> to vector<2x256xi1>
    %422 = arith.select %421, %417, %419 : vector<2x256xi1>, vector<2x256xf32>
    %cst_106 = arith.constant dense<0.000000e+00> : vector<2x256xf32>
    %423 = tpu.matmul %407, %283, %cst_106 {dimension_numbers = #tpu.dot_dimension_numbers<[1], [0], [0], [1], [0, 0, 1, 1], [], []>} : vector<2x64xf32>, vector<64x256xf32>, vector<2x256xf32> -> vector<2x256xf32>
    %424 = arith.addf %422, %423 : vector<2x256xf32>
    %425 = arith.negf %424 : vector<2x256xf32>
    %426 = math.exp %425 : vector<2x256xf32>
    %cst_107 = arith.constant 1.000000e+00 : f32
    %427 = vector.broadcast %cst_107 : f32 to vector<2x256xf32>
    %428 = arith.addf %427, %426 : vector<2x256xf32>
    %429 = arith.divf %427, %428 : vector<2x256xf32>
    %430 = math.tanh %424 : vector<2x256xf32>
    %431 = vector.extract_strided_slice %429 {offsets = [0, 64], sizes = [2, 64], strides = [1, 1]} : vector<2x256xf32> to vector<2x64xf32>
    %432 = arith.mulf %431, %404 : vector<2x64xf32>
    %433 = vector.extract_strided_slice %429 {offsets = [0, 0], sizes = [2, 64], strides = [1, 1]} : vector<2x256xf32> to vector<2x64xf32>
    %434 = vector.extract_strided_slice %430 {offsets = [0, 128], sizes = [2, 64], strides = [1, 1]} : vector<2x256xf32> to vector<2x64xf32>
    %435 = arith.mulf %433, %434 : vector<2x64xf32>
    %436 = arith.addf %432, %435 : vector<2x64xf32>
    %437 = vector.extract_strided_slice %429 {offsets = [0, 192], sizes = [2, 64], strides = [1, 1]} : vector<2x256xf32> to vector<2x64xf32>
    %438 = math.tanh %436 : vector<2x64xf32>
    %439 = arith.mulf %437, %438 : vector<2x64xf32>
    %440 = vector.extract_strided_slice %439 {offsets = [0, 0], sizes = [2, 32], strides = [1, 1]} : vector<2x64xf32> to vector<2x32xf32>
    %c4_108 = arith.constant 4 : index
    %c0_109 = arith.constant 0 : index
    %c0_110 = arith.constant 0 : index
    %441 = vector.load %arg4[%c4_108, %c0_109, %c0_110] : memref<8x2x64xf32, #tpu.memory_space<vmem>>, vector<1x2x32xf32>
    %442 = vector.shape_cast %441 : vector<1x2x32xf32> to vector<2x32xf32>
    %443 = vector.shape_cast %440 : vector<2x32xf32> to vector<1x2x32xf32>
    tpu.vector_store %arg4[%c4_108, %c0_109, %c0_110], %443 {strides = array<i32>} : memref<8x2x64xf32, #tpu.memory_space<vmem>>, vector<1x2x32xf32>,
    %444 = vector.extract_strided_slice %439 {offsets = [0, 32], sizes = [2, 32], strides = [1, 1]} : vector<2x64xf32> to vector<2x32xf32>
    %c3_111 = arith.constant 3 : index
    %c0_112 = arith.constant 0 : index
    %c32_113 = arith.constant 32 : index
    %445 = vector.load %arg4[%c3_111, %c0_112, %c32_113] : memref<8x2x64xf32, #tpu.memory_space<vmem>>, vector<1x2x32xf32>
    %446 = vector.shape_cast %445 : vector<1x2x32xf32> to vector<2x32xf32>
    %447 = vector.shape_cast %444 : vector<2x32xf32> to vector<1x2x32xf32>
    tpu.vector_store %arg4[%c3_111, %c0_112, %c32_113], %447 {strides = array<i32>} : memref<8x2x64xf32, #tpu.memory_space<vmem>>, vector<1x2x32xf32>,
    %448 = vector.extract_strided_slice %288 {offsets = [5, 0, 0], sizes = [1, 2, 256], strides = [1, 1, 1]} : vector<8x2x256xf32> to vector<1x2x256xf32>
    %449 = vector.shape_cast %448 : vector<1x2x256xf32> to vector<2x256xf32>
    %450 = vector.extract_strided_slice %288 {offsets = [2, 0, 0], sizes = [1, 2, 256], strides = [1, 1, 1]} : vector<8x2x256xf32> to vector<1x2x256xf32>
    %451 = vector.shape_cast %450 : vector<1x2x256xf32> to vector<2x256xf32>
    %452 = vector.shape_cast %4 : vector<1x256xi1> to vector<1x256xi1>
    %453 = vector.broadcast %452 : vector<1x256xi1> to vector<2x256xi1>
    %454 = arith.select %453, %449, %451 : vector<2x256xi1>, vector<2x256xf32>
    %cst_114 = arith.constant dense<0.000000e+00> : vector<2x256xf32>
    %455 = tpu.matmul %439, %283, %cst_114 {dimension_numbers = #tpu.dot_dimension_numbers<[1], [0], [0], [1], [0, 0, 1, 1], [], []>} : vector<2x64xf32>, vector<64x256xf32>, vector<2x256xf32> -> vector<2x256xf32>
    %456 = arith.addf %454, %455 : vector<2x256xf32>
    %457 = arith.negf %456 : vector<2x256xf32>
    %458 = math.exp %457 : vector<2x256xf32>
    %cst_115 = arith.constant 1.000000e+00 : f32
    %459 = vector.broadcast %cst_115 : f32 to vector<2x256xf32>
    %460 = arith.addf %459, %458 : vector<2x256xf32>
    %461 = arith.divf %459, %460 : vector<2x256xf32>
    %462 = math.tanh %456 : vector<2x256xf32>
    %463 = vector.extract_strided_slice %461 {offsets = [0, 64], sizes = [2, 64], strides = [1, 1]} : vector<2x256xf32> to vector<2x64xf32>
    %464 = arith.mulf %463, %436 : vector<2x64xf32>
    %465 = vector.extract_strided_slice %461 {offsets = [0, 0], sizes = [2, 64], strides = [1, 1]} : vector<2x256xf32> to vector<2x64xf32>
    %466 = vector.extract_strided_slice %462 {offsets = [0, 128], sizes = [2, 64], strides = [1, 1]} : vector<2x256xf32> to vector<2x64xf32>
    %467 = arith.mulf %465, %466 : vector<2x64xf32>
    %468 = arith.addf %464, %467 : vector<2x64xf32>
    %469 = vector.extract_strided_slice %461 {offsets = [0, 192], sizes = [2, 64], strides = [1, 1]} : vector<2x256xf32> to vector<2x64xf32>
    %470 = math.tanh %468 : vector<2x64xf32>
    %471 = arith.mulf %469, %470 : vector<2x64xf32>
    %472 = vector.extract_strided_slice %471 {offsets = [0, 0], sizes = [2, 32], strides = [1, 1]} : vector<2x64xf32> to vector<2x32xf32>
    %c5_116 = arith.constant 5 : index
    %c0_117 = arith.constant 0 : index
    %c0_118 = arith.constant 0 : index
    %473 = vector.load %arg4[%c5_116, %c0_117, %c0_118] : memref<8x2x64xf32, #tpu.memory_space<vmem>>, vector<1x2x32xf32>
    %474 = vector.shape_cast %473 : vector<1x2x32xf32> to vector<2x32xf32>
    %475 = vector.shape_cast %472 : vector<2x32xf32> to vector<1x2x32xf32>
    tpu.vector_store %arg4[%c5_116, %c0_117, %c0_118], %475 {strides = array<i32>} : memref<8x2x64xf32, #tpu.memory_space<vmem>>, vector<1x2x32xf32>,
    %476 = vector.extract_strided_slice %471 {offsets = [0, 32], sizes = [2, 32], strides = [1, 1]} : vector<2x64xf32> to vector<2x32xf32>
    %c2_119 = arith.constant 2 : index
    %c0_120 = arith.constant 0 : index
    %c32_121 = arith.constant 32 : index
    %477 = vector.load %arg4[%c2_119, %c0_120, %c32_121] : memref<8x2x64xf32, #tpu.memory_space<vmem>>, vector<1x2x32xf32>
    %478 = vector.shape_cast %477 : vector<1x2x32xf32> to vector<2x32xf32>
    %479 = vector.shape_cast %476 : vector<2x32xf32> to vector<1x2x32xf32>
    tpu.vector_store %arg4[%c2_119, %c0_120, %c32_121], %479 {strides = array<i32>} : memref<8x2x64xf32, #tpu.memory_space<vmem>>, vector<1x2x32xf32>,
    %480 = vector.extract_strided_slice %288 {offsets = [6, 0, 0], sizes = [1, 2, 256], strides = [1, 1, 1]} : vector<8x2x256xf32> to vector<1x2x256xf32>
    %481 = vector.shape_cast %480 : vector<1x2x256xf32> to vector<2x256xf32>
    %482 = vector.extract_strided_slice %288 {offsets = [1, 0, 0], sizes = [1, 2, 256], strides = [1, 1, 1]} : vector<8x2x256xf32> to vector<1x2x256xf32>
    %483 = vector.shape_cast %482 : vector<1x2x256xf32> to vector<2x256xf32>
    %484 = vector.shape_cast %4 : vector<1x256xi1> to vector<1x256xi1>
    %485 = vector.broadcast %484 : vector<1x256xi1> to vector<2x256xi1>
    %486 = arith.select %485, %481, %483 : vector<2x256xi1>, vector<2x256xf32>
    %cst_122 = arith.constant dense<0.000000e+00> : vector<2x256xf32>
    %487 = tpu.matmul %471, %283, %cst_122 {dimension_numbers = #tpu.dot_dimension_numbers<[1], [0], [0], [1], [0, 0, 1, 1], [], []>} : vector<2x64xf32>, vector<64x256xf32>, vector<2x256xf32> -> vector<2x256xf32>
    %488 = arith.addf %486, %487 : vector<2x256xf32>
    %489 = arith.negf %488 : vector<2x256xf32>
    %490 = math.exp %489 : vector<2x256xf32>
    %cst_123 = arith.constant 1.000000e+00 : f32
    %491 = vector.broadcast %cst_123 : f32 to vector<2x256xf32>
    %492 = arith.addf %491, %490 : vector<2x256xf32>
    %493 = arith.divf %491, %492 : vector<2x256xf32>
    %494 = math.tanh %488 : vector<2x256xf32>
    %495 = vector.extract_strided_slice %493 {offsets = [0, 64], sizes = [2, 64], strides = [1, 1]} : vector<2x256xf32> to vector<2x64xf32>
    %496 = arith.mulf %495, %468 : vector<2x64xf32>
    %497 = vector.extract_strided_slice %493 {offsets = [0, 0], sizes = [2, 64], strides = [1, 1]} : vector<2x256xf32> to vector<2x64xf32>
    %498 = vector.extract_strided_slice %494 {offsets = [0, 128], sizes = [2, 64], strides = [1, 1]} : vector<2x256xf32> to vector<2x64xf32>
    %499 = arith.mulf %497, %498 : vector<2x64xf32>
    %500 = arith.addf %496, %499 : vector<2x64xf32>
    %501 = vector.extract_strided_slice %493 {offsets = [0, 192], sizes = [2, 64], strides = [1, 1]} : vector<2x256xf32> to vector<2x64xf32>
    %502 = math.tanh %500 : vector<2x64xf32>
    %503 = arith.mulf %501, %502 : vector<2x64xf32>
    %504 = vector.extract_strided_slice %503 {offsets = [0, 0], sizes = [2, 32], strides = [1, 1]} : vector<2x64xf32> to vector<2x32xf32>
    %c6_124 = arith.constant 6 : index
    %c0_125 = arith.constant 0 : index
    %c0_126 = arith.constant 0 : index
    %505 = vector.load %arg4[%c6_124, %c0_125, %c0_126] : memref<8x2x64xf32, #tpu.memory_space<vmem>>, vector<1x2x32xf32>
    %506 = vector.shape_cast %505 : vector<1x2x32xf32> to vector<2x32xf32>
    %507 = vector.shape_cast %504 : vector<2x32xf32> to vector<1x2x32xf32>
    tpu.vector_store %arg4[%c6_124, %c0_125, %c0_126], %507 {strides = array<i32>} : memref<8x2x64xf32, #tpu.memory_space<vmem>>, vector<1x2x32xf32>,
    %508 = vector.extract_strided_slice %503 {offsets = [0, 32], sizes = [2, 32], strides = [1, 1]} : vector<2x64xf32> to vector<2x32xf32>
    %c1_127 = arith.constant 1 : index
    %c0_128 = arith.constant 0 : index
    %c32_129 = arith.constant 32 : index
    %509 = vector.load %arg4[%c1_127, %c0_128, %c32_129] : memref<8x2x64xf32, #tpu.memory_space<vmem>>, vector<1x2x32xf32>
    %510 = vector.shape_cast %509 : vector<1x2x32xf32> to vector<2x32xf32>
    %511 = vector.shape_cast %508 : vector<2x32xf32> to vector<1x2x32xf32>
    tpu.vector_store %arg4[%c1_127, %c0_128, %c32_129], %511 {strides = array<i32>} : memref<8x2x64xf32, #tpu.memory_space<vmem>>, vector<1x2x32xf32>,
    %512 = vector.extract_strided_slice %288 {offsets = [7, 0, 0], sizes = [1, 2, 256], strides = [1, 1, 1]} : vector<8x2x256xf32> to vector<1x2x256xf32>
    %513 = vector.shape_cast %512 : vector<1x2x256xf32> to vector<2x256xf32>
    %514 = vector.extract_strided_slice %288 {offsets = [0, 0, 0], sizes = [1, 2, 256], strides = [1, 1, 1]} : vector<8x2x256xf32> to vector<1x2x256xf32>
    %515 = vector.shape_cast %514 : vector<1x2x256xf32> to vector<2x256xf32>
    %516 = vector.shape_cast %4 : vector<1x256xi1> to vector<1x256xi1>
    %517 = vector.broadcast %516 : vector<1x256xi1> to vector<2x256xi1>
    %518 = arith.select %517, %513, %515 : vector<2x256xi1>, vector<2x256xf32>
    %cst_130 = arith.constant dense<0.000000e+00> : vector<2x256xf32>
    %519 = tpu.matmul %503, %283, %cst_130 {dimension_numbers = #tpu.dot_dimension_numbers<[1], [0], [0], [1], [0, 0, 1, 1], [], []>} : vector<2x64xf32>, vector<64x256xf32>, vector<2x256xf32> -> vector<2x256xf32>
    %520 = arith.addf %518, %519 : vector<2x256xf32>
    %521 = arith.negf %520 : vector<2x256xf32>
    %522 = math.exp %521 : vector<2x256xf32>
    %cst_131 = arith.constant 1.000000e+00 : f32
    %523 = vector.broadcast %cst_131 : f32 to vector<2x256xf32>
    %524 = arith.addf %523, %522 : vector<2x256xf32>
    %525 = arith.divf %523, %524 : vector<2x256xf32>
    %526 = math.tanh %520 : vector<2x256xf32>
    %527 = vector.extract_strided_slice %525 {offsets = [0, 64], sizes = [2, 64], strides = [1, 1]} : vector<2x256xf32> to vector<2x64xf32>
    %528 = arith.mulf %527, %500 : vector<2x64xf32>
    %529 = vector.extract_strided_slice %525 {offsets = [0, 0], sizes = [2, 64], strides = [1, 1]} : vector<2x256xf32> to vector<2x64xf32>
    %530 = vector.extract_strided_slice %526 {offsets = [0, 128], sizes = [2, 64], strides = [1, 1]} : vector<2x256xf32> to vector<2x64xf32>
    %531 = arith.mulf %529, %530 : vector<2x64xf32>
    %532 = arith.addf %528, %531 : vector<2x64xf32>
    %533 = vector.extract_strided_slice %525 {offsets = [0, 192], sizes = [2, 64], strides = [1, 1]} : vector<2x256xf32> to vector<2x64xf32>
    %534 = math.tanh %532 : vector<2x64xf32>
    %535 = arith.mulf %533, %534 : vector<2x64xf32>
    %536 = vector.extract_strided_slice %535 {offsets = [0, 0], sizes = [2, 32], strides = [1, 1]} : vector<2x64xf32> to vector<2x32xf32>
    %c7_132 = arith.constant 7 : index
    %c0_133 = arith.constant 0 : index
    %c0_134 = arith.constant 0 : index
    %537 = vector.load %arg4[%c7_132, %c0_133, %c0_134] : memref<8x2x64xf32, #tpu.memory_space<vmem>>, vector<1x2x32xf32>
    %538 = vector.shape_cast %537 : vector<1x2x32xf32> to vector<2x32xf32>
    %539 = vector.shape_cast %536 : vector<2x32xf32> to vector<1x2x32xf32>
    tpu.vector_store %arg4[%c7_132, %c0_133, %c0_134], %539 {strides = array<i32>} : memref<8x2x64xf32, #tpu.memory_space<vmem>>, vector<1x2x32xf32>,
    %540 = vector.extract_strided_slice %535 {offsets = [0, 32], sizes = [2, 32], strides = [1, 1]} : vector<2x64xf32> to vector<2x32xf32>
    %c0_135 = arith.constant 0 : index
    %c0_136 = arith.constant 0 : index
    %c32_137 = arith.constant 32 : index
    %541 = vector.load %arg4[%c0_135, %c0_136, %c32_137] : memref<8x2x64xf32, #tpu.memory_space<vmem>>, vector<1x2x32xf32>
    %542 = vector.shape_cast %541 : vector<1x2x32xf32> to vector<2x32xf32>
    %543 = vector.shape_cast %540 : vector<2x32xf32> to vector<1x2x32xf32>
    tpu.vector_store %arg4[%c0_135, %c0_136, %c32_137], %543 {strides = array<i32>} : memref<8x2x64xf32, #tpu.memory_space<vmem>>, vector<1x2x32xf32>,
    %c0_138 = arith.constant 0 : index
    %c0_139 = arith.constant 0 : index
    %c0_140 = arith.constant 0 : index
    %544 = vector.load %arg4[%c0_138, %c0_139, %c0_140] : memref<8x2x64xf32, #tpu.memory_space<vmem>>, vector<8x2x64xf32>
    %545 = vector.shape_cast %544 : vector<8x2x64xf32> to vector<16x64xf32>
    %c240 = arith.constant 240 : index
    %c0_141 = arith.constant 0 : index
    %546 = vector.load %arg2[%c240, %c0_141] : memref<512x256xf32, #tpu.memory_space<vmem>>, vector<64x256xf32>
    %c304 = arith.constant 304 : index
    %c0_142 = arith.constant 0 : index
    %547 = vector.load %arg2[%c304, %c0_142] : memref<512x256xf32, #tpu.memory_space<vmem>>, vector<64x256xf32>
    %c368 = arith.constant 368 : index
    %c0_143 = arith.constant 0 : index
    %548 = vector.load %arg2[%c368, %c0_143] : memref<512x256xf32, #tpu.memory_space<vmem>>, vector<1x256xf32>
    %cst_144 = arith.constant dense<0.000000e+00> : vector<16x256xf32>
    %549 = tpu.matmul %545, %546, %cst_144 {dimension_numbers = #tpu.dot_dimension_numbers<[1], [0], [0], [1], [0, 0, 1, 1], [], []>} : vector<16x64xf32>, vector<64x256xf32>, vector<16x256xf32> -> vector<16x256xf32>
    %550 = vector.broadcast %548 : vector<1x256xf32> to vector<16x256xf32>
    %551 = arith.addf %549, %550 : vector<16x256xf32>
    %552 = vector.shape_cast %551 : vector<16x256xf32> to vector<8x2x256xf32>
    %cst_145 = arith.constant 0.000000e+00 : f32
    %553 = vector.broadcast %cst_145 : f32 to vector<2x64xf32>
    %554 = vector.extract_strided_slice %552 {offsets = [0, 0, 0], sizes = [1, 2, 256], strides = [1, 1, 1]} : vector<8x2x256xf32> to vector<1x2x256xf32>
    %555 = vector.shape_cast %554 : vector<1x2x256xf32> to vector<2x256xf32>
    %556 = vector.extract_strided_slice %552 {offsets = [7, 0, 0], sizes = [1, 2, 256], strides = [1, 1, 1]} : vector<8x2x256xf32> to vector<1x2x256xf32>
    %557 = vector.shape_cast %556 : vector<1x2x256xf32> to vector<2x256xf32>
    %558 = vector.shape_cast %4 : vector<1x256xi1> to vector<1x256xi1>
    %559 = vector.broadcast %558 : vector<1x256xi1> to vector<2x256xi1>
    %560 = arith.select %559, %555, %557 : vector<2x256xi1>, vector<2x256xf32>
    %561 = arith.negf %560 : vector<2x256xf32>
    %562 = math.exp %561 : vector<2x256xf32>
    %cst_146 = arith.constant 1.000000e+00 : f32
    %563 = vector.broadcast %cst_146 : f32 to vector<2x256xf32>
    %564 = arith.addf %563, %562 : vector<2x256xf32>
    %565 = arith.divf %563, %564 : vector<2x256xf32>
    %566 = math.tanh %560 : vector<2x256xf32>
    %567 = vector.extract_strided_slice %565 {offsets = [0, 64], sizes = [2, 64], strides = [1, 1]} : vector<2x256xf32> to vector<2x64xf32>
    %568 = arith.mulf %567, %553 : vector<2x64xf32>
    %569 = vector.extract_strided_slice %565 {offsets = [0, 0], sizes = [2, 64], strides = [1, 1]} : vector<2x256xf32> to vector<2x64xf32>
    %570 = vector.extract_strided_slice %566 {offsets = [0, 128], sizes = [2, 64], strides = [1, 1]} : vector<2x256xf32> to vector<2x64xf32>
    %571 = arith.mulf %569, %570 : vector<2x64xf32>
    %572 = arith.addf %568, %571 : vector<2x64xf32>
    %573 = vector.extract_strided_slice %565 {offsets = [0, 192], sizes = [2, 64], strides = [1, 1]} : vector<2x256xf32> to vector<2x64xf32>
    %574 = math.tanh %572 : vector<2x64xf32>
    %575 = arith.mulf %573, %574 : vector<2x64xf32>
    %576 = vector.extract_strided_slice %575 {offsets = [0, 0], sizes = [2, 32], strides = [1, 1]} : vector<2x64xf32> to vector<2x32xf32>
    %c0_147 = arith.constant 0 : index
    %c0_148 = arith.constant 0 : index
    %c0_149 = arith.constant 0 : index
    %577 = vector.load %arg4[%c0_147, %c0_148, %c0_149] : memref<8x2x64xf32, #tpu.memory_space<vmem>>, vector<1x2x32xf32>
    %578 = vector.shape_cast %577 : vector<1x2x32xf32> to vector<2x32xf32>
    %579 = vector.shape_cast %576 : vector<2x32xf32> to vector<1x2x32xf32>
    tpu.vector_store %arg4[%c0_147, %c0_148, %c0_149], %579 {strides = array<i32>} : memref<8x2x64xf32, #tpu.memory_space<vmem>>, vector<1x2x32xf32>,
    %580 = vector.extract_strided_slice %575 {offsets = [0, 32], sizes = [2, 32], strides = [1, 1]} : vector<2x64xf32> to vector<2x32xf32>
    %c7_150 = arith.constant 7 : index
    %c0_151 = arith.constant 0 : index
    %c32_152 = arith.constant 32 : index
    %581 = vector.load %arg4[%c7_150, %c0_151, %c32_152] : memref<8x2x64xf32, #tpu.memory_space<vmem>>, vector<1x2x32xf32>
    %582 = vector.shape_cast %581 : vector<1x2x32xf32> to vector<2x32xf32>
    %583 = vector.shape_cast %580 : vector<2x32xf32> to vector<1x2x32xf32>
    tpu.vector_store %arg4[%c7_150, %c0_151, %c32_152], %583 {strides = array<i32>} : memref<8x2x64xf32, #tpu.memory_space<vmem>>, vector<1x2x32xf32>,
    %584 = vector.extract_strided_slice %552 {offsets = [1, 0, 0], sizes = [1, 2, 256], strides = [1, 1, 1]} : vector<8x2x256xf32> to vector<1x2x256xf32>
    %585 = vector.shape_cast %584 : vector<1x2x256xf32> to vector<2x256xf32>
    %586 = vector.extract_strided_slice %552 {offsets = [6, 0, 0], sizes = [1, 2, 256], strides = [1, 1, 1]} : vector<8x2x256xf32> to vector<1x2x256xf32>
    %587 = vector.shape_cast %586 : vector<1x2x256xf32> to vector<2x256xf32>
    %588 = vector.shape_cast %4 : vector<1x256xi1> to vector<1x256xi1>
    %589 = vector.broadcast %588 : vector<1x256xi1> to vector<2x256xi1>
    %590 = arith.select %589, %585, %587 : vector<2x256xi1>, vector<2x256xf32>
    %cst_153 = arith.constant dense<0.000000e+00> : vector<2x256xf32>
    %591 = tpu.matmul %575, %547, %cst_153 {dimension_numbers = #tpu.dot_dimension_numbers<[1], [0], [0], [1], [0, 0, 1, 1], [], []>} : vector<2x64xf32>, vector<64x256xf32>, vector<2x256xf32> -> vector<2x256xf32>
    %592 = arith.addf %590, %591 : vector<2x256xf32>
    %593 = arith.negf %592 : vector<2x256xf32>
    %594 = math.exp %593 : vector<2x256xf32>
    %cst_154 = arith.constant 1.000000e+00 : f32
    %595 = vector.broadcast %cst_154 : f32 to vector<2x256xf32>
    %596 = arith.addf %595, %594 : vector<2x256xf32>
    %597 = arith.divf %595, %596 : vector<2x256xf32>
    %598 = math.tanh %592 : vector<2x256xf32>
    %599 = vector.extract_strided_slice %597 {offsets = [0, 64], sizes = [2, 64], strides = [1, 1]} : vector<2x256xf32> to vector<2x64xf32>
    %600 = arith.mulf %599, %572 : vector<2x64xf32>
    %601 = vector.extract_strided_slice %597 {offsets = [0, 0], sizes = [2, 64], strides = [1, 1]} : vector<2x256xf32> to vector<2x64xf32>
    %602 = vector.extract_strided_slice %598 {offsets = [0, 128], sizes = [2, 64], strides = [1, 1]} : vector<2x256xf32> to vector<2x64xf32>
    %603 = arith.mulf %601, %602 : vector<2x64xf32>
    %604 = arith.addf %600, %603 : vector<2x64xf32>
    %605 = vector.extract_strided_slice %597 {offsets = [0, 192], sizes = [2, 64], strides = [1, 1]} : vector<2x256xf32> to vector<2x64xf32>
    %606 = math.tanh %604 : vector<2x64xf32>
    %607 = arith.mulf %605, %606 : vector<2x64xf32>
    %608 = vector.extract_strided_slice %607 {offsets = [0, 0], sizes = [2, 32], strides = [1, 1]} : vector<2x64xf32> to vector<2x32xf32>
    %c1_155 = arith.constant 1 : index
    %c0_156 = arith.constant 0 : index
    %c0_157 = arith.constant 0 : index
    %609 = vector.load %arg4[%c1_155, %c0_156, %c0_157] : memref<8x2x64xf32, #tpu.memory_space<vmem>>, vector<1x2x32xf32>
    %610 = vector.shape_cast %609 : vector<1x2x32xf32> to vector<2x32xf32>
    %611 = vector.shape_cast %608 : vector<2x32xf32> to vector<1x2x32xf32>
    tpu.vector_store %arg4[%c1_155, %c0_156, %c0_157], %611 {strides = array<i32>} : memref<8x2x64xf32, #tpu.memory_space<vmem>>, vector<1x2x32xf32>,
    %612 = vector.extract_strided_slice %607 {offsets = [0, 32], sizes = [2, 32], strides = [1, 1]} : vector<2x64xf32> to vector<2x32xf32>
    %c6_158 = arith.constant 6 : index
    %c0_159 = arith.constant 0 : index
    %c32_160 = arith.constant 32 : index
    %613 = vector.load %arg4[%c6_158, %c0_159, %c32_160] : memref<8x2x64xf32, #tpu.memory_space<vmem>>, vector<1x2x32xf32>
    %614 = vector.shape_cast %613 : vector<1x2x32xf32> to vector<2x32xf32>
    %615 = vector.shape_cast %612 : vector<2x32xf32> to vector<1x2x32xf32>
    tpu.vector_store %arg4[%c6_158, %c0_159, %c32_160], %615 {strides = array<i32>} : memref<8x2x64xf32, #tpu.memory_space<vmem>>, vector<1x2x32xf32>,
    %616 = vector.extract_strided_slice %552 {offsets = [2, 0, 0], sizes = [1, 2, 256], strides = [1, 1, 1]} : vector<8x2x256xf32> to vector<1x2x256xf32>
    %617 = vector.shape_cast %616 : vector<1x2x256xf32> to vector<2x256xf32>
    %618 = vector.extract_strided_slice %552 {offsets = [5, 0, 0], sizes = [1, 2, 256], strides = [1, 1, 1]} : vector<8x2x256xf32> to vector<1x2x256xf32>
    %619 = vector.shape_cast %618 : vector<1x2x256xf32> to vector<2x256xf32>
    %620 = vector.shape_cast %4 : vector<1x256xi1> to vector<1x256xi1>
    %621 = vector.broadcast %620 : vector<1x256xi1> to vector<2x256xi1>
    %622 = arith.select %621, %617, %619 : vector<2x256xi1>, vector<2x256xf32>
    %cst_161 = arith.constant dense<0.000000e+00> : vector<2x256xf32>
    %623 = tpu.matmul %607, %547, %cst_161 {dimension_numbers = #tpu.dot_dimension_numbers<[1], [0], [0], [1], [0, 0, 1, 1], [], []>} : vector<2x64xf32>, vector<64x256xf32>, vector<2x256xf32> -> vector<2x256xf32>
    %624 = arith.addf %622, %623 : vector<2x256xf32>
    %625 = arith.negf %624 : vector<2x256xf32>
    %626 = math.exp %625 : vector<2x256xf32>
    %cst_162 = arith.constant 1.000000e+00 : f32
    %627 = vector.broadcast %cst_162 : f32 to vector<2x256xf32>
    %628 = arith.addf %627, %626 : vector<2x256xf32>
    %629 = arith.divf %627, %628 : vector<2x256xf32>
    %630 = math.tanh %624 : vector<2x256xf32>
    %631 = vector.extract_strided_slice %629 {offsets = [0, 64], sizes = [2, 64], strides = [1, 1]} : vector<2x256xf32> to vector<2x64xf32>
    %632 = arith.mulf %631, %604 : vector<2x64xf32>
    %633 = vector.extract_strided_slice %629 {offsets = [0, 0], sizes = [2, 64], strides = [1, 1]} : vector<2x256xf32> to vector<2x64xf32>
    %634 = vector.extract_strided_slice %630 {offsets = [0, 128], sizes = [2, 64], strides = [1, 1]} : vector<2x256xf32> to vector<2x64xf32>
    %635 = arith.mulf %633, %634 : vector<2x64xf32>
    %636 = arith.addf %632, %635 : vector<2x64xf32>
    %637 = vector.extract_strided_slice %629 {offsets = [0, 192], sizes = [2, 64], strides = [1, 1]} : vector<2x256xf32> to vector<2x64xf32>
    %638 = math.tanh %636 : vector<2x64xf32>
    %639 = arith.mulf %637, %638 : vector<2x64xf32>
    %640 = vector.extract_strided_slice %639 {offsets = [0, 0], sizes = [2, 32], strides = [1, 1]} : vector<2x64xf32> to vector<2x32xf32>
    %c2_163 = arith.constant 2 : index
    %c0_164 = arith.constant 0 : index
    %c0_165 = arith.constant 0 : index
    %641 = vector.load %arg4[%c2_163, %c0_164, %c0_165] : memref<8x2x64xf32, #tpu.memory_space<vmem>>, vector<1x2x32xf32>
    %642 = vector.shape_cast %641 : vector<1x2x32xf32> to vector<2x32xf32>
    %643 = vector.shape_cast %640 : vector<2x32xf32> to vector<1x2x32xf32>
    tpu.vector_store %arg4[%c2_163, %c0_164, %c0_165], %643 {strides = array<i32>} : memref<8x2x64xf32, #tpu.memory_space<vmem>>, vector<1x2x32xf32>,
    %644 = vector.extract_strided_slice %639 {offsets = [0, 32], sizes = [2, 32], strides = [1, 1]} : vector<2x64xf32> to vector<2x32xf32>
    %c5_166 = arith.constant 5 : index
    %c0_167 = arith.constant 0 : index
    %c32_168 = arith.constant 32 : index
    %645 = vector.load %arg4[%c5_166, %c0_167, %c32_168] : memref<8x2x64xf32, #tpu.memory_space<vmem>>, vector<1x2x32xf32>
    %646 = vector.shape_cast %645 : vector<1x2x32xf32> to vector<2x32xf32>
    %647 = vector.shape_cast %644 : vector<2x32xf32> to vector<1x2x32xf32>
    tpu.vector_store %arg4[%c5_166, %c0_167, %c32_168], %647 {strides = array<i32>} : memref<8x2x64xf32, #tpu.memory_space<vmem>>, vector<1x2x32xf32>,
    %648 = vector.extract_strided_slice %552 {offsets = [3, 0, 0], sizes = [1, 2, 256], strides = [1, 1, 1]} : vector<8x2x256xf32> to vector<1x2x256xf32>
    %649 = vector.shape_cast %648 : vector<1x2x256xf32> to vector<2x256xf32>
    %650 = vector.extract_strided_slice %552 {offsets = [4, 0, 0], sizes = [1, 2, 256], strides = [1, 1, 1]} : vector<8x2x256xf32> to vector<1x2x256xf32>
    %651 = vector.shape_cast %650 : vector<1x2x256xf32> to vector<2x256xf32>
    %652 = vector.shape_cast %4 : vector<1x256xi1> to vector<1x256xi1>
    %653 = vector.broadcast %652 : vector<1x256xi1> to vector<2x256xi1>
    %654 = arith.select %653, %649, %651 : vector<2x256xi1>, vector<2x256xf32>
    %cst_169 = arith.constant dense<0.000000e+00> : vector<2x256xf32>
    %655 = tpu.matmul %639, %547, %cst_169 {dimension_numbers = #tpu.dot_dimension_numbers<[1], [0], [0], [1], [0, 0, 1, 1], [], []>} : vector<2x64xf32>, vector<64x256xf32>, vector<2x256xf32> -> vector<2x256xf32>
    %656 = arith.addf %654, %655 : vector<2x256xf32>
    %657 = arith.negf %656 : vector<2x256xf32>
    %658 = math.exp %657 : vector<2x256xf32>
    %cst_170 = arith.constant 1.000000e+00 : f32
    %659 = vector.broadcast %cst_170 : f32 to vector<2x256xf32>
    %660 = arith.addf %659, %658 : vector<2x256xf32>
    %661 = arith.divf %659, %660 : vector<2x256xf32>
    %662 = math.tanh %656 : vector<2x256xf32>
    %663 = vector.extract_strided_slice %661 {offsets = [0, 64], sizes = [2, 64], strides = [1, 1]} : vector<2x256xf32> to vector<2x64xf32>
    %664 = arith.mulf %663, %636 : vector<2x64xf32>
    %665 = vector.extract_strided_slice %661 {offsets = [0, 0], sizes = [2, 64], strides = [1, 1]} : vector<2x256xf32> to vector<2x64xf32>
    %666 = vector.extract_strided_slice %662 {offsets = [0, 128], sizes = [2, 64], strides = [1, 1]} : vector<2x256xf32> to vector<2x64xf32>
    %667 = arith.mulf %665, %666 : vector<2x64xf32>
    %668 = arith.addf %664, %667 : vector<2x64xf32>
    %669 = vector.extract_strided_slice %661 {offsets = [0, 192], sizes = [2, 64], strides = [1, 1]} : vector<2x256xf32> to vector<2x64xf32>
    %670 = math.tanh %668 : vector<2x64xf32>
    %671 = arith.mulf %669, %670 : vector<2x64xf32>
    %672 = vector.extract_strided_slice %671 {offsets = [0, 0], sizes = [2, 32], strides = [1, 1]} : vector<2x64xf32> to vector<2x32xf32>
    %c3_171 = arith.constant 3 : index
    %c0_172 = arith.constant 0 : index
    %c0_173 = arith.constant 0 : index
    %673 = vector.load %arg4[%c3_171, %c0_172, %c0_173] : memref<8x2x64xf32, #tpu.memory_space<vmem>>, vector<1x2x32xf32>
    %674 = vector.shape_cast %673 : vector<1x2x32xf32> to vector<2x32xf32>
    %675 = vector.shape_cast %672 : vector<2x32xf32> to vector<1x2x32xf32>
    tpu.vector_store %arg4[%c3_171, %c0_172, %c0_173], %675 {strides = array<i32>} : memref<8x2x64xf32, #tpu.memory_space<vmem>>, vector<1x2x32xf32>,
    %676 = vector.extract_strided_slice %671 {offsets = [0, 32], sizes = [2, 32], strides = [1, 1]} : vector<2x64xf32> to vector<2x32xf32>
    %c4_174 = arith.constant 4 : index
    %c0_175 = arith.constant 0 : index
    %c32_176 = arith.constant 32 : index
    %677 = vector.load %arg4[%c4_174, %c0_175, %c32_176] : memref<8x2x64xf32, #tpu.memory_space<vmem>>, vector<1x2x32xf32>
    %678 = vector.shape_cast %677 : vector<1x2x32xf32> to vector<2x32xf32>
    %679 = vector.shape_cast %676 : vector<2x32xf32> to vector<1x2x32xf32>
    tpu.vector_store %arg4[%c4_174, %c0_175, %c32_176], %679 {strides = array<i32>} : memref<8x2x64xf32, #tpu.memory_space<vmem>>, vector<1x2x32xf32>,
    %680 = vector.extract_strided_slice %552 {offsets = [4, 0, 0], sizes = [1, 2, 256], strides = [1, 1, 1]} : vector<8x2x256xf32> to vector<1x2x256xf32>
    %681 = vector.shape_cast %680 : vector<1x2x256xf32> to vector<2x256xf32>
    %682 = vector.extract_strided_slice %552 {offsets = [3, 0, 0], sizes = [1, 2, 256], strides = [1, 1, 1]} : vector<8x2x256xf32> to vector<1x2x256xf32>
    %683 = vector.shape_cast %682 : vector<1x2x256xf32> to vector<2x256xf32>
    %684 = vector.shape_cast %4 : vector<1x256xi1> to vector<1x256xi1>
    %685 = vector.broadcast %684 : vector<1x256xi1> to vector<2x256xi1>
    %686 = arith.select %685, %681, %683 : vector<2x256xi1>, vector<2x256xf32>
    %cst_177 = arith.constant dense<0.000000e+00> : vector<2x256xf32>
    %687 = tpu.matmul %671, %547, %cst_177 {dimension_numbers = #tpu.dot_dimension_numbers<[1], [0], [0], [1], [0, 0, 1, 1], [], []>} : vector<2x64xf32>, vector<64x256xf32>, vector<2x256xf32> -> vector<2x256xf32>
    %688 = arith.addf %686, %687 : vector<2x256xf32>
    %689 = arith.negf %688 : vector<2x256xf32>
    %690 = math.exp %689 : vector<2x256xf32>
    %cst_178 = arith.constant 1.000000e+00 : f32
    %691 = vector.broadcast %cst_178 : f32 to vector<2x256xf32>
    %692 = arith.addf %691, %690 : vector<2x256xf32>
    %693 = arith.divf %691, %692 : vector<2x256xf32>
    %694 = math.tanh %688 : vector<2x256xf32>
    %695 = vector.extract_strided_slice %693 {offsets = [0, 64], sizes = [2, 64], strides = [1, 1]} : vector<2x256xf32> to vector<2x64xf32>
    %696 = arith.mulf %695, %668 : vector<2x64xf32>
    %697 = vector.extract_strided_slice %693 {offsets = [0, 0], sizes = [2, 64], strides = [1, 1]} : vector<2x256xf32> to vector<2x64xf32>
    %698 = vector.extract_strided_slice %694 {offsets = [0, 128], sizes = [2, 64], strides = [1, 1]} : vector<2x256xf32> to vector<2x64xf32>
    %699 = arith.mulf %697, %698 : vector<2x64xf32>
    %700 = arith.addf %696, %699 : vector<2x64xf32>
    %701 = vector.extract_strided_slice %693 {offsets = [0, 192], sizes = [2, 64], strides = [1, 1]} : vector<2x256xf32> to vector<2x64xf32>
    %702 = math.tanh %700 : vector<2x64xf32>
    %703 = arith.mulf %701, %702 : vector<2x64xf32>
    %704 = vector.extract_strided_slice %703 {offsets = [0, 0], sizes = [2, 32], strides = [1, 1]} : vector<2x64xf32> to vector<2x32xf32>
    %c4_179 = arith.constant 4 : index
    %c0_180 = arith.constant 0 : index
    %c0_181 = arith.constant 0 : index
    %705 = vector.load %arg4[%c4_179, %c0_180, %c0_181] : memref<8x2x64xf32, #tpu.memory_space<vmem>>, vector<1x2x32xf32>
    %706 = vector.shape_cast %705 : vector<1x2x32xf32> to vector<2x32xf32>
    %707 = vector.shape_cast %704 : vector<2x32xf32> to vector<1x2x32xf32>
    tpu.vector_store %arg4[%c4_179, %c0_180, %c0_181], %707 {strides = array<i32>} : memref<8x2x64xf32, #tpu.memory_space<vmem>>, vector<1x2x32xf32>,
    %708 = vector.extract_strided_slice %703 {offsets = [0, 32], sizes = [2, 32], strides = [1, 1]} : vector<2x64xf32> to vector<2x32xf32>
    %c3_182 = arith.constant 3 : index
    %c0_183 = arith.constant 0 : index
    %c32_184 = arith.constant 32 : index
    %709 = vector.load %arg4[%c3_182, %c0_183, %c32_184] : memref<8x2x64xf32, #tpu.memory_space<vmem>>, vector<1x2x32xf32>
    %710 = vector.shape_cast %709 : vector<1x2x32xf32> to vector<2x32xf32>
    %711 = vector.shape_cast %708 : vector<2x32xf32> to vector<1x2x32xf32>
    tpu.vector_store %arg4[%c3_182, %c0_183, %c32_184], %711 {strides = array<i32>} : memref<8x2x64xf32, #tpu.memory_space<vmem>>, vector<1x2x32xf32>,
    %712 = vector.extract_strided_slice %552 {offsets = [5, 0, 0], sizes = [1, 2, 256], strides = [1, 1, 1]} : vector<8x2x256xf32> to vector<1x2x256xf32>
    %713 = vector.shape_cast %712 : vector<1x2x256xf32> to vector<2x256xf32>
    %714 = vector.extract_strided_slice %552 {offsets = [2, 0, 0], sizes = [1, 2, 256], strides = [1, 1, 1]} : vector<8x2x256xf32> to vector<1x2x256xf32>
    %715 = vector.shape_cast %714 : vector<1x2x256xf32> to vector<2x256xf32>
    %716 = vector.shape_cast %4 : vector<1x256xi1> to vector<1x256xi1>
    %717 = vector.broadcast %716 : vector<1x256xi1> to vector<2x256xi1>
    %718 = arith.select %717, %713, %715 : vector<2x256xi1>, vector<2x256xf32>
    %cst_185 = arith.constant dense<0.000000e+00> : vector<2x256xf32>
    %719 = tpu.matmul %703, %547, %cst_185 {dimension_numbers = #tpu.dot_dimension_numbers<[1], [0], [0], [1], [0, 0, 1, 1], [], []>} : vector<2x64xf32>, vector<64x256xf32>, vector<2x256xf32> -> vector<2x256xf32>
    %720 = arith.addf %718, %719 : vector<2x256xf32>
    %721 = arith.negf %720 : vector<2x256xf32>
    %722 = math.exp %721 : vector<2x256xf32>
    %cst_186 = arith.constant 1.000000e+00 : f32
    %723 = vector.broadcast %cst_186 : f32 to vector<2x256xf32>
    %724 = arith.addf %723, %722 : vector<2x256xf32>
    %725 = arith.divf %723, %724 : vector<2x256xf32>
    %726 = math.tanh %720 : vector<2x256xf32>
    %727 = vector.extract_strided_slice %725 {offsets = [0, 64], sizes = [2, 64], strides = [1, 1]} : vector<2x256xf32> to vector<2x64xf32>
    %728 = arith.mulf %727, %700 : vector<2x64xf32>
    %729 = vector.extract_strided_slice %725 {offsets = [0, 0], sizes = [2, 64], strides = [1, 1]} : vector<2x256xf32> to vector<2x64xf32>
    %730 = vector.extract_strided_slice %726 {offsets = [0, 128], sizes = [2, 64], strides = [1, 1]} : vector<2x256xf32> to vector<2x64xf32>
    %731 = arith.mulf %729, %730 : vector<2x64xf32>
    %732 = arith.addf %728, %731 : vector<2x64xf32>
    %733 = vector.extract_strided_slice %725 {offsets = [0, 192], sizes = [2, 64], strides = [1, 1]} : vector<2x256xf32> to vector<2x64xf32>
    %734 = math.tanh %732 : vector<2x64xf32>
    %735 = arith.mulf %733, %734 : vector<2x64xf32>
    %736 = vector.extract_strided_slice %735 {offsets = [0, 0], sizes = [2, 32], strides = [1, 1]} : vector<2x64xf32> to vector<2x32xf32>
    %c5_187 = arith.constant 5 : index
    %c0_188 = arith.constant 0 : index
    %c0_189 = arith.constant 0 : index
    %737 = vector.load %arg4[%c5_187, %c0_188, %c0_189] : memref<8x2x64xf32, #tpu.memory_space<vmem>>, vector<1x2x32xf32>
    %738 = vector.shape_cast %737 : vector<1x2x32xf32> to vector<2x32xf32>
    %739 = vector.shape_cast %736 : vector<2x32xf32> to vector<1x2x32xf32>
    tpu.vector_store %arg4[%c5_187, %c0_188, %c0_189], %739 {strides = array<i32>} : memref<8x2x64xf32, #tpu.memory_space<vmem>>, vector<1x2x32xf32>,
    %740 = vector.extract_strided_slice %735 {offsets = [0, 32], sizes = [2, 32], strides = [1, 1]} : vector<2x64xf32> to vector<2x32xf32>
    %c2_190 = arith.constant 2 : index
    %c0_191 = arith.constant 0 : index
    %c32_192 = arith.constant 32 : index
    %741 = vector.load %arg4[%c2_190, %c0_191, %c32_192] : memref<8x2x64xf32, #tpu.memory_space<vmem>>, vector<1x2x32xf32>
    %742 = vector.shape_cast %741 : vector<1x2x32xf32> to vector<2x32xf32>
    %743 = vector.shape_cast %740 : vector<2x32xf32> to vector<1x2x32xf32>
    tpu.vector_store %arg4[%c2_190, %c0_191, %c32_192], %743 {strides = array<i32>} : memref<8x2x64xf32, #tpu.memory_space<vmem>>, vector<1x2x32xf32>,
    %744 = vector.extract_strided_slice %552 {offsets = [6, 0, 0], sizes = [1, 2, 256], strides = [1, 1, 1]} : vector<8x2x256xf32> to vector<1x2x256xf32>
    %745 = vector.shape_cast %744 : vector<1x2x256xf32> to vector<2x256xf32>
    %746 = vector.extract_strided_slice %552 {offsets = [1, 0, 0], sizes = [1, 2, 256], strides = [1, 1, 1]} : vector<8x2x256xf32> to vector<1x2x256xf32>
    %747 = vector.shape_cast %746 : vector<1x2x256xf32> to vector<2x256xf32>
    %748 = vector.shape_cast %4 : vector<1x256xi1> to vector<1x256xi1>
    %749 = vector.broadcast %748 : vector<1x256xi1> to vector<2x256xi1>
    %750 = arith.select %749, %745, %747 : vector<2x256xi1>, vector<2x256xf32>
    %cst_193 = arith.constant dense<0.000000e+00> : vector<2x256xf32>
    %751 = tpu.matmul %735, %547, %cst_193 {dimension_numbers = #tpu.dot_dimension_numbers<[1], [0], [0], [1], [0, 0, 1, 1], [], []>} : vector<2x64xf32>, vector<64x256xf32>, vector<2x256xf32> -> vector<2x256xf32>
    %752 = arith.addf %750, %751 : vector<2x256xf32>
    %753 = arith.negf %752 : vector<2x256xf32>
    %754 = math.exp %753 : vector<2x256xf32>
    %cst_194 = arith.constant 1.000000e+00 : f32
    %755 = vector.broadcast %cst_194 : f32 to vector<2x256xf32>
    %756 = arith.addf %755, %754 : vector<2x256xf32>
    %757 = arith.divf %755, %756 : vector<2x256xf32>
    %758 = math.tanh %752 : vector<2x256xf32>
    %759 = vector.extract_strided_slice %757 {offsets = [0, 64], sizes = [2, 64], strides = [1, 1]} : vector<2x256xf32> to vector<2x64xf32>
    %760 = arith.mulf %759, %732 : vector<2x64xf32>
    %761 = vector.extract_strided_slice %757 {offsets = [0, 0], sizes = [2, 64], strides = [1, 1]} : vector<2x256xf32> to vector<2x64xf32>
    %762 = vector.extract_strided_slice %758 {offsets = [0, 128], sizes = [2, 64], strides = [1, 1]} : vector<2x256xf32> to vector<2x64xf32>
    %763 = arith.mulf %761, %762 : vector<2x64xf32>
    %764 = arith.addf %760, %763 : vector<2x64xf32>
    %765 = vector.extract_strided_slice %757 {offsets = [0, 192], sizes = [2, 64], strides = [1, 1]} : vector<2x256xf32> to vector<2x64xf32>
    %766 = math.tanh %764 : vector<2x64xf32>
    %767 = arith.mulf %765, %766 : vector<2x64xf32>
    %768 = vector.extract_strided_slice %767 {offsets = [0, 0], sizes = [2, 32], strides = [1, 1]} : vector<2x64xf32> to vector<2x32xf32>
    %c6_195 = arith.constant 6 : index
    %c0_196 = arith.constant 0 : index
    %c0_197 = arith.constant 0 : index
    %769 = vector.load %arg4[%c6_195, %c0_196, %c0_197] : memref<8x2x64xf32, #tpu.memory_space<vmem>>, vector<1x2x32xf32>
    %770 = vector.shape_cast %769 : vector<1x2x32xf32> to vector<2x32xf32>
    %771 = vector.shape_cast %768 : vector<2x32xf32> to vector<1x2x32xf32>
    tpu.vector_store %arg4[%c6_195, %c0_196, %c0_197], %771 {strides = array<i32>} : memref<8x2x64xf32, #tpu.memory_space<vmem>>, vector<1x2x32xf32>,
    %772 = vector.extract_strided_slice %767 {offsets = [0, 32], sizes = [2, 32], strides = [1, 1]} : vector<2x64xf32> to vector<2x32xf32>
    %c1_198 = arith.constant 1 : index
    %c0_199 = arith.constant 0 : index
    %c32_200 = arith.constant 32 : index
    %773 = vector.load %arg4[%c1_198, %c0_199, %c32_200] : memref<8x2x64xf32, #tpu.memory_space<vmem>>, vector<1x2x32xf32>
    %774 = vector.shape_cast %773 : vector<1x2x32xf32> to vector<2x32xf32>
    %775 = vector.shape_cast %772 : vector<2x32xf32> to vector<1x2x32xf32>
    tpu.vector_store %arg4[%c1_198, %c0_199, %c32_200], %775 {strides = array<i32>} : memref<8x2x64xf32, #tpu.memory_space<vmem>>, vector<1x2x32xf32>,
    %776 = vector.extract_strided_slice %552 {offsets = [7, 0, 0], sizes = [1, 2, 256], strides = [1, 1, 1]} : vector<8x2x256xf32> to vector<1x2x256xf32>
    %777 = vector.shape_cast %776 : vector<1x2x256xf32> to vector<2x256xf32>
    %778 = vector.extract_strided_slice %552 {offsets = [0, 0, 0], sizes = [1, 2, 256], strides = [1, 1, 1]} : vector<8x2x256xf32> to vector<1x2x256xf32>
    %779 = vector.shape_cast %778 : vector<1x2x256xf32> to vector<2x256xf32>
    %780 = vector.shape_cast %4 : vector<1x256xi1> to vector<1x256xi1>
    %781 = vector.broadcast %780 : vector<1x256xi1> to vector<2x256xi1>
    %782 = arith.select %781, %777, %779 : vector<2x256xi1>, vector<2x256xf32>
    %cst_201 = arith.constant dense<0.000000e+00> : vector<2x256xf32>
    %783 = tpu.matmul %767, %547, %cst_201 {dimension_numbers = #tpu.dot_dimension_numbers<[1], [0], [0], [1], [0, 0, 1, 1], [], []>} : vector<2x64xf32>, vector<64x256xf32>, vector<2x256xf32> -> vector<2x256xf32>
    %784 = arith.addf %782, %783 : vector<2x256xf32>
    %785 = arith.negf %784 : vector<2x256xf32>
    %786 = math.exp %785 : vector<2x256xf32>
    %cst_202 = arith.constant 1.000000e+00 : f32
    %787 = vector.broadcast %cst_202 : f32 to vector<2x256xf32>
    %788 = arith.addf %787, %786 : vector<2x256xf32>
    %789 = arith.divf %787, %788 : vector<2x256xf32>
    %790 = math.tanh %784 : vector<2x256xf32>
    %791 = vector.extract_strided_slice %789 {offsets = [0, 64], sizes = [2, 64], strides = [1, 1]} : vector<2x256xf32> to vector<2x64xf32>
    %792 = arith.mulf %791, %764 : vector<2x64xf32>
    %793 = vector.extract_strided_slice %789 {offsets = [0, 0], sizes = [2, 64], strides = [1, 1]} : vector<2x256xf32> to vector<2x64xf32>
    %794 = vector.extract_strided_slice %790 {offsets = [0, 128], sizes = [2, 64], strides = [1, 1]} : vector<2x256xf32> to vector<2x64xf32>
    %795 = arith.mulf %793, %794 : vector<2x64xf32>
    %796 = arith.addf %792, %795 : vector<2x64xf32>
    %797 = vector.extract_strided_slice %789 {offsets = [0, 192], sizes = [2, 64], strides = [1, 1]} : vector<2x256xf32> to vector<2x64xf32>
    %798 = math.tanh %796 : vector<2x64xf32>
    %799 = arith.mulf %797, %798 : vector<2x64xf32>
    %800 = vector.extract_strided_slice %799 {offsets = [0, 0], sizes = [2, 32], strides = [1, 1]} : vector<2x64xf32> to vector<2x32xf32>
    %c7_203 = arith.constant 7 : index
    %c0_204 = arith.constant 0 : index
    %c0_205 = arith.constant 0 : index
    %801 = vector.load %arg4[%c7_203, %c0_204, %c0_205] : memref<8x2x64xf32, #tpu.memory_space<vmem>>, vector<1x2x32xf32>
    %802 = vector.shape_cast %801 : vector<1x2x32xf32> to vector<2x32xf32>
    %803 = vector.shape_cast %800 : vector<2x32xf32> to vector<1x2x32xf32>
    tpu.vector_store %arg4[%c7_203, %c0_204, %c0_205], %803 {strides = array<i32>} : memref<8x2x64xf32, #tpu.memory_space<vmem>>, vector<1x2x32xf32>,
    %804 = vector.extract_strided_slice %799 {offsets = [0, 32], sizes = [2, 32], strides = [1, 1]} : vector<2x64xf32> to vector<2x32xf32>
    %c0_206 = arith.constant 0 : index
    %c0_207 = arith.constant 0 : index
    %c32_208 = arith.constant 32 : index
    %805 = vector.load %arg4[%c0_206, %c0_207, %c32_208] : memref<8x2x64xf32, #tpu.memory_space<vmem>>, vector<1x2x32xf32>
    %806 = vector.shape_cast %805 : vector<1x2x32xf32> to vector<2x32xf32>
    %807 = vector.shape_cast %804 : vector<2x32xf32> to vector<1x2x32xf32>
    tpu.vector_store %arg4[%c0_206, %c0_207, %c32_208], %807 {strides = array<i32>} : memref<8x2x64xf32, #tpu.memory_space<vmem>>, vector<1x2x32xf32>,
    %c0_209 = arith.constant 0 : index
    %c0_210 = arith.constant 0 : index
    %c0_211 = arith.constant 0 : index
    %808 = vector.load %arg4[%c0_209, %c0_210, %c0_211] : memref<8x2x64xf32, #tpu.memory_space<vmem>>, vector<8x2x64xf32>
    %809 = vector.shape_cast %808 : vector<8x2x64xf32> to vector<16x64xf32>
    %c376 = arith.constant 376 : index
    %c0_212 = arith.constant 0 : index
    %810 = vector.load %arg2[%c376, %c0_212] : memref<512x256xf32, #tpu.memory_space<vmem>>, vector<64x256xf32>
    %c440 = arith.constant 440 : index
    %c0_213 = arith.constant 0 : index
    %811 = vector.load %arg2[%c440, %c0_213] : memref<512x256xf32, #tpu.memory_space<vmem>>, vector<64x256xf32>
    %c504 = arith.constant 504 : index
    %c0_214 = arith.constant 0 : index
    %812 = vector.load %arg2[%c504, %c0_214] : memref<512x256xf32, #tpu.memory_space<vmem>>, vector<1x256xf32>
    %cst_215 = arith.constant dense<0.000000e+00> : vector<16x256xf32>
    %813 = tpu.matmul %809, %810, %cst_215 {dimension_numbers = #tpu.dot_dimension_numbers<[1], [0], [0], [1], [0, 0, 1, 1], [], []>} : vector<16x64xf32>, vector<64x256xf32>, vector<16x256xf32> -> vector<16x256xf32>
    %814 = vector.broadcast %812 : vector<1x256xf32> to vector<16x256xf32>
    %815 = arith.addf %813, %814 : vector<16x256xf32>
    %816 = vector.shape_cast %815 : vector<16x256xf32> to vector<8x2x256xf32>
    %cst_216 = arith.constant 0.000000e+00 : f32
    %817 = vector.broadcast %cst_216 : f32 to vector<2x64xf32>
    %818 = vector.extract_strided_slice %816 {offsets = [0, 0, 0], sizes = [1, 2, 256], strides = [1, 1, 1]} : vector<8x2x256xf32> to vector<1x2x256xf32>
    %819 = vector.shape_cast %818 : vector<1x2x256xf32> to vector<2x256xf32>
    %820 = vector.extract_strided_slice %816 {offsets = [7, 0, 0], sizes = [1, 2, 256], strides = [1, 1, 1]} : vector<8x2x256xf32> to vector<1x2x256xf32>
    %821 = vector.shape_cast %820 : vector<1x2x256xf32> to vector<2x256xf32>
    %822 = vector.shape_cast %4 : vector<1x256xi1> to vector<1x256xi1>
    %823 = vector.broadcast %822 : vector<1x256xi1> to vector<2x256xi1>
    %824 = arith.select %823, %819, %821 : vector<2x256xi1>, vector<2x256xf32>
    %825 = arith.negf %824 : vector<2x256xf32>
    %826 = math.exp %825 : vector<2x256xf32>
    %cst_217 = arith.constant 1.000000e+00 : f32
    %827 = vector.broadcast %cst_217 : f32 to vector<2x256xf32>
    %828 = arith.addf %827, %826 : vector<2x256xf32>
    %829 = arith.divf %827, %828 : vector<2x256xf32>
    %830 = math.tanh %824 : vector<2x256xf32>
    %831 = vector.extract_strided_slice %829 {offsets = [0, 64], sizes = [2, 64], strides = [1, 1]} : vector<2x256xf32> to vector<2x64xf32>
    %832 = arith.mulf %831, %817 : vector<2x64xf32>
    %833 = vector.extract_strided_slice %829 {offsets = [0, 0], sizes = [2, 64], strides = [1, 1]} : vector<2x256xf32> to vector<2x64xf32>
    %834 = vector.extract_strided_slice %830 {offsets = [0, 128], sizes = [2, 64], strides = [1, 1]} : vector<2x256xf32> to vector<2x64xf32>
    %835 = arith.mulf %833, %834 : vector<2x64xf32>
    %836 = arith.addf %832, %835 : vector<2x64xf32>
    %837 = vector.extract_strided_slice %829 {offsets = [0, 192], sizes = [2, 64], strides = [1, 1]} : vector<2x256xf32> to vector<2x64xf32>
    %838 = math.tanh %836 : vector<2x64xf32>
    %839 = arith.mulf %837, %838 : vector<2x64xf32>
    %840 = vector.extract_strided_slice %839 {offsets = [0, 32], sizes = [2, 32], strides = [1, 1]} : vector<2x64xf32> to vector<2x32xf32>
    %c7_218 = arith.constant 7 : index
    %c0_219 = arith.constant 0 : index
    %c32_220 = arith.constant 32 : index
    %841 = vector.load %arg4[%c7_218, %c0_219, %c32_220] : memref<8x2x64xf32, #tpu.memory_space<vmem>>, vector<1x2x32xf32>
    %842 = vector.shape_cast %841 : vector<1x2x32xf32> to vector<2x32xf32>
    %843 = vector.shape_cast %840 : vector<2x32xf32> to vector<1x2x32xf32>
    tpu.vector_store %arg4[%c7_218, %c0_219, %c32_220], %843 {strides = array<i32>} : memref<8x2x64xf32, #tpu.memory_space<vmem>>, vector<1x2x32xf32>,
    %844 = vector.extract_strided_slice %816 {offsets = [1, 0, 0], sizes = [1, 2, 256], strides = [1, 1, 1]} : vector<8x2x256xf32> to vector<1x2x256xf32>
    %845 = vector.shape_cast %844 : vector<1x2x256xf32> to vector<2x256xf32>
    %846 = vector.extract_strided_slice %816 {offsets = [6, 0, 0], sizes = [1, 2, 256], strides = [1, 1, 1]} : vector<8x2x256xf32> to vector<1x2x256xf32>
    %847 = vector.shape_cast %846 : vector<1x2x256xf32> to vector<2x256xf32>
    %848 = vector.shape_cast %4 : vector<1x256xi1> to vector<1x256xi1>
    %849 = vector.broadcast %848 : vector<1x256xi1> to vector<2x256xi1>
    %850 = arith.select %849, %845, %847 : vector<2x256xi1>, vector<2x256xf32>
    %cst_221 = arith.constant dense<0.000000e+00> : vector<2x256xf32>
    %851 = tpu.matmul %839, %811, %cst_221 {dimension_numbers = #tpu.dot_dimension_numbers<[1], [0], [0], [1], [0, 0, 1, 1], [], []>} : vector<2x64xf32>, vector<64x256xf32>, vector<2x256xf32> -> vector<2x256xf32>
    %852 = arith.addf %850, %851 : vector<2x256xf32>
    %853 = arith.negf %852 : vector<2x256xf32>
    %854 = math.exp %853 : vector<2x256xf32>
    %cst_222 = arith.constant 1.000000e+00 : f32
    %855 = vector.broadcast %cst_222 : f32 to vector<2x256xf32>
    %856 = arith.addf %855, %854 : vector<2x256xf32>
    %857 = arith.divf %855, %856 : vector<2x256xf32>
    %858 = math.tanh %852 : vector<2x256xf32>
    %859 = vector.extract_strided_slice %857 {offsets = [0, 64], sizes = [2, 64], strides = [1, 1]} : vector<2x256xf32> to vector<2x64xf32>
    %860 = arith.mulf %859, %836 : vector<2x64xf32>
    %861 = vector.extract_strided_slice %857 {offsets = [0, 0], sizes = [2, 64], strides = [1, 1]} : vector<2x256xf32> to vector<2x64xf32>
    %862 = vector.extract_strided_slice %858 {offsets = [0, 128], sizes = [2, 64], strides = [1, 1]} : vector<2x256xf32> to vector<2x64xf32>
    %863 = arith.mulf %861, %862 : vector<2x64xf32>
    %864 = arith.addf %860, %863 : vector<2x64xf32>
    %865 = vector.extract_strided_slice %857 {offsets = [0, 192], sizes = [2, 64], strides = [1, 1]} : vector<2x256xf32> to vector<2x64xf32>
    %866 = math.tanh %864 : vector<2x64xf32>
    %867 = arith.mulf %865, %866 : vector<2x64xf32>
    %868 = vector.extract_strided_slice %816 {offsets = [2, 0, 0], sizes = [1, 2, 256], strides = [1, 1, 1]} : vector<8x2x256xf32> to vector<1x2x256xf32>
    %869 = vector.shape_cast %868 : vector<1x2x256xf32> to vector<2x256xf32>
    %870 = vector.extract_strided_slice %816 {offsets = [5, 0, 0], sizes = [1, 2, 256], strides = [1, 1, 1]} : vector<8x2x256xf32> to vector<1x2x256xf32>
    %871 = vector.shape_cast %870 : vector<1x2x256xf32> to vector<2x256xf32>
    %872 = vector.shape_cast %4 : vector<1x256xi1> to vector<1x256xi1>
    %873 = vector.broadcast %872 : vector<1x256xi1> to vector<2x256xi1>
    %874 = arith.select %873, %869, %871 : vector<2x256xi1>, vector<2x256xf32>
    %cst_223 = arith.constant dense<0.000000e+00> : vector<2x256xf32>
    %875 = tpu.matmul %867, %811, %cst_223 {dimension_numbers = #tpu.dot_dimension_numbers<[1], [0], [0], [1], [0, 0, 1, 1], [], []>} : vector<2x64xf32>, vector<64x256xf32>, vector<2x256xf32> -> vector<2x256xf32>
    %876 = arith.addf %874, %875 : vector<2x256xf32>
    %877 = arith.negf %876 : vector<2x256xf32>
    %878 = math.exp %877 : vector<2x256xf32>
    %cst_224 = arith.constant 1.000000e+00 : f32
    %879 = vector.broadcast %cst_224 : f32 to vector<2x256xf32>
    %880 = arith.addf %879, %878 : vector<2x256xf32>
    %881 = arith.divf %879, %880 : vector<2x256xf32>
    %882 = math.tanh %876 : vector<2x256xf32>
    %883 = vector.extract_strided_slice %881 {offsets = [0, 64], sizes = [2, 64], strides = [1, 1]} : vector<2x256xf32> to vector<2x64xf32>
    %884 = arith.mulf %883, %864 : vector<2x64xf32>
    %885 = vector.extract_strided_slice %881 {offsets = [0, 0], sizes = [2, 64], strides = [1, 1]} : vector<2x256xf32> to vector<2x64xf32>
    %886 = vector.extract_strided_slice %882 {offsets = [0, 128], sizes = [2, 64], strides = [1, 1]} : vector<2x256xf32> to vector<2x64xf32>
    %887 = arith.mulf %885, %886 : vector<2x64xf32>
    %888 = arith.addf %884, %887 : vector<2x64xf32>
    %889 = vector.extract_strided_slice %881 {offsets = [0, 192], sizes = [2, 64], strides = [1, 1]} : vector<2x256xf32> to vector<2x64xf32>
    %890 = math.tanh %888 : vector<2x64xf32>
    %891 = arith.mulf %889, %890 : vector<2x64xf32>
    %892 = vector.extract_strided_slice %816 {offsets = [3, 0, 0], sizes = [1, 2, 256], strides = [1, 1, 1]} : vector<8x2x256xf32> to vector<1x2x256xf32>
    %893 = vector.shape_cast %892 : vector<1x2x256xf32> to vector<2x256xf32>
    %894 = vector.extract_strided_slice %816 {offsets = [4, 0, 0], sizes = [1, 2, 256], strides = [1, 1, 1]} : vector<8x2x256xf32> to vector<1x2x256xf32>
    %895 = vector.shape_cast %894 : vector<1x2x256xf32> to vector<2x256xf32>
    %896 = vector.shape_cast %4 : vector<1x256xi1> to vector<1x256xi1>
    %897 = vector.broadcast %896 : vector<1x256xi1> to vector<2x256xi1>
    %898 = arith.select %897, %893, %895 : vector<2x256xi1>, vector<2x256xf32>
    %cst_225 = arith.constant dense<0.000000e+00> : vector<2x256xf32>
    %899 = tpu.matmul %891, %811, %cst_225 {dimension_numbers = #tpu.dot_dimension_numbers<[1], [0], [0], [1], [0, 0, 1, 1], [], []>} : vector<2x64xf32>, vector<64x256xf32>, vector<2x256xf32> -> vector<2x256xf32>
    %900 = arith.addf %898, %899 : vector<2x256xf32>
    %901 = arith.negf %900 : vector<2x256xf32>
    %902 = math.exp %901 : vector<2x256xf32>
    %cst_226 = arith.constant 1.000000e+00 : f32
    %903 = vector.broadcast %cst_226 : f32 to vector<2x256xf32>
    %904 = arith.addf %903, %902 : vector<2x256xf32>
    %905 = arith.divf %903, %904 : vector<2x256xf32>
    %906 = math.tanh %900 : vector<2x256xf32>
    %907 = vector.extract_strided_slice %905 {offsets = [0, 64], sizes = [2, 64], strides = [1, 1]} : vector<2x256xf32> to vector<2x64xf32>
    %908 = arith.mulf %907, %888 : vector<2x64xf32>
    %909 = vector.extract_strided_slice %905 {offsets = [0, 0], sizes = [2, 64], strides = [1, 1]} : vector<2x256xf32> to vector<2x64xf32>
    %910 = vector.extract_strided_slice %906 {offsets = [0, 128], sizes = [2, 64], strides = [1, 1]} : vector<2x256xf32> to vector<2x64xf32>
    %911 = arith.mulf %909, %910 : vector<2x64xf32>
    %912 = arith.addf %908, %911 : vector<2x64xf32>
    %913 = vector.extract_strided_slice %905 {offsets = [0, 192], sizes = [2, 64], strides = [1, 1]} : vector<2x256xf32> to vector<2x64xf32>
    %914 = math.tanh %912 : vector<2x64xf32>
    %915 = arith.mulf %913, %914 : vector<2x64xf32>
    %916 = vector.extract_strided_slice %816 {offsets = [4, 0, 0], sizes = [1, 2, 256], strides = [1, 1, 1]} : vector<8x2x256xf32> to vector<1x2x256xf32>
    %917 = vector.shape_cast %916 : vector<1x2x256xf32> to vector<2x256xf32>
    %918 = vector.extract_strided_slice %816 {offsets = [3, 0, 0], sizes = [1, 2, 256], strides = [1, 1, 1]} : vector<8x2x256xf32> to vector<1x2x256xf32>
    %919 = vector.shape_cast %918 : vector<1x2x256xf32> to vector<2x256xf32>
    %920 = vector.shape_cast %4 : vector<1x256xi1> to vector<1x256xi1>
    %921 = vector.broadcast %920 : vector<1x256xi1> to vector<2x256xi1>
    %922 = arith.select %921, %917, %919 : vector<2x256xi1>, vector<2x256xf32>
    %cst_227 = arith.constant dense<0.000000e+00> : vector<2x256xf32>
    %923 = tpu.matmul %915, %811, %cst_227 {dimension_numbers = #tpu.dot_dimension_numbers<[1], [0], [0], [1], [0, 0, 1, 1], [], []>} : vector<2x64xf32>, vector<64x256xf32>, vector<2x256xf32> -> vector<2x256xf32>
    %924 = arith.addf %922, %923 : vector<2x256xf32>
    %925 = arith.negf %924 : vector<2x256xf32>
    %926 = math.exp %925 : vector<2x256xf32>
    %cst_228 = arith.constant 1.000000e+00 : f32
    %927 = vector.broadcast %cst_228 : f32 to vector<2x256xf32>
    %928 = arith.addf %927, %926 : vector<2x256xf32>
    %929 = arith.divf %927, %928 : vector<2x256xf32>
    %930 = math.tanh %924 : vector<2x256xf32>
    %931 = vector.extract_strided_slice %929 {offsets = [0, 64], sizes = [2, 64], strides = [1, 1]} : vector<2x256xf32> to vector<2x64xf32>
    %932 = arith.mulf %931, %912 : vector<2x64xf32>
    %933 = vector.extract_strided_slice %929 {offsets = [0, 0], sizes = [2, 64], strides = [1, 1]} : vector<2x256xf32> to vector<2x64xf32>
    %934 = vector.extract_strided_slice %930 {offsets = [0, 128], sizes = [2, 64], strides = [1, 1]} : vector<2x256xf32> to vector<2x64xf32>
    %935 = arith.mulf %933, %934 : vector<2x64xf32>
    %936 = arith.addf %932, %935 : vector<2x64xf32>
    %937 = vector.extract_strided_slice %929 {offsets = [0, 192], sizes = [2, 64], strides = [1, 1]} : vector<2x256xf32> to vector<2x64xf32>
    %938 = math.tanh %936 : vector<2x64xf32>
    %939 = arith.mulf %937, %938 : vector<2x64xf32>
    %940 = vector.extract_strided_slice %816 {offsets = [5, 0, 0], sizes = [1, 2, 256], strides = [1, 1, 1]} : vector<8x2x256xf32> to vector<1x2x256xf32>
    %941 = vector.shape_cast %940 : vector<1x2x256xf32> to vector<2x256xf32>
    %942 = vector.extract_strided_slice %816 {offsets = [2, 0, 0], sizes = [1, 2, 256], strides = [1, 1, 1]} : vector<8x2x256xf32> to vector<1x2x256xf32>
    %943 = vector.shape_cast %942 : vector<1x2x256xf32> to vector<2x256xf32>
    %944 = vector.shape_cast %4 : vector<1x256xi1> to vector<1x256xi1>
    %945 = vector.broadcast %944 : vector<1x256xi1> to vector<2x256xi1>
    %946 = arith.select %945, %941, %943 : vector<2x256xi1>, vector<2x256xf32>
    %cst_229 = arith.constant dense<0.000000e+00> : vector<2x256xf32>
    %947 = tpu.matmul %939, %811, %cst_229 {dimension_numbers = #tpu.dot_dimension_numbers<[1], [0], [0], [1], [0, 0, 1, 1], [], []>} : vector<2x64xf32>, vector<64x256xf32>, vector<2x256xf32> -> vector<2x256xf32>
    %948 = arith.addf %946, %947 : vector<2x256xf32>
    %949 = arith.negf %948 : vector<2x256xf32>
    %950 = math.exp %949 : vector<2x256xf32>
    %cst_230 = arith.constant 1.000000e+00 : f32
    %951 = vector.broadcast %cst_230 : f32 to vector<2x256xf32>
    %952 = arith.addf %951, %950 : vector<2x256xf32>
    %953 = arith.divf %951, %952 : vector<2x256xf32>
    %954 = math.tanh %948 : vector<2x256xf32>
    %955 = vector.extract_strided_slice %953 {offsets = [0, 64], sizes = [2, 64], strides = [1, 1]} : vector<2x256xf32> to vector<2x64xf32>
    %956 = arith.mulf %955, %936 : vector<2x64xf32>
    %957 = vector.extract_strided_slice %953 {offsets = [0, 0], sizes = [2, 64], strides = [1, 1]} : vector<2x256xf32> to vector<2x64xf32>
    %958 = vector.extract_strided_slice %954 {offsets = [0, 128], sizes = [2, 64], strides = [1, 1]} : vector<2x256xf32> to vector<2x64xf32>
    %959 = arith.mulf %957, %958 : vector<2x64xf32>
    %960 = arith.addf %956, %959 : vector<2x64xf32>
    %961 = vector.extract_strided_slice %953 {offsets = [0, 192], sizes = [2, 64], strides = [1, 1]} : vector<2x256xf32> to vector<2x64xf32>
    %962 = math.tanh %960 : vector<2x64xf32>
    %963 = arith.mulf %961, %962 : vector<2x64xf32>
    %964 = vector.extract_strided_slice %816 {offsets = [6, 0, 0], sizes = [1, 2, 256], strides = [1, 1, 1]} : vector<8x2x256xf32> to vector<1x2x256xf32>
    %965 = vector.shape_cast %964 : vector<1x2x256xf32> to vector<2x256xf32>
    %966 = vector.extract_strided_slice %816 {offsets = [1, 0, 0], sizes = [1, 2, 256], strides = [1, 1, 1]} : vector<8x2x256xf32> to vector<1x2x256xf32>
    %967 = vector.shape_cast %966 : vector<1x2x256xf32> to vector<2x256xf32>
    %968 = vector.shape_cast %4 : vector<1x256xi1> to vector<1x256xi1>
    %969 = vector.broadcast %968 : vector<1x256xi1> to vector<2x256xi1>
    %970 = arith.select %969, %965, %967 : vector<2x256xi1>, vector<2x256xf32>
    %cst_231 = arith.constant dense<0.000000e+00> : vector<2x256xf32>
    %971 = tpu.matmul %963, %811, %cst_231 {dimension_numbers = #tpu.dot_dimension_numbers<[1], [0], [0], [1], [0, 0, 1, 1], [], []>} : vector<2x64xf32>, vector<64x256xf32>, vector<2x256xf32> -> vector<2x256xf32>
    %972 = arith.addf %970, %971 : vector<2x256xf32>
    %973 = arith.negf %972 : vector<2x256xf32>
    %974 = math.exp %973 : vector<2x256xf32>
    %cst_232 = arith.constant 1.000000e+00 : f32
    %975 = vector.broadcast %cst_232 : f32 to vector<2x256xf32>
    %976 = arith.addf %975, %974 : vector<2x256xf32>
    %977 = arith.divf %975, %976 : vector<2x256xf32>
    %978 = math.tanh %972 : vector<2x256xf32>
    %979 = vector.extract_strided_slice %977 {offsets = [0, 64], sizes = [2, 64], strides = [1, 1]} : vector<2x256xf32> to vector<2x64xf32>
    %980 = arith.mulf %979, %960 : vector<2x64xf32>
    %981 = vector.extract_strided_slice %977 {offsets = [0, 0], sizes = [2, 64], strides = [1, 1]} : vector<2x256xf32> to vector<2x64xf32>
    %982 = vector.extract_strided_slice %978 {offsets = [0, 128], sizes = [2, 64], strides = [1, 1]} : vector<2x256xf32> to vector<2x64xf32>
    %983 = arith.mulf %981, %982 : vector<2x64xf32>
    %984 = arith.addf %980, %983 : vector<2x64xf32>
    %985 = vector.extract_strided_slice %977 {offsets = [0, 192], sizes = [2, 64], strides = [1, 1]} : vector<2x256xf32> to vector<2x64xf32>
    %986 = math.tanh %984 : vector<2x64xf32>
    %987 = arith.mulf %985, %986 : vector<2x64xf32>
    %988 = vector.extract_strided_slice %816 {offsets = [7, 0, 0], sizes = [1, 2, 256], strides = [1, 1, 1]} : vector<8x2x256xf32> to vector<1x2x256xf32>
    %989 = vector.shape_cast %988 : vector<1x2x256xf32> to vector<2x256xf32>
    %990 = vector.extract_strided_slice %816 {offsets = [0, 0, 0], sizes = [1, 2, 256], strides = [1, 1, 1]} : vector<8x2x256xf32> to vector<1x2x256xf32>
    %991 = vector.shape_cast %990 : vector<1x2x256xf32> to vector<2x256xf32>
    %992 = vector.shape_cast %4 : vector<1x256xi1> to vector<1x256xi1>
    %993 = vector.broadcast %992 : vector<1x256xi1> to vector<2x256xi1>
    %994 = arith.select %993, %989, %991 : vector<2x256xi1>, vector<2x256xf32>
    %cst_233 = arith.constant dense<0.000000e+00> : vector<2x256xf32>
    %995 = tpu.matmul %987, %811, %cst_233 {dimension_numbers = #tpu.dot_dimension_numbers<[1], [0], [0], [1], [0, 0, 1, 1], [], []>} : vector<2x64xf32>, vector<64x256xf32>, vector<2x256xf32> -> vector<2x256xf32>
    %996 = arith.addf %994, %995 : vector<2x256xf32>
    %997 = arith.negf %996 : vector<2x256xf32>
    %998 = math.exp %997 : vector<2x256xf32>
    %cst_234 = arith.constant 1.000000e+00 : f32
    %999 = vector.broadcast %cst_234 : f32 to vector<2x256xf32>
    %1000 = arith.addf %999, %998 : vector<2x256xf32>
    %1001 = arith.divf %999, %1000 : vector<2x256xf32>
    %1002 = math.tanh %996 : vector<2x256xf32>
    %1003 = vector.extract_strided_slice %1001 {offsets = [0, 64], sizes = [2, 64], strides = [1, 1]} : vector<2x256xf32> to vector<2x64xf32>
    %1004 = arith.mulf %1003, %984 : vector<2x64xf32>
    %1005 = vector.extract_strided_slice %1001 {offsets = [0, 0], sizes = [2, 64], strides = [1, 1]} : vector<2x256xf32> to vector<2x64xf32>
    %1006 = vector.extract_strided_slice %1002 {offsets = [0, 128], sizes = [2, 64], strides = [1, 1]} : vector<2x256xf32> to vector<2x64xf32>
    %1007 = arith.mulf %1005, %1006 : vector<2x64xf32>
    %1008 = arith.addf %1004, %1007 : vector<2x64xf32>
    %1009 = vector.extract_strided_slice %1001 {offsets = [0, 192], sizes = [2, 64], strides = [1, 1]} : vector<2x256xf32> to vector<2x64xf32>
    %1010 = math.tanh %1008 : vector<2x64xf32>
    %1011 = arith.mulf %1009, %1010 : vector<2x64xf32>
    %1012 = vector.extract_strided_slice %1011 {offsets = [0, 0], sizes = [2, 32], strides = [1, 1]} : vector<2x64xf32> to vector<2x32xf32>
    %c7_235 = arith.constant 7 : index
    %c0_236 = arith.constant 0 : index
    %c0_237 = arith.constant 0 : index
    %1013 = vector.load %arg4[%c7_235, %c0_236, %c0_237] : memref<8x2x64xf32, #tpu.memory_space<vmem>>, vector<1x2x32xf32>
    %1014 = vector.shape_cast %1013 : vector<1x2x32xf32> to vector<2x32xf32>
    %1015 = vector.shape_cast %1012 : vector<2x32xf32> to vector<1x2x32xf32>
    tpu.vector_store %arg4[%c7_235, %c0_236, %c0_237], %1015 {strides = array<i32>} : memref<8x2x64xf32, #tpu.memory_space<vmem>>, vector<1x2x32xf32>,
    %c7_238 = arith.constant 7 : index
    %c0_239 = arith.constant 0 : index
    %c0_240 = arith.constant 0 : index
    %1016 = vector.load %arg4[%c7_238, %c0_239, %c0_240] : memref<8x2x64xf32, #tpu.memory_space<vmem>>, vector<1x2x64xf32>
    %1017 = vector.shape_cast %1016 : vector<1x2x64xf32> to vector<2x64xf32>
    %c0_241 = arith.constant 0 : index
    %c0_242 = arith.constant 0 : index
    %1018 = vector.load %arg3[%c0_241, %c0_242] : memref<2x64xf32, #tpu.memory_space<vmem>>, vector<2x64xf32>
    tpu.vector_store %arg3[%c0_241, %c0_242], %1017 {strides = array<i32>} : memref<2x64xf32, #tpu.memory_space<vmem>>, vector<2x64xf32>,
    return
  }
  func.func @transform_0(%arg0: i32) -> (i32, i32, i32) {
    %c0_i32 = arith.constant 0 : i32
    %c0_i32_0 = arith.constant 0 : i32
    %c0_i32_1 = arith.constant 0 : i32
    return %c0_i32, %arg0, %c0_i32_0 : i32, i32, i32
  }
  func.func @transform_1(%arg0: i32) -> (i32, i32) {
    %c0_i32 = arith.constant 0 : i32
    %c0_i32_0 = arith.constant 0 : i32
    %c0_i32_1 = arith.constant 0 : i32
    return %c0_i32, %c0_i32_0 : i32, i32
  }
  func.func @transform_2(%arg0: i32) -> (i32, i32) {
    %c0_i32 = arith.constant 0 : i32
    %c0_i32_0 = arith.constant 0 : i32
    return %arg0, %c0_i32 : i32, i32
  }
}

</mosaic_0001>

<llo_original>
// kernel: imunet_forward.1
$region0: #{imunet_forward.1}
  #allocation0 [shape = 'u32[]', space=smem, size = 0x4, offset = 0x4, fixed_abs, tag = 'smem constant byte address 0x4 - core index']
  #allocation1 [shape = 'u32[144,128]{1,0:T(1,128)}', space=vmem, size = 0x12000, scoped, tag = 'internal scratch']
  #allocation2 [shape = 'f32[8,2,64]{2,1,0:T(2,128)}', space=vmem, size = 0x2000, scoped, tag = 'scratch operand']
  %s0 = inlined_call_operand.vmem [shape: f32[8,2,4], index: 0, kind: input, shape index: {}]
  %s1 = inlined_call_operand.hbm [shape: f32[512,256], index: 1, kind: input, shape index: {}]
  %s2 = inlined_call_operand.hbm [shape: f32[2,64], index: 2, kind: output, shape index: {}]
  %s3 = sld [smem:[#allocation0]]
  $region22: #{imunet_forward.1} parent=0
    _
  %s5 = ssub.s32 1, %s3
  %s6 = scalar_select 0, %s5, %s3
  $region1: #{imunet_forward.1} parent=0
    #allocation3 [shape = 'u8[524288]{0}', space=vmem, size = 0x80000, scoped, tag = 'input window, operand 1, single buffered']
    #allocation4 [shape = 's32[1]{0}', space=sflag, size = 0x4, scoped, tag = 'scoped memory for imunet_forward.1']
    #allocation5 [shape = 's32[1]{0}', space=sflag, size = 0x4, scoped, tag = 'scoped memory for imunet_forward.1']
    #allocation6 [shape = 'u8[1024]{0}', space=vmem, size = 0x400, scoped, tag = 'output window, operand 0, single buffered']
    %7 = vsyncpa [#allocation4], 0
    %8 = vsyncpa [#allocation5], 0
    // Predicated region
    $region2: #{imunet_forward.1} parent=1 // pred_check
      _
    $region3: #{imunet_forward.1} parent=1 // pred_check_branch
      %10 = sbr.rel (0) target = $region5
    $region4: #{imunet_forward.1} parent=1 // pred_region
      _
    $region5: #{imunet_forward.1} parent=1 // pred_fallthru
      _
    // Predicated region
    $region6: #{imunet_forward.1} parent=1 // pred_check
      _
    $region7: #{imunet_forward.1} parent=1 // pred_check_branch
      %12 = sbr.rel (0) target = $region9
    $region8: #{imunet_forward.1} parent=1 // pred_region
      %s14 = ssub.s32 16384, 16384
      %15 = vsyncadd [#allocation4], %s14
      %s16 = sshll.u32 [#allocation3], 4
      %s17 = int_to_ptr.vmem [resolvable:$true] %s16
      %22 = dma.hbm_to_vmem [thread:$0]  %s1, 16384, %s17, [#allocation4], 256, 256, 16
    $region9: #{imunet_forward.1} parent=1 // pred_fallthru
      _
    // Predicated region
    $region10: #{imunet_forward.1} parent=1 // pred_check
      _
    $region11: #{imunet_forward.1} parent=1 // pred_check_branch
      %24 = sbr.rel (0) target = $region13
    $region12: #{imunet_forward.1} parent=1 // pred_region
      %25 = dma.done [#allocation4], 16384
    $region13: #{imunet_forward.1} parent=1 // pred_fallthru
      _
    %v26 = vlaneseq
    %v27 = vand.u32 %v26, 127
    %v28 = vadd.s32 %v27, 128
    %v29 = vand.u32 %v27, 32
    %v30 = vand.u32 %v28, 32
    %vm31 = vcmp.eq.s32.totalorder %v29, 0
    %vm32 = vcmp.eq.s32.totalorder %v30, 0
    %v33 = vld [vmem:[%s0] sm:$0x3]
    %v34 = vld [vmem:[%s0 + $0x2] sm:$0x3]
    %v35 = vld [vmem:[%s0 + $0x4] sm:$0x3]
    %v36 = vld [vmem:[%s0 + $0x6] sm:$0x3]
    %v37 = vld [vmem:[%s0 + $0x8] sm:$0x3]
    %v38 = vld [vmem:[%s0 + $0xa] sm:$0x3]
    %v39 = vld [vmem:[%s0 + $0xc] sm:$0x3]
    %v40 = vld [vmem:[%s0 + $0xe] sm:$0x3]
    %v41 = vmul.f32 %v33, 3.1415927
    %v42 = vmul.f32 %v34, 3.1415927
    %v43 = vmul.f32 %v35, 3.1415927
    %v44 = vmul.f32 %v36, 3.1415927
    %v45 = vmul.f32 %v37, 3.1415927
    %v46 = vmul.f32 %v38, 3.1415927
    %v47 = vmul.f32 %v39, 3.1415927
    %v48 = vmul.f32 %v40, 3.1415927
    %v49 = vmul.f32 %v33, 6.2831855
    %v50 = vmul.f32 %v34, 6.2831855
    %v51 = vmul.f32 %v35, 6.2831855
    %v52 = vmul.f32 %v36, 6.2831855
    %v53 = vmul.f32 %v37, 6.2831855
    %v54 = vmul.f32 %v38, 6.2831855
    %v55 = vmul.f32 %v39, 6.2831855
    %v56 = vmul.f32 %v40, 6.2831855
    %v57 = vmul.f32 %v33, 12.566371
    %v58 = vmul.f32 %v34, 12.566371
    %v59 = vmul.f32 %v35, 12.566371
    %v60 = vmul.f32 %v36, 12.566371
    %v61 = vmul.f32 %v37, 12.566371
    %v62 = vmul.f32 %v38, 12.566371
    %v63 = vmul.f32 %v39, 12.566371
    %v64 = vmul.f32 %v40, 12.566371
    %v73 = vcombine.low %v41, %v42
    %v74 = vcombine.low %v43, %v44
    %v76 = vunpack.c.l.s4 1983009808
    %v77 = vunpack.c.0.s8 %v76
    %v78 = vlaneseq
    %v79 = vshrl.u32 %v78, 7
    %v80 = vsub.s32 %v77, %v79
    %v81 = vrot.slane %v73, %v80
    %v83 = vunpack.c.l.s4 1983009808
    %v84 = vunpack.c.0.s8 %v83
    %v85 = vlaneseq
    %v86 = vshrl.u32 %v85, 7
    %v87 = vsub.s32 %v84, %v86
    %v88 = vrot.slane %v74, %v87
    %v89 = vcombine.low %v81, %v88
    %v90 = vcombine.low %v45, %v46
    %v91 = vcombine.low %v47, %v48
    %v93 = vunpack.c.l.s4 1983009808
    %v94 = vunpack.c.0.s8 %v93
    %v95 = vlaneseq
    %v96 = vshrl.u32 %v95, 7
    %v97 = vsub.s32 %v94, %v96
    %v98 = vrot.slane %v90, %v97
    %v100 = vunpack.c.l.s4 1983009808
    %v101 = vunpack.c.0.s8 %v100
    %v102 = vlaneseq
    %v103 = vshrl.u32 %v102, 7
    %v104 = vsub.s32 %v101, %v103
    %v105 = vrot.slane %v91, %v104
    %v106 = vcombine.low %v98, %v105
    %v117 = vcombine.low %v49, %v50
    %v118 = vcombine.low %v51, %v52
    %v120 = vunpack.c.l.s4 1983009808
    %v121 = vunpack.c.0.s8 %v120
    %v122 = vlaneseq
    %v123 = vshrl.u32 %v122, 7
    %v124 = vsub.s32 %v121, %v123
    %v125 = vrot.slane %v117, %v124
    %v127 = vunpack.c.l.s4 1983009808
    %v128 = vunpack.c.0.s8 %v127
    %v129 = vlaneseq
    %v130 = vshrl.u32 %v129, 7
    %v131 = vsub.s32 %v128, %v130
    %v132 = vrot.slane %v118, %v131
    %v133 = vcombine.low %v125, %v132
    %v134 = vcombine.low %v53, %v54
    %v135 = vcombine.low %v55, %v56
    %v137 = vunpack.c.l.s4 1983009808
    %v138 = vunpack.c.0.s8 %v137
    %v139 = vlaneseq
    %v140 = vshrl.u32 %v139, 7
    %v141 = vsub.s32 %v138, %v140
    %v142 = vrot.slane %v134, %v141
    %v144 = vunpack.c.l.s4 1983009808
    %v145 = vunpack.c.0.s8 %v144
    %v146 = vlaneseq
    %v147 = vshrl.u32 %v146, 7
    %v148 = vsub.s32 %v145, %v147
    %v149 = vrot.slane %v135, %v148
    %v150 = vcombine.low %v142, %v149
    %151 = vrot.lane.b32.xlu0 %v133, 4
    %v152 = vpop.permute.xlu0 %151
    %153 = vrot.lane.b32.xlu0 %v150, 4
    %v154 = vpop.permute.xlu0 %153
    %v165 = vcombine.low %v57, %v58
    %v166 = vcombine.low %v59, %v60
    %v168 = vunpack.c.l.s4 1983009808
    %v169 = vunpack.c.0.s8 %v168
    %v170 = vlaneseq
    %v171 = vshrl.u32 %v170, 7
    %v172 = vsub.s32 %v169, %v171
    %v173 = vrot.slane %v165, %v172
    %v175 = vunpack.c.l.s4 1983009808
    %v176 = vunpack.c.0.s8 %v175
    %v177 = vlaneseq
    %v178 = vshrl.u32 %v177, 7
    %v179 = vsub.s32 %v176, %v178
    %v180 = vrot.slane %v166, %v179
    %v181 = vcombine.low %v173, %v180
    %v182 = vcombine.low %v61, %v62
    %v183 = vcombine.low %v63, %v64
    %v185 = vunpack.c.l.s4 1983009808
    %v186 = vunpack.c.0.s8 %v185
    %v187 = vlaneseq
    %v188 = vshrl.u32 %v187, 7
    %v189 = vsub.s32 %v186, %v188
    %v190 = vrot.slane %v182, %v189
    %v192 = vunpack.c.l.s4 1983009808
    %v193 = vunpack.c.0.s8 %v192
    %v194 = vlaneseq
    %v195 = vshrl.u32 %v194, 7
    %v196 = vsub.s32 %v193, %v195
    %v197 = vrot.slane %v183, %v196
    %v198 = vcombine.low %v190, %v197
    %199 = vrot.lane.b32.xlu0 %v181, 8
    %v200 = vpop.permute.xlu0 %199
    %201 = vrot.lane.b32.xlu0 %v198, 8
    %v202 = vpop.permute.xlu0 %201
    %vm205 = vcmask 31744
    %v206 = vsel %vm205, %v89, %v152
    %v207 = vsel %vm205, %v106, %v154
    %vm208 = vcmask 64512
    %v209 = vsel %vm208, %v206, %v200
    %v210 = vsel %vm208, %v207, %v202
    %v211 = vand.u32 2147483647, %v209
    %vm212 = vcmp.le.f32.partialorder %v211, 0.7853982
    %vm213 = vcmp.lt.s32.totalorder %v209, 0
    %v214 = vand.u32 %v209, 2139095040
    %v215 = vshrl.u32 %v214, 23
    %v216 = vsub.s32 %v215, 127
    %v217 = vand.u32 2147483647, %v209
    %v218 = vand.u32 %v217, 8388607
    %v219 = vor.u32 %v218, 8388608
    %v220 = vsub.s32 0, %v219
    %v221 = vadd.s32 %v216, 1
    %vm222 = vcmp.gt.s32.totalorder %v221, 0
    %v223 = vsel %vm222, %v221, 0
    %v224 = vshrl.u32 %v223, 5
    %v225 = vand.u32 %v223, 31
    %v226 = vsub.s32 32, %v225
    %v227 = vshrl.u32 683565275, %v226
    %v228 = vshll.u32 683565275, %v225
    %v229 = vshrl.u32 2475754826, %v226
    %v230 = vor.u32 %v228, %v229
    %v231 = vshll.u32 2475754826, %v225
    %v232 = vshrl.u32 2131351028, %v226
    %v233 = vor.u32 %v231, %v232
    %v234 = vshll.u32 2131351028, %v225
    %v235 = vshrl.u32 2102212464, %v226
    %v236 = vor.u32 %v234, %v235
    %v237 = vshll.u32 2102212464, %v225
    %v238 = vshrl.u32 920167782, %v226
    %v239 = vor.u32 %v237, %v238
    %v240 = vshll.u32 920167782, %v225
    %v241 = vshrl.u32 1326507024, %v226
    %v242 = vor.u32 %v240, %v241
    %vm243 = vcmp.lt.s32.totalorder %v224, 1
    %vm244 = vcmp.lt.s32.totalorder %v224, 2
    %vm245 = vcmp.lt.s32.totalorder %v224, 3
    %vm246 = vcmp.lt.s32.totalorder %v224, 4
    %v247 = vsel %vm243, %v227, %v230
    %v248 = vsel %vm246, %v236, 2102212464
    %v249 = vsel %vm245, %v233, %v248
    %v250 = vsel %vm244, %v247, %v249
    %v251 = vsel %vm243, %v230, %v233
    %v252 = vsel %vm246, %v239, 920167782
    %v253 = vsel %vm245, %v236, %v252
    %v254 = vsel %vm244, %v251, %v253
    %v255 = vsel %vm243, %v233, %v236
    %v256 = vsel %vm246, %v242, 1326507024
    %v257 = vsel %vm245, %v239, %v256
    %v258 = vsel %vm244, %v255, %v257
    %v259 = vshll.u32 %v219, 8
    %v260 = vmul.u32.u64.compose %v259, %v258
    %v261 = vextract.low.u32 %v260
    %v262 = vextract.high.u32 %v260
    %v263 = vmul.u32.u64.compose %v259, %v254
    %v264 = vextract.low.u32 %v263
    %v265 = vextract.high.u32 %v263
    %v266 = vmul.u32 %v259, %v250
    %v267 = vadd.s32 %v262, %v264
    %vm268 = vc.u32 %v262, %v264
    %v269 = vadd.s32 %v265, 1
    %v270 = vsel %vm268, %v269, %v265
    %v271 = vadd.s32 %v266, %v270
    %v272 = vadd.s32 %v271, 536870912
    %v273 = vshrl.u32 %v272, 30
    %v274 = vshll.u32 %v273, 30
    %v275 = vsub.s32 %v271, %v274
    %vm276 = vcmp.lt.s32.totalorder %v275, 0
    %v277 = vsub.s32 0, %v275
    %v278 = vsel %vm276, %v277, %v275
    %v279 = vclz %v278
    %v280 = vsub.s32 %v279, 2
    %vm281 = vcmp.gt.s32.totalorder 0, %v280
    %v282 = vsel %vm281, 0, %v280
    %v283 = vsub.s32 32, %v282
    %v284 = vshll.u32 %v275, %v282
    %v285 = vshrl.u32 %v267, %v283
    %v286 = vor.u32 %v284, %v285
    %v287 = vsub.s32 4294967266, %v282
    %v288 = vadd.s32 %v287, 127
    %v289 = vshll.u32 %v288, 23
    %v290 = vor.u32 4788187, %v289
    %v291 = vand.u32 2147483647, %v290
    %v293 = vcvt.s32.f32 %v286
    %v294 = vmul.f32 %v293, %v291
    %v295 = vxor.u32 %v294, 2147483648
    %v296 = vsel %vm213, %v295, %v294
    %v297 = vsub.s32 4, %v273
    %v298 = vsel %vm213, %v297, %v273
    %v299 = vsel %vm212, %v209, %v296
    %v300 = vsel %vm212, 0, %v298
    %v301 = vcosq.f32.pop %v299
    %v302 = vsinq.f32.pop %v299
    %vm303 = vweird.f32 %v209
    %v304 = vadd.s32 %v300, 3
    %v305 = vand.u32 %v304, 3
    %vm306 = vcmp.lt.s32.totalorder %v305, 2
    %vm307 = vcmp.eq.s32.totalorder %v305, 0
    %v308 = vxor.u32 %v302, 2147483648
    %v309 = vsel %vm307, %v301, %v308
    %vm310 = vcmp.eq.s32.totalorder %v305, 2
    %v311 = vxor.u32 %v301, 2147483648
    %v312 = vsel %vm310, %v311, %v302
    %v313 = vsel %vm306, %v309, %v312
    %v314 = vsel %vm303, nan, %v313
    %v315 = vand.u32 2147483647, %v210
    %vm316 = vcmp.le.f32.partialorder %v315, 0.7853982
    %vm317 = vcmp.lt.s32.totalorder %v210, 0
    %v318 = vand.u32 %v210, 2139095040
    %v319 = vshrl.u32 %v318, 23
    %v320 = vsub.s32 %v319, 127
    %v321 = vand.u32 2147483647, %v210
    %v322 = vand.u32 %v321, 8388607
    %v323 = vor.u32 %v322, 8388608
    %v324 = vsub.s32 0, %v323
    %v325 = vadd.s32 %v320, 1
    %vm326 = vcmp.gt.s32.totalorder %v325, 0
    %v327 = vsel %vm326, %v325, 0
    %v328 = vshrl.u32 %v327, 5
    %v329 = vand.u32 %v327, 31
    %v330 = vsub.s32 32, %v329
    %v331 = vshrl.u32 683565275, %v330
    %v332 = vshll.u32 683565275, %v329
    %v333 = vshrl.u32 2475754826, %v330
    %v334 = vor.u32 %v332, %v333
    %v335 = vshll.u32 2475754826, %v329
    %v336 = vshrl.u32 2131351028, %v330
    %v337 = vor.u32 %v335, %v336
    %v338 = vshll.u32 2131351028, %v329
    %v339 = vshrl.u32 2102212464, %v330
    %v340 = vor.u32 %v338, %v339
    %v341 = vshll.u32 2102212464, %v329
    %v342 = vshrl.u32 920167782, %v330
    %v343 = vor.u32 %v341, %v342
    %v344 = vshll.u32 920167782, %v329
    %v345 = vshrl.u32 1326507024, %v330
    %v346 = vor.u32 %v344, %v345
    %vm347 = vcmp.lt.s32.totalorder %v328, 1
    %vm348 = vcmp.lt.s32.totalorder %v328, 2
    %vm349 = vcmp.lt.s32.totalorder %v328, 3
    %vm350 = vcmp.lt.s32.totalorder %v328, 4
    %v351 = vsel %vm347, %v331, %v334
    %v352 = vsel %vm350, %v340, 2102212464
    %v353 = vsel %vm349, %v337, %v352
    %v354 = vsel %vm348, %v351, %v353
    %v355 = vsel %vm347, %v334, %v337
    %v356 = vsel %vm350, %v343, 920167782
    %v357 = vsel %vm349, %v340, %v356
    %v358 = vsel %vm348, %v355, %v357
    %v359 = vsel %vm347, %v337, %v340
    %v360 = vsel %vm350, %v346, 1326507024
    %v361 = vsel %vm349, %v343, %v360
    %v362 = vsel %vm348, %v359, %v361
    %v363 = vshll.u32 %v323, 8
    %v364 = vmul.u32.u64.compose %v363, %v362
    %v365 = vextract.low.u32 %v364
    %v366 = vextract.high.u32 %v364
    %v367 = vmul.u32.u64.compose %v363, %v358
    %v368 = vextract.low.u32 %v367
    %v369 = vextract.high.u32 %v367
    %v370 = vmul.u32 %v363, %v354
    %v371 = vadd.s32 %v366, %v368
    %vm372 = vc.u32 %v366, %v368
    %v373 = vadd.s32 %v369, 1
    %v374 = vsel %vm372, %v373, %v369
    %v375 = vadd.s32 %v370, %v374
    %v376 = vadd.s32 %v375, 536870912
    %v377 = vshrl.u32 %v376, 30
    %v378 = vshll.u32 %v377, 30
    %v379 = vsub.s32 %v375, %v378
    %vm380 = vcmp.lt.s32.totalorder %v379, 0
    %v381 = vsub.s32 0, %v379
    %v382 = vsel %vm380, %v381, %v379
    %v383 = vclz %v382
    %v384 = vsub.s32 %v383, 2
    %vm385 = vcmp.gt.s32.totalorder 0, %v384
    %v386 = vsel %vm385, 0, %v384
    %v387 = vsub.s32 32, %v386
    %v388 = vshll.u32 %v379, %v386
    %v389 = vshrl.u32 %v371, %v387
    %v390 = vor.u32 %v388, %v389
    %v391 = vsub.s32 4294967266, %v386
    %v392 = vadd.s32 %v391, 127
    %v393 = vshll.u32 %v392, 23
    %v394 = vor.u32 4788187, %v393
    %v395 = vand.u32 2147483647, %v394
    %v397 = vcvt.s32.f32 %v390
    %v398 = vmul.f32 %v397, %v395
    %v399 = vxor.u32 %v398, 2147483648
    %v400 = vsel %vm317, %v399, %v398
    %v401 = vsub.s32 4, %v377
    %v402 = vsel %vm317, %v401, %v377
    %v403 = vsel %vm316, %v210, %v400
    %v404 = vsel %vm316, 0, %v402
    %v405 = vcosq.f32.pop %v403
    %v406 = vsinq.f32.pop %v403
    %vm407 = vweird.f32 %v210
    %v408 = vadd.s32 %v404, 3
    %v409 = vand.u32 %v408, 3
    %vm410 = vcmp.lt.s32.totalorder %v409, 2
    %vm411 = vcmp.eq.s32.totalorder %v409, 0
    %v412 = vxor.u32 %v406, 2147483648
    %v413 = vsel %vm411, %v405, %v412
    %vm414 = vcmp.eq.s32.totalorder %v409, 2
    %v415 = vxor.u32 %v405, 2147483648
    %v416 = vsel %vm414, %v415, %v406
    %v417 = vsel %vm410, %v413, %v416
    %v418 = vsel %vm407, nan, %v417
    %v419 = vand.u32 2147483647, %v209
    %vm420 = vcmp.le.f32.partialorder %v419, 0.7853982
    %vm421 = vcmp.lt.s32.totalorder %v209, 0
    %v422 = vand.u32 %v209, 2139095040
    %v423 = vshrl.u32 %v422, 23
    %v424 = vsub.s32 %v423, 127
    %v425 = vand.u32 2147483647, %v209
    %v426 = vand.u32 %v425, 8388607
    %v427 = vor.u32 %v426, 8388608
    %v428 = vsub.s32 0, %v427
    %v429 = vadd.s32 %v424, 1
    %vm430 = vcmp.gt.s32.totalorder %v429, 0
    %v431 = vsel %vm430, %v429, 0
    %v432 = vshrl.u32 %v431, 5
    %v433 = vand.u32 %v431, 31
    %v434 = vsub.s32 32, %v433
    %v435 = vshrl.u32 683565275, %v434
    %v436 = vshll.u32 683565275, %v433
    %v437 = vshrl.u32 2475754826, %v434
    %v438 = vor.u32 %v436, %v437
    %v439 = vshll.u32 2475754826, %v433
    %v440 = vshrl.u32 2131351028, %v434
    %v441 = vor.u32 %v439, %v440
    %v442 = vshll.u32 2131351028, %v433
    %v443 = vshrl.u32 2102212464, %v434
    %v444 = vor.u32 %v442, %v443
    %v445 = vshll.u32 2102212464, %v433
    %v446 = vshrl.u32 920167782, %v434
    %v447 = vor.u32 %v445, %v446
    %v448 = vshll.u32 920167782, %v433
    %v449 = vshrl.u32 1326507024, %v434
    %v450 = vor.u32 %v448, %v449
    %vm451 = vcmp.lt.s32.totalorder %v432, 1
    %vm452 = vcmp.lt.s32.totalorder %v432, 2
    %vm453 = vcmp.lt.s32.totalorder %v432, 3
    %vm454 = vcmp.lt.s32.totalorder %v432, 4
    %v455 = vsel %vm451, %v435, %v438
    %v456 = vsel %vm454, %v444, 2102212464
    %v457 = vsel %vm453, %v441, %v456
    %v458 = vsel %vm452, %v455, %v457
    %v459 = vsel %vm451, %v438, %v441
    %v460 = vsel %vm454, %v447, 920167782
    %v461 = vsel %vm453, %v444, %v460
    %v462 = vsel %vm452, %v459, %v461
    %v463 = vsel %vm451, %v441, %v444
    %v464 = vsel %vm454, %v450, 1326507024
    %v465 = vsel %vm453, %v447, %v464
    %v466 = vsel %vm452, %v463, %v465
    %v467 = vshll.u32 %v427, 8
    %v468 = vmul.u32.u64.compose %v467, %v466
    %v469 = vextract.low.u32 %v468
    %v470 = vextract.high.u32 %v468
    %v471 = vmul.u32.u64.compose %v467, %v462
    %v472 = vextract.low.u32 %v471
    %v473 = vextract.high.u32 %v471
    %v474 = vmul.u32 %v467, %v458
    %v475 = vadd.s32 %v470, %v472
    %vm476 = vc.u32 %v470, %v472
    %v477 = vadd.s32 %v473, 1
    %v478 = vsel %vm476, %v477, %v473
    %v479 = vadd.s32 %v474, %v478
    %v480 = vadd.s32 %v479, 536870912
    %v481 = vshrl.u32 %v480, 30
    %v482 = vshll.u32 %v481, 30
    %v483 = vsub.s32 %v479, %v482
    %vm484 = vcmp.lt.s32.totalorder %v483, 0
    %v485 = vsub.s32 0, %v483
    %v486 = vsel %vm484, %v485, %v483
    %v487 = vclz %v486
    %v488 = vsub.s32 %v487, 2
    %vm489 = vcmp.gt.s32.totalorder 0, %v488
    %v490 = vsel %vm489, 0, %v488
    %v491 = vsub.s32 32, %v490
    %v492 = vshll.u32 %v483, %v490
    %v493 = vshrl.u32 %v475, %v491
    %v494 = vor.u32 %v492, %v493
    %v495 = vsub.s32 4294967266, %v490
    %v496 = vadd.s32 %v495, 127
    %v497 = vshll.u32 %v496, 23
    %v498 = vor.u32 4788187, %v497
    %v499 = vand.u32 2147483647, %v498
    %v501 = vcvt.s32.f32 %v494
    %v502 = vmul.f32 %v501, %v499
    %v503 = vxor.u32 %v502, 2147483648
    %v504 = vsel %vm421, %v503, %v502
    %v505 = vsub.s32 4, %v481
    %v506 = vsel %vm421, %v505, %v481
    %v507 = vsel %vm420, %v209, %v504
    %v508 = vsel %vm420, 0, %v506
    %v509 = vcosq.f32.pop %v507
    %v510 = vsinq.f32.pop %v507
    %vm511 = vweird.f32 %v209
    %v512 = vand.u32 %v508, 3
    %vm513 = vcmp.lt.s32.totalorder %v512, 2
    %vm514 = vcmp.eq.s32.totalorder %v512, 0
    %v515 = vxor.u32 %v510, 2147483648
    %v516 = vsel %vm514, %v509, %v515
    %vm517 = vcmp.eq.s32.totalorder %v512, 2
    %v518 = vxor.u32 %v509, 2147483648
    %v519 = vsel %vm517, %v518, %v510
    %v520 = vsel %vm513, %v516, %v519
    %v521 = vsel %vm511, nan, %v520
    %v522 = vand.u32 2147483647, %v210
    %vm523 = vcmp.le.f32.partialorder %v522, 0.7853982
    %vm524 = vcmp.lt.s32.totalorder %v210, 0
    %v525 = vand.u32 %v210, 2139095040
    %v526 = vshrl.u32 %v525, 23
    %v527 = vsub.s32 %v526, 127
    %v528 = vand.u32 2147483647, %v210
    %v529 = vand.u32 %v528, 8388607
    %v530 = vor.u32 %v529, 8388608
    %v531 = vsub.s32 0, %v530
    %v532 = vadd.s32 %v527, 1
    %vm533 = vcmp.gt.s32.totalorder %v532, 0
    %v534 = vsel %vm533, %v532, 0
    %v535 = vshrl.u32 %v534, 5
    %v536 = vand.u32 %v534, 31
    %v537 = vsub.s32 32, %v536
    %v538 = vshrl.u32 683565275, %v537
    %v539 = vshll.u32 683565275, %v536
    %v540 = vshrl.u32 2475754826, %v537
    %v541 = vor.u32 %v539, %v540
    %v542 = vshll.u32 2475754826, %v536
    %v543 = vshrl.u32 2131351028, %v537
    %v544 = vor.u32 %v542, %v543
    %v545 = vshll.u32 2131351028, %v536
    %v546 = vshrl.u32 2102212464, %v537
    %v547 = vor.u32 %v545, %v546
    %v548 = vshll.u32 2102212464, %v536
    %v549 = vshrl.u32 920167782, %v537
    %v550 = vor.u32 %v548, %v549
    %v551 = vshll.u32 920167782, %v536
    %v552 = vshrl.u32 1326507024, %v537
    %v553 = vor.u32 %v551, %v552
    %vm554 = vcmp.lt.s32.totalorder %v535, 1
    %vm555 = vcmp.lt.s32.totalorder %v535, 2
    %vm556 = vcmp.lt.s32.totalorder %v535, 3
    %vm557 = vcmp.lt.s32.totalorder %v535, 4
    %v558 = vsel %vm554, %v538, %v541
    %v559 = vsel %vm557, %v547, 2102212464
    %v560 = vsel %vm556, %v544, %v559
    %v561 = vsel %vm555, %v558, %v560
    %v562 = vsel %vm554, %v541, %v544
    %v563 = vsel %vm557, %v550, 920167782
    %v564 = vsel %vm556, %v547, %v563
    %v565 = vsel %vm555, %v562, %v564
    %v566 = vsel %vm554, %v544, %v547
    %v567 = vsel %vm557, %v553, 1326507024
    %v568 = vsel %vm556, %v550, %v567
    %v569 = vsel %vm555, %v566, %v568
    %v570 = vshll.u32 %v530, 8
    %v571 = vmul.u32.u64.compose %v570, %v569
    %v572 = vextract.low.u32 %v571
    %v573 = vextract.high.u32 %v571
    %v574 = vmul.u32.u64.compose %v570, %v565
    %v575 = vextract.low.u32 %v574
    %v576 = vextract.high.u32 %v574
    %v577 = vmul.u32 %v570, %v561
    %v578 = vadd.s32 %v573, %v575
    %vm579 = vc.u32 %v573, %v575
    %v580 = vadd.s32 %v576, 1
    %v581 = vsel %vm579, %v580, %v576
    %v582 = vadd.s32 %v577, %v581
    %v583 = vadd.s32 %v582, 536870912
    %v584 = vshrl.u32 %v583, 30
    %v585 = vshll.u32 %v584, 30
    %v586 = vsub.s32 %v582, %v585
    %vm587 = vcmp.lt.s32.totalorder %v586, 0
    %v588 = vsub.s32 0, %v586
    %v589 = vsel %vm587, %v588, %v586
    %v590 = vclz %v589
    %v591 = vsub.s32 %v590, 2
    %vm592 = vcmp.gt.s32.totalorder 0, %v591
    %v593 = vsel %vm592, 0, %v591
    %v594 = vsub.s32 32, %v593
    %v595 = vshll.u32 %v586, %v593
    %v596 = vshrl.u32 %v578, %v594
    %v597 = vor.u32 %v595, %v596
    %v598 = vsub.s32 4294967266, %v593
    %v599 = vadd.s32 %v598, 127
    %v600 = vshll.u32 %v599, 23
    %v601 = vor.u32 4788187, %v600
    %v602 = vand.u32 2147483647, %v601
    %v604 = vcvt.s32.f32 %v597
    %v605 = vmul.f32 %v604, %v602
    %v606 = vxor.u32 %v605, 2147483648
    %v607 = vsel %vm524, %v606, %v605
    %v608 = vsub.s32 4, %v584
    %v609 = vsel %vm524, %v608, %v584
    %v610 = vsel %vm523, %v210, %v607
    %v611 = vsel %vm523, 0, %v609
    %v612 = vcosq.f32.pop %v610
    %v613 = vsinq.f32.pop %v610
    %vm614 = vweird.f32 %v210
    %v615 = vand.u32 %v611, 3
    %vm616 = vcmp.lt.s32.totalorder %v615, 2
    %vm617 = vcmp.eq.s32.totalorder %v615, 0
    %v618 = vxor.u32 %v613, 2147483648
    %v619 = vsel %vm617, %v612, %v618
    %vm620 = vcmp.eq.s32.totalorder %v615, 2
    %v621 = vxor.u32 %v612, 2147483648
    %v622 = vsel %vm620, %v621, %v613
    %v623 = vsel %vm616, %v619, %v622
    %v624 = vsel %vm614, nan, %v623
    %v633 = vcombine.low %v33, %v34
    %v634 = vcombine.low %v35, %v36
    %v636 = vunpack.c.l.s4 1983009808
    %v637 = vunpack.c.0.s8 %v636
    %v638 = vlaneseq
    %v639 = vshrl.u32 %v638, 7
    %v640 = vsub.s32 %v637, %v639
    %v641 = vrot.slane %v633, %v640
    %v643 = vunpack.c.l.s4 1983009808
    %v644 = vunpack.c.0.s8 %v643
    %v645 = vlaneseq
    %v646 = vshrl.u32 %v645, 7
    %v647 = vsub.s32 %v644, %v646
    %v648 = vrot.slane %v634, %v647
    %v649 = vcombine.low %v641, %v648
    %v650 = vcombine.low %v37, %v38
    %v651 = vcombine.low %v39, %v40
    %v653 = vunpack.c.l.s4 1983009808
    %v654 = vunpack.c.0.s8 %v653
    %v655 = vlaneseq
    %v656 = vshrl.u32 %v655, 7
    %v657 = vsub.s32 %v654, %v656
    %v658 = vrot.slane %v650, %v657
    %v660 = vunpack.c.l.s4 1983009808
    %v661 = vunpack.c.0.s8 %v660
    %v662 = vlaneseq
    %v663 = vshrl.u32 %v662, 7
    %v664 = vsub.s32 %v661, %v663
    %v665 = vrot.slane %v651, %v664
    %v666 = vcombine.low %v658, %v665
    %671 = vrot.lane.b32.xlu0 %v314, 4
    %v672 = vpop.permute.xlu0 %671
    %673 = vrot.lane.b32.xlu0 %v418, 4
    %v674 = vpop.permute.xlu0 %673
    %679 = vrot.lane.b32.xlu0 %v521, 16
    %v680 = vpop.permute.xlu0 %679
    %681 = vrot.lane.b32.xlu0 %v624, 16
    %v682 = vpop.permute.xlu0 %681
    %v685 = vsel %vm205, %v649, %v672
    %v686 = vsel %vm205, %v666, %v674
    %vm687 = vcmask 130048
    %v688 = vsel %vm687, %v685, %v680
    %v689 = vsel %vm687, %v686, %v682
    %vm690 = vcmask 228352
    %v691 = vsel %vm690, %v688, 0.0
    %v692 = vsel %vm690, %v689, 0.0
    %v693 = vld [vmem:[#allocation3] sm:$0xff]
    %v694 = vld [vmem:[#allocation3 + $0x8] sm:$0xff]
    %v695 = vld [vmem:[#allocation3 + $0x10] sm:$0xff]
    %v696 = vld [vmem:[#allocation3 + $0x18] sm:$0xff]
    %v697 = vld [vmem:[#allocation3 + $0x20] sm:$0xff]
    %v698 = vld [vmem:[#allocation3 + $0x28] sm:$0xff]
    %v699 = vld [vmem:[#allocation3 + $0x30] sm:$0xff]
    %v700 = vld [vmem:[#allocation3 + $0x38] sm:$0xff]
    %v701 = vld [vmem:[#allocation3 + $0x40] sm:$0xff]
    %v702 = vld [vmem:[#allocation3 + $0x48] sm:$0xff]
    %v703 = vld [vmem:[#allocation3 + $0x50] sm:$0xff]
    %v704 = vld [vmem:[#allocation3 + $0x58] sm:$0xff]
    %v705 = vld [vmem:[#allocation3 + $0x60] sm:$0xff]
    %v706 = vld [vmem:[#allocation3 + $0x68] sm:$0xff]
    %v707 = vld [vmem:[#allocation3 + $0x70] sm:$0xff]
    %v708 = vld [vmem:[#allocation3 + $0x78] sm:$0xff]
    %v709 = vld [vmem:[#allocation3 + $0x80] sm:$0xff]
    %v710 = vld [vmem:[#allocation3 + $0x88] sm:$0xff]
    %v711 = vld [vmem:[#allocation3 + $0x90] sm:$0xff]
    %v712 = vld [vmem:[#allocation3 + $0x98] sm:$0xff]
    %v713 = vld [vmem:[#allocation3 + $0xa0] sm:$0xff]
    %v714 = vld [vmem:[#allocation3 + $0xa8] sm:$0xff]
    %v715 = vld [vmem:[#allocation3 + $0xb0] sm:$0xff]
    %v716 = vld [vmem:[#allocation3 + $0xb8] sm:$0xff]
    %s717 = scalar_lea.vmem [#allocation3], 192
    %v718 = vld [vmem:[%s717] ss:$8 sm:$0x3]
    %v720 = vlaneseq
    %v721 = vshrl.u32 %v720, 7
    %v722 = vsub.s32 0, %v721
    %v723 = vrot.slane %v718, %v722
    %v724 = vlaneseq
    %v725 = vshrl.u32 %v724, 7
    %v726 = vsub.s32 1, %v725
    %v727 = vrot.slane %v718, %v726
    %vm730 = vcmask 261120
    %v732 = vsel %vm730, %v691, 0
    %v735 = vsel %vm730, %v692, 0
    %737 = vmatprep.subr.mxu0 %v694
    %738 = vmatpush1.msra.mxu0 %v693
    %739 = vmatprep.subr.mxu0 %v696
    %740 = vmatpush1.msra.mxu0 %v695
    %741 = vmatprep.subr.mxu0 %v698
    %742 = vmatpush1.msra.mxu0 %v697
    %743 = vmatprep.subr.mxu0 %v700
    %744 = vmatpush1.msra.mxu0 %v699
    %745 = vmatprep.subr.mxu0 0.0
    %746 = vmatpush1.msra.mxu0 0.0
    %747 = vmatprep.subr.mxu0 0.0
    %748 = vmatpush1.msra.mxu0 0.0
    %749 = vmatprep.subr.mxu0 0.0
    %750 = vmatpush1.msra.mxu0 0.0
    %751 = vmatprep.subr.mxu0 0.0
    %752 = vmatpush1.msra.mxu0 0.0
    %753 = vmatprep.subr.mxu0 0.0
    %754 = vmatpush1.msra.mxu0 0.0
    %755 = vmatprep.subr.mxu0 0.0
    %756 = vmatpush1.msra.mxu0 0.0
    %757 = vmatprep.subr.mxu0 0.0
    %758 = vmatpush1.msra.mxu0 0.0
    %759 = vmatprep.subr.mxu0 0.0
    %760 = vmatpush1.msra.mxu0 0.0
    %761 = vmatprep.subr.mxu0 0.0
    %762 = vmatpush1.msra.mxu0 0.0
    %763 = vmatprep.subr.mxu0 0.0
    %764 = vmatpush1.msra.mxu0 0.0
    %765 = vmatprep.subr.mxu0 0.0
    %766 = vmatpush1.msra.mxu0 0.0
    %767 = vmatprep.subr.mxu0 0.0
    %768 = vmatpush1.msra.mxu0 0.0
    %769 = vmatprep.subr.mxu0 0.0
    %770 = vmatpush1.msra.mxu0 0.0
    %771 = vmatprep.subr.mxu0 0.0
    %772 = vmatpush1.msra.mxu0 0.0
    %773 = vmatprep.subr.mxu0 0.0
    %774 = vmatpush1.msra.mxu0 0.0
    %775 = vmatprep.subr.mxu0 0.0
    %776 = vmatpush1.msra.mxu0 0.0
    %777 = vmatprep.subr.mxu0 0.0
    %778 = vmatpush1.msra.mxu0 0.0
    %779 = vmatprep.subr.mxu0 0.0
    %780 = vmatpush1.msra.mxu0 0.0
    %781 = vmatprep.subr.mxu0 0.0
    %782 = vmatpush1.msra.mxu0 0.0
    %783 = vmatprep.subr.mxu0 0.0
    %784 = vmatpush1.msra.mxu0 0.0
    %785 = vmatprep.subr.mxu0 0.0
    %786 = vmatpush1.msra.mxu0 0.0
    %787 = vmatprep.subr.mxu0 0.0
    %788 = vmatpush1.msra.mxu0 0.0
    %789 = vmatprep.subr.mxu0 0.0
    %790 = vmatpush1.msra.mxu0 0.0
    %791 = vmatprep.subr.mxu0 0.0
    %792 = vmatpush1.msra.mxu0 0.0
    %793 = vmatprep.subr.mxu0 0.0
    %794 = vmatpush1.msra.mxu0 0.0
    %795 = vmatprep.subr.mxu0 0.0
    %796 = vmatpush1.msra.mxu0 0.0
    %797 = vmatprep.subr.mxu0 0.0
    %798 = vmatpush1.msra.mxu0 0.0
    %799 = vmatprep.subr.mxu0 0.0
    %800 = vmatpush1.msra.mxu0 0.0
    %801 = vmatprep.mubr.f32.mxu0 0.0
    %802 = vmatmul.mubr.f32.gmra.mrb[0].mxu0 %v732
    %v803 = vpop.f32.mrb[0].mxu0
    %v804 = vadd.f32 %v723, %v803
    %v805 = vpop.f32.mrb[0].mxu0
    %v806 = vadd.f32 %v727, %v805
    %807 = vmatprep.mubr.f32.mxu0 0.0
    %808 = vmatmul.mubr.f32.gmra.mrb[0].mxu0 %v735
    %v809 = vpop.f32.mrb[0].mxu0
    %v810 = vadd.f32 %v723, %v809
    %v811 = vpop.f32.mrb[0].mxu0
    %v812 = vadd.f32 %v727, %v811
    %813 = vdwg.mxu0
    %v818 = vcombine.low %v804, %v806
    %v819 = vcombine.high %v804, %v806
    %v821 = vunpack.c.l.s4 1983009808
    %v822 = vunpack.c.0.s8 %v821
    %v823 = vlaneseq
    %v824 = vshrl.u32 %v823, 7
    %v825 = vsub.s32 %v822, %v824
    %v826 = vrot.slane %v818, %v825
    %v828 = vunpack.c.l.s4 1983009808
    %v829 = vunpack.c.0.s8 %v828
    %v830 = vlaneseq
    %v831 = vshrl.u32 %v830, 7
    %v832 = vsub.s32 %v829, %v831
    %v833 = vrot.slane %v819, %v832
    %v834 = vcombine.high %v826, %v826
    %v835 = vcombine.high %v833, %v833
    %v836 = vcombine.low %v810, %v812
    %v837 = vcombine.high %v810, %v812
    %v839 = vunpack.c.l.s4 1983009808
    %v840 = vunpack.c.0.s8 %v839
    %v841 = vlaneseq
    %v842 = vshrl.u32 %v841, 7
    %v843 = vsub.s32 %v840, %v842
    %v844 = vrot.slane %v836, %v843
    %v846 = vunpack.c.l.s4 1983009808
    %v847 = vunpack.c.0.s8 %v846
    %v848 = vlaneseq
    %v849 = vshrl.u32 %v848, 7
    %v850 = vsub.s32 %v847, %v849
    %v851 = vrot.slane %v837, %v850
    %v852 = vcombine.high %v844, %v844
    %v853 = vcombine.high %v851, %v851
    %v854 = vsel %vm31, 1, 0
    %v855 = vsel %vm32, 1, 0
    %vm856 = vcmp.eq.s32.totalorder %v854, 1
    %vm857 = vcmp.eq.s32.totalorder %v855, 1
    %v859 = vunpack.c.l.s4 1983009808
    %v860 = vunpack.c.0.s8 %v859
    %v861 = vlaneseq
    %v862 = vshrl.u32 %v861, 7
    %v863 = vsub.s32 %v860, %v862
    %v864 = vrot.slane %v826, %v863
    %v865 = vcombine.high %v864, %v864
    %v869 = vunpack.c.l.s4 1983009808
    %v870 = vunpack.c.0.s8 %v869
    %v871 = vlaneseq
    %v872 = vshrl.u32 %v871, 7
    %v873 = vsub.s32 %v870, %v872
    %v874 = vrot.slane %v853, %v873
    %v875 = vcombine.high %v874, %v874
    %v878 = vsel %vm856, %v864, %v874
    %v879 = vsel %vm857, %v865, %v875
    %v880 = vxor.u32 %v878, 2147483648
    %v881 = vxor.u32 %v879, 2147483648
    %v882 = vmul.f32 %v880, 1.442695
    %v883 = vpow.pop %v882
    %v884 = vmul.f32 %v881, 1.442695
    %v885 = vpow.pop %v884
    %v886 = vadd.f32 %v883, 1.0
    %v887 = vadd.f32 %v885, 1.0
    %v888 = vrcp.pop %v886
    %v889 = vmul.f32 1.0, %v888
    %v890 = vrcp.pop %v887
    %v891 = vmul.f32 1.0, %v890
    %v892 = vtanh.pop %v879
    %v893 = vmul.f32 %v889, 0.0
    %v894 = vmul.f32 %v889, %v892
    %896 = vrot.lane.b32.xlu0 %v894, 64
    %v897 = vpop.permute.xlu0 %896
    %v899 = vadd.f32 %v893, %v897
    %v900 = vtanh.pop %v899
    %v901 = vmul.f32 %v891, %v900
    %903 = vrot.lane.b32.xlu0 %v901, 64
    %v904 = vpop.permute.xlu0 %903
    %vm906 = vcmask 254976
    %907 = vst.msk [vmem:[#allocation2] sm:$0x3] %vm906, %v904
    %s908 = scalar_lea.vmem [#allocation2], 14
    %vm909 = vcmask 517376
    %910 = vst.msk [vmem:[%s908] sm:$0x3] %vm909, %v904
    %v912 = vunpack.c.l.s4 1983009808
    %v913 = vunpack.c.0.s8 %v912
    %v914 = vlaneseq
    %v915 = vshrl.u32 %v914, 7
    %v916 = vsub.s32 %v913, %v915
    %v917 = vrot.slane %v834, %v916
    %v918 = vcombine.high %v917, %v917
    %v922 = vunpack.c.l.s4 1983009808
    %v923 = vunpack.c.0.s8 %v922
    %v924 = vlaneseq
    %v925 = vshrl.u32 %v924, 7
    %v926 = vsub.s32 %v923, %v925
    %v927 = vrot.slane %v851, %v926
    %v928 = vcombine.high %v927, %v927
    %v931 = vsel %vm856, %v917, %v927
    %v932 = vsel %vm857, %v918, %v928
    %vm933 = vcmask 523264
    %v934 = vsel %vm933, %v904, 0
    %936 = vmatprep.subr.mxu0 %v702
    %937 = vmatpush1.msra.mxu0 %v701
    %938 = vmatprep.subr.mxu0 %v704
    %939 = vmatpush1.msra.mxu0 %v703
    %940 = vmatprep.subr.mxu0 %v706
    %941 = vmatpush1.msra.mxu0 %v705
    %942 = vmatprep.subr.mxu0 %v708
    %943 = vmatpush1.msra.mxu0 %v707
    %944 = vmatprep.subr.mxu0 %v710
    %945 = vmatpush1.msra.mxu0 %v709
    %946 = vmatprep.subr.mxu0 %v712
    %947 = vmatpush1.msra.mxu0 %v711
    %948 = vmatprep.subr.mxu0 %v714
    %949 = vmatpush1.msra.mxu0 %v713
    %950 = vmatprep.subr.mxu0 %v716
    %951 = vmatpush1.msra.mxu0 %v715
    %952 = vmatprep.subr.mxu0 0.0
    %953 = vmatpush1.msra.mxu0 0.0
    %954 = vmatprep.subr.mxu0 0.0
    %955 = vmatpush1.msra.mxu0 0.0
    %956 = vmatprep.subr.mxu0 0.0
    %957 = vmatpush1.msra.mxu0 0.0
    %958 = vmatprep.subr.mxu0 0.0
    %959 = vmatpush1.msra.mxu0 0.0
    %960 = vmatprep.subr.mxu0 0.0
    %961 = vmatpush1.msra.mxu0 0.0
    %962 = vmatprep.subr.mxu0 0.0
    %963 = vmatpush1.msra.mxu0 0.0
    %964 = vmatprep.subr.mxu0 0.0
    %965 = vmatpush1.msra.mxu0 0.0
    %966 = vmatprep.subr.mxu0 0.0
    %967 = vmatpush1.msra.mxu0 0.0
    %968 = vmatprep.subr.mxu0 0.0
    %969 = vmatpush1.msra.mxu0 0.0
    %970 = vmatprep.subr.mxu0 0.0
    %971 = vmatpush1.msra.mxu0 0.0
    %972 = vmatprep.subr.mxu0 0.0
    %973 = vmatpush1.msra.mxu0 0.0
    %974 = vmatprep.subr.mxu0 0.0
    %975 = vmatpush1.msra.mxu0 0.0
    %976 = vmatprep.subr.mxu0 0.0
    %977 = vmatpush1.msra.mxu0 0.0
    %978 = vmatprep.subr.mxu0 0.0
    %979 = vmatpush1.msra.mxu0 0.0
    %980 = vmatprep.subr.mxu0 0.0
    %981 = vmatpush1.msra.mxu0 0.0
    %982 = vmatprep.subr.mxu0 0.0
    %983 = vmatpush1.msra.mxu0 0.0
    %984 = vmatprep.subr.mxu0 0.0
    %985 = vmatpush1.msra.mxu0 0.0
    %986 = vmatprep.subr.mxu0 0.0
    %987 = vmatpush1.msra.mxu0 0.0
    %988 = vmatprep.subr.mxu0 0.0
    %989 = vmatpush1.msra.mxu0 0.0
    %990 = vmatprep.subr.mxu0 0.0
    %991 = vmatpush1.msra.mxu0 0.0
    %992 = vmatprep.subr.mxu0 0.0
    %993 = vmatpush1.msra.mxu0 0.0
    %994 = vmatprep.subr.mxu0 0.0
    %995 = vmatpush1.msra.mxu0 0.0
    %996 = vmatprep.subr.mxu0 0.0
    %997 = vmatpush1.msra.mxu0 0.0
    %998 = vmatprep.subr.mxu0 0.0
    %999 = vmatpush1.msra.mxu0 0.0
    %1000 = vmatprep.mubr.f32.mxu0 0.0
    %1001 = vmatmul.mubr.f32.gmra.mrb[0].mxu0 %v934
    %v1002 = vpop.f32.mrb[0].mxu0
    %v1003 = vadd.f32 0.0, %v1002
    %v1004 = vpop.f32.mrb[0].mxu0
    %v1005 = vadd.f32 0.0, %v1004
    %1006 = vdwg.mxu0
    %v1007 = vadd.f32 %v931, %v1003
    %v1008 = vadd.f32 %v932, %v1005
    %v1009 = vxor.u32 %v1007, 2147483648
    %v1010 = vxor.u32 %v1008, 2147483648
    %v1011 = vmul.f32 %v1009, 1.442695
    %v1012 = vpow.pop %v1011
    %v1013 = vmul.f32 %v1010, 1.442695
    %v1014 = vpow.pop %v1013
    %v1015 = vadd.f32 %v1012, 1.0
    %v1016 = vadd.f32 %v1014, 1.0
    %v1017 = vrcp.pop %v1015
    %v1018 = vmul.f32 1.0, %v1017
    %v1019 = vrcp.pop %v1016
    %v1020 = vmul.f32 1.0, %v1019
    %v1021 = vtanh.pop %v1008
    %v1022 = vmul.f32 %v1018, %v899
    %v1023 = vmul.f32 %v1018, %v1021
    %1025 = vrot.lane.b32.xlu0 %v1023, 64
    %v1026 = vpop.permute.xlu0 %1025
    %v1028 = vadd.f32 %v1022, %v1026
    %v1029 = vtanh.pop %v1028
    %v1030 = vmul.f32 %v1020, %v1029
    %1032 = vrot.lane.b32.xlu0 %v1030, 64
    %v1033 = vpop.permute.xlu0 %1032
    %s1035 = scalar_lea.vmem [#allocation2], 2
    %1036 = vst.msk [vmem:[%s1035] sm:$0x3] %vm906, %v1033
    %s1037 = scalar_lea.vmem [#allocation2], 12
    %1038 = vst.msk [vmem:[%s1037] sm:$0x3] %vm909, %v1033
    %v1040 = vunpack.c.l.s4 1983009808
    %v1041 = vunpack.c.0.s8 %v1040
    %v1042 = vlaneseq
    %v1043 = vshrl.u32 %v1042, 7
    %v1044 = vsub.s32 %v1041, %v1043
    %v1045 = vrot.slane %v833, %v1044
    %v1046 = vcombine.high %v1045, %v1045
    %v1050 = vunpack.c.l.s4 1983009808
    %v1051 = vunpack.c.0.s8 %v1050
    %v1052 = vlaneseq
    %v1053 = vshrl.u32 %v1052, 7
    %v1054 = vsub.s32 %v1051, %v1053
    %v1055 = vrot.slane %v852, %v1054
    %v1056 = vcombine.high %v1055, %v1055
    %v1059 = vsel %vm856, %v1045, %v1055
    %v1060 = vsel %vm857, %v1046, %v1056
    %v1061 = vsel %vm933, %v1033, 0
    %1063 = vmatprep.subr.mxu0 %v702
    %1064 = vmatpush1.msra.mxu0 %v701
    %1065 = vmatprep.subr.mxu0 %v704
    %1066 = vmatpush1.msra.mxu0 %v703
    %1067 = vmatprep.subr.mxu0 %v706
    %1068 = vmatpush1.msra.mxu0 %v705
    %1069 = vmatprep.subr.mxu0 %v708
    %1070 = vmatpush1.msra.mxu0 %v707
    %1071 = vmatprep.subr.mxu0 %v710
    %1072 = vmatpush1.msra.mxu0 %v709
    %1073 = vmatprep.subr.mxu0 %v712
    %1074 = vmatpush1.msra.mxu0 %v711
    %1075 = vmatprep.subr.mxu0 %v714
    %1076 = vmatpush1.msra.mxu0 %v713
    %1077 = vmatprep.subr.mxu0 %v716
    %1078 = vmatpush1.msra.mxu0 %v715
    %1079 = vmatprep.subr.mxu0 0.0
    %1080 = vmatpush1.msra.mxu0 0.0
    %1081 = vmatprep.subr.mxu0 0.0
    %1082 = vmatpush1.msra.mxu0 0.0
    %1083 = vmatprep.subr.mxu0 0.0
    %1084 = vmatpush1.msra.mxu0 0.0
    %1085 = vmatprep.subr.mxu0 0.0
    %1086 = vmatpush1.msra.mxu0 0.0
    %1087 = vmatprep.subr.mxu0 0.0
    %1088 = vmatpush1.msra.mxu0 0.0
    %1089 = vmatprep.subr.mxu0 0.0
    %1090 = vmatpush1.msra.mxu0 0.0
    %1091 = vmatprep.subr.mxu0 0.0
    %1092 = vmatpush1.msra.mxu0 0.0
    %1093 = vmatprep.subr.mxu0 0.0
    %1094 = vmatpush1.msra.mxu0 0.0
    %1095 = vmatprep.subr.mxu0 0.0
    %1096 = vmatpush1.msra.mxu0 0.0
    %1097 = vmatprep.subr.mxu0 0.0
    %1098 = vmatpush1.msra.mxu0 0.0
    %1099 = vmatprep.subr.mxu0 0.0
    %1100 = vmatpush1.msra.mxu0 0.0
    %1101 = vmatprep.subr.mxu0 0.0
    %1102 = vmatpush1.msra.mxu0 0.0
    %1103 = vmatprep.subr.mxu0 0.0
    %1104 = vmatpush1.msra.mxu0 0.0
    %1105 = vmatprep.subr.mxu0 0.0
    %1106 = vmatpush1.msra.mxu0 0.0
    %1107 = vmatprep.subr.mxu0 0.0
    %1108 = vmatpush1.msra.mxu0 0.0
    %1109 = vmatprep.subr.mxu0 0.0
    %1110 = vmatpush1.msra.mxu0 0.0
    %1111 = vmatprep.subr.mxu0 0.0
    %1112 = vmatpush1.msra.mxu0 0.0
    %1113 = vmatprep.subr.mxu0 0.0
    %1114 = vmatpush1.msra.mxu0 0.0
    %1115 = vmatprep.subr.mxu0 0.0
    %1116 = vmatpush1.msra.mxu0 0.0
    %1117 = vmatprep.subr.mxu0 0.0
    %1118 = vmatpush1.msra.mxu0 0.0
    %1119 = vmatprep.subr.mxu0 0.0
    %1120 = vmatpush1.msra.mxu0 0.0
    %1121 = vmatprep.subr.mxu0 0.0
    %1122 = vmatpush1.msra.mxu0 0.0
    %1123 = vmatprep.subr.mxu0 0.0
    %1124 = vmatpush1.msra.mxu0 0.0
    %1125 = vmatprep.subr.mxu0 0.0
    %1126 = vmatpush1.msra.mxu0 0.0
    %1127 = vmatprep.mubr.f32.mxu0 0.0
    %1128 = vmatmul.mubr.f32.gmra.mrb[0].mxu0 %v1061
    %v1129 = vpop.f32.mrb[0].mxu0
    %v1130 = vadd.f32 0.0, %v1129
    %v1131 = vpop.f32.mrb[0].mxu0
    %v1132 = vadd.f32 0.0, %v1131
    %1133 = vdwg.mxu0
    %v1134 = vadd.f32 %v1059, %v1130
    %v1135 = vadd.f32 %v1060, %v1132
    %v1136 = vxor.u32 %v1134, 2147483648
    %v1137 = vxor.u32 %v1135, 2147483648
    %v1138 = vmul.f32 %v1136, 1.442695
    %v1139 = vpow.pop %v1138
    %v1140 = vmul.f32 %v1137, 1.442695
    %v1141 = vpow.pop %v1140
    %v1142 = vadd.f32 %v1139, 1.0
    %v1143 = vadd.f32 %v1141, 1.0
    %v1144 = vrcp.pop %v1142
    %v1145 = vmul.f32 1.0, %v1144
    %v1146 = vrcp.pop %v1143
    %v1147 = vmul.f32 1.0, %v1146
    %v1148 = vtanh.pop %v1135
    %v1149 = vmul.f32 %v1145, %v1028
    %v1150 = vmul.f32 %v1145, %v1148
    %1152 = vrot.lane.b32.xlu0 %v1150, 64
    %v1153 = vpop.permute.xlu0 %1152
    %v1155 = vadd.f32 %v1149, %v1153
    %v1156 = vtanh.pop %v1155
    %v1157 = vmul.f32 %v1147, %v1156
    %1159 = vrot.lane.b32.xlu0 %v1157, 64
    %v1160 = vpop.permute.xlu0 %1159
    %s1162 = scalar_lea.vmem [#allocation2], 4
    %1163 = vst.msk [vmem:[%s1162] sm:$0x3] %vm906, %v1160
    %s1164 = scalar_lea.vmem [#allocation2], 10
    %1165 = vst.msk [vmem:[%s1164] sm:$0x3] %vm909, %v1160
    %v1167 = vunpack.c.l.s4 1983009808
    %v1168 = vunpack.c.0.s8 %v1167
    %v1169 = vlaneseq
    %v1170 = vshrl.u32 %v1169, 7
    %v1171 = vsub.s32 %v1168, %v1170
    %v1172 = vrot.slane %v835, %v1171
    %v1173 = vcombine.high %v1172, %v1172
    %v1177 = vunpack.c.l.s4 1983009808
    %v1178 = vunpack.c.0.s8 %v1177
    %v1179 = vlaneseq
    %v1180 = vshrl.u32 %v1179, 7
    %v1181 = vsub.s32 %v1178, %v1180
    %v1182 = vrot.slane %v844, %v1181
    %v1183 = vcombine.high %v1182, %v1182
    %v1186 = vsel %vm856, %v1172, %v1182
    %v1187 = vsel %vm857, %v1173, %v1183
    %v1188 = vsel %vm933, %v1160, 0
    %1190 = vmatprep.subr.mxu0 %v702
    %1191 = vmatpush1.msra.mxu0 %v701
    %1192 = vmatprep.subr.mxu0 %v704
    %1193 = vmatpush1.msra.mxu0 %v703
    %1194 = vmatprep.subr.mxu0 %v706
    %1195 = vmatpush1.msra.mxu0 %v705
    %1196 = vmatprep.subr.mxu0 %v708
    %1197 = vmatpush1.msra.mxu0 %v707
    %1198 = vmatprep.subr.mxu0 %v710
    %1199 = vmatpush1.msra.mxu0 %v709
    %1200 = vmatprep.subr.mxu0 %v712
    %1201 = vmatpush1.msra.mxu0 %v711
    %1202 = vmatprep.subr.mxu0 %v714
    %1203 = vmatpush1.msra.mxu0 %v713
    %1204 = vmatprep.subr.mxu0 %v716
    %1205 = vmatpush1.msra.mxu0 %v715
    %1206 = vmatprep.subr.mxu0 0.0
    %1207 = vmatpush1.msra.mxu0 0.0
    %1208 = vmatprep.subr.mxu0 0.0
    %1209 = vmatpush1.msra.mxu0 0.0
    %1210 = vmatprep.subr.mxu0 0.0
    %1211 = vmatpush1.msra.mxu0 0.0
    %1212 = vmatprep.subr.mxu0 0.0
    %1213 = vmatpush1.msra.mxu0 0.0
    %1214 = vmatprep.subr.mxu0 0.0
    %1215 = vmatpush1.msra.mxu0 0.0
    %1216 = vmatprep.subr.mxu0 0.0
    %1217 = vmatpush1.msra.mxu0 0.0
    %1218 = vmatprep.subr.mxu0 0.0
    %1219 = vmatpush1.msra.mxu0 0.0
    %1220 = vmatprep.subr.mxu0 0.0
    %1221 = vmatpush1.msra.mxu0 0.0
    %1222 = vmatprep.subr.mxu0 0.0
    %1223 = vmatpush1.msra.mxu0 0.0
    %1224 = vmatprep.subr.mxu0 0.0
    %1225 = vmatpush1.msra.mxu0 0.0
    %1226 = vmatprep.subr.mxu0 0.0
    %1227 = vmatpush1.msra.mxu0 0.0
    %1228 = vmatprep.subr.mxu0 0.0
    %1229 = vmatpush1.msra.mxu0 0.0
    %1230 = vmatprep.subr.mxu0 0.0
    %1231 = vmatpush1.msra.mxu0 0.0
    %1232 = vmatprep.subr.mxu0 0.0
    %1233 = vmatpush1.msra.mxu0 0.0
    %1234 = vmatprep.subr.mxu0 0.0
    %1235 = vmatpush1.msra.mxu0 0.0
    %1236 = vmatprep.subr.mxu0 0.0
    %1237 = vmatpush1.msra.mxu0 0.0
    %1238 = vmatprep.subr.mxu0 0.0
    %1239 = vmatpush1.msra.mxu0 0.0
    %1240 = vmatprep.subr.mxu0 0.0
    %1241 = vmatpush1.msra.mxu0 0.0
    %1242 = vmatprep.subr.mxu0 0.0
    %1243 = vmatpush1.msra.mxu0 0.0
    %1244 = vmatprep.subr.mxu0 0.0
    %1245 = vmatpush1.msra.mxu0 0.0
    %1246 = vmatprep.subr.mxu0 0.0
    %1247 = vmatpush1.msra.mxu0 0.0
    %1248 = vmatprep.subr.mxu0 0.0
    %1249 = vmatpush1.msra.mxu0 0.0
    %1250 = vmatprep.subr.mxu0 0.0
    %1251 = vmatpush1.msra.mxu0 0.0
    %1252 = vmatprep.subr.mxu0 0.0
    %1253 = vmatpush1.msra.mxu0 0.0
    %1254 = vmatprep.mubr.f32.mxu0 0.0
    %1255 = vmatmul.mubr.f32.gmra.mrb[0].mxu0 %v1188
    %v1256 = vpop.f32.mrb[0].mxu0
    %v1257 = vadd.f32 0.0, %v1256
    %v1258 = vpop.f32.mrb[0].mxu0
    %v1259 = vadd.f32 0.0, %v1258
    %1260 = vdwg.mxu0
    %v1261 = vadd.f32 %v1186, %v1257
    %v1262 = vadd.f32 %v1187, %v1259
    %v1263 = vxor.u32 %v1261, 2147483648
    %v1264 = vxor.u32 %v1262, 2147483648
    %v1265 = vmul.f32 %v1263, 1.442695
    %v1266 = vpow.pop %v1265
    %v1267 = vmul.f32 %v1264, 1.442695
    %v1268 = vpow.pop %v1267
    %v1269 = vadd.f32 %v1266, 1.0
    %v1270 = vadd.f32 %v1268, 1.0
    %v1271 = vrcp.pop %v1269
    %v1272 = vmul.f32 1.0, %v1271
    %v1273 = vrcp.pop %v1270
    %v1274 = vmul.f32 1.0, %v1273
    %v1275 = vtanh.pop %v1262
    %v1276 = vmul.f32 %v1272, %v1155
    %v1277 = vmul.f32 %v1272, %v1275
    %1279 = vrot.lane.b32.xlu0 %v1277, 64
    %v1280 = vpop.permute.xlu0 %1279
    %v1282 = vadd.f32 %v1276, %v1280
    %v1283 = vtanh.pop %v1282
    %v1284 = vmul.f32 %v1274, %v1283
    %1286 = vrot.lane.b32.xlu0 %v1284, 64
    %v1287 = vpop.permute.xlu0 %1286
    %s1289 = scalar_lea.vmem [#allocation2], 6
    %1290 = vst.msk [vmem:[%s1289] sm:$0x3] %vm906, %v1287
    %s1291 = scalar_lea.vmem [#allocation2], 8
    %1292 = vst.msk [vmem:[%s1291] sm:$0x3] %vm909, %v1287
    %v1293 = vsel %vm856, %v1182, %v1172
    %v1294 = vsel %vm857, %v1183, %v1173
    %v1295 = vsel %vm933, %v1287, 0
    %1297 = vmatprep.subr.mxu0 %v702
    %1298 = vmatpush1.msra.mxu0 %v701
    %1299 = vmatprep.subr.mxu0 %v704
    %1300 = vmatpush1.msra.mxu0 %v703
    %1301 = vmatprep.subr.mxu0 %v706
    %1302 = vmatpush1.msra.mxu0 %v705
    %1303 = vmatprep.subr.mxu0 %v708
    %1304 = vmatpush1.msra.mxu0 %v707
    %1305 = vmatprep.subr.mxu0 %v710
    %1306 = vmatpush1.msra.mxu0 %v709
    %1307 = vmatprep.subr.mxu0 %v712
    %1308 = vmatpush1.msra.mxu0 %v711
    %1309 = vmatprep.subr.mxu0 %v714
    %1310 = vmatpush1.msra.mxu0 %v713
    %1311 = vmatprep.subr.mxu0 %v716
    %1312 = vmatpush1.msra.mxu0 %v715
    %1313 = vmatprep.subr.mxu0 0.0
    %1314 = vmatpush1.msra.mxu0 0.0
    %1315 = vmatprep.subr.mxu0 0.0
    %1316 = vmatpush1.msra.mxu0 0.0
    %1317 = vmatprep.subr.mxu0 0.0
    %1318 = vmatpush1.msra.mxu0 0.0
    %1319 = vmatprep.subr.mxu0 0.0
    %1320 = vmatpush1.msra.mxu0 0.0
    %1321 = vmatprep.subr.mxu0 0.0
    %1322 = vmatpush1.msra.mxu0 0.0
    %1323 = vmatprep.subr.mxu0 0.0
    %1324 = vmatpush1.msra.mxu0 0.0
    %1325 = vmatprep.subr.mxu0 0.0
    %1326 = vmatpush1.msra.mxu0 0.0
    %1327 = vmatprep.subr.mxu0 0.0
    %1328 = vmatpush1.msra.mxu0 0.0
    %1329 = vmatprep.subr.mxu0 0.0
    %1330 = vmatpush1.msra.mxu0 0.0
    %1331 = vmatprep.subr.mxu0 0.0
    %1332 = vmatpush1.msra.mxu0 0.0
    %1333 = vmatprep.subr.mxu0 0.0
    %1334 = vmatpush1.msra.mxu0 0.0
    %1335 = vmatprep.subr.mxu0 0.0
    %1336 = vmatpush1.msra.mxu0 0.0
    %1337 = vmatprep.subr.mxu0 0.0
    %1338 = vmatpush1.msra.mxu0 0.0
    %1339 = vmatprep.subr.mxu0 0.0
    %1340 = vmatpush1.msra.mxu0 0.0
    %1341 = vmatprep.subr.mxu0 0.0
    %1342 = vmatpush1.msra.mxu0 0.0
    %1343 = vmatprep.subr.mxu0 0.0
    %1344 = vmatpush1.msra.mxu0 0.0
    %1345 = vmatprep.subr.mxu0 0.0
    %1346 = vmatpush1.msra.mxu0 0.0
    %1347 = vmatprep.subr.mxu0 0.0
    %1348 = vmatpush1.msra.mxu0 0.0
    %1349 = vmatprep.subr.mxu0 0.0
    %1350 = vmatpush1.msra.mxu0 0.0
    %1351 = vmatprep.subr.mxu0 0.0
    %1352 = vmatpush1.msra.mxu0 0.0
    %1353 = vmatprep.subr.mxu0 0.0
    %1354 = vmatpush1.msra.mxu0 0.0
    %1355 = vmatprep.subr.mxu0 0.0
    %1356 = vmatpush1.msra.mxu0 0.0
    %1357 = vmatprep.subr.mxu0 0.0
    %1358 = vmatpush1.msra.mxu0 0.0
    %1359 = vmatprep.subr.mxu0 0.0
    %1360 = vmatpush1.msra.mxu0 0.0
    %1361 = vmatprep.mubr.f32.mxu0 0.0
    %1362 = vmatmul.mubr.f32.gmra.mrb[0].mxu0 %v1295
    %v1363 = vpop.f32.mrb[0].mxu0
    %v1364 = vadd.f32 0.0, %v1363
    %v1365 = vpop.f32.mrb[0].mxu0
    %v1366 = vadd.f32 0.0, %v1365
    %1367 = vdwg.mxu0
    %v1368 = vadd.f32 %v1293, %v1364
    %v1369 = vadd.f32 %v1294, %v1366
    %v1370 = vxor.u32 %v1368, 2147483648
    %v1371 = vxor.u32 %v1369, 2147483648
    %v1372 = vmul.f32 %v1370, 1.442695
    %v1373 = vpow.pop %v1372
    %v1374 = vmul.f32 %v1371, 1.442695
    %v1375 = vpow.pop %v1374
    %v1376 = vadd.f32 %v1373, 1.0
    %v1377 = vadd.f32 %v1375, 1.0
    %v1378 = vrcp.pop %v1376
    %v1379 = vmul.f32 1.0, %v1378
    %v1380 = vrcp.pop %v1377
    %v1381 = vmul.f32 1.0, %v1380
    %v1382 = vtanh.pop %v1369
    %v1383 = vmul.f32 %v1379, %v1282
    %v1384 = vmul.f32 %v1379, %v1382
    %1386 = vrot.lane.b32.xlu0 %v1384, 64
    %v1387 = vpop.permute.xlu0 %1386
    %v1389 = vadd.f32 %v1383, %v1387
    %v1390 = vtanh.pop %v1389
    %v1391 = vmul.f32 %v1381, %v1390
    %1393 = vrot.lane.b32.xlu0 %v1391, 64
    %v1394 = vpop.permute.xlu0 %1393
    %1396 = vst.msk [vmem:[%s1291] sm:$0x3] %vm906, %v1394
    %1397 = vst.msk [vmem:[%s1289] sm:$0x3] %vm909, %v1394
    %v1398 = vsel %vm856, %v1055, %v1045
    %v1399 = vsel %vm857, %v1056, %v1046
    %v1400 = vsel %vm933, %v1394, 0
    %1402 = vmatprep.subr.mxu0 %v702
    %1403 = vmatpush1.msra.mxu0 %v701
    %1404 = vmatprep.subr.mxu0 %v704
    %1405 = vmatpush1.msra.mxu0 %v703
    %1406 = vmatprep.subr.mxu0 %v706
    %1407 = vmatpush1.msra.mxu0 %v705
    %1408 = vmatprep.subr.mxu0 %v708
    %1409 = vmatpush1.msra.mxu0 %v707
    %1410 = vmatprep.subr.mxu0 %v710
    %1411 = vmatpush1.msra.mxu0 %v709
    %1412 = vmatprep.subr.mxu0 %v712
    %1413 = vmatpush1.msra.mxu0 %v711
    %1414 = vmatprep.subr.mxu0 %v714
    %1415 = vmatpush1.msra.mxu0 %v713
    %1416 = vmatprep.subr.mxu0 %v716
    %1417 = vmatpush1.msra.mxu0 %v715
    %1418 = vmatprep.subr.mxu0 0.0
    %1419 = vmatpush1.msra.mxu0 0.0
    %1420 = vmatprep.subr.mxu0 0.0
    %1421 = vmatpush1.msra.mxu0 0.0
    %1422 = vmatprep.subr.mxu0 0.0
    %1423 = vmatpush1.msra.mxu0 0.0
    %1424 = vmatprep.subr.mxu0 0.0
    %1425 = vmatpush1.msra.mxu0 0.0
    %1426 = vmatprep.subr.mxu0 0.0
    %1427 = vmatpush1.msra.mxu0 0.0
    %1428 = vmatprep.subr.mxu0 0.0
    %1429 = vmatpush1.msra.mxu0 0.0
    %1430 = vmatprep.subr.mxu0 0.0
    %1431 = vmatpush1.msra.mxu0 0.0
    %1432 = vmatprep.subr.mxu0 0.0
    %1433 = vmatpush1.msra.mxu0 0.0
    %1434 = vmatprep.subr.mxu0 0.0
    %1435 = vmatpush1.msra.mxu0 0.0
    %1436 = vmatprep.subr.mxu0 0.0
    %1437 = vmatpush1.msra.mxu0 0.0
    %1438 = vmatprep.subr.mxu0 0.0
    %1439 = vmatpush1.msra.mxu0 0.0
    %1440 = vmatprep.subr.mxu0 0.0
    %1441 = vmatpush1.msra.mxu0 0.0
    %1442 = vmatprep.subr.mxu0 0.0
    %1443 = vmatpush1.msra.mxu0 0.0
    %1444 = vmatprep.subr.mxu0 0.0
    %1445 = vmatpush1.msra.mxu0 0.0
    %1446 = vmatprep.subr.mxu0 0.0
    %1447 = vmatpush1.msra.mxu0 0.0
    %1448 = vmatprep.subr.mxu0 0.0
    %1449 = vmatpush1.msra.mxu0 0.0
    %1450 = vmatprep.subr.mxu0 0.0
    %1451 = vmatpush1.msra.mxu0 0.0
    %1452 = vmatprep.subr.mxu0 0.0
    %1453 = vmatpush1.msra.mxu0 0.0
    %1454 = vmatprep.subr.mxu0 0.0
    %1455 = vmatpush1.msra.mxu0 0.0
    %1456 = vmatprep.subr.mxu0 0.0
    %1457 = vmatpush1.msra.mxu0 0.0
    %1458 = vmatprep.subr.mxu0 0.0
    %1459 = vmatpush1.msra.mxu0 0.0
    %1460 = vmatprep.subr.mxu0 0.0
    %1461 = vmatpush1.msra.mxu0 0.0
    %1462 = vmatprep.subr.mxu0 0.0
    %1463 = vmatpush1.msra.mxu0 0.0
    %1464 = vmatprep.subr.mxu0 0.0
    %1465 = vmatpush1.msra.mxu0 0.0
    %1466 = vmatprep.mubr.f32.mxu0 0.0
    %1467 = vmatmul.mubr.f32.gmra.mrb[0].mxu0 %v1400
    %v1468 = vpop.f32.mrb[0].mxu0
    %v1469 = vadd.f32 0.0, %v1468
    %v1470 = vpop.f32.mrb[0].mxu0
    %v1471 = vadd.f32 0.0, %v1470
    %1472 = vdwg.mxu0
    %v1473 = vadd.f32 %v1398, %v1469
    %v1474 = vadd.f32 %v1399, %v1471
    %v1475 = vxor.u32 %v1473, 2147483648
    %v1476 = vxor.u32 %v1474, 2147483648
    %v1477 = vmul.f32 %v1475, 1.442695
    %v1478 = vpow.pop %v1477
    %v1479 = vmul.f32 %v1476, 1.442695
    %v1480 = vpow.pop %v1479
    %v1481 = vadd.f32 %v1478, 1.0
    %v1482 = vadd.f32 %v1480, 1.0
    %v1483 = vrcp.pop %v1481
    %v1484 = vmul.f32 1.0, %v1483
    %v1485 = vrcp.pop %v1482
    %v1486 = vmul.f32 1.0, %v1485
    %v1487 = vtanh.pop %v1474
    %v1488 = vmul.f32 %v1484, %v1389
    %v1489 = vmul.f32 %v1484, %v1487
    %1491 = vrot.lane.b32.xlu0 %v1489, 64
    %v1492 = vpop.permute.xlu0 %1491
    %v1494 = vadd.f32 %v1488, %v1492
    %v1495 = vtanh.pop %v1494
    %v1496 = vmul.f32 %v1486, %v1495
    %1498 = vrot.lane.b32.xlu0 %v1496, 64
    %v1499 = vpop.permute.xlu0 %1498
    %1501 = vst.msk [vmem:[%s1164] sm:$0x3] %vm906, %v1499
    %1502 = vst.msk [vmem:[%s1162] sm:$0x3] %vm909, %v1499
    %v1503 = vsel %vm856, %v927, %v917
    %v1504 = vsel %vm857, %v928, %v918
    %v1505 = vsel %vm933, %v1499, 0
    %1507 = vmatprep.subr.mxu0 %v702
    %1508 = vmatpush1.msra.mxu0 %v701
    %1509 = vmatprep.subr.mxu0 %v704
    %1510 = vmatpush1.msra.mxu0 %v703
    %1511 = vmatprep.subr.mxu0 %v706
    %1512 = vmatpush1.msra.mxu0 %v705
    %1513 = vmatprep.subr.mxu0 %v708
    %1514 = vmatpush1.msra.mxu0 %v707
    %1515 = vmatprep.subr.mxu0 %v710
    %1516 = vmatpush1.msra.mxu0 %v709
    %1517 = vmatprep.subr.mxu0 %v712
    %1518 = vmatpush1.msra.mxu0 %v711
    %1519 = vmatprep.subr.mxu0 %v714
    %1520 = vmatpush1.msra.mxu0 %v713
    %1521 = vmatprep.subr.mxu0 %v716
    %1522 = vmatpush1.msra.mxu0 %v715
    %1523 = vmatprep.subr.mxu0 0.0
    %1524 = vmatpush1.msra.mxu0 0.0
    %1525 = vmatprep.subr.mxu0 0.0
    %1526 = vmatpush1.msra.mxu0 0.0
    %1527 = vmatprep.subr.mxu0 0.0
    %1528 = vmatpush1.msra.mxu0 0.0
    %1529 = vmatprep.subr.mxu0 0.0
    %1530 = vmatpush1.msra.mxu0 0.0
    %1531 = vmatprep.subr.mxu0 0.0
    %1532 = vmatpush1.msra.mxu0 0.0
    %1533 = vmatprep.subr.mxu0 0.0
    %1534 = vmatpush1.msra.mxu0 0.0
    %1535 = vmatprep.subr.mxu0 0.0
    %1536 = vmatpush1.msra.mxu0 0.0
    %1537 = vmatprep.subr.mxu0 0.0
    %1538 = vmatpush1.msra.mxu0 0.0
    %1539 = vmatprep.subr.mxu0 0.0
    %1540 = vmatpush1.msra.mxu0 0.0
    %1541 = vmatprep.subr.mxu0 0.0
    %1542 = vmatpush1.msra.mxu0 0.0
    %1543 = vmatprep.subr.mxu0 0.0
    %1544 = vmatpush1.msra.mxu0 0.0
    %1545 = vmatprep.subr.mxu0 0.0
    %1546 = vmatpush1.msra.mxu0 0.0
    %1547 = vmatprep.subr.mxu0 0.0
    %1548 = vmatpush1.msra.mxu0 0.0
    %1549 = vmatprep.subr.mxu0 0.0
    %1550 = vmatpush1.msra.mxu0 0.0
    %1551 = vmatprep.subr.mxu0 0.0
    %1552 = vmatpush1.msra.mxu0 0.0
    %1553 = vmatprep.subr.mxu0 0.0
    %1554 = vmatpush1.msra.mxu0 0.0
    %1555 = vmatprep.subr.mxu0 0.0
    %1556 = vmatpush1.msra.mxu0 0.0
    %1557 = vmatprep.subr.mxu0 0.0
    %1558 = vmatpush1.msra.mxu0 0.0
    %1559 = vmatprep.subr.mxu0 0.0
    %1560 = vmatpush1.msra.mxu0 0.0
    %1561 = vmatprep.subr.mxu0 0.0
    %1562 = vmatpush1.msra.mxu0 0.0
    %1563 = vmatprep.subr.mxu0 0.0
    %1564 = vmatpush1.msra.mxu0 0.0
    %1565 = vmatprep.subr.mxu0 0.0
    %1566 = vmatpush1.msra.mxu0 0.0
    %1567 = vmatprep.subr.mxu0 0.0
    %1568 = vmatpush1.msra.mxu0 0.0
    %1569 = vmatprep.subr.mxu0 0.0
    %1570 = vmatpush1.msra.mxu0 0.0
    %1571 = vmatprep.mubr.f32.mxu0 0.0
    %1572 = vmatmul.mubr.f32.gmra.mrb[0].mxu0 %v1505
    %v1573 = vpop.f32.mrb[0].mxu0
    %v1574 = vadd.f32 0.0, %v1573
    %v1575 = vpop.f32.mrb[0].mxu0
    %v1576 = vadd.f32 0.0, %v1575
    %1577 = vdwg.mxu0
    %v1578 = vadd.f32 %v1503, %v1574
    %v1579 = vadd.f32 %v1504, %v1576
    %v1580 = vxor.u32 %v1578, 2147483648
    %v1581 = vxor.u32 %v1579, 2147483648
    %v1582 = vmul.f32 %v1580, 1.442695
    %v1583 = vpow.pop %v1582
    %v1584 = vmul.f32 %v1581, 1.442695
    %v1585 = vpow.pop %v1584
    %v1586 = vadd.f32 %v1583, 1.0
    %v1587 = vadd.f32 %v1585, 1.0
    %v1588 = vrcp.pop %v1586
    %v1589 = vmul.f32 1.0, %v1588
    %v1590 = vrcp.pop %v1587
    %v1591 = vmul.f32 1.0, %v1590
    %v1592 = vtanh.pop %v1579
    %v1593 = vmul.f32 %v1589, %v1494
    %v1594 = vmul.f32 %v1589, %v1592
    %1596 = vrot.lane.b32.xlu0 %v1594, 64
    %v1597 = vpop.permute.xlu0 %1596
    %v1599 = vadd.f32 %v1593, %v1597
    %v1600 = vtanh.pop %v1599
    %v1601 = vmul.f32 %v1591, %v1600
    %1603 = vrot.lane.b32.xlu0 %v1601, 64
    %v1604 = vpop.permute.xlu0 %1603
    %1606 = vst.msk [vmem:[%s1037] sm:$0x3] %vm906, %v1604
    %1607 = vst.msk [vmem:[%s1035] sm:$0x3] %vm909, %v1604
    %v1608 = vsel %vm856, %v874, %v864
    %v1609 = vsel %vm857, %v875, %v865
    %v1610 = vsel %vm933, %v1604, 0
    %1612 = vmatprep.subr.mxu0 %v702
    %1613 = vmatpush1.msra.mxu0 %v701
    %1614 = vmatprep.subr.mxu0 %v704
    %1615 = vmatpush1.msra.mxu0 %v703
    %1616 = vmatprep.subr.mxu0 %v706
    %1617 = vmatpush1.msra.mxu0 %v705
    %1618 = vmatprep.subr.mxu0 %v708
    %1619 = vmatpush1.msra.mxu0 %v707
    %1620 = vmatprep.subr.mxu0 %v710
    %1621 = vmatpush1.msra.mxu0 %v709
    %1622 = vmatprep.subr.mxu0 %v712
    %1623 = vmatpush1.msra.mxu0 %v711
    %1624 = vmatprep.subr.mxu0 %v714
    %1625 = vmatpush1.msra.mxu0 %v713
    %1626 = vmatprep.subr.mxu0 %v716
    %1627 = vmatpush1.msra.mxu0 %v715
    %1628 = vmatprep.subr.mxu0 0.0
    %1629 = vmatpush1.msra.mxu0 0.0
    %1630 = vmatprep.subr.mxu0 0.0
    %1631 = vmatpush1.msra.mxu0 0.0
    %1632 = vmatprep.subr.mxu0 0.0
    %1633 = vmatpush1.msra.mxu0 0.0
    %1634 = vmatprep.subr.mxu0 0.0
    %1635 = vmatpush1.msra.mxu0 0.0
    %1636 = vmatprep.subr.mxu0 0.0
    %1637 = vmatpush1.msra.mxu0 0.0
    %1638 = vmatprep.subr.mxu0 0.0
    %1639 = vmatpush1.msra.mxu0 0.0
    %1640 = vmatprep.subr.mxu0 0.0
    %1641 = vmatpush1.msra.mxu0 0.0
    %1642 = vmatprep.subr.mxu0 0.0
    %1643 = vmatpush1.msra.mxu0 0.0
    %1644 = vmatprep.subr.mxu0 0.0
    %1645 = vmatpush1.msra.mxu0 0.0
    %1646 = vmatprep.subr.mxu0 0.0
    %1647 = vmatpush1.msra.mxu0 0.0
    %1648 = vmatprep.subr.mxu0 0.0
    %1649 = vmatpush1.msra.mxu0 0.0
    %1650 = vmatprep.subr.mxu0 0.0
    %1651 = vmatpush1.msra.mxu0 0.0
    %1652 = vmatprep.subr.mxu0 0.0
    %1653 = vmatpush1.msra.mxu0 0.0
    %1654 = vmatprep.subr.mxu0 0.0
    %1655 = vmatpush1.msra.mxu0 0.0
    %1656 = vmatprep.subr.mxu0 0.0
    %1657 = vmatpush1.msra.mxu0 0.0
    %1658 = vmatprep.subr.mxu0 0.0
    %1659 = vmatpush1.msra.mxu0 0.0
    %1660 = vmatprep.subr.mxu0 0.0
    %1661 = vmatpush1.msra.mxu0 0.0
    %1662 = vmatprep.subr.mxu0 0.0
    %1663 = vmatpush1.msra.mxu0 0.0
    %1664 = vmatprep.subr.mxu0 0.0
    %1665 = vmatpush1.msra.mxu0 0.0
    %1666 = vmatprep.subr.mxu0 0.0
    %1667 = vmatpush1.msra.mxu0 0.0
    %1668 = vmatprep.subr.mxu0 0.0
    %1669 = vmatpush1.msra.mxu0 0.0
    %1670 = vmatprep.subr.mxu0 0.0
    %1671 = vmatpush1.msra.mxu0 0.0
    %1672 = vmatprep.subr.mxu0 0.0
    %1673 = vmatpush1.msra.mxu0 0.0
    %1674 = vmatprep.subr.mxu0 0.0
    %1675 = vmatpush1.msra.mxu0 0.0
    %1676 = vmatprep.mubr.f32.mxu0 0.0
    %1677 = vmatmul.mubr.f32.gmra.mrb[0].mxu0 %v1610
    %v1678 = vpop.f32.mrb[0].mxu0
    %v1679 = vadd.f32 0.0, %v1678
    %v1680 = vpop.f32.mrb[0].mxu0
    %v1681 = vadd.f32 0.0, %v1680
    %1682 = vdwg.mxu0
    %v1683 = vadd.f32 %v1608, %v1679
    %v1684 = vadd.f32 %v1609, %v1681
    %v1685 = vxor.u32 %v1683, 2147483648
    %v1686 = vxor.u32 %v1684, 2147483648
    %v1687 = vmul.f32 %v1685, 1.442695
    %v1688 = vpow.pop %v1687
    %v1689 = vmul.f32 %v1686, 1.442695
    %v1690 = vpow.pop %v1689
    %v1691 = vadd.f32 %v1688, 1.0
    %v1692 = vadd.f32 %v1690, 1.0
    %v1693 = vrcp.pop %v1691
    %v1694 = vmul.f32 1.0, %v1693
    %v1695 = vrcp.pop %v1692
    %v1696 = vmul.f32 1.0, %v1695
    %v1697 = vtanh.pop %v1684
    %v1698 = vmul.f32 %v1694, %v1599
    %v1699 = vmul.f32 %v1694, %v1697
    %1701 = vrot.lane.b32.xlu0 %v1699, 64
    %v1702 = vpop.permute.xlu0 %1701
    %v1704 = vadd.f32 %v1698, %v1702
    %v1705 = vtanh.pop %v1704
    %v1706 = vmul.f32 %v1696, %v1705
    %1708 = vrot.lane.b32.xlu0 %v1706, 64
    %v1709 = vpop.permute.xlu0 %1708
    %1711 = vst.msk [vmem:[%s908] sm:$0x3] %vm906, %v1709
    %1712 = vst.msk [vmem:[#allocation2] sm:$0x3] %vm909, %v1709
    %v1713 = vld [vmem:[#allocation2] sm:$0x3]
    %v1714 = vld [vmem:[#allocation2 + $0x2] sm:$0x3]
    %v1715 = vld [vmem:[#allocation2 + $0x4] sm:$0x3]
    %v1716 = vld [vmem:[#allocation2 + $0x6] sm:$0x3]
    %v1717 = vld [vmem:[#allocation2 + $0x8] sm:$0x3]
    %v1718 = vld [vmem:[#allocation2 + $0xa] sm:$0x3]
    %v1719 = vld [vmem:[#allocation2 + $0xc] sm:$0x3]
    %v1720 = vld [vmem:[#allocation2 + $0xe] sm:$0x3]
    %v1721 = vld [vmem:[#allocation3 + $0xd0] sm:$0xff]
    %v1722 = vld [vmem:[#allocation3 + $0xd8] sm:$0xff]
    %v1723 = vld [vmem:[#allocation3 + $0xe0] sm:$0xff]
    %v1724 = vld [vmem:[#allocation3 + $0xe8] sm:$0xff]
    %v1725 = vld [vmem:[#allocation3 + $0xf0] sm:$0xff]
    %v1726 = vld [vmem:[#allocation3 + $0xf8] sm:$0xff]
    %v1727 = vld [vmem:[#allocation3 + $0x100] sm:$0xff]
    %v1728 = vld [vmem:[#allocation3 + $0x108] sm:$0xff]
    %v1729 = vld [vmem:[#allocation3 + $0x110] sm:$0xff]
    %v1730 = vld [vmem:[#allocation3 + $0x118] sm:$0xff]
    %v1731 = vld [vmem:[#allocation3 + $0x120] sm:$0xff]
    %v1732 = vld [vmem:[#allocation3 + $0x128] sm:$0xff]
    %v1733 = vld [vmem:[#allocation3 + $0x130] sm:$0xff]
    %v1734 = vld [vmem:[#allocation3 + $0x138] sm:$0xff]
    %v1735 = vld [vmem:[#allocation3 + $0x140] sm:$0xff]
    %v1736 = vld [vmem:[#allocation3 + $0x148] sm:$0xff]
    %v1737 = vld [vmem:[#allocation3 + $0x150] sm:$0xff]
    %v1738 = vld [vmem:[#allocation3 + $0x158] sm:$0xff]
    %v1739 = vld [vmem:[#allocation3 + $0x160] sm:$0xff]
    %v1740 = vld [vmem:[#allocation3 + $0x168] sm:$0xff]
    %v1741 = vld [vmem:[#allocation3 + $0x170] sm:$0xff]
    %v1742 = vld [vmem:[#allocation3 + $0x178] sm:$0xff]
    %v1743 = vld [vmem:[#allocation3 + $0x180] sm:$0xff]
    %v1744 = vld [vmem:[#allocation3 + $0x188] sm:$0xff]
    %v1745 = vld [vmem:[#allocation3 + $0x190] sm:$0xff]
    %v1746 = vld [vmem:[#allocation3 + $0x198] sm:$0xff]
    %v1747 = vld [vmem:[#allocation3 + $0x1a0] sm:$0xff]
    %v1748 = vld [vmem:[#allocation3 + $0x1a8] sm:$0xff]
    %v1749 = vld [vmem:[#allocation3 + $0x1b0] sm:$0xff]
    %v1750 = vld [vmem:[#allocation3 + $0x1b8] sm:$0xff]
    %v1751 = vld [vmem:[#allocation3 + $0x1c0] sm:$0xff]
    %v1752 = vld [vmem:[#allocation3 + $0x1c8] sm:$0xff]
    %s1753 = scalar_lea.vmem [#allocation3], 464
    %v1754 = vld [vmem:[%s1753] ss:$8 sm:$0x3]
    %v1756 = vlaneseq
    %v1757 = vshrl.u32 %v1756, 7
    %v1758 = vsub.s32 0, %v1757
    %v1759 = vrot.slane %v1754, %v1758
    %v1760 = vlaneseq
    %v1761 = vshrl.u32 %v1760, 7
    %v1762 = vsub.s32 1, %v1761
    %v1763 = vrot.slane %v1754, %v1762
    %v1774 = vcombine.low %v1713, %v1714
    %v1775 = vcombine.low %v1715, %v1716
    %v1777 = vunpack.c.l.s4 1983009808
    %v1778 = vunpack.c.0.s8 %v1777
    %v1779 = vlaneseq
    %v1780 = vshrl.u32 %v1779, 7
    %v1781 = vsub.s32 %v1778, %v1780
    %v1782 = vrot.slane %v1774, %v1781
    %v1784 = vunpack.c.l.s4 1983009808
    %v1785 = vunpack.c.0.s8 %v1784
    %v1786 = vlaneseq
    %v1787 = vshrl.u32 %v1786, 7
    %v1788 = vsub.s32 %v1785, %v1787
    %v1789 = vrot.slane %v1775, %v1788
    %v1790 = vcombine.low %v1782, %v1789
    %v1791 = vcombine.low %v1717, %v1718
    %v1792 = vcombine.low %v1719, %v1720
    %v1794 = vunpack.c.l.s4 1983009808
    %v1795 = vunpack.c.0.s8 %v1794
    %v1796 = vlaneseq
    %v1797 = vshrl.u32 %v1796, 7
    %v1798 = vsub.s32 %v1795, %v1797
    %v1799 = vrot.slane %v1791, %v1798
    %v1801 = vunpack.c.l.s4 1983009808
    %v1802 = vunpack.c.0.s8 %v1801
    %v1803 = vlaneseq
    %v1804 = vshrl.u32 %v1803, 7
    %v1805 = vsub.s32 %v1802, %v1804
    %v1806 = vrot.slane %v1792, %v1805
    %v1807 = vcombine.low %v1799, %v1806
    %v1808 = vsel %vm933, %v1790, 0
    %v1810 = vsel %vm933, %v1807, 0
    %1812 = vmatprep.subr.mxu0 %v1722
    %1813 = vmatpush1.msra.mxu0 %v1721
    %1814 = vmatprep.subr.mxu0 %v1724
    %1815 = vmatpush1.msra.mxu0 %v1723
    %1816 = vmatprep.subr.mxu0 %v1726
    %1817 = vmatpush1.msra.mxu0 %v1725
    %1818 = vmatprep.subr.mxu0 %v1728
    %1819 = vmatpush1.msra.mxu0 %v1727
    %1820 = vmatprep.subr.mxu0 %v1730
    %1821 = vmatpush1.msra.mxu0 %v1729
    %1822 = vmatprep.subr.mxu0 %v1732
    %1823 = vmatpush1.msra.mxu0 %v1731
    %1824 = vmatprep.subr.mxu0 %v1734
    %1825 = vmatpush1.msra.mxu0 %v1733
    %1826 = vmatprep.subr.mxu0 %v1736
    %1827 = vmatpush1.msra.mxu0 %v1735
    %1828 = vmatprep.subr.mxu0 0.0
    %1829 = vmatpush1.msra.mxu0 0.0
    %1830 = vmatprep.subr.mxu0 0.0
    %1831 = vmatpush1.msra.mxu0 0.0
    %1832 = vmatprep.subr.mxu0 0.0
    %1833 = vmatpush1.msra.mxu0 0.0
    %1834 = vmatprep.subr.mxu0 0.0
    %1835 = vmatpush1.msra.mxu0 0.0
    %1836 = vmatprep.subr.mxu0 0.0
    %1837 = vmatpush1.msra.mxu0 0.0
    %1838 = vmatprep.subr.mxu0 0.0
    %1839 = vmatpush1.msra.mxu0 0.0
    %1840 = vmatprep.subr.mxu0 0.0
    %1841 = vmatpush1.msra.mxu0 0.0
    %1842 = vmatprep.subr.mxu0 0.0
    %1843 = vmatpush1.msra.mxu0 0.0
    %1844 = vmatprep.subr.mxu0 0.0
    %1845 = vmatpush1.msra.mxu0 0.0
    %1846 = vmatprep.subr.mxu0 0.0
    %1847 = vmatpush1.msra.mxu0 0.0
    %1848 = vmatprep.subr.mxu0 0.0
    %1849 = vmatpush1.msra.mxu0 0.0
    %1850 = vmatprep.subr.mxu0 0.0
    %1851 = vmatpush1.msra.mxu0 0.0
    %1852 = vmatprep.subr.mxu0 0.0
    %1853 = vmatpush1.msra.mxu0 0.0
    %1854 = vmatprep.subr.mxu0 0.0
    %1855 = vmatpush1.msra.mxu0 0.0
    %1856 = vmatprep.subr.mxu0 0.0
    %1857 = vmatpush1.msra.mxu0 0.0
    %1858 = vmatprep.subr.mxu0 0.0
    %1859 = vmatpush1.msra.mxu0 0.0
    %1860 = vmatprep.subr.mxu0 0.0
    %1861 = vmatpush1.msra.mxu0 0.0
    %1862 = vmatprep.subr.mxu0 0.0
    %1863 = vmatpush1.msra.mxu0 0.0
    %1864 = vmatprep.subr.mxu0 0.0
    %1865 = vmatpush1.msra.mxu0 0.0
    %1866 = vmatprep.subr.mxu0 0.0
    %1867 = vmatpush1.msra.mxu0 0.0
    %1868 = vmatprep.subr.mxu0 0.0
    %1869 = vmatpush1.msra.mxu0 0.0
    %1870 = vmatprep.subr.mxu0 0.0
    %1871 = vmatpush1.msra.mxu0 0.0
    %1872 = vmatprep.subr.mxu0 0.0
    %1873 = vmatpush1.msra.mxu0 0.0
    %1874 = vmatprep.subr.mxu0 0.0
    %1875 = vmatpush1.msra.mxu0 0.0
    %1876 = vmatprep.mubr.f32.mxu0 0.0
    %1877 = vmatmul.mubr.f32.gmra.mrb[0].mxu0 %v1808
    %v1878 = vpop.f32.mrb[0].mxu0
    %v1879 = vadd.f32 %v1759, %v1878
    %v1880 = vpop.f32.mrb[0].mxu0
    %v1881 = vadd.f32 %v1763, %v1880
    %1882 = vmatprep.mubr.f32.mxu0 0.0
    %1883 = vmatmul.mubr.f32.gmra.mrb[0].mxu0 %v1810
    %v1884 = vpop.f32.mrb[0].mxu0
    %v1885 = vadd.f32 %v1759, %v1884
    %v1886 = vpop.f32.mrb[0].mxu0
    %v1887 = vadd.f32 %v1763, %v1886
    %1888 = vdwg.mxu0
    %v1893 = vcombine.low %v1879, %v1881
    %v1894 = vcombine.high %v1879, %v1881
    %v1896 = vunpack.c.l.s4 1983009808
    %v1897 = vunpack.c.0.s8 %v1896
    %v1898 = vlaneseq
    %v1899 = vshrl.u32 %v1898, 7
    %v1900 = vsub.s32 %v1897, %v1899
    %v1901 = vrot.slane %v1893, %v1900
    %v1903 = vunpack.c.l.s4 1983009808
    %v1904 = vunpack.c.0.s8 %v1903
    %v1905 = vlaneseq
    %v1906 = vshrl.u32 %v1905, 7
    %v1907 = vsub.s32 %v1904, %v1906
    %v1908 = vrot.slane %v1894, %v1907
    %v1909 = vcombine.high %v1901, %v1901
    %v1910 = vcombine.high %v1908, %v1908
    %v1911 = vcombine.low %v1885, %v1887
    %v1912 = vcombine.high %v1885, %v1887
    %v1914 = vunpack.c.l.s4 1983009808
    %v1915 = vunpack.c.0.s8 %v1914
    %v1916 = vlaneseq
    %v1917 = vshrl.u32 %v1916, 7
    %v1918 = vsub.s32 %v1915, %v1917
    %v1919 = vrot.slane %v1911, %v1918
    %v1921 = vunpack.c.l.s4 1983009808
    %v1922 = vunpack.c.0.s8 %v1921
    %v1923 = vlaneseq
    %v1924 = vshrl.u32 %v1923, 7
    %v1925 = vsub.s32 %v1922, %v1924
    %v1926 = vrot.slane %v1912, %v1925
    %v1927 = vcombine.high %v1919, %v1919
    %v1928 = vcombine.high %v1926, %v1926
    %v1930 = vunpack.c.l.s4 1983009808
    %v1931 = vunpack.c.0.s8 %v1930
    %v1932 = vlaneseq
    %v1933 = vshrl.u32 %v1932, 7
    %v1934 = vsub.s32 %v1931, %v1933
    %v1935 = vrot.slane %v1901, %v1934
    %v1936 = vcombine.high %v1935, %v1935
    %v1940 = vunpack.c.l.s4 1983009808
    %v1941 = vunpack.c.0.s8 %v1940
    %v1942 = vlaneseq
    %v1943 = vshrl.u32 %v1942, 7
    %v1944 = vsub.s32 %v1941, %v1943
    %v1945 = vrot.slane %v1928, %v1944
    %v1946 = vcombine.high %v1945, %v1945
    %v1949 = vsel %vm856, %v1935, %v1945
    %v1950 = vsel %vm857, %v1936, %v1946
    %v1951 = vxor.u32 %v1949, 2147483648
    %v1952 = vxor.u32 %v1950, 2147483648
    %v1953 = vmul.f32 %v1951, 1.442695
    %v1954 = vpow.pop %v1953
    %v1955 = vmul.f32 %v1952, 1.442695
    %v1956 = vpow.pop %v1955
    %v1957 = vadd.f32 %v1954, 1.0
    %v1958 = vadd.f32 %v1956, 1.0
    %v1959 = vrcp.pop %v1957
    %v1960 = vmul.f32 1.0, %v1959
    %v1961 = vrcp.pop %v1958
    %v1962 = vmul.f32 1.0, %v1961
    %v1963 = vtanh.pop %v1950
    %v1964 = vmul.f32 %v1960, 0.0
    %v1965 = vmul.f32 %v1960, %v1963
    %1967 = vrot.lane.b32.xlu0 %v1965, 64
    %v1968 = vpop.permute.xlu0 %1967
    %v1970 = vadd.f32 %v1964, %v1968
    %v1971 = vtanh.pop %v1970
    %v1972 = vmul.f32 %v1962, %v1971
    %1974 = vrot.lane.b32.xlu0 %v1972, 64
    %v1975 = vpop.permute.xlu0 %1974
    %1977 = vst.msk [vmem:[#allocation2] sm:$0x3] %vm906, %v1975
    %1978 = vst.msk [vmem:[%s908] sm:$0x3] %vm909, %v1975
    %v1980 = vunpack.c.l.s4 1983009808
    %v1981 = vunpack.c.0.s8 %v1980
    %v1982 = vlaneseq
    %v1983 = vshrl.u32 %v1982, 7
    %v1984 = vsub.s32 %v1981, %v1983
    %v1985 = vrot.slane %v1909, %v1984
    %v1986 = vcombine.high %v1985, %v1985
    %v1990 = vunpack.c.l.s4 1983009808
    %v1991 = vunpack.c.0.s8 %v1990
    %v1992 = vlaneseq
    %v1993 = vshrl.u32 %v1992, 7
    %v1994 = vsub.s32 %v1991, %v1993
    %v1995 = vrot.slane %v1926, %v1994
    %v1996 = vcombine.high %v1995, %v1995
    %v1999 = vsel %vm856, %v1985, %v1995
    %v2000 = vsel %vm857, %v1986, %v1996
    %v2001 = vsel %vm933, %v1975, 0
    %2003 = vmatprep.subr.mxu0 %v1738
    %2004 = vmatpush1.msra.mxu0 %v1737
    %2005 = vmatprep.subr.mxu0 %v1740
    %2006 = vmatpush1.msra.mxu0 %v1739
    %2007 = vmatprep.subr.mxu0 %v1742
    %2008 = vmatpush1.msra.mxu0 %v1741
    %2009 = vmatprep.subr.mxu0 %v1744
    %2010 = vmatpush1.msra.mxu0 %v1743
    %2011 = vmatprep.subr.mxu0 %v1746
    %2012 = vmatpush1.msra.mxu0 %v1745
    %2013 = vmatprep.subr.mxu0 %v1748
    %2014 = vmatpush1.msra.mxu0 %v1747
    %2015 = vmatprep.subr.mxu0 %v1750
    %2016 = vmatpush1.msra.mxu0 %v1749
    %2017 = vmatprep.subr.mxu0 %v1752
    %2018 = vmatpush1.msra.mxu0 %v1751
    %2019 = vmatprep.subr.mxu0 0.0
    %2020 = vmatpush1.msra.mxu0 0.0
    %2021 = vmatprep.subr.mxu0 0.0
    %2022 = vmatpush1.msra.mxu0 0.0
    %2023 = vmatprep.subr.mxu0 0.0
    %2024 = vmatpush1.msra.mxu0 0.0
    %2025 = vmatprep.subr.mxu0 0.0
    %2026 = vmatpush1.msra.mxu0 0.0
    %2027 = vmatprep.subr.mxu0 0.0
    %2028 = vmatpush1.msra.mxu0 0.0
    %2029 = vmatprep.subr.mxu0 0.0
    %2030 = vmatpush1.msra.mxu0 0.0
    %2031 = vmatprep.subr.mxu0 0.0
    %2032 = vmatpush1.msra.mxu0 0.0
    %2033 = vmatprep.subr.mxu0 0.0
    %2034 = vmatpush1.msra.mxu0 0.0
    %2035 = vmatprep.subr.mxu0 0.0
    %2036 = vmatpush1.msra.mxu0 0.0
    %2037 = vmatprep.subr.mxu0 0.0
    %2038 = vmatpush1.msra.mxu0 0.0
    %2039 = vmatprep.subr.mxu0 0.0
    %2040 = vmatpush1.msra.mxu0 0.0
    %2041 = vmatprep.subr.mxu0 0.0
    %2042 = vmatpush1.msra.mxu0 0.0
    %2043 = vmatprep.subr.mxu0 0.0
    %2044 = vmatpush1.msra.mxu0 0.0
    %2045 = vmatprep.subr.mxu0 0.0
    %2046 = vmatpush1.msra.mxu0 0.0
    %2047 = vmatprep.subr.mxu0 0.0
    %2048 = vmatpush1.msra.mxu0 0.0
    %2049 = vmatprep.subr.mxu0 0.0
    %2050 = vmatpush1.msra.mxu0 0.0
    %2051 = vmatprep.subr.mxu0 0.0
    %2052 = vmatpush1.msra.mxu0 0.0
    %2053 = vmatprep.subr.mxu0 0.0
    %2054 = vmatpush1.msra.mxu0 0.0
    %2055 = vmatprep.subr.mxu0 0.0
    %2056 = vmatpush1.msra.mxu0 0.0
    %2057 = vmatprep.subr.mxu0 0.0
    %2058 = vmatpush1.msra.mxu0 0.0
    %2059 = vmatprep.subr.mxu0 0.0
    %2060 = vmatpush1.msra.mxu0 0.0
    %2061 = vmatprep.subr.mxu0 0.0
    %2062 = vmatpush1.msra.mxu0 0.0
    %2063 = vmatprep.subr.mxu0 0.0
    %2064 = vmatpush1.msra.mxu0 0.0
    %2065 = vmatprep.subr.mxu0 0.0
    %2066 = vmatpush1.msra.mxu0 0.0
    %2067 = vmatprep.mubr.f32.mxu0 0.0
    %2068 = vmatmul.mubr.f32.gmra.mrb[0].mxu0 %v2001
    %v2069 = vpop.f32.mrb[0].mxu0
    %v2070 = vadd.f32 0.0, %v2069
    %v2071 = vpop.f32.mrb[0].mxu0
    %v2072 = vadd.f32 0.0, %v2071
    %2073 = vdwg.mxu0
    %v2074 = vadd.f32 %v1999, %v2070
    %v2075 = vadd.f32 %v2000, %v2072
    %v2076 = vxor.u32 %v2074, 2147483648
    %v2077 = vxor.u32 %v2075, 2147483648
    %v2078 = vmul.f32 %v2076, 1.442695
    %v2079 = vpow.pop %v2078
    %v2080 = vmul.f32 %v2077, 1.442695
    %v2081 = vpow.pop %v2080
    %v2082 = vadd.f32 %v2079, 1.0
    %v2083 = vadd.f32 %v2081, 1.0
    %v2084 = vrcp.pop %v2082
    %v2085 = vmul.f32 1.0, %v2084
    %v2086 = vrcp.pop %v2083
    %v2087 = vmul.f32 1.0, %v2086
    %v2088 = vtanh.pop %v2075
    %v2089 = vmul.f32 %v2085, %v1970
    %v2090 = vmul.f32 %v2085, %v2088
    %2092 = vrot.lane.b32.xlu0 %v2090, 64
    %v2093 = vpop.permute.xlu0 %2092
    %v2095 = vadd.f32 %v2089, %v2093
    %v2096 = vtanh.pop %v2095
    %v2097 = vmul.f32 %v2087, %v2096
    %2099 = vrot.lane.b32.xlu0 %v2097, 64
    %v2100 = vpop.permute.xlu0 %2099
    %2102 = vst.msk [vmem:[%s1035] sm:$0x3] %vm906, %v2100
    %2103 = vst.msk [vmem:[%s1037] sm:$0x3] %vm909, %v2100
    %v2105 = vunpack.c.l.s4 1983009808
    %v2106 = vunpack.c.0.s8 %v2105
    %v2107 = vlaneseq
    %v2108 = vshrl.u32 %v2107, 7
    %v2109 = vsub.s32 %v2106, %v2108
    %v2110 = vrot.slane %v1908, %v2109
    %v2111 = vcombine.high %v2110, %v2110
    %v2115 = vunpack.c.l.s4 1983009808
    %v2116 = vunpack.c.0.s8 %v2115
    %v2117 = vlaneseq
    %v2118 = vshrl.u32 %v2117, 7
    %v2119 = vsub.s32 %v2116, %v2118
    %v2120 = vrot.slane %v1927, %v2119
    %v2121 = vcombine.high %v2120, %v2120
    %v2124 = vsel %vm856, %v2110, %v2120
    %v2125 = vsel %vm857, %v2111, %v2121
    %v2126 = vsel %vm933, %v2100, 0
    %2128 = vmatprep.subr.mxu0 %v1738
    %2129 = vmatpush1.msra.mxu0 %v1737
    %2130 = vmatprep.subr.mxu0 %v1740
    %2131 = vmatpush1.msra.mxu0 %v1739
    %2132 = vmatprep.subr.mxu0 %v1742
    %2133 = vmatpush1.msra.mxu0 %v1741
    %2134 = vmatprep.subr.mxu0 %v1744
    %2135 = vmatpush1.msra.mxu0 %v1743
    %2136 = vmatprep.subr.mxu0 %v1746
    %2137 = vmatpush1.msra.mxu0 %v1745
    %2138 = vmatprep.subr.mxu0 %v1748
    %2139 = vmatpush1.msra.mxu0 %v1747
    %2140 = vmatprep.subr.mxu0 %v1750
    %2141 = vmatpush1.msra.mxu0 %v1749
    %2142 = vmatprep.subr.mxu0 %v1752
    %2143 = vmatpush1.msra.mxu0 %v1751
    %2144 = vmatprep.subr.mxu0 0.0
    %2145 = vmatpush1.msra.mxu0 0.0
    %2146 = vmatprep.subr.mxu0 0.0
    %2147 = vmatpush1.msra.mxu0 0.0
    %2148 = vmatprep.subr.mxu0 0.0
    %2149 = vmatpush1.msra.mxu0 0.0
    %2150 = vmatprep.subr.mxu0 0.0
    %2151 = vmatpush1.msra.mxu0 0.0
    %2152 = vmatprep.subr.mxu0 0.0
    %2153 = vmatpush1.msra.mxu0 0.0
    %2154 = vmatprep.subr.mxu0 0.0
    %2155 = vmatpush1.msra.mxu0 0.0
    %2156 = vmatprep.subr.mxu0 0.0
    %2157 = vmatpush1.msra.mxu0 0.0
    %2158 = vmatprep.subr.mxu0 0.0
    %2159 = vmatpush1.msra.mxu0 0.0
    %2160 = vmatprep.subr.mxu0 0.0
    %2161 = vmatpush1.msra.mxu0 0.0
    %2162 = vmatprep.subr.mxu0 0.0
    %2163 = vmatpush1.msra.mxu0 0.0
    %2164 = vmatprep.subr.mxu0 0.0
    %2165 = vmatpush1.msra.mxu0 0.0
    %2166 = vmatprep.subr.mxu0 0.0
    %2167 = vmatpush1.msra.mxu0 0.0
    %2168 = vmatprep.subr.mxu0 0.0
    %2169 = vmatpush1.msra.mxu0 0.0
    %2170 = vmatprep.subr.mxu0 0.0
    %2171 = vmatpush1.msra.mxu0 0.0
    %2172 = vmatprep.subr.mxu0 0.0
    %2173 = vmatpush1.msra.mxu0 0.0
    %2174 = vmatprep.subr.mxu0 0.0
    %2175 = vmatpush1.msra.mxu0 0.0
    %2176 = vmatprep.subr.mxu0 0.0
    %2177 = vmatpush1.msra.mxu0 0.0
    %2178 = vmatprep.subr.mxu0 0.0
    %2179 = vmatpush1.msra.mxu0 0.0
    %2180 = vmatprep.subr.mxu0 0.0
    %2181 = vmatpush1.msra.mxu0 0.0
    %2182 = vmatprep.subr.mxu0 0.0
    %2183 = vmatpush1.msra.mxu0 0.0
    %2184 = vmatprep.subr.mxu0 0.0
    %2185 = vmatpush1.msra.mxu0 0.0
    %2186 = vmatprep.subr.mxu0 0.0
    %2187 = vmatpush1.msra.mxu0 0.0
    %2188 = vmatprep.subr.mxu0 0.0
    %2189 = vmatpush1.msra.mxu0 0.0
    %2190 = vmatprep.subr.mxu0 0.0
    %2191 = vmatpush1.msra.mxu0 0.0
    %2192 = vmatprep.mubr.f32.mxu0 0.0
    %2193 = vmatmul.mubr.f32.gmra.mrb[0].mxu0 %v2126
    %v2194 = vpop.f32.mrb[0].mxu0
    %v2195 = vadd.f32 0.0, %v2194
    %v2196 = vpop.f32.mrb[0].mxu0
    %v2197 = vadd.f32 0.0, %v2196
    %2198 = vdwg.mxu0
    %v2199 = vadd.f32 %v2124, %v2195
    %v2200 = vadd.f32 %v2125, %v2197
    %v2201 = vxor.u32 %v2199, 2147483648
    %v2202 = vxor.u32 %v2200, 2147483648
    %v2203 = vmul.f32 %v2201, 1.442695
    %v2204 = vpow.pop %v2203
    %v2205 = vmul.f32 %v2202, 1.442695
    %v2206 = vpow.pop %v2205
    %v2207 = vadd.f32 %v2204, 1.0
    %v2208 = vadd.f32 %v2206, 1.0
    %v2209 = vrcp.pop %v2207
    %v2210 = vmul.f32 1.0, %v2209
    %v2211 = vrcp.pop %v2208
    %v2212 = vmul.f32 1.0, %v2211
    %v2213 = vtanh.pop %v2200
    %v2214 = vmul.f32 %v2210, %v2095
    %v2215 = vmul.f32 %v2210, %v2213
    %2217 = vrot.lane.b32.xlu0 %v2215, 64
    %v2218 = vpop.permute.xlu0 %2217
    %v2220 = vadd.f32 %v2214, %v2218
    %v2221 = vtanh.pop %v2220
    %v2222 = vmul.f32 %v2212, %v2221
    %2224 = vrot.lane.b32.xlu0 %v2222, 64
    %v2225 = vpop.permute.xlu0 %2224
    %2227 = vst.msk [vmem:[%s1162] sm:$0x3] %vm906, %v2225
    %2228 = vst.msk [vmem:[%s1164] sm:$0x3] %vm909, %v2225
    %v2230 = vunpack.c.l.s4 1983009808
    %v2231 = vunpack.c.0.s8 %v2230
    %v2232 = vlaneseq
    %v2233 = vshrl.u32 %v2232, 7
    %v2234 = vsub.s32 %v2231, %v2233
    %v2235 = vrot.slane %v1910, %v2234
    %v2236 = vcombine.high %v2235, %v2235
    %v2240 = vunpack.c.l.s4 1983009808
    %v2241 = vunpack.c.0.s8 %v2240
    %v2242 = vlaneseq
    %v2243 = vshrl.u32 %v2242, 7
    %v2244 = vsub.s32 %v2241, %v2243
    %v2245 = vrot.slane %v1919, %v2244
    %v2246 = vcombine.high %v2245, %v2245
    %v2249 = vsel %vm856, %v2235, %v2245
    %v2250 = vsel %vm857, %v2236, %v2246
    %v2251 = vsel %vm933, %v2225, 0
    %2253 = vmatprep.subr.mxu0 %v1738
    %2254 = vmatpush1.msra.mxu0 %v1737
    %2255 = vmatprep.subr.mxu0 %v1740
    %2256 = vmatpush1.msra.mxu0 %v1739
    %2257 = vmatprep.subr.mxu0 %v1742
    %2258 = vmatpush1.msra.mxu0 %v1741
    %2259 = vmatprep.subr.mxu0 %v1744
    %2260 = vmatpush1.msra.mxu0 %v1743
    %2261 = vmatprep.subr.mxu0 %v1746
    %2262 = vmatpush1.msra.mxu0 %v1745
    %2263 = vmatprep.subr.mxu0 %v1748
    %2264 = vmatpush1.msra.mxu0 %v1747
    %2265 = vmatprep.subr.mxu0 %v1750
    %2266 = vmatpush1.msra.mxu0 %v1749
    %2267 = vmatprep.subr.mxu0 %v1752
    %2268 = vmatpush1.msra.mxu0 %v1751
    %2269 = vmatprep.subr.mxu0 0.0
    %2270 = vmatpush1.msra.mxu0 0.0
    %2271 = vmatprep.subr.mxu0 0.0
    %2272 = vmatpush1.msra.mxu0 0.0
    %2273 = vmatprep.subr.mxu0 0.0
    %2274 = vmatpush1.msra.mxu0 0.0
    %2275 = vmatprep.subr.mxu0 0.0
    %2276 = vmatpush1.msra.mxu0 0.0
    %2277 = vmatprep.subr.mxu0 0.0
    %2278 = vmatpush1.msra.mxu0 0.0
    %2279 = vmatprep.subr.mxu0 0.0
    %2280 = vmatpush1.msra.mxu0 0.0
    %2281 = vmatprep.subr.mxu0 0.0
    %2282 = vmatpush1.msra.mxu0 0.0
    %2283 = vmatprep.subr.mxu0 0.0
    %2284 = vmatpush1.msra.mxu0 0.0
    %2285 = vmatprep.subr.mxu0 0.0
    %2286 = vmatpush1.msra.mxu0 0.0
    %2287 = vmatprep.subr.mxu0 0.0
    %2288 = vmatpush1.msra.mxu0 0.0
    %2289 = vmatprep.subr.mxu0 0.0
    %2290 = vmatpush1.msra.mxu0 0.0
    %2291 = vmatprep.subr.mxu0 0.0
    %2292 = vmatpush1.msra.mxu0 0.0
    %2293 = vmatprep.subr.mxu0 0.0
    %2294 = vmatpush1.msra.mxu0 0.0
    %2295 = vmatprep.subr.mxu0 0.0
    %2296 = vmatpush1.msra.mxu0 0.0
    %2297 = vmatprep.subr.mxu0 0.0
    %2298 = vmatpush1.msra.mxu0 0.0
    %2299 = vmatprep.subr.mxu0 0.0
    %2300 = vmatpush1.msra.mxu0 0.0
    %2301 = vmatprep.subr.mxu0 0.0
    %2302 = vmatpush1.msra.mxu0 0.0
    %2303 = vmatprep.subr.mxu0 0.0
    %2304 = vmatpush1.msra.mxu0 0.0
    %2305 = vmatprep.subr.mxu0 0.0
    %2306 = vmatpush1.msra.mxu0 0.0
    %2307 = vmatprep.subr.mxu0 0.0
    %2308 = vmatpush1.msra.mxu0 0.0
    %2309 = vmatprep.subr.mxu0 0.0
    %2310 = vmatpush1.msra.mxu0 0.0
    %2311 = vmatprep.subr.mxu0 0.0
    %2312 = vmatpush1.msra.mxu0 0.0
    %2313 = vmatprep.subr.mxu0 0.0
    %2314 = vmatpush1.msra.mxu0 0.0
    %2315 = vmatprep.subr.mxu0 0.0
    %2316 = vmatpush1.msra.mxu0 0.0
    %2317 = vmatprep.mubr.f32.mxu0 0.0
    %2318 = vmatmul.mubr.f32.gmra.mrb[0].mxu0 %v2251
    %v2319 = vpop.f32.mrb[0].mxu0
    %v2320 = vadd.f32 0.0, %v2319
    %v2321 = vpop.f32.mrb[0].mxu0
    %v2322 = vadd.f32 0.0, %v2321
    %2323 = vdwg.mxu0
    %v2324 = vadd.f32 %v2249, %v2320
    %v2325 = vadd.f32 %v2250, %v2322
    %v2326 = vxor.u32 %v2324, 2147483648
    %v2327 = vxor.u32 %v2325, 2147483648
    %v2328 = vmul.f32 %v2326, 1.442695
    %v2329 = vpow.pop %v2328
    %v2330 = vmul.f32 %v2327, 1.442695
    %v2331 = vpow.pop %v2330
    %v2332 = vadd.f32 %v2329, 1.0
    %v2333 = vadd.f32 %v2331, 1.0
    %v2334 = vrcp.pop %v2332
    %v2335 = vmul.f32 1.0, %v2334
    %v2336 = vrcp.pop %v2333
    %v2337 = vmul.f32 1.0, %v2336
    %v2338 = vtanh.pop %v2325
    %v2339 = vmul.f32 %v2335, %v2220
    %v2340 = vmul.f32 %v2335, %v2338
    %2342 = vrot.lane.b32.xlu0 %v2340, 64
    %v2343 = vpop.permute.xlu0 %2342
    %v2345 = vadd.f32 %v2339, %v2343
    %v2346 = vtanh.pop %v2345
    %v2347 = vmul.f32 %v2337, %v2346
    %2349 = vrot.lane.b32.xlu0 %v2347, 64
    %v2350 = vpop.permute.xlu0 %2349
    %2352 = vst.msk [vmem:[%s1289] sm:$0x3] %vm906, %v2350
    %2353 = vst.msk [vmem:[%s1291] sm:$0x3] %vm909, %v2350
    %v2354 = vsel %vm856, %v2245, %v2235
    %v2355 = vsel %vm857, %v2246, %v2236
    %v2356 = vsel %vm933, %v2350, 0
    %2358 = vmatprep.subr.mxu0 %v1738
    %2359 = vmatpush1.msra.mxu0 %v1737
    %2360 = vmatprep.subr.mxu0 %v1740
    %2361 = vmatpush1.msra.mxu0 %v1739
    %2362 = vmatprep.subr.mxu0 %v1742
    %2363 = vmatpush1.msra.mxu0 %v1741
    %2364 = vmatprep.subr.mxu0 %v1744
    %2365 = vmatpush1.msra.mxu0 %v1743
    %2366 = vmatprep.subr.mxu0 %v1746
    %2367 = vmatpush1.msra.mxu0 %v1745
    %2368 = vmatprep.subr.mxu0 %v1748
    %2369 = vmatpush1.msra.mxu0 %v1747
    %2370 = vmatprep.subr.mxu0 %v1750
    %2371 = vmatpush1.msra.mxu0 %v1749
    %2372 = vmatprep.subr.mxu0 %v1752
    %2373 = vmatpush1.msra.mxu0 %v1751
    %2374 = vmatprep.subr.mxu0 0.0
    %2375 = vmatpush1.msra.mxu0 0.0
    %2376 = vmatprep.subr.mxu0 0.0
    %2377 = vmatpush1.msra.mxu0 0.0
    %2378 = vmatprep.subr.mxu0 0.0
    %2379 = vmatpush1.msra.mxu0 0.0
    %2380 = vmatprep.subr.mxu0 0.0
    %2381 = vmatpush1.msra.mxu0 0.0
    %2382 = vmatprep.subr.mxu0 0.0
    %2383 = vmatpush1.msra.mxu0 0.0
    %2384 = vmatprep.subr.mxu0 0.0
    %2385 = vmatpush1.msra.mxu0 0.0
    %2386 = vmatprep.subr.mxu0 0.0
    %2387 = vmatpush1.msra.mxu0 0.0
    %2388 = vmatprep.subr.mxu0 0.0
    %2389 = vmatpush1.msra.mxu0 0.0
    %2390 = vmatprep.subr.mxu0 0.0
    %2391 = vmatpush1.msra.mxu0 0.0
    %2392 = vmatprep.subr.mxu0 0.0
    %2393 = vmatpush1.msra.mxu0 0.0
    %2394 = vmatprep.subr.mxu0 0.0
    %2395 = vmatpush1.msra.mxu0 0.0
    %2396 = vmatprep.subr.mxu0 0.0
    %2397 = vmatpush1.msra.mxu0 0.0
    %2398 = vmatprep.subr.mxu0 0.0
    %2399 = vmatpush1.msra.mxu0 0.0
    %2400 = vmatprep.subr.mxu0 0.0
    %2401 = vmatpush1.msra.mxu0 0.0
    %2402 = vmatprep.subr.mxu0 0.0
    %2403 = vmatpush1.msra.mxu0 0.0
    %2404 = vmatprep.subr.mxu0 0.0
    %2405 = vmatpush1.msra.mxu0 0.0
    %2406 = vmatprep.subr.mxu0 0.0
    %2407 = vmatpush1.msra.mxu0 0.0
    %2408 = vmatprep.subr.mxu0 0.0
    %2409 = vmatpush1.msra.mxu0 0.0
    %2410 = vmatprep.subr.mxu0 0.0
    %2411 = vmatpush1.msra.mxu0 0.0
    %2412 = vmatprep.subr.mxu0 0.0
    %2413 = vmatpush1.msra.mxu0 0.0
    %2414 = vmatprep.subr.mxu0 0.0
    %2415 = vmatpush1.msra.mxu0 0.0
    %2416 = vmatprep.subr.mxu0 0.0
    %2417 = vmatpush1.msra.mxu0 0.0
    %2418 = vmatprep.subr.mxu0 0.0
    %2419 = vmatpush1.msra.mxu0 0.0
    %2420 = vmatprep.subr.mxu0 0.0
    %2421 = vmatpush1.msra.mxu0 0.0
    %2422 = vmatprep.mubr.f32.mxu0 0.0
    %2423 = vmatmul.mubr.f32.gmra.mrb[0].mxu0 %v2356
    %v2424 = vpop.f32.mrb[0].mxu0
    %v2425 = vadd.f32 0.0, %v2424
    %v2426 = vpop.f32.mrb[0].mxu0
    %v2427 = vadd.f32 0.0, %v2426
    %2428 = vdwg.mxu0
    %v2429 = vadd.f32 %v2354, %v2425
    %v2430 = vadd.f32 %v2355, %v2427
    %v2431 = vxor.u32 %v2429, 2147483648
    %v2432 = vxor.u32 %v2430, 2147483648
    %v2433 = vmul.f32 %v2431, 1.442695
    %v2434 = vpow.pop %v2433
    %v2435 = vmul.f32 %v2432, 1.442695
    %v2436 = vpow.pop %v2435
    %v2437 = vadd.f32 %v2434, 1.0
    %v2438 = vadd.f32 %v2436, 1.0
    %v2439 = vrcp.pop %v2437
    %v2440 = vmul.f32 1.0, %v2439
    %v2441 = vrcp.pop %v2438
    %v2442 = vmul.f32 1.0, %v2441
    %v2443 = vtanh.pop %v2430
    %v2444 = vmul.f32 %v2440, %v2345
    %v2445 = vmul.f32 %v2440, %v2443
    %2447 = vrot.lane.b32.xlu0 %v2445, 64
    %v2448 = vpop.permute.xlu0 %2447
    %v2450 = vadd.f32 %v2444, %v2448
    %v2451 = vtanh.pop %v2450
    %v2452 = vmul.f32 %v2442, %v2451
    %2454 = vrot.lane.b32.xlu0 %v2452, 64
    %v2455 = vpop.permute.xlu0 %2454
    %2457 = vst.msk [vmem:[%s1291] sm:$0x3] %vm906, %v2455
    %2458 = vst.msk [vmem:[%s1289] sm:$0x3] %vm909, %v2455
    %v2459 = vsel %vm856, %v2120, %v2110
    %v2460 = vsel %vm857, %v2121, %v2111
    %v2461 = vsel %vm933, %v2455, 0
    %2463 = vmatprep.subr.mxu0 %v1738
    %2464 = vmatpush1.msra.mxu0 %v1737
    %2465 = vmatprep.subr.mxu0 %v1740
    %2466 = vmatpush1.msra.mxu0 %v1739
    %2467 = vmatprep.subr.mxu0 %v1742
    %2468 = vmatpush1.msra.mxu0 %v1741
    %2469 = vmatprep.subr.mxu0 %v1744
    %2470 = vmatpush1.msra.mxu0 %v1743
    %2471 = vmatprep.subr.mxu0 %v1746
    %2472 = vmatpush1.msra.mxu0 %v1745
    %2473 = vmatprep.subr.mxu0 %v1748
    %2474 = vmatpush1.msra.mxu0 %v1747
    %2475 = vmatprep.subr.mxu0 %v1750
    %2476 = vmatpush1.msra.mxu0 %v1749
    %2477 = vmatprep.subr.mxu0 %v1752
    %2478 = vmatpush1.msra.mxu0 %v1751
    %2479 = vmatprep.subr.mxu0 0.0
    %2480 = vmatpush1.msra.mxu0 0.0
    %2481 = vmatprep.subr.mxu0 0.0
    %2482 = vmatpush1.msra.mxu0 0.0
    %2483 = vmatprep.subr.mxu0 0.0
    %2484 = vmatpush1.msra.mxu0 0.0
    %2485 = vmatprep.subr.mxu0 0.0
    %2486 = vmatpush1.msra.mxu0 0.0
    %2487 = vmatprep.subr.mxu0 0.0
    %2488 = vmatpush1.msra.mxu0 0.0
    %2489 = vmatprep.subr.mxu0 0.0
    %2490 = vmatpush1.msra.mxu0 0.0
    %2491 = vmatprep.subr.mxu0 0.0
    %2492 = vmatpush1.msra.mxu0 0.0
    %2493 = vmatprep.subr.mxu0 0.0
    %2494 = vmatpush1.msra.mxu0 0.0
    %2495 = vmatprep.subr.mxu0 0.0
    %2496 = vmatpush1.msra.mxu0 0.0
    %2497 = vmatprep.subr.mxu0 0.0
    %2498 = vmatpush1.msra.mxu0 0.0
    %2499 = vmatprep.subr.mxu0 0.0
    %2500 = vmatpush1.msra.mxu0 0.0
    %2501 = vmatprep.subr.mxu0 0.0
    %2502 = vmatpush1.msra.mxu0 0.0
    %2503 = vmatprep.subr.mxu0 0.0
    %2504 = vmatpush1.msra.mxu0 0.0
    %2505 = vmatprep.subr.mxu0 0.0
    %2506 = vmatpush1.msra.mxu0 0.0
    %2507 = vmatprep.subr.mxu0 0.0
    %2508 = vmatpush1.msra.mxu0 0.0
    %2509 = vmatprep.subr.mxu0 0.0
    %2510 = vmatpush1.msra.mxu0 0.0
    %2511 = vmatprep.subr.mxu0 0.0
    %2512 = vmatpush1.msra.mxu0 0.0
    %2513 = vmatprep.subr.mxu0 0.0
    %2514 = vmatpush1.msra.mxu0 0.0
    %2515 = vmatprep.subr.mxu0 0.0
    %2516 = vmatpush1.msra.mxu0 0.0
    %2517 = vmatprep.subr.mxu0 0.0
    %2518 = vmatpush1.msra.mxu0 0.0
    %2519 = vmatprep.subr.mxu0 0.0
    %2520 = vmatpush1.msra.mxu0 0.0
    %2521 = vmatprep.subr.mxu0 0.0
    %2522 = vmatpush1.msra.mxu0 0.0
    %2523 = vmatprep.subr.mxu0 0.0
    %2524 = vmatpush1.msra.mxu0 0.0
    %2525 = vmatprep.subr.mxu0 0.0
    %2526 = vmatpush1.msra.mxu0 0.0
    %2527 = vmatprep.mubr.f32.mxu0 0.0
    %2528 = vmatmul.mubr.f32.gmra.mrb[0].mxu0 %v2461
    %v2529 = vpop.f32.mrb[0].mxu0
    %v2530 = vadd.f32 0.0, %v2529
    %v2531 = vpop.f32.mrb[0].mxu0
    %v2532 = vadd.f32 0.0, %v2531
    %2533 = vdwg.mxu0
    %v2534 = vadd.f32 %v2459, %v2530
    %v2535 = vadd.f32 %v2460, %v2532
    %v2536 = vxor.u32 %v2534, 2147483648
    %v2537 = vxor.u32 %v2535, 2147483648
    %v2538 = vmul.f32 %v2536, 1.442695
    %v2539 = vpow.pop %v2538
    %v2540 = vmul.f32 %v2537, 1.442695
    %v2541 = vpow.pop %v2540
    %v2542 = vadd.f32 %v2539, 1.0
    %v2543 = vadd.f32 %v2541, 1.0
    %v2544 = vrcp.pop %v2542
    %v2545 = vmul.f32 1.0, %v2544
    %v2546 = vrcp.pop %v2543
    %v2547 = vmul.f32 1.0, %v2546
    %v2548 = vtanh.pop %v2535
    %v2549 = vmul.f32 %v2545, %v2450
    %v2550 = vmul.f32 %v2545, %v2548
    %2552 = vrot.lane.b32.xlu0 %v2550, 64
    %v2553 = vpop.permute.xlu0 %2552
    %v2555 = vadd.f32 %v2549, %v2553
    %v2556 = vtanh.pop %v2555
    %v2557 = vmul.f32 %v2547, %v2556
    %2559 = vrot.lane.b32.xlu0 %v2557, 64
    %v2560 = vpop.permute.xlu0 %2559
    %2562 = vst.msk [vmem:[%s1164] sm:$0x3] %vm906, %v2560
    %2563 = vst.msk [vmem:[%s1162] sm:$0x3] %vm909, %v2560
    %v2564 = vsel %vm856, %v1995, %v1985
    %v2565 = vsel %vm857, %v1996, %v1986
    %v2566 = vsel %vm933, %v2560, 0
    %2568 = vmatprep.subr.mxu0 %v1738
    %2569 = vmatpush1.msra.mxu0 %v1737
    %2570 = vmatprep.subr.mxu0 %v1740
    %2571 = vmatpush1.msra.mxu0 %v1739
    %2572 = vmatprep.subr.mxu0 %v1742
    %2573 = vmatpush1.msra.mxu0 %v1741
    %2574 = vmatprep.subr.mxu0 %v1744
    %2575 = vmatpush1.msra.mxu0 %v1743
    %2576 = vmatprep.subr.mxu0 %v1746
    %2577 = vmatpush1.msra.mxu0 %v1745
    %2578 = vmatprep.subr.mxu0 %v1748
    %2579 = vmatpush1.msra.mxu0 %v1747
    %2580 = vmatprep.subr.mxu0 %v1750
    %2581 = vmatpush1.msra.mxu0 %v1749
    %2582 = vmatprep.subr.mxu0 %v1752
    %2583 = vmatpush1.msra.mxu0 %v1751
    %2584 = vmatprep.subr.mxu0 0.0
    %2585 = vmatpush1.msra.mxu0 0.0
    %2586 = vmatprep.subr.mxu0 0.0
    %2587 = vmatpush1.msra.mxu0 0.0
    %2588 = vmatprep.subr.mxu0 0.0
    %2589 = vmatpush1.msra.mxu0 0.0
    %2590 = vmatprep.subr.mxu0 0.0
    %2591 = vmatpush1.msra.mxu0 0.0
    %2592 = vmatprep.subr.mxu0 0.0
    %2593 = vmatpush1.msra.mxu0 0.0
    %2594 = vmatprep.subr.mxu0 0.0
    %2595 = vmatpush1.msra.mxu0 0.0
    %2596 = vmatprep.subr.mxu0 0.0
    %2597 = vmatpush1.msra.mxu0 0.0
    %2598 = vmatprep.subr.mxu0 0.0
    %2599 = vmatpush1.msra.mxu0 0.0
    %2600 = vmatprep.subr.mxu0 0.0
    %2601 = vmatpush1.msra.mxu0 0.0
    %2602 = vmatprep.subr.mxu0 0.0
    %2603 = vmatpush1.msra.mxu0 0.0
    %2604 = vmatprep.subr.mxu0 0.0
    %2605 = vmatpush1.msra.mxu0 0.0
    %2606 = vmatprep.subr.mxu0 0.0
    %2607 = vmatpush1.msra.mxu0 0.0
    %2608 = vmatprep.subr.mxu0 0.0
    %2609 = vmatpush1.msra.mxu0 0.0
    %2610 = vmatprep.subr.mxu0 0.0
    %2611 = vmatpush1.msra.mxu0 0.0
    %2612 = vmatprep.subr.mxu0 0.0
    %2613 = vmatpush1.msra.mxu0 0.0
    %2614 = vmatprep.subr.mxu0 0.0
    %2615 = vmatpush1.msra.mxu0 0.0
    %2616 = vmatprep.subr.mxu0 0.0
    %2617 = vmatpush1.msra.mxu0 0.0
    %2618 = vmatprep.subr.mxu0 0.0
    %2619 = vmatpush1.msra.mxu0 0.0
    %2620 = vmatprep.subr.mxu0 0.0
    %2621 = vmatpush1.msra.mxu0 0.0
    %2622 = vmatprep.subr.mxu0 0.0
    %2623 = vmatpush1.msra.mxu0 0.0
    %2624 = vmatprep.subr.mxu0 0.0
    %2625 = vmatpush1.msra.mxu0 0.0
    %2626 = vmatprep.subr.mxu0 0.0
    %2627 = vmatpush1.msra.mxu0 0.0
    %2628 = vmatprep.subr.mxu0 0.0
    %2629 = vmatpush1.msra.mxu0 0.0
    %2630 = vmatprep.subr.mxu0 0.0
    %2631 = vmatpush1.msra.mxu0 0.0
    %2632 = vmatprep.mubr.f32.mxu0 0.0
    %2633 = vmatmul.mubr.f32.gmra.mrb[0].mxu0 %v2566
    %v2634 = vpop.f32.mrb[0].mxu0
    %v2635 = vadd.f32 0.0, %v2634
    %v2636 = vpop.f32.mrb[0].mxu0
    %v2637 = vadd.f32 0.0, %v2636
    %2638 = vdwg.mxu0
    %v2639 = vadd.f32 %v2564, %v2635
    %v2640 = vadd.f32 %v2565, %v2637
    %v2641 = vxor.u32 %v2639, 2147483648
    %v2642 = vxor.u32 %v2640, 2147483648
    %v2643 = vmul.f32 %v2641, 1.442695
    %v2644 = vpow.pop %v2643
    %v2645 = vmul.f32 %v2642, 1.442695
    %v2646 = vpow.pop %v2645
    %v2647 = vadd.f32 %v2644, 1.0
    %v2648 = vadd.f32 %v2646, 1.0
    %v2649 = vrcp.pop %v2647
    %v2650 = vmul.f32 1.0, %v2649
    %v2651 = vrcp.pop %v2648
    %v2652 = vmul.f32 1.0, %v2651
    %v2653 = vtanh.pop %v2640
    %v2654 = vmul.f32 %v2650, %v2555
    %v2655 = vmul.f32 %v2650, %v2653
    %2657 = vrot.lane.b32.xlu0 %v2655, 64
    %v2658 = vpop.permute.xlu0 %2657
    %v2660 = vadd.f32 %v2654, %v2658
    %v2661 = vtanh.pop %v2660
    %v2662 = vmul.f32 %v2652, %v2661
    %2664 = vrot.lane.b32.xlu0 %v2662, 64
    %v2665 = vpop.permute.xlu0 %2664
    %2667 = vst.msk [vmem:[%s1037] sm:$0x3] %vm906, %v2665
    %2668 = vst.msk [vmem:[%s1035] sm:$0x3] %vm909, %v2665
    %v2669 = vsel %vm856, %v1945, %v1935
    %v2670 = vsel %vm857, %v1946, %v1936
    %v2671 = vsel %vm933, %v2665, 0
    %2673 = vmatprep.subr.mxu0 %v1738
    %2674 = vmatpush1.msra.mxu0 %v1737
    %2675 = vmatprep.subr.mxu0 %v1740
    %2676 = vmatpush1.msra.mxu0 %v1739
    %2677 = vmatprep.subr.mxu0 %v1742
    %2678 = vmatpush1.msra.mxu0 %v1741
    %2679 = vmatprep.subr.mxu0 %v1744
    %2680 = vmatpush1.msra.mxu0 %v1743
    %2681 = vmatprep.subr.mxu0 %v1746
    %2682 = vmatpush1.msra.mxu0 %v1745
    %2683 = vmatprep.subr.mxu0 %v1748
    %2684 = vmatpush1.msra.mxu0 %v1747
    %2685 = vmatprep.subr.mxu0 %v1750
    %2686 = vmatpush1.msra.mxu0 %v1749
    %2687 = vmatprep.subr.mxu0 %v1752
    %2688 = vmatpush1.msra.mxu0 %v1751
    %2689 = vmatprep.subr.mxu0 0.0
    %2690 = vmatpush1.msra.mxu0 0.0
    %2691 = vmatprep.subr.mxu0 0.0
    %2692 = vmatpush1.msra.mxu0 0.0
    %2693 = vmatprep.subr.mxu0 0.0
    %2694 = vmatpush1.msra.mxu0 0.0
    %2695 = vmatprep.subr.mxu0 0.0
    %2696 = vmatpush1.msra.mxu0 0.0
    %2697 = vmatprep.subr.mxu0 0.0
    %2698 = vmatpush1.msra.mxu0 0.0
    %2699 = vmatprep.subr.mxu0 0.0
    %2700 = vmatpush1.msra.mxu0 0.0
    %2701 = vmatprep.subr.mxu0 0.0
    %2702 = vmatpush1.msra.mxu0 0.0
    %2703 = vmatprep.subr.mxu0 0.0
    %2704 = vmatpush1.msra.mxu0 0.0
    %2705 = vmatprep.subr.mxu0 0.0
    %2706 = vmatpush1.msra.mxu0 0.0
    %2707 = vmatprep.subr.mxu0 0.0
    %2708 = vmatpush1.msra.mxu0 0.0
    %2709 = vmatprep.subr.mxu0 0.0
    %2710 = vmatpush1.msra.mxu0 0.0
    %2711 = vmatprep.subr.mxu0 0.0
    %2712 = vmatpush1.msra.mxu0 0.0
    %2713 = vmatprep.subr.mxu0 0.0
    %2714 = vmatpush1.msra.mxu0 0.0
    %2715 = vmatprep.subr.mxu0 0.0
    %2716 = vmatpush1.msra.mxu0 0.0
    %2717 = vmatprep.subr.mxu0 0.0
    %2718 = vmatpush1.msra.mxu0 0.0
    %2719 = vmatprep.subr.mxu0 0.0
    %2720 = vmatpush1.msra.mxu0 0.0
    %2721 = vmatprep.subr.mxu0 0.0
    %2722 = vmatpush1.msra.mxu0 0.0
    %2723 = vmatprep.subr.mxu0 0.0
    %2724 = vmatpush1.msra.mxu0 0.0
    %2725 = vmatprep.subr.mxu0 0.0
    %2726 = vmatpush1.msra.mxu0 0.0
    %2727 = vmatprep.subr.mxu0 0.0
    %2728 = vmatpush1.msra.mxu0 0.0
    %2729 = vmatprep.subr.mxu0 0.0
    %2730 = vmatpush1.msra.mxu0 0.0
    %2731 = vmatprep.subr.mxu0 0.0
    %2732 = vmatpush1.msra.mxu0 0.0
    %2733 = vmatprep.subr.mxu0 0.0
    %2734 = vmatpush1.msra.mxu0 0.0
    %2735 = vmatprep.subr.mxu0 0.0
    %2736 = vmatpush1.msra.mxu0 0.0
    %2737 = vmatprep.mubr.f32.mxu0 0.0
    %2738 = vmatmul.mubr.f32.gmra.mrb[0].mxu0 %v2671
    %v2739 = vpop.f32.mrb[0].mxu0
    %v2740 = vadd.f32 0.0, %v2739
    %v2741 = vpop.f32.mrb[0].mxu0
    %v2742 = vadd.f32 0.0, %v2741
    %2743 = vdwg.mxu0
    %v2744 = vadd.f32 %v2669, %v2740
    %v2745 = vadd.f32 %v2670, %v2742
    %v2746 = vxor.u32 %v2744, 2147483648
    %v2747 = vxor.u32 %v2745, 2147483648
    %v2748 = vmul.f32 %v2746, 1.442695
    %v2749 = vpow.pop %v2748
    %v2750 = vmul.f32 %v2747, 1.442695
    %v2751 = vpow.pop %v2750
    %v2752 = vadd.f32 %v2749, 1.0
    %v2753 = vadd.f32 %v2751, 1.0
    %v2754 = vrcp.pop %v2752
    %v2755 = vmul.f32 1.0, %v2754
    %v2756 = vrcp.pop %v2753
    %v2757 = vmul.f32 1.0, %v2756
    %v2758 = vtanh.pop %v2745
    %v2759 = vmul.f32 %v2755, %v2660
    %v2760 = vmul.f32 %v2755, %v2758
    %2762 = vrot.lane.b32.xlu0 %v2760, 64
    %v2763 = vpop.permute.xlu0 %2762
    %v2765 = vadd.f32 %v2759, %v2763
    %v2766 = vtanh.pop %v2765
    %v2767 = vmul.f32 %v2757, %v2766
    %2769 = vrot.lane.b32.xlu0 %v2767, 64
    %v2770 = vpop.permute.xlu0 %2769
    %2772 = vst.msk [vmem:[%s908] sm:$0x3] %vm906, %v2770
    %2773 = vst.msk [vmem:[#allocation2] sm:$0x3] %vm909, %v2770
    %v2774 = vld [vmem:[#allocation2] sm:$0x3]
    %v2775 = vld [vmem:[#allocation2 + $0x2] sm:$0x3]
    %v2776 = vld [vmem:[#allocation2 + $0x4] sm:$0x3]
    %v2777 = vld [vmem:[#allocation2 + $0x6] sm:$0x3]
    %v2778 = vld [vmem:[#allocation2 + $0x8] sm:$0x3]
    %v2779 = vld [vmem:[#allocation2 + $0xa] sm:$0x3]
    %v2780 = vld [vmem:[#allocation2 + $0xc] sm:$0x3]
    %v2781 = vld [vmem:[#allocation2 + $0xe] sm:$0x3]
    %v2782 = vld [vmem:[#allocation3 + $0x1e0] sm:$0xff]
    %v2783 = vld [vmem:[#allocation3 + $0x1e8] sm:$0xff]
    %v2784 = vld [vmem:[#allocation3 + $0x1f0] sm:$0xff]
    %v2785 = vld [vmem:[#allocation3 + $0x1f8] sm:$0xff]
    %v2786 = vld [vmem:[#allocation3 + $0x200] sm:$0xff]
    %v2787 = vld [vmem:[#allocation3 + $0x208] sm:$0xff]
    %v2788 = vld [vmem:[#allocation3 + $0x210] sm:$0xff]
    %v2789 = vld [vmem:[#allocation3 + $0x218] sm:$0xff]
    %v2790 = vld [vmem:[#allocation3 + $0x220] sm:$0xff]
    %v2791 = vld [vmem:[#allocation3 + $0x228] sm:$0xff]
    %v2792 = vld [vmem:[#allocation3 + $0x230] sm:$0xff]
    %v2793 = vld [vmem:[#allocation3 + $0x238] sm:$0xff]
    %v2794 = vld [vmem:[#allocation3 + $0x240] sm:$0xff]
    %v2795 = vld [vmem:[#allocation3 + $0x248] sm:$0xff]
    %v2796 = vld [vmem:[#allocation3 + $0x250] sm:$0xff]
    %v2797 = vld [vmem:[#allocation3 + $0x258] sm:$0xff]
    %v2798 = vld [vmem:[#allocation3 + $0x260] sm:$0xff]
    %v2799 = vld [vmem:[#allocation3 + $0x268] sm:$0xff]
    %v2800 = vld [vmem:[#allocation3 + $0x270] sm:$0xff]
    %v2801 = vld [vmem:[#allocation3 + $0x278] sm:$0xff]
    %v2802 = vld [vmem:[#allocation3 + $0x280] sm:$0xff]
    %v2803 = vld [vmem:[#allocation3 + $0x288] sm:$0xff]
    %v2804 = vld [vmem:[#allocation3 + $0x290] sm:$0xff]
    %v2805 = vld [vmem:[#allocation3 + $0x298] sm:$0xff]
    %v2806 = vld [vmem:[#allocation3 + $0x2a0] sm:$0xff]
    %v2807 = vld [vmem:[#allocation3 + $0x2a8] sm:$0xff]
    %v2808 = vld [vmem:[#allocation3 + $0x2b0] sm:$0xff]
    %v2809 = vld [vmem:[#allocation3 + $0x2b8] sm:$0xff]
    %v2810 = vld [vmem:[#allocation3 + $0x2c0] sm:$0xff]
    %v2811 = vld [vmem:[#allocation3 + $0x2c8] sm:$0xff]
    %v2812 = vld [vmem:[#allocation3 + $0x2d0] sm:$0xff]
    %v2813 = vld [vmem:[#allocation3 + $0x2d8] sm:$0xff]
    %s2814 = scalar_lea.vmem [#allocation3], 736
    %v2815 = vld [vmem:[%s2814] ss:$8 sm:$0x3]
    %v2817 = vlaneseq
    %v2818 = vshrl.u32 %v2817, 7
    %v2819 = vsub.s32 0, %v2818
    %v2820 = vrot.slane %v2815, %v2819
    %v2821 = vlaneseq
    %v2822 = vshrl.u32 %v2821, 7
    %v2823 = vsub.s32 1, %v2822
    %v2824 = vrot.slane %v2815, %v2823
    %v2835 = vcombine.low %v2774, %v2775
    %v2836 = vcombine.low %v2776, %v2777
    %v2838 = vunpack.c.l.s4 1983009808
    %v2839 = vunpack.c.0.s8 %v2838
    %v2840 = vlaneseq
    %v2841 = vshrl.u32 %v2840, 7
    %v2842 = vsub.s32 %v2839, %v2841
    %v2843 = vrot.slane %v2835, %v2842
    %v2845 = vunpack.c.l.s4 1983009808
    %v2846 = vunpack.c.0.s8 %v2845
    %v2847 = vlaneseq
    %v2848 = vshrl.u32 %v2847, 7
    %v2849 = vsub.s32 %v2846, %v2848
    %v2850 = vrot.slane %v2836, %v2849
    %v2851 = vcombine.low %v2843, %v2850
    %v2852 = vcombine.low %v2778, %v2779
    %v2853 = vcombine.low %v2780, %v2781
    %v2855 = vunpack.c.l.s4 1983009808
    %v2856 = vunpack.c.0.s8 %v2855
    %v2857 = vlaneseq
    %v2858 = vshrl.u32 %v2857, 7
    %v2859 = vsub.s32 %v2856, %v2858
    %v2860 = vrot.slane %v2852, %v2859
    %v2862 = vunpack.c.l.s4 1983009808
    %v2863 = vunpack.c.0.s8 %v2862
    %v2864 = vlaneseq
    %v2865 = vshrl.u32 %v2864, 7
    %v2866 = vsub.s32 %v2863, %v2865
    %v2867 = vrot.slane %v2853, %v2866
    %v2868 = vcombine.low %v2860, %v2867
    %v2869 = vsel %vm933, %v2851, 0
    %v2871 = vsel %vm933, %v2868, 0
    %2873 = vmatprep.subr.mxu0 %v2783
    %2874 = vmatpush1.msra.mxu0 %v2782
    %2875 = vmatprep.subr.mxu0 %v2785
    %2876 = vmatpush1.msra.mxu0 %v2784
    %2877 = vmatprep.subr.mxu0 %v2787
    %2878 = vmatpush1.msra.mxu0 %v2786
    %2879 = vmatprep.subr.mxu0 %v2789
    %2880 = vmatpush1.msra.mxu0 %v2788
    %2881 = vmatprep.subr.mxu0 %v2791
    %2882 = vmatpush1.msra.mxu0 %v2790
    %2883 = vmatprep.subr.mxu0 %v2793
    %2884 = vmatpush1.msra.mxu0 %v2792
    %2885 = vmatprep.subr.mxu0 %v2795
    %2886 = vmatpush1.msra.mxu0 %v2794
    %2887 = vmatprep.subr.mxu0 %v2797
    %2888 = vmatpush1.msra.mxu0 %v2796
    %2889 = vmatprep.subr.mxu0 0.0
    %2890 = vmatpush1.msra.mxu0 0.0
    %2891 = vmatprep.subr.mxu0 0.0
    %2892 = vmatpush1.msra.mxu0 0.0
    %2893 = vmatprep.subr.mxu0 0.0
    %2894 = vmatpush1.msra.mxu0 0.0
    %2895 = vmatprep.subr.mxu0 0.0
    %2896 = vmatpush1.msra.mxu0 0.0
    %2897 = vmatprep.subr.mxu0 0.0
    %2898 = vmatpush1.msra.mxu0 0.0
    %2899 = vmatprep.subr.mxu0 0.0
    %2900 = vmatpush1.msra.mxu0 0.0
    %2901 = vmatprep.subr.mxu0 0.0
    %2902 = vmatpush1.msra.mxu0 0.0
    %2903 = vmatprep.subr.mxu0 0.0
    %2904 = vmatpush1.msra.mxu0 0.0
    %2905 = vmatprep.subr.mxu0 0.0
    %2906 = vmatpush1.msra.mxu0 0.0
    %2907 = vmatprep.subr.mxu0 0.0
    %2908 = vmatpush1.msra.mxu0 0.0
    %2909 = vmatprep.subr.mxu0 0.0
    %2910 = vmatpush1.msra.mxu0 0.0
    %2911 = vmatprep.subr.mxu0 0.0
    %2912 = vmatpush1.msra.mxu0 0.0
    %2913 = vmatprep.subr.mxu0 0.0
    %2914 = vmatpush1.msra.mxu0 0.0
    %2915 = vmatprep.subr.mxu0 0.0
    %2916 = vmatpush1.msra.mxu0 0.0
    %2917 = vmatprep.subr.mxu0 0.0
    %2918 = vmatpush1.msra.mxu0 0.0
    %2919 = vmatprep.subr.mxu0 0.0
    %2920 = vmatpush1.msra.mxu0 0.0
    %2921 = vmatprep.subr.mxu0 0.0
    %2922 = vmatpush1.msra.mxu0 0.0
    %2923 = vmatprep.subr.mxu0 0.0
    %2924 = vmatpush1.msra.mxu0 0.0
    %2925 = vmatprep.subr.mxu0 0.0
    %2926 = vmatpush1.msra.mxu0 0.0
    %2927 = vmatprep.subr.mxu0 0.0
    %2928 = vmatpush1.msra.mxu0 0.0
    %2929 = vmatprep.subr.mxu0 0.0
    %2930 = vmatpush1.msra.mxu0 0.0
    %2931 = vmatprep.subr.mxu0 0.0
    %2932 = vmatpush1.msra.mxu0 0.0
    %2933 = vmatprep.subr.mxu0 0.0
    %2934 = vmatpush1.msra.mxu0 0.0
    %2935 = vmatprep.subr.mxu0 0.0
    %2936 = vmatpush1.msra.mxu0 0.0
    %2937 = vmatprep.mubr.f32.mxu0 0.0
    %2938 = vmatmul.mubr.f32.gmra.mrb[0].mxu0 %v2869
    %v2939 = vpop.f32.mrb[0].mxu0
    %v2940 = vadd.f32 %v2820, %v2939
    %v2941 = vpop.f32.mrb[0].mxu0
    %v2942 = vadd.f32 %v2824, %v2941
    %2943 = vmatprep.mubr.f32.mxu0 0.0
    %2944 = vmatmul.mubr.f32.gmra.mrb[0].mxu0 %v2871
    %v2945 = vpop.f32.mrb[0].mxu0
    %v2946 = vadd.f32 %v2820, %v2945
    %v2947 = vpop.f32.mrb[0].mxu0
    %v2948 = vadd.f32 %v2824, %v2947
    %2949 = vdwg.mxu0
    %v2954 = vcombine.low %v2940, %v2942
    %v2955 = vcombine.high %v2940, %v2942
    %v2957 = vunpack.c.l.s4 1983009808
    %v2958 = vunpack.c.0.s8 %v2957
    %v2959 = vlaneseq
    %v2960 = vshrl.u32 %v2959, 7
    %v2961 = vsub.s32 %v2958, %v2960
    %v2962 = vrot.slane %v2954, %v2961
    %v2964 = vunpack.c.l.s4 1983009808
    %v2965 = vunpack.c.0.s8 %v2964
    %v2966 = vlaneseq
    %v2967 = vshrl.u32 %v2966, 7
    %v2968 = vsub.s32 %v2965, %v2967
    %v2969 = vrot.slane %v2955, %v2968
    %v2970 = vcombine.high %v2962, %v2962
    %v2971 = vcombine.high %v2969, %v2969
    %v2972 = vcombine.low %v2946, %v2948
    %v2973 = vcombine.high %v2946, %v2948
    %v2975 = vunpack.c.l.s4 1983009808
    %v2976 = vunpack.c.0.s8 %v2975
    %v2977 = vlaneseq
    %v2978 = vshrl.u32 %v2977, 7
    %v2979 = vsub.s32 %v2976, %v2978
    %v2980 = vrot.slane %v2972, %v2979
    %v2982 = vunpack.c.l.s4 1983009808
    %v2983 = vunpack.c.0.s8 %v2982
    %v2984 = vlaneseq
    %v2985 = vshrl.u32 %v2984, 7
    %v2986 = vsub.s32 %v2983, %v2985
    %v2987 = vrot.slane %v2973, %v2986
    %v2988 = vcombine.high %v2980, %v2980
    %v2989 = vcombine.high %v2987, %v2987
    %v2991 = vunpack.c.l.s4 1983009808
    %v2992 = vunpack.c.0.s8 %v2991
    %v2993 = vlaneseq
    %v2994 = vshrl.u32 %v2993, 7
    %v2995 = vsub.s32 %v2992, %v2994
    %v2996 = vrot.slane %v2962, %v2995
    %v2997 = vcombine.high %v2996, %v2996
    %v3001 = vunpack.c.l.s4 1983009808
    %v3002 = vunpack.c.0.s8 %v3001
    %v3003 = vlaneseq
    %v3004 = vshrl.u32 %v3003, 7
    %v3005 = vsub.s32 %v3002, %v3004
    %v3006 = vrot.slane %v2989, %v3005
    %v3007 = vcombine.high %v3006, %v3006
    %v3010 = vsel %vm856, %v2996, %v3006
    %v3011 = vsel %vm857, %v2997, %v3007
    %v3012 = vxor.u32 %v3010, 2147483648
    %v3013 = vxor.u32 %v3011, 2147483648
    %v3014 = vmul.f32 %v3012, 1.442695
    %v3015 = vpow.pop %v3014
    %v3016 = vmul.f32 %v3013, 1.442695
    %v3017 = vpow.pop %v3016
    %v3018 = vadd.f32 %v3015, 1.0
    %v3019 = vadd.f32 %v3017, 1.0
    %v3020 = vrcp.pop %v3018
    %v3021 = vmul.f32 1.0, %v3020
    %v3022 = vrcp.pop %v3019
    %v3023 = vmul.f32 1.0, %v3022
    %v3024 = vtanh.pop %v3011
    %v3025 = vmul.f32 %v3021, 0.0
    %v3026 = vmul.f32 %v3021, %v3024
    %3028 = vrot.lane.b32.xlu0 %v3026, 64
    %v3029 = vpop.permute.xlu0 %3028
    %v3031 = vadd.f32 %v3025, %v3029
    %v3032 = vtanh.pop %v3031
    %v3033 = vmul.f32 %v3023, %v3032
    %3035 = vrot.lane.b32.xlu0 %v3033, 64
    %v3036 = vpop.permute.xlu0 %3035
    %3038 = vst.msk [vmem:[#allocation2] sm:$0x3] %vm906, %v3036
    %3039 = vst.msk [vmem:[%s908] sm:$0x3] %vm909, %v3036
    %v3041 = vunpack.c.l.s4 1983009808
    %v3042 = vunpack.c.0.s8 %v3041
    %v3043 = vlaneseq
    %v3044 = vshrl.u32 %v3043, 7
    %v3045 = vsub.s32 %v3042, %v3044
    %v3046 = vrot.slane %v2970, %v3045
    %v3047 = vcombine.high %v3046, %v3046
    %v3051 = vunpack.c.l.s4 1983009808
    %v3052 = vunpack.c.0.s8 %v3051
    %v3053 = vlaneseq
    %v3054 = vshrl.u32 %v3053, 7
    %v3055 = vsub.s32 %v3052, %v3054
    %v3056 = vrot.slane %v2987, %v3055
    %v3057 = vcombine.high %v3056, %v3056
    %v3060 = vsel %vm856, %v3046, %v3056
    %v3061 = vsel %vm857, %v3047, %v3057
    %v3062 = vsel %vm933, %v3036, 0
    %3064 = vmatprep.subr.mxu0 %v2799
    %3065 = vmatpush1.msra.mxu0 %v2798
    %3066 = vmatprep.subr.mxu0 %v2801
    %3067 = vmatpush1.msra.mxu0 %v2800
    %3068 = vmatprep.subr.mxu0 %v2803
    %3069 = vmatpush1.msra.mxu0 %v2802
    %3070 = vmatprep.subr.mxu0 %v2805
    %3071 = vmatpush1.msra.mxu0 %v2804
    %3072 = vmatprep.subr.mxu0 %v2807
    %3073 = vmatpush1.msra.mxu0 %v2806
    %3074 = vmatprep.subr.mxu0 %v2809
    %3075 = vmatpush1.msra.mxu0 %v2808
    %3076 = vmatprep.subr.mxu0 %v2811
    %3077 = vmatpush1.msra.mxu0 %v2810
    %3078 = vmatprep.subr.mxu0 %v2813
    %3079 = vmatpush1.msra.mxu0 %v2812
    %3080 = vmatprep.subr.mxu0 0.0
    %3081 = vmatpush1.msra.mxu0 0.0
    %3082 = vmatprep.subr.mxu0 0.0
    %3083 = vmatpush1.msra.mxu0 0.0
    %3084 = vmatprep.subr.mxu0 0.0
    %3085 = vmatpush1.msra.mxu0 0.0
    %3086 = vmatprep.subr.mxu0 0.0
    %3087 = vmatpush1.msra.mxu0 0.0
    %3088 = vmatprep.subr.mxu0 0.0
    %3089 = vmatpush1.msra.mxu0 0.0
    %3090 = vmatprep.subr.mxu0 0.0
    %3091 = vmatpush1.msra.mxu0 0.0
    %3092 = vmatprep.subr.mxu0 0.0
    %3093 = vmatpush1.msra.mxu0 0.0
    %3094 = vmatprep.subr.mxu0 0.0
    %3095 = vmatpush1.msra.mxu0 0.0
    %3096 = vmatprep.subr.mxu0 0.0
    %3097 = vmatpush1.msra.mxu0 0.0
    %3098 = vmatprep.subr.mxu0 0.0
    %3099 = vmatpush1.msra.mxu0 0.0
    %3100 = vmatprep.subr.mxu0 0.0
    %3101 = vmatpush1.msra.mxu0 0.0
    %3102 = vmatprep.subr.mxu0 0.0
    %3103 = vmatpush1.msra.mxu0 0.0
    %3104 = vmatprep.subr.mxu0 0.0
    %3105 = vmatpush1.msra.mxu0 0.0
    %3106 = vmatprep.subr.mxu0 0.0
    %3107 = vmatpush1.msra.mxu0 0.0
    %3108 = vmatprep.subr.mxu0 0.0
    %3109 = vmatpush1.msra.mxu0 0.0
    %3110 = vmatprep.subr.mxu0 0.0
    %3111 = vmatpush1.msra.mxu0 0.0
    %3112 = vmatprep.subr.mxu0 0.0
    %3113 = vmatpush1.msra.mxu0 0.0
    %3114 = vmatprep.subr.mxu0 0.0
    %3115 = vmatpush1.msra.mxu0 0.0
    %3116 = vmatprep.subr.mxu0 0.0
    %3117 = vmatpush1.msra.mxu0 0.0
    %3118 = vmatprep.subr.mxu0 0.0
    %3119 = vmatpush1.msra.mxu0 0.0
    %3120 = vmatprep.subr.mxu0 0.0
    %3121 = vmatpush1.msra.mxu0 0.0
    %3122 = vmatprep.subr.mxu0 0.0
    %3123 = vmatpush1.msra.mxu0 0.0
    %3124 = vmatprep.subr.mxu0 0.0
    %3125 = vmatpush1.msra.mxu0 0.0
    %3126 = vmatprep.subr.mxu0 0.0
    %3127 = vmatpush1.msra.mxu0 0.0
    %3128 = vmatprep.mubr.f32.mxu0 0.0
    %3129 = vmatmul.mubr.f32.gmra.mrb[0].mxu0 %v3062
    %v3130 = vpop.f32.mrb[0].mxu0
    %v3131 = vadd.f32 0.0, %v3130
    %v3132 = vpop.f32.mrb[0].mxu0
    %v3133 = vadd.f32 0.0, %v3132
    %3134 = vdwg.mxu0
    %v3135 = vadd.f32 %v3060, %v3131
    %v3136 = vadd.f32 %v3061, %v3133
    %v3137 = vxor.u32 %v3135, 2147483648
    %v3138 = vxor.u32 %v3136, 2147483648
    %v3139 = vmul.f32 %v3137, 1.442695
    %v3140 = vpow.pop %v3139
    %v3141 = vmul.f32 %v3138, 1.442695
    %v3142 = vpow.pop %v3141
    %v3143 = vadd.f32 %v3140, 1.0
    %v3144 = vadd.f32 %v3142, 1.0
    %v3145 = vrcp.pop %v3143
    %v3146 = vmul.f32 1.0, %v3145
    %v3147 = vrcp.pop %v3144
    %v3148 = vmul.f32 1.0, %v3147
    %v3149 = vtanh.pop %v3136
    %v3150 = vmul.f32 %v3146, %v3031
    %v3151 = vmul.f32 %v3146, %v3149
    %3153 = vrot.lane.b32.xlu0 %v3151, 64
    %v3154 = vpop.permute.xlu0 %3153
    %v3156 = vadd.f32 %v3150, %v3154
    %v3157 = vtanh.pop %v3156
    %v3158 = vmul.f32 %v3148, %v3157
    %3160 = vrot.lane.b32.xlu0 %v3158, 64
    %v3161 = vpop.permute.xlu0 %3160
    %3163 = vst.msk [vmem:[%s1035] sm:$0x3] %vm906, %v3161
    %3164 = vst.msk [vmem:[%s1037] sm:$0x3] %vm909, %v3161
    %v3166 = vunpack.c.l.s4 1983009808
    %v3167 = vunpack.c.0.s8 %v3166
    %v3168 = vlaneseq
    %v3169 = vshrl.u32 %v3168, 7
    %v3170 = vsub.s32 %v3167, %v3169
    %v3171 = vrot.slane %v2969, %v3170
    %v3172 = vcombine.high %v3171, %v3171
    %v3176 = vunpack.c.l.s4 1983009808
    %v3177 = vunpack.c.0.s8 %v3176
    %v3178 = vlaneseq
    %v3179 = vshrl.u32 %v3178, 7
    %v3180 = vsub.s32 %v3177, %v3179
    %v3181 = vrot.slane %v2988, %v3180
    %v3182 = vcombine.high %v3181, %v3181
    %v3185 = vsel %vm856, %v3171, %v3181
    %v3186 = vsel %vm857, %v3172, %v3182
    %v3187 = vsel %vm933, %v3161, 0
    %3189 = vmatprep.subr.mxu0 %v2799
    %3190 = vmatpush1.msra.mxu0 %v2798
    %3191 = vmatprep.subr.mxu0 %v2801
    %3192 = vmatpush1.msra.mxu0 %v2800
    %3193 = vmatprep.subr.mxu0 %v2803
    %3194 = vmatpush1.msra.mxu0 %v2802
    %3195 = vmatprep.subr.mxu0 %v2805
    %3196 = vmatpush1.msra.mxu0 %v2804
    %3197 = vmatprep.subr.mxu0 %v2807
    %3198 = vmatpush1.msra.mxu0 %v2806
    %3199 = vmatprep.subr.mxu0 %v2809
    %3200 = vmatpush1.msra.mxu0 %v2808
    %3201 = vmatprep.subr.mxu0 %v2811
    %3202 = vmatpush1.msra.mxu0 %v2810
    %3203 = vmatprep.subr.mxu0 %v2813
    %3204 = vmatpush1.msra.mxu0 %v2812
    %3205 = vmatprep.subr.mxu0 0.0
    %3206 = vmatpush1.msra.mxu0 0.0
    %3207 = vmatprep.subr.mxu0 0.0
    %3208 = vmatpush1.msra.mxu0 0.0
    %3209 = vmatprep.subr.mxu0 0.0
    %3210 = vmatpush1.msra.mxu0 0.0
    %3211 = vmatprep.subr.mxu0 0.0
    %3212 = vmatpush1.msra.mxu0 0.0
    %3213 = vmatprep.subr.mxu0 0.0
    %3214 = vmatpush1.msra.mxu0 0.0
    %3215 = vmatprep.subr.mxu0 0.0
    %3216 = vmatpush1.msra.mxu0 0.0
    %3217 = vmatprep.subr.mxu0 0.0
    %3218 = vmatpush1.msra.mxu0 0.0
    %3219 = vmatprep.subr.mxu0 0.0
    %3220 = vmatpush1.msra.mxu0 0.0
    %3221 = vmatprep.subr.mxu0 0.0
    %3222 = vmatpush1.msra.mxu0 0.0
    %3223 = vmatprep.subr.mxu0 0.0
    %3224 = vmatpush1.msra.mxu0 0.0
    %3225 = vmatprep.subr.mxu0 0.0
    %3226 = vmatpush1.msra.mxu0 0.0
    %3227 = vmatprep.subr.mxu0 0.0
    %3228 = vmatpush1.msra.mxu0 0.0
    %3229 = vmatprep.subr.mxu0 0.0
    %3230 = vmatpush1.msra.mxu0 0.0
    %3231 = vmatprep.subr.mxu0 0.0
    %3232 = vmatpush1.msra.mxu0 0.0
    %3233 = vmatprep.subr.mxu0 0.0
    %3234 = vmatpush1.msra.mxu0 0.0
    %3235 = vmatprep.subr.mxu0 0.0
    %3236 = vmatpush1.msra.mxu0 0.0
    %3237 = vmatprep.subr.mxu0 0.0
    %3238 = vmatpush1.msra.mxu0 0.0
    %3239 = vmatprep.subr.mxu0 0.0
    %3240 = vmatpush1.msra.mxu0 0.0
    %3241 = vmatprep.subr.mxu0 0.0
    %3242 = vmatpush1.msra.mxu0 0.0
    %3243 = vmatprep.subr.mxu0 0.0
    %3244 = vmatpush1.msra.mxu0 0.0
    %3245 = vmatprep.subr.mxu0 0.0
    %3246 = vmatpush1.msra.mxu0 0.0
    %3247 = vmatprep.subr.mxu0 0.0
    %3248 = vmatpush1.msra.mxu0 0.0
    %3249 = vmatprep.subr.mxu0 0.0
    %3250 = vmatpush1.msra.mxu0 0.0
    %3251 = vmatprep.subr.mxu0 0.0
    %3252 = vmatpush1.msra.mxu0 0.0
    %3253 = vmatprep.mubr.f32.mxu0 0.0
    %3254 = vmatmul.mubr.f32.gmra.mrb[0].mxu0 %v3187
    %v3255 = vpop.f32.mrb[0].mxu0
    %v3256 = vadd.f32 0.0, %v3255
    %v3257 = vpop.f32.mrb[0].mxu0
    %v3258 = vadd.f32 0.0, %v3257
    %3259 = vdwg.mxu0
    %v3260 = vadd.f32 %v3185, %v3256
    %v3261 = vadd.f32 %v3186, %v3258
    %v3262 = vxor.u32 %v3260, 2147483648
    %v3263 = vxor.u32 %v3261, 2147483648
    %v3264 = vmul.f32 %v3262, 1.442695
    %v3265 = vpow.pop %v3264
    %v3266 = vmul.f32 %v3263, 1.442695
    %v3267 = vpow.pop %v3266
    %v3268 = vadd.f32 %v3265, 1.0
    %v3269 = vadd.f32 %v3267, 1.0
    %v3270 = vrcp.pop %v3268
    %v3271 = vmul.f32 1.0, %v3270
    %v3272 = vrcp.pop %v3269
    %v3273 = vmul.f32 1.0, %v3272
    %v3274 = vtanh.pop %v3261
    %v3275 = vmul.f32 %v3271, %v3156
    %v3276 = vmul.f32 %v3271, %v3274
    %3278 = vrot.lane.b32.xlu0 %v3276, 64
    %v3279 = vpop.permute.xlu0 %3278
    %v3281 = vadd.f32 %v3275, %v3279
    %v3282 = vtanh.pop %v3281
    %v3283 = vmul.f32 %v3273, %v3282
    %3285 = vrot.lane.b32.xlu0 %v3283, 64
    %v3286 = vpop.permute.xlu0 %3285
    %3288 = vst.msk [vmem:[%s1162] sm:$0x3] %vm906, %v3286
    %3289 = vst.msk [vmem:[%s1164] sm:$0x3] %vm909, %v3286
    %v3291 = vunpack.c.l.s4 1983009808
    %v3292 = vunpack.c.0.s8 %v3291
    %v3293 = vlaneseq
    %v3294 = vshrl.u32 %v3293, 7
    %v3295 = vsub.s32 %v3292, %v3294
    %v3296 = vrot.slane %v2971, %v3295
    %v3297 = vcombine.high %v3296, %v3296
    %v3301 = vunpack.c.l.s4 1983009808
    %v3302 = vunpack.c.0.s8 %v3301
    %v3303 = vlaneseq
    %v3304 = vshrl.u32 %v3303, 7
    %v3305 = vsub.s32 %v3302, %v3304
    %v3306 = vrot.slane %v2980, %v3305
    %v3307 = vcombine.high %v3306, %v3306
    %v3310 = vsel %vm856, %v3296, %v3306
    %v3311 = vsel %vm857, %v3297, %v3307
    %v3312 = vsel %vm933, %v3286, 0
    %3314 = vmatprep.subr.mxu0 %v2799
    %3315 = vmatpush1.msra.mxu0 %v2798
    %3316 = vmatprep.subr.mxu0 %v2801
    %3317 = vmatpush1.msra.mxu0 %v2800
    %3318 = vmatprep.subr.mxu0 %v2803
    %3319 = vmatpush1.msra.mxu0 %v2802
    %3320 = vmatprep.subr.mxu0 %v2805
    %3321 = vmatpush1.msra.mxu0 %v2804
    %3322 = vmatprep.subr.mxu0 %v2807
    %3323 = vmatpush1.msra.mxu0 %v2806
    %3324 = vmatprep.subr.mxu0 %v2809
    %3325 = vmatpush1.msra.mxu0 %v2808
    %3326 = vmatprep.subr.mxu0 %v2811
    %3327 = vmatpush1.msra.mxu0 %v2810
    %3328 = vmatprep.subr.mxu0 %v2813
    %3329 = vmatpush1.msra.mxu0 %v2812
    %3330 = vmatprep.subr.mxu0 0.0
    %3331 = vmatpush1.msra.mxu0 0.0
    %3332 = vmatprep.subr.mxu0 0.0
    %3333 = vmatpush1.msra.mxu0 0.0
    %3334 = vmatprep.subr.mxu0 0.0
    %3335 = vmatpush1.msra.mxu0 0.0
    %3336 = vmatprep.subr.mxu0 0.0
    %3337 = vmatpush1.msra.mxu0 0.0
    %3338 = vmatprep.subr.mxu0 0.0
    %3339 = vmatpush1.msra.mxu0 0.0
    %3340 = vmatprep.subr.mxu0 0.0
    %3341 = vmatpush1.msra.mxu0 0.0
    %3342 = vmatprep.subr.mxu0 0.0
    %3343 = vmatpush1.msra.mxu0 0.0
    %3344 = vmatprep.subr.mxu0 0.0
    %3345 = vmatpush1.msra.mxu0 0.0
    %3346 = vmatprep.subr.mxu0 0.0
    %3347 = vmatpush1.msra.mxu0 0.0
    %3348 = vmatprep.subr.mxu0 0.0
    %3349 = vmatpush1.msra.mxu0 0.0
    %3350 = vmatprep.subr.mxu0 0.0
    %3351 = vmatpush1.msra.mxu0 0.0
    %3352 = vmatprep.subr.mxu0 0.0
    %3353 = vmatpush1.msra.mxu0 0.0
    %3354 = vmatprep.subr.mxu0 0.0
    %3355 = vmatpush1.msra.mxu0 0.0
    %3356 = vmatprep.subr.mxu0 0.0
    %3357 = vmatpush1.msra.mxu0 0.0
    %3358 = vmatprep.subr.mxu0 0.0
    %3359 = vmatpush1.msra.mxu0 0.0
    %3360 = vmatprep.subr.mxu0 0.0
    %3361 = vmatpush1.msra.mxu0 0.0
    %3362 = vmatprep.subr.mxu0 0.0
    %3363 = vmatpush1.msra.mxu0 0.0
    %3364 = vmatprep.subr.mxu0 0.0
    %3365 = vmatpush1.msra.mxu0 0.0
    %3366 = vmatprep.subr.mxu0 0.0
    %3367 = vmatpush1.msra.mxu0 0.0
    %3368 = vmatprep.subr.mxu0 0.0
    %3369 = vmatpush1.msra.mxu0 0.0
    %3370 = vmatprep.subr.mxu0 0.0
    %3371 = vmatpush1.msra.mxu0 0.0
    %3372 = vmatprep.subr.mxu0 0.0
    %3373 = vmatpush1.msra.mxu0 0.0
    %3374 = vmatprep.subr.mxu0 0.0
    %3375 = vmatpush1.msra.mxu0 0.0
    %3376 = vmatprep.subr.mxu0 0.0
    %3377 = vmatpush1.msra.mxu0 0.0
    %3378 = vmatprep.mubr.f32.mxu0 0.0
    %3379 = vmatmul.mubr.f32.gmra.mrb[0].mxu0 %v3312
    %v3380 = vpop.f32.mrb[0].mxu0
    %v3381 = vadd.f32 0.0, %v3380
    %v3382 = vpop.f32.mrb[0].mxu0
    %v3383 = vadd.f32 0.0, %v3382
    %3384 = vdwg.mxu0
    %v3385 = vadd.f32 %v3310, %v3381
    %v3386 = vadd.f32 %v3311, %v3383
    %v3387 = vxor.u32 %v3385, 2147483648
    %v3388 = vxor.u32 %v3386, 2147483648
    %v3389 = vmul.f32 %v3387, 1.442695
    %v3390 = vpow.pop %v3389
    %v3391 = vmul.f32 %v3388, 1.442695
    %v3392 = vpow.pop %v3391
    %v3393 = vadd.f32 %v3390, 1.0
    %v3394 = vadd.f32 %v3392, 1.0
    %v3395 = vrcp.pop %v3393
    %v3396 = vmul.f32 1.0, %v3395
    %v3397 = vrcp.pop %v3394
    %v3398 = vmul.f32 1.0, %v3397
    %v3399 = vtanh.pop %v3386
    %v3400 = vmul.f32 %v3396, %v3281
    %v3401 = vmul.f32 %v3396, %v3399
    %3403 = vrot.lane.b32.xlu0 %v3401, 64
    %v3404 = vpop.permute.xlu0 %3403
    %v3406 = vadd.f32 %v3400, %v3404
    %v3407 = vtanh.pop %v3406
    %v3408 = vmul.f32 %v3398, %v3407
    %3410 = vrot.lane.b32.xlu0 %v3408, 64
    %v3411 = vpop.permute.xlu0 %3410
    %3413 = vst.msk [vmem:[%s1289] sm:$0x3] %vm906, %v3411
    %3414 = vst.msk [vmem:[%s1291] sm:$0x3] %vm909, %v3411
    %v3415 = vsel %vm856, %v3306, %v3296
    %v3416 = vsel %vm857, %v3307, %v3297
    %v3417 = vsel %vm933, %v3411, 0
    %3419 = vmatprep.subr.mxu0 %v2799
    %3420 = vmatpush1.msra.mxu0 %v2798
    %3421 = vmatprep.subr.mxu0 %v2801
    %3422 = vmatpush1.msra.mxu0 %v2800
    %3423 = vmatprep.subr.mxu0 %v2803
    %3424 = vmatpush1.msra.mxu0 %v2802
    %3425 = vmatprep.subr.mxu0 %v2805
    %3426 = vmatpush1.msra.mxu0 %v2804
    %3427 = vmatprep.subr.mxu0 %v2807
    %3428 = vmatpush1.msra.mxu0 %v2806
    %3429 = vmatprep.subr.mxu0 %v2809
    %3430 = vmatpush1.msra.mxu0 %v2808
    %3431 = vmatprep.subr.mxu0 %v2811
    %3432 = vmatpush1.msra.mxu0 %v2810
    %3433 = vmatprep.subr.mxu0 %v2813
    %3434 = vmatpush1.msra.mxu0 %v2812
    %3435 = vmatprep.subr.mxu0 0.0
    %3436 = vmatpush1.msra.mxu0 0.0
    %3437 = vmatprep.subr.mxu0 0.0
    %3438 = vmatpush1.msra.mxu0 0.0
    %3439 = vmatprep.subr.mxu0 0.0
    %3440 = vmatpush1.msra.mxu0 0.0
    %3441 = vmatprep.subr.mxu0 0.0
    %3442 = vmatpush1.msra.mxu0 0.0
    %3443 = vmatprep.subr.mxu0 0.0
    %3444 = vmatpush1.msra.mxu0 0.0
    %3445 = vmatprep.subr.mxu0 0.0
    %3446 = vmatpush1.msra.mxu0 0.0
    %3447 = vmatprep.subr.mxu0 0.0
    %3448 = vmatpush1.msra.mxu0 0.0
    %3449 = vmatprep.subr.mxu0 0.0
    %3450 = vmatpush1.msra.mxu0 0.0
    %3451 = vmatprep.subr.mxu0 0.0
    %3452 = vmatpush1.msra.mxu0 0.0
    %3453 = vmatprep.subr.mxu0 0.0
    %3454 = vmatpush1.msra.mxu0 0.0
    %3455 = vmatprep.subr.mxu0 0.0
    %3456 = vmatpush1.msra.mxu0 0.0
    %3457 = vmatprep.subr.mxu0 0.0
    %3458 = vmatpush1.msra.mxu0 0.0
    %3459 = vmatprep.subr.mxu0 0.0
    %3460 = vmatpush1.msra.mxu0 0.0
    %3461 = vmatprep.subr.mxu0 0.0
    %3462 = vmatpush1.msra.mxu0 0.0
    %3463 = vmatprep.subr.mxu0 0.0
    %3464 = vmatpush1.msra.mxu0 0.0
    %3465 = vmatprep.subr.mxu0 0.0
    %3466 = vmatpush1.msra.mxu0 0.0
    %3467 = vmatprep.subr.mxu0 0.0
    %3468 = vmatpush1.msra.mxu0 0.0
    %3469 = vmatprep.subr.mxu0 0.0
    %3470 = vmatpush1.msra.mxu0 0.0
    %3471 = vmatprep.subr.mxu0 0.0
    %3472 = vmatpush1.msra.mxu0 0.0
    %3473 = vmatprep.subr.mxu0 0.0
    %3474 = vmatpush1.msra.mxu0 0.0
    %3475 = vmatprep.subr.mxu0 0.0
    %3476 = vmatpush1.msra.mxu0 0.0
    %3477 = vmatprep.subr.mxu0 0.0
    %3478 = vmatpush1.msra.mxu0 0.0
    %3479 = vmatprep.subr.mxu0 0.0
    %3480 = vmatpush1.msra.mxu0 0.0
    %3481 = vmatprep.subr.mxu0 0.0
    %3482 = vmatpush1.msra.mxu0 0.0
    %3483 = vmatprep.mubr.f32.mxu0 0.0
    %3484 = vmatmul.mubr.f32.gmra.mrb[0].mxu0 %v3417
    %v3485 = vpop.f32.mrb[0].mxu0
    %v3486 = vadd.f32 0.0, %v3485
    %v3487 = vpop.f32.mrb[0].mxu0
    %v3488 = vadd.f32 0.0, %v3487
    %3489 = vdwg.mxu0
    %v3490 = vadd.f32 %v3415, %v3486
    %v3491 = vadd.f32 %v3416, %v3488
    %v3492 = vxor.u32 %v3490, 2147483648
    %v3493 = vxor.u32 %v3491, 2147483648
    %v3494 = vmul.f32 %v3492, 1.442695
    %v3495 = vpow.pop %v3494
    %v3496 = vmul.f32 %v3493, 1.442695
    %v3497 = vpow.pop %v3496
    %v3498 = vadd.f32 %v3495, 1.0
    %v3499 = vadd.f32 %v3497, 1.0
    %v3500 = vrcp.pop %v3498
    %v3501 = vmul.f32 1.0, %v3500
    %v3502 = vrcp.pop %v3499
    %v3503 = vmul.f32 1.0, %v3502
    %v3504 = vtanh.pop %v3491
    %v3505 = vmul.f32 %v3501, %v3406
    %v3506 = vmul.f32 %v3501, %v3504
    %3508 = vrot.lane.b32.xlu0 %v3506, 64
    %v3509 = vpop.permute.xlu0 %3508
    %v3511 = vadd.f32 %v3505, %v3509
    %v3512 = vtanh.pop %v3511
    %v3513 = vmul.f32 %v3503, %v3512
    %3515 = vrot.lane.b32.xlu0 %v3513, 64
    %v3516 = vpop.permute.xlu0 %3515
    %3518 = vst.msk [vmem:[%s1291] sm:$0x3] %vm906, %v3516
    %3519 = vst.msk [vmem:[%s1289] sm:$0x3] %vm909, %v3516
    %v3520 = vsel %vm856, %v3181, %v3171
    %v3521 = vsel %vm857, %v3182, %v3172
    %v3522 = vsel %vm933, %v3516, 0
    %3524 = vmatprep.subr.mxu0 %v2799
    %3525 = vmatpush1.msra.mxu0 %v2798
    %3526 = vmatprep.subr.mxu0 %v2801
    %3527 = vmatpush1.msra.mxu0 %v2800
    %3528 = vmatprep.subr.mxu0 %v2803
    %3529 = vmatpush1.msra.mxu0 %v2802
    %3530 = vmatprep.subr.mxu0 %v2805
    %3531 = vmatpush1.msra.mxu0 %v2804
    %3532 = vmatprep.subr.mxu0 %v2807
    %3533 = vmatpush1.msra.mxu0 %v2806
    %3534 = vmatprep.subr.mxu0 %v2809
    %3535 = vmatpush1.msra.mxu0 %v2808
    %3536 = vmatprep.subr.mxu0 %v2811
    %3537 = vmatpush1.msra.mxu0 %v2810
    %3538 = vmatprep.subr.mxu0 %v2813
    %3539 = vmatpush1.msra.mxu0 %v2812
    %3540 = vmatprep.subr.mxu0 0.0
    %3541 = vmatpush1.msra.mxu0 0.0
    %3542 = vmatprep.subr.mxu0 0.0
    %3543 = vmatpush1.msra.mxu0 0.0
    %3544 = vmatprep.subr.mxu0 0.0
    %3545 = vmatpush1.msra.mxu0 0.0
    %3546 = vmatprep.subr.mxu0 0.0
    %3547 = vmatpush1.msra.mxu0 0.0
    %3548 = vmatprep.subr.mxu0 0.0
    %3549 = vmatpush1.msra.mxu0 0.0
    %3550 = vmatprep.subr.mxu0 0.0
    %3551 = vmatpush1.msra.mxu0 0.0
    %3552 = vmatprep.subr.mxu0 0.0
    %3553 = vmatpush1.msra.mxu0 0.0
    %3554 = vmatprep.subr.mxu0 0.0
    %3555 = vmatpush1.msra.mxu0 0.0
    %3556 = vmatprep.subr.mxu0 0.0
    %3557 = vmatpush1.msra.mxu0 0.0
    %3558 = vmatprep.subr.mxu0 0.0
    %3559 = vmatpush1.msra.mxu0 0.0
    %3560 = vmatprep.subr.mxu0 0.0
    %3561 = vmatpush1.msra.mxu0 0.0
    %3562 = vmatprep.subr.mxu0 0.0
    %3563 = vmatpush1.msra.mxu0 0.0
    %3564 = vmatprep.subr.mxu0 0.0
    %3565 = vmatpush1.msra.mxu0 0.0
    %3566 = vmatprep.subr.mxu0 0.0
    %3567 = vmatpush1.msra.mxu0 0.0
    %3568 = vmatprep.subr.mxu0 0.0
    %3569 = vmatpush1.msra.mxu0 0.0
    %3570 = vmatprep.subr.mxu0 0.0
    %3571 = vmatpush1.msra.mxu0 0.0
    %3572 = vmatprep.subr.mxu0 0.0
    %3573 = vmatpush1.msra.mxu0 0.0
    %3574 = vmatprep.subr.mxu0 0.0
    %3575 = vmatpush1.msra.mxu0 0.0
    %3576 = vmatprep.subr.mxu0 0.0
    %3577 = vmatpush1.msra.mxu0 0.0
    %3578 = vmatprep.subr.mxu0 0.0
    %3579 = vmatpush1.msra.mxu0 0.0
    %3580 = vmatprep.subr.mxu0 0.0
    %3581 = vmatpush1.msra.mxu0 0.0
    %3582 = vmatprep.subr.mxu0 0.0
    %3583 = vmatpush1.msra.mxu0 0.0
    %3584 = vmatprep.subr.mxu0 0.0
    %3585 = vmatpush1.msra.mxu0 0.0
    %3586 = vmatprep.subr.mxu0 0.0
    %3587 = vmatpush1.msra.mxu0 0.0
    %3588 = vmatprep.mubr.f32.mxu0 0.0
    %3589 = vmatmul.mubr.f32.gmra.mrb[0].mxu0 %v3522
    %v3590 = vpop.f32.mrb[0].mxu0
    %v3591 = vadd.f32 0.0, %v3590
    %v3592 = vpop.f32.mrb[0].mxu0
    %v3593 = vadd.f32 0.0, %v3592
    %3594 = vdwg.mxu0
    %v3595 = vadd.f32 %v3520, %v3591
    %v3596 = vadd.f32 %v3521, %v3593
    %v3597 = vxor.u32 %v3595, 2147483648
    %v3598 = vxor.u32 %v3596, 2147483648
    %v3599 = vmul.f32 %v3597, 1.442695
    %v3600 = vpow.pop %v3599
    %v3601 = vmul.f32 %v3598, 1.442695
    %v3602 = vpow.pop %v3601
    %v3603 = vadd.f32 %v3600, 1.0
    %v3604 = vadd.f32 %v3602, 1.0
    %v3605 = vrcp.pop %v3603
    %v3606 = vmul.f32 1.0, %v3605
    %v3607 = vrcp.pop %v3604
    %v3608 = vmul.f32 1.0, %v3607
    %v3609 = vtanh.pop %v3596
    %v3610 = vmul.f32 %v3606, %v3511
    %v3611 = vmul.f32 %v3606, %v3609
    %3613 = vrot.lane.b32.xlu0 %v3611, 64
    %v3614 = vpop.permute.xlu0 %3613
    %v3616 = vadd.f32 %v3610, %v3614
    %v3617 = vtanh.pop %v3616
    %v3618 = vmul.f32 %v3608, %v3617
    %3620 = vrot.lane.b32.xlu0 %v3618, 64
    %v3621 = vpop.permute.xlu0 %3620
    %3623 = vst.msk [vmem:[%s1164] sm:$0x3] %vm906, %v3621
    %3624 = vst.msk [vmem:[%s1162] sm:$0x3] %vm909, %v3621
    %v3625 = vsel %vm856, %v3056, %v3046
    %v3626 = vsel %vm857, %v3057, %v3047
    %v3627 = vsel %vm933, %v3621, 0
    %3629 = vmatprep.subr.mxu0 %v2799
    %3630 = vmatpush1.msra.mxu0 %v2798
    %3631 = vmatprep.subr.mxu0 %v2801
    %3632 = vmatpush1.msra.mxu0 %v2800
    %3633 = vmatprep.subr.mxu0 %v2803
    %3634 = vmatpush1.msra.mxu0 %v2802
    %3635 = vmatprep.subr.mxu0 %v2805
    %3636 = vmatpush1.msra.mxu0 %v2804
    %3637 = vmatprep.subr.mxu0 %v2807
    %3638 = vmatpush1.msra.mxu0 %v2806
    %3639 = vmatprep.subr.mxu0 %v2809
    %3640 = vmatpush1.msra.mxu0 %v2808
    %3641 = vmatprep.subr.mxu0 %v2811
    %3642 = vmatpush1.msra.mxu0 %v2810
    %3643 = vmatprep.subr.mxu0 %v2813
    %3644 = vmatpush1.msra.mxu0 %v2812
    %3645 = vmatprep.subr.mxu0 0.0
    %3646 = vmatpush1.msra.mxu0 0.0
    %3647 = vmatprep.subr.mxu0 0.0
    %3648 = vmatpush1.msra.mxu0 0.0
    %3649 = vmatprep.subr.mxu0 0.0
    %3650 = vmatpush1.msra.mxu0 0.0
    %3651 = vmatprep.subr.mxu0 0.0
    %3652 = vmatpush1.msra.mxu0 0.0
    %3653 = vmatprep.subr.mxu0 0.0
    %3654 = vmatpush1.msra.mxu0 0.0
    %3655 = vmatprep.subr.mxu0 0.0
    %3656 = vmatpush1.msra.mxu0 0.0
    %3657 = vmatprep.subr.mxu0 0.0
    %3658 = vmatpush1.msra.mxu0 0.0
    %3659 = vmatprep.subr.mxu0 0.0
    %3660 = vmatpush1.msra.mxu0 0.0
    %3661 = vmatprep.subr.mxu0 0.0
    %3662 = vmatpush1.msra.mxu0 0.0
    %3663 = vmatprep.subr.mxu0 0.0
    %3664 = vmatpush1.msra.mxu0 0.0
    %3665 = vmatprep.subr.mxu0 0.0
    %3666 = vmatpush1.msra.mxu0 0.0
    %3667 = vmatprep.subr.mxu0 0.0
    %3668 = vmatpush1.msra.mxu0 0.0
    %3669 = vmatprep.subr.mxu0 0.0
    %3670 = vmatpush1.msra.mxu0 0.0
    %3671 = vmatprep.subr.mxu0 0.0
    %3672 = vmatpush1.msra.mxu0 0.0
    %3673 = vmatprep.subr.mxu0 0.0
    %3674 = vmatpush1.msra.mxu0 0.0
    %3675 = vmatprep.subr.mxu0 0.0
    %3676 = vmatpush1.msra.mxu0 0.0
    %3677 = vmatprep.subr.mxu0 0.0
    %3678 = vmatpush1.msra.mxu0 0.0
    %3679 = vmatprep.subr.mxu0 0.0
    %3680 = vmatpush1.msra.mxu0 0.0
    %3681 = vmatprep.subr.mxu0 0.0
    %3682 = vmatpush1.msra.mxu0 0.0
    %3683 = vmatprep.subr.mxu0 0.0
    %3684 = vmatpush1.msra.mxu0 0.0
    %3685 = vmatprep.subr.mxu0 0.0
    %3686 = vmatpush1.msra.mxu0 0.0
    %3687 = vmatprep.subr.mxu0 0.0
    %3688 = vmatpush1.msra.mxu0 0.0
    %3689 = vmatprep.subr.mxu0 0.0
    %3690 = vmatpush1.msra.mxu0 0.0
    %3691 = vmatprep.subr.mxu0 0.0
    %3692 = vmatpush1.msra.mxu0 0.0
    %3693 = vmatprep.mubr.f32.mxu0 0.0
    %3694 = vmatmul.mubr.f32.gmra.mrb[0].mxu0 %v3627
    %v3695 = vpop.f32.mrb[0].mxu0
    %v3696 = vadd.f32 0.0, %v3695
    %v3697 = vpop.f32.mrb[0].mxu0
    %v3698 = vadd.f32 0.0, %v3697
    %3699 = vdwg.mxu0
    %v3700 = vadd.f32 %v3625, %v3696
    %v3701 = vadd.f32 %v3626, %v3698
    %v3702 = vxor.u32 %v3700, 2147483648
    %v3703 = vxor.u32 %v3701, 2147483648
    %v3704 = vmul.f32 %v3702, 1.442695
    %v3705 = vpow.pop %v3704
    %v3706 = vmul.f32 %v3703, 1.442695
    %v3707 = vpow.pop %v3706
    %v3708 = vadd.f32 %v3705, 1.0
    %v3709 = vadd.f32 %v3707, 1.0
    %v3710 = vrcp.pop %v3708
    %v3711 = vmul.f32 1.0, %v3710
    %v3712 = vrcp.pop %v3709
    %v3713 = vmul.f32 1.0, %v3712
    %v3714 = vtanh.pop %v3701
    %v3715 = vmul.f32 %v3711, %v3616
    %v3716 = vmul.f32 %v3711, %v3714
    %3718 = vrot.lane.b32.xlu0 %v3716, 64
    %v3719 = vpop.permute.xlu0 %3718
    %v3721 = vadd.f32 %v3715, %v3719
    %v3722 = vtanh.pop %v3721
    %v3723 = vmul.f32 %v3713, %v3722
    %3725 = vrot.lane.b32.xlu0 %v3723, 64
    %v3726 = vpop.permute.xlu0 %3725
    %3728 = vst.msk [vmem:[%s1037] sm:$0x3] %vm906, %v3726
    %3729 = vst.msk [vmem:[%s1035] sm:$0x3] %vm909, %v3726
    %v3730 = vsel %vm856, %v3006, %v2996
    %v3731 = vsel %vm857, %v3007, %v2997
    %v3732 = vsel %vm933, %v3726, 0
    %3734 = vmatprep.subr.mxu0 %v2799
    %3735 = vmatpush1.msra.mxu0 %v2798
    %3736 = vmatprep.subr.mxu0 %v2801
    %3737 = vmatpush1.msra.mxu0 %v2800
    %3738 = vmatprep.subr.mxu0 %v2803
    %3739 = vmatpush1.msra.mxu0 %v2802
    %3740 = vmatprep.subr.mxu0 %v2805
    %3741 = vmatpush1.msra.mxu0 %v2804
    %3742 = vmatprep.subr.mxu0 %v2807
    %3743 = vmatpush1.msra.mxu0 %v2806
    %3744 = vmatprep.subr.mxu0 %v2809
    %3745 = vmatpush1.msra.mxu0 %v2808
    %3746 = vmatprep.subr.mxu0 %v2811
    %3747 = vmatpush1.msra.mxu0 %v2810
    %3748 = vmatprep.subr.mxu0 %v2813
    %3749 = vmatpush1.msra.mxu0 %v2812
    %3750 = vmatprep.subr.mxu0 0.0
    %3751 = vmatpush1.msra.mxu0 0.0
    %3752 = vmatprep.subr.mxu0 0.0
    %3753 = vmatpush1.msra.mxu0 0.0
    %3754 = vmatprep.subr.mxu0 0.0
    %3755 = vmatpush1.msra.mxu0 0.0
    %3756 = vmatprep.subr.mxu0 0.0
    %3757 = vmatpush1.msra.mxu0 0.0
    %3758 = vmatprep.subr.mxu0 0.0
    %3759 = vmatpush1.msra.mxu0 0.0
    %3760 = vmatprep.subr.mxu0 0.0
    %3761 = vmatpush1.msra.mxu0 0.0
    %3762 = vmatprep.subr.mxu0 0.0
    %3763 = vmatpush1.msra.mxu0 0.0
    %3764 = vmatprep.subr.mxu0 0.0
    %3765 = vmatpush1.msra.mxu0 0.0
    %3766 = vmatprep.subr.mxu0 0.0
    %3767 = vmatpush1.msra.mxu0 0.0
    %3768 = vmatprep.subr.mxu0 0.0
    %3769 = vmatpush1.msra.mxu0 0.0
    %3770 = vmatprep.subr.mxu0 0.0
    %3771 = vmatpush1.msra.mxu0 0.0
    %3772 = vmatprep.subr.mxu0 0.0
    %3773 = vmatpush1.msra.mxu0 0.0
    %3774 = vmatprep.subr.mxu0 0.0
    %3775 = vmatpush1.msra.mxu0 0.0
    %3776 = vmatprep.subr.mxu0 0.0
    %3777 = vmatpush1.msra.mxu0 0.0
    %3778 = vmatprep.subr.mxu0 0.0
    %3779 = vmatpush1.msra.mxu0 0.0
    %3780 = vmatprep.subr.mxu0 0.0
    %3781 = vmatpush1.msra.mxu0 0.0
    %3782 = vmatprep.subr.mxu0 0.0
    %3783 = vmatpush1.msra.mxu0 0.0
    %3784 = vmatprep.subr.mxu0 0.0
    %3785 = vmatpush1.msra.mxu0 0.0
    %3786 = vmatprep.subr.mxu0 0.0
    %3787 = vmatpush1.msra.mxu0 0.0
    %3788 = vmatprep.subr.mxu0 0.0
    %3789 = vmatpush1.msra.mxu0 0.0
    %3790 = vmatprep.subr.mxu0 0.0
    %3791 = vmatpush1.msra.mxu0 0.0
    %3792 = vmatprep.subr.mxu0 0.0
    %3793 = vmatpush1.msra.mxu0 0.0
    %3794 = vmatprep.subr.mxu0 0.0
    %3795 = vmatpush1.msra.mxu0 0.0
    %3796 = vmatprep.subr.mxu0 0.0
    %3797 = vmatpush1.msra.mxu0 0.0
    %3798 = vmatprep.mubr.f32.mxu0 0.0
    %3799 = vmatmul.mubr.f32.gmra.mrb[0].mxu0 %v3732
    %v3800 = vpop.f32.mrb[0].mxu0
    %v3801 = vadd.f32 0.0, %v3800
    %v3802 = vpop.f32.mrb[0].mxu0
    %v3803 = vadd.f32 0.0, %v3802
    %3804 = vdwg.mxu0
    %v3805 = vadd.f32 %v3730, %v3801
    %v3806 = vadd.f32 %v3731, %v3803
    %v3807 = vxor.u32 %v3805, 2147483648
    %v3808 = vxor.u32 %v3806, 2147483648
    %v3809 = vmul.f32 %v3807, 1.442695
    %v3810 = vpow.pop %v3809
    %v3811 = vmul.f32 %v3808, 1.442695
    %v3812 = vpow.pop %v3811
    %v3813 = vadd.f32 %v3810, 1.0
    %v3814 = vadd.f32 %v3812, 1.0
    %v3815 = vrcp.pop %v3813
    %v3816 = vmul.f32 1.0, %v3815
    %v3817 = vrcp.pop %v3814
    %v3818 = vmul.f32 1.0, %v3817
    %v3819 = vtanh.pop %v3806
    %v3820 = vmul.f32 %v3816, %v3721
    %v3821 = vmul.f32 %v3816, %v3819
    %3823 = vrot.lane.b32.xlu0 %v3821, 64
    %v3824 = vpop.permute.xlu0 %3823
    %v3826 = vadd.f32 %v3820, %v3824
    %v3827 = vtanh.pop %v3826
    %v3828 = vmul.f32 %v3818, %v3827
    %3830 = vrot.lane.b32.xlu0 %v3828, 64
    %v3831 = vpop.permute.xlu0 %3830
    %3833 = vst.msk [vmem:[%s908] sm:$0x3] %vm906, %v3831
    %3834 = vst.msk [vmem:[#allocation2] sm:$0x3] %vm909, %v3831
    %v3835 = vld [vmem:[#allocation2] sm:$0x3]
    %v3836 = vld [vmem:[#allocation2 + $0x2] sm:$0x3]
    %v3837 = vld [vmem:[#allocation2 + $0x4] sm:$0x3]
    %v3838 = vld [vmem:[#allocation2 + $0x6] sm:$0x3]
    %v3839 = vld [vmem:[#allocation2 + $0x8] sm:$0x3]
    %v3840 = vld [vmem:[#allocation2 + $0xa] sm:$0x3]
    %v3841 = vld [vmem:[#allocation2 + $0xc] sm:$0x3]
    %v3842 = vld [vmem:[#allocation2 + $0xe] sm:$0x3]
    %v3843 = vld [vmem:[#allocation3 + $0x2f0] sm:$0xff]
    %v3844 = vld [vmem:[#allocation3 + $0x2f8] sm:$0xff]
    %v3845 = vld [vmem:[#allocation3 + $0x300] sm:$0xff]
    %v3846 = vld [vmem:[#allocation3 + $0x308] sm:$0xff]
    %v3847 = vld [vmem:[#allocation3 + $0x310] sm:$0xff]
    %v3848 = vld [vmem:[#allocation3 + $0x318] sm:$0xff]
    %v3849 = vld [vmem:[#allocation3 + $0x320] sm:$0xff]
    %v3850 = vld [vmem:[#allocation3 + $0x328] sm:$0xff]
    %v3851 = vld [vmem:[#allocation3 + $0x330] sm:$0xff]
    %v3852 = vld [vmem:[#allocation3 + $0x338] sm:$0xff]
    %v3853 = vld [vmem:[#allocation3 + $0x340] sm:$0xff]
    %v3854 = vld [vmem:[#allocation3 + $0x348] sm:$0xff]
    %v3855 = vld [vmem:[#allocation3 + $0x350] sm:$0xff]
    %v3856 = vld [vmem:[#allocation3 + $0x358] sm:$0xff]
    %v3857 = vld [vmem:[#allocation3 + $0x360] sm:$0xff]
    %v3858 = vld [vmem:[#allocation3 + $0x368] sm:$0xff]
    %v3859 = vld [vmem:[#allocation3 + $0x370] sm:$0xff]
    %v3860 = vld [vmem:[#allocation3 + $0x378] sm:$0xff]
    %v3861 = vld [vmem:[#allocation3 + $0x380] sm:$0xff]
    %v3862 = vld [vmem:[#allocation3 + $0x388] sm:$0xff]
    %v3863 = vld [vmem:[#allocation3 + $0x390] sm:$0xff]
    %v3864 = vld [vmem:[#allocation3 + $0x398] sm:$0xff]
    %v3865 = vld [vmem:[#allocation3 + $0x3a0] sm:$0xff]
    %v3866 = vld [vmem:[#allocation3 + $0x3a8] sm:$0xff]
    %v3867 = vld [vmem:[#allocation3 + $0x3b0] sm:$0xff]
    %v3868 = vld [vmem:[#allocation3 + $0x3b8] sm:$0xff]
    %v3869 = vld [vmem:[#allocation3 + $0x3c0] sm:$0xff]
    %v3870 = vld [vmem:[#allocation3 + $0x3c8] sm:$0xff]
    %v3871 = vld [vmem:[#allocation3 + $0x3d0] sm:$0xff]
    %v3872 = vld [vmem:[#allocation3 + $0x3d8] sm:$0xff]
    %v3873 = vld [vmem:[#allocation3 + $0x3e0] sm:$0xff]
    %v3874 = vld [vmem:[#allocation3 + $0x3e8] sm:$0xff]
    %s3875 = scalar_lea.vmem [#allocation3], 1008
    %v3876 = vld [vmem:[%s3875] ss:$8 sm:$0x3]
    %v3878 = vlaneseq
    %v3879 = vshrl.u32 %v3878, 7
    %v3880 = vsub.s32 0, %v3879
    %v3881 = vrot.slane %v3876, %v3880
    %v3882 = vlaneseq
    %v3883 = vshrl.u32 %v3882, 7
    %v3884 = vsub.s32 1, %v3883
    %v3885 = vrot.slane %v3876, %v3884
    %v3896 = vcombine.low %v3835, %v3836
    %v3897 = vcombine.low %v3837, %v3838
    %v3899 = vunpack.c.l.s4 1983009808
    %v3900 = vunpack.c.0.s8 %v3899
    %v3901 = vlaneseq
    %v3902 = vshrl.u32 %v3901, 7
    %v3903 = vsub.s32 %v3900, %v3902
    %v3904 = vrot.slane %v3896, %v3903
    %v3906 = vunpack.c.l.s4 1983009808
    %v3907 = vunpack.c.0.s8 %v3906
    %v3908 = vlaneseq
    %v3909 = vshrl.u32 %v3908, 7
    %v3910 = vsub.s32 %v3907, %v3909
    %v3911 = vrot.slane %v3897, %v3910
    %v3912 = vcombine.low %v3904, %v3911
    %v3913 = vcombine.low %v3839, %v3840
    %v3914 = vcombine.low %v3841, %v3842
    %v3916 = vunpack.c.l.s4 1983009808
    %v3917 = vunpack.c.0.s8 %v3916
    %v3918 = vlaneseq
    %v3919 = vshrl.u32 %v3918, 7
    %v3920 = vsub.s32 %v3917, %v3919
    %v3921 = vrot.slane %v3913, %v3920
    %v3923 = vunpack.c.l.s4 1983009808
    %v3924 = vunpack.c.0.s8 %v3923
    %v3925 = vlaneseq
    %v3926 = vshrl.u32 %v3925, 7
    %v3927 = vsub.s32 %v3924, %v3926
    %v3928 = vrot.slane %v3914, %v3927
    %v3929 = vcombine.low %v3921, %v3928
    %v3930 = vsel %vm933, %v3912, 0
    %v3932 = vsel %vm933, %v3929, 0
    %3934 = vmatprep.subr.mxu0 %v3844
    %3935 = vmatpush1.msra.mxu0 %v3843
    %3936 = vmatprep.subr.mxu0 %v3846
    %3937 = vmatpush1.msra.mxu0 %v3845
    %3938 = vmatprep.subr.mxu0 %v3848
    %3939 = vmatpush1.msra.mxu0 %v3847
    %3940 = vmatprep.subr.mxu0 %v3850
    %3941 = vmatpush1.msra.mxu0 %v3849
    %3942 = vmatprep.subr.mxu0 %v3852
    %3943 = vmatpush1.msra.mxu0 %v3851
    %3944 = vmatprep.subr.mxu0 %v3854
    %3945 = vmatpush1.msra.mxu0 %v3853
    %3946 = vmatprep.subr.mxu0 %v3856
    %3947 = vmatpush1.msra.mxu0 %v3855
    %3948 = vmatprep.subr.mxu0 %v3858
    %3949 = vmatpush1.msra.mxu0 %v3857
    %3950 = vmatprep.subr.mxu0 0.0
    %3951 = vmatpush1.msra.mxu0 0.0
    %3952 = vmatprep.subr.mxu0 0.0
    %3953 = vmatpush1.msra.mxu0 0.0
    %3954 = vmatprep.subr.mxu0 0.0
    %3955 = vmatpush1.msra.mxu0 0.0
    %3956 = vmatprep.subr.mxu0 0.0
    %3957 = vmatpush1.msra.mxu0 0.0
    %3958 = vmatprep.subr.mxu0 0.0
    %3959 = vmatpush1.msra.mxu0 0.0
    %3960 = vmatprep.subr.mxu0 0.0
    %3961 = vmatpush1.msra.mxu0 0.0
    %3962 = vmatprep.subr.mxu0 0.0
    %3963 = vmatpush1.msra.mxu0 0.0
    %3964 = vmatprep.subr.mxu0 0.0
    %3965 = vmatpush1.msra.mxu0 0.0
    %3966 = vmatprep.subr.mxu0 0.0
    %3967 = vmatpush1.msra.mxu0 0.0
    %3968 = vmatprep.subr.mxu0 0.0
    %3969 = vmatpush1.msra.mxu0 0.0
    %3970 = vmatprep.subr.mxu0 0.0
    %3971 = vmatpush1.msra.mxu0 0.0
    %3972 = vmatprep.subr.mxu0 0.0
    %3973 = vmatpush1.msra.mxu0 0.0
    %3974 = vmatprep.subr.mxu0 0.0
    %3975 = vmatpush1.msra.mxu0 0.0
    %3976 = vmatprep.subr.mxu0 0.0
    %3977 = vmatpush1.msra.mxu0 0.0
    %3978 = vmatprep.subr.mxu0 0.0
    %3979 = vmatpush1.msra.mxu0 0.0
    %3980 = vmatprep.subr.mxu0 0.0
    %3981 = vmatpush1.msra.mxu0 0.0
    %3982 = vmatprep.subr.mxu0 0.0
    %3983 = vmatpush1.msra.mxu0 0.0
    %3984 = vmatprep.subr.mxu0 0.0
    %3985 = vmatpush1.msra.mxu0 0.0
    %3986 = vmatprep.subr.mxu0 0.0
    %3987 = vmatpush1.msra.mxu0 0.0
    %3988 = vmatprep.subr.mxu0 0.0
    %3989 = vmatpush1.msra.mxu0 0.0
    %3990 = vmatprep.subr.mxu0 0.0
    %3991 = vmatpush1.msra.mxu0 0.0
    %3992 = vmatprep.subr.mxu0 0.0
    %3993 = vmatpush1.msra.mxu0 0.0
    %3994 = vmatprep.subr.mxu0 0.0
    %3995 = vmatpush1.msra.mxu0 0.0
    %3996 = vmatprep.subr.mxu0 0.0
    %3997 = vmatpush1.msra.mxu0 0.0
    %3998 = vmatprep.mubr.f32.mxu0 0.0
    %3999 = vmatmul.mubr.f32.gmra.mrb[0].mxu0 %v3930
    %v4000 = vpop.f32.mrb[0].mxu0
    %v4001 = vadd.f32 %v3881, %v4000
    %v4002 = vpop.f32.mrb[0].mxu0
    %v4003 = vadd.f32 %v3885, %v4002
    %4004 = vmatprep.mubr.f32.mxu0 0.0
    %4005 = vmatmul.mubr.f32.gmra.mrb[0].mxu0 %v3932
    %v4006 = vpop.f32.mrb[0].mxu0
    %v4007 = vadd.f32 %v3881, %v4006
    %v4008 = vpop.f32.mrb[0].mxu0
    %v4009 = vadd.f32 %v3885, %v4008
    %4010 = vdwg.mxu0
    %v4015 = vcombine.low %v4001, %v4003
    %v4016 = vcombine.high %v4001, %v4003
    %v4018 = vunpack.c.l.s4 1983009808
    %v4019 = vunpack.c.0.s8 %v4018
    %v4020 = vlaneseq
    %v4021 = vshrl.u32 %v4020, 7
    %v4022 = vsub.s32 %v4019, %v4021
    %v4023 = vrot.slane %v4015, %v4022
    %v4025 = vunpack.c.l.s4 1983009808
    %v4026 = vunpack.c.0.s8 %v4025
    %v4027 = vlaneseq
    %v4028 = vshrl.u32 %v4027, 7
    %v4029 = vsub.s32 %v4026, %v4028
    %v4030 = vrot.slane %v4016, %v4029
    %v4031 = vcombine.high %v4023, %v4023
    %v4032 = vcombine.high %v4030, %v4030
    %v4033 = vcombine.low %v4007, %v4009
    %v4034 = vcombine.high %v4007, %v4009
    %v4036 = vunpack.c.l.s4 1983009808
    %v4037 = vunpack.c.0.s8 %v4036
    %v4038 = vlaneseq
    %v4039 = vshrl.u32 %v4038, 7
    %v4040 = vsub.s32 %v4037, %v4039
    %v4041 = vrot.slane %v4033, %v4040
    %v4043 = vunpack.c.l.s4 1983009808
    %v4044 = vunpack.c.0.s8 %v4043
    %v4045 = vlaneseq
    %v4046 = vshrl.u32 %v4045, 7
    %v4047 = vsub.s32 %v4044, %v4046
    %v4048 = vrot.slane %v4034, %v4047
    %v4049 = vcombine.high %v4041, %v4041
    %v4050 = vcombine.high %v4048, %v4048
    %v4052 = vunpack.c.l.s4 1983009808
    %v4053 = vunpack.c.0.s8 %v4052
    %v4054 = vlaneseq
    %v4055 = vshrl.u32 %v4054, 7
    %v4056 = vsub.s32 %v4053, %v4055
    %v4057 = vrot.slane %v4023, %v4056
    %v4058 = vcombine.high %v4057, %v4057
    %v4062 = vunpack.c.l.s4 1983009808
    %v4063 = vunpack.c.0.s8 %v4062
    %v4064 = vlaneseq
    %v4065 = vshrl.u32 %v4064, 7
    %v4066 = vsub.s32 %v4063, %v4065
    %v4067 = vrot.slane %v4050, %v4066
    %v4068 = vcombine.high %v4067, %v4067
    %v4071 = vsel %vm856, %v4057, %v4067
    %v4072 = vsel %vm857, %v4058, %v4068
    %v4073 = vxor.u32 %v4071, 2147483648
    %v4074 = vxor.u32 %v4072, 2147483648
    %v4075 = vmul.f32 %v4073, 1.442695
    %v4076 = vpow.pop %v4075
    %v4077 = vmul.f32 %v4074, 1.442695
    %v4078 = vpow.pop %v4077
    %v4079 = vadd.f32 %v4076, 1.0
    %v4080 = vadd.f32 %v4078, 1.0
    %v4081 = vrcp.pop %v4079
    %v4082 = vmul.f32 1.0, %v4081
    %v4083 = vrcp.pop %v4080
    %v4084 = vmul.f32 1.0, %v4083
    %v4085 = vtanh.pop %v4072
    %v4086 = vmul.f32 %v4082, 0.0
    %v4087 = vmul.f32 %v4082, %v4085
    %4089 = vrot.lane.b32.xlu0 %v4087, 64
    %v4090 = vpop.permute.xlu0 %4089
    %v4092 = vadd.f32 %v4086, %v4090
    %v4093 = vtanh.pop %v4092
    %v4094 = vmul.f32 %v4084, %v4093
    %4096 = vrot.lane.b32.xlu0 %v4094, 64
    %v4097 = vpop.permute.xlu0 %4096
    %4099 = vst.msk [vmem:[%s908] sm:$0x3] %vm909, %v4097
    %v4101 = vunpack.c.l.s4 1983009808
    %v4102 = vunpack.c.0.s8 %v4101
    %v4103 = vlaneseq
    %v4104 = vshrl.u32 %v4103, 7
    %v4105 = vsub.s32 %v4102, %v4104
    %v4106 = vrot.slane %v4031, %v4105
    %v4107 = vcombine.high %v4106, %v4106
    %v4111 = vunpack.c.l.s4 1983009808
    %v4112 = vunpack.c.0.s8 %v4111
    %v4113 = vlaneseq
    %v4114 = vshrl.u32 %v4113, 7
    %v4115 = vsub.s32 %v4112, %v4114
    %v4116 = vrot.slane %v4048, %v4115
    %v4117 = vcombine.high %v4116, %v4116
    %v4120 = vsel %vm856, %v4106, %v4116
    %v4121 = vsel %vm857, %v4107, %v4117
    %v4122 = vsel %vm933, %v4097, 0
    %4124 = vmatprep.subr.mxu0 %v3860
    %4125 = vmatpush1.msra.mxu0 %v3859
    %4126 = vmatprep.subr.mxu0 %v3862
    %4127 = vmatpush1.msra.mxu0 %v3861
    %4128 = vmatprep.subr.mxu0 %v3864
    %4129 = vmatpush1.msra.mxu0 %v3863
    %4130 = vmatprep.subr.mxu0 %v3866
    %4131 = vmatpush1.msra.mxu0 %v3865
    %4132 = vmatprep.subr.mxu0 %v3868
    %4133 = vmatpush1.msra.mxu0 %v3867
    %4134 = vmatprep.subr.mxu0 %v3870
    %4135 = vmatpush1.msra.mxu0 %v3869
    %4136 = vmatprep.subr.mxu0 %v3872
    %4137 = vmatpush1.msra.mxu0 %v3871
    %4138 = vmatprep.subr.mxu0 %v3874
    %4139 = vmatpush1.msra.mxu0 %v3873
    %4140 = vmatprep.subr.mxu0 0.0
    %4141 = vmatpush1.msra.mxu0 0.0
    %4142 = vmatprep.subr.mxu0 0.0
    %4143 = vmatpush1.msra.mxu0 0.0
    %4144 = vmatprep.subr.mxu0 0.0
    %4145 = vmatpush1.msra.mxu0 0.0
    %4146 = vmatprep.subr.mxu0 0.0
    %4147 = vmatpush1.msra.mxu0 0.0
    %4148 = vmatprep.subr.mxu0 0.0
    %4149 = vmatpush1.msra.mxu0 0.0
    %4150 = vmatprep.subr.mxu0 0.0
    %4151 = vmatpush1.msra.mxu0 0.0
    %4152 = vmatprep.subr.mxu0 0.0
    %4153 = vmatpush1.msra.mxu0 0.0
    %4154 = vmatprep.subr.mxu0 0.0
    %4155 = vmatpush1.msra.mxu0 0.0
    %4156 = vmatprep.subr.mxu0 0.0
    %4157 = vmatpush1.msra.mxu0 0.0
    %4158 = vmatprep.subr.mxu0 0.0
    %4159 = vmatpush1.msra.mxu0 0.0
    %4160 = vmatprep.subr.mxu0 0.0
    %4161 = vmatpush1.msra.mxu0 0.0
    %4162 = vmatprep.subr.mxu0 0.0
    %4163 = vmatpush1.msra.mxu0 0.0
    %4164 = vmatprep.subr.mxu0 0.0
    %4165 = vmatpush1.msra.mxu0 0.0
    %4166 = vmatprep.subr.mxu0 0.0
    %4167 = vmatpush1.msra.mxu0 0.0
    %4168 = vmatprep.subr.mxu0 0.0
    %4169 = vmatpush1.msra.mxu0 0.0
    %4170 = vmatprep.subr.mxu0 0.0
    %4171 = vmatpush1.msra.mxu0 0.0
    %4172 = vmatprep.subr.mxu0 0.0
    %4173 = vmatpush1.msra.mxu0 0.0
    %4174 = vmatprep.subr.mxu0 0.0
    %4175 = vmatpush1.msra.mxu0 0.0
    %4176 = vmatprep.subr.mxu0 0.0
    %4177 = vmatpush1.msra.mxu0 0.0
    %4178 = vmatprep.subr.mxu0 0.0
    %4179 = vmatpush1.msra.mxu0 0.0
    %4180 = vmatprep.subr.mxu0 0.0
    %4181 = vmatpush1.msra.mxu0 0.0
    %4182 = vmatprep.subr.mxu0 0.0
    %4183 = vmatpush1.msra.mxu0 0.0
    %4184 = vmatprep.subr.mxu0 0.0
    %4185 = vmatpush1.msra.mxu0 0.0
    %4186 = vmatprep.subr.mxu0 0.0
    %4187 = vmatpush1.msra.mxu0 0.0
    %4188 = vmatprep.mubr.f32.mxu0 0.0
    %4189 = vmatmul.mubr.f32.gmra.mrb[0].mxu0 %v4122
    %v4190 = vpop.f32.mrb[0].mxu0
    %v4191 = vadd.f32 0.0, %v4190
    %v4192 = vpop.f32.mrb[0].mxu0
    %v4193 = vadd.f32 0.0, %v4192
    %4194 = vdwg.mxu0
    %v4195 = vadd.f32 %v4120, %v4191
    %v4196 = vadd.f32 %v4121, %v4193
    %v4197 = vxor.u32 %v4195, 2147483648
    %v4198 = vxor.u32 %v4196, 2147483648
    %v4199 = vmul.f32 %v4197, 1.442695
    %v4200 = vpow.pop %v4199
    %v4201 = vmul.f32 %v4198, 1.442695
    %v4202 = vpow.pop %v4201
    %v4203 = vadd.f32 %v4200, 1.0
    %v4204 = vadd.f32 %v4202, 1.0
    %v4205 = vrcp.pop %v4203
    %v4206 = vmul.f32 1.0, %v4205
    %v4207 = vrcp.pop %v4204
    %v4208 = vmul.f32 1.0, %v4207
    %v4209 = vtanh.pop %v4196
    %v4210 = vmul.f32 %v4206, %v4092
    %v4211 = vmul.f32 %v4206, %v4209
    %4213 = vrot.lane.b32.xlu0 %v4211, 64
    %v4214 = vpop.permute.xlu0 %4213
    %v4216 = vadd.f32 %v4210, %v4214
    %v4217 = vtanh.pop %v4216
    %v4218 = vmul.f32 %v4208, %v4217
    %v4220 = vunpack.c.l.s4 1983009808
    %v4221 = vunpack.c.0.s8 %v4220
    %v4222 = vlaneseq
    %v4223 = vshrl.u32 %v4222, 7
    %v4224 = vsub.s32 %v4221, %v4223
    %v4225 = vrot.slane %v4030, %v4224
    %v4226 = vcombine.high %v4225, %v4225
    %v4230 = vunpack.c.l.s4 1983009808
    %v4231 = vunpack.c.0.s8 %v4230
    %v4232 = vlaneseq
    %v4233 = vshrl.u32 %v4232, 7
    %v4234 = vsub.s32 %v4231, %v4233
    %v4235 = vrot.slane %v4049, %v4234
    %v4236 = vcombine.high %v4235, %v4235
    %v4239 = vsel %vm856, %v4225, %v4235
    %v4240 = vsel %vm857, %v4226, %v4236
    %4242 = vrot.lane.b32.xlu0 %v4218, 64
    %v4243 = vpop.permute.xlu0 %4242
    %v4244 = vsel %vm933, %v4243, 0
    %4246 = vmatprep.subr.mxu0 %v3860
    %4247 = vmatpush1.msra.mxu0 %v3859
    %4248 = vmatprep.subr.mxu0 %v3862
    %4249 = vmatpush1.msra.mxu0 %v3861
    %4250 = vmatprep.subr.mxu0 %v3864
    %4251 = vmatpush1.msra.mxu0 %v3863
    %4252 = vmatprep.subr.mxu0 %v3866
    %4253 = vmatpush1.msra.mxu0 %v3865
    %4254 = vmatprep.subr.mxu0 %v3868
    %4255 = vmatpush1.msra.mxu0 %v3867
    %4256 = vmatprep.subr.mxu0 %v3870
    %4257 = vmatpush1.msra.mxu0 %v3869
    %4258 = vmatprep.subr.mxu0 %v3872
    %4259 = vmatpush1.msra.mxu0 %v3871
    %4260 = vmatprep.subr.mxu0 %v3874
    %4261 = vmatpush1.msra.mxu0 %v3873
    %4262 = vmatprep.subr.mxu0 0.0
    %4263 = vmatpush1.msra.mxu0 0.0
    %4264 = vmatprep.subr.mxu0 0.0
    %4265 = vmatpush1.msra.mxu0 0.0
    %4266 = vmatprep.subr.mxu0 0.0
    %4267 = vmatpush1.msra.mxu0 0.0
    %4268 = vmatprep.subr.mxu0 0.0
    %4269 = vmatpush1.msra.mxu0 0.0
    %4270 = vmatprep.subr.mxu0 0.0
    %4271 = vmatpush1.msra.mxu0 0.0
    %4272 = vmatprep.subr.mxu0 0.0
    %4273 = vmatpush1.msra.mxu0 0.0
    %4274 = vmatprep.subr.mxu0 0.0
    %4275 = vmatpush1.msra.mxu0 0.0
    %4276 = vmatprep.subr.mxu0 0.0
    %4277 = vmatpush1.msra.mxu0 0.0
    %4278 = vmatprep.subr.mxu0 0.0
    %4279 = vmatpush1.msra.mxu0 0.0
    %4280 = vmatprep.subr.mxu0 0.0
    %4281 = vmatpush1.msra.mxu0 0.0
    %4282 = vmatprep.subr.mxu0 0.0
    %4283 = vmatpush1.msra.mxu0 0.0
    %4284 = vmatprep.subr.mxu0 0.0
    %4285 = vmatpush1.msra.mxu0 0.0
    %4286 = vmatprep.subr.mxu0 0.0
    %4287 = vmatpush1.msra.mxu0 0.0
    %4288 = vmatprep.subr.mxu0 0.0
    %4289 = vmatpush1.msra.mxu0 0.0
    %4290 = vmatprep.subr.mxu0 0.0
    %4291 = vmatpush1.msra.mxu0 0.0
    %4292 = vmatprep.subr.mxu0 0.0
    %4293 = vmatpush1.msra.mxu0 0.0
    %4294 = vmatprep.subr.mxu0 0.0
    %4295 = vmatpush1.msra.mxu0 0.0
    %4296 = vmatprep.subr.mxu0 0.0
    %4297 = vmatpush1.msra.mxu0 0.0
    %4298 = vmatprep.subr.mxu0 0.0
    %4299 = vmatpush1.msra.mxu0 0.0
    %4300 = vmatprep.subr.mxu0 0.0
    %4301 = vmatpush1.msra.mxu0 0.0
    %4302 = vmatprep.subr.mxu0 0.0
    %4303 = vmatpush1.msra.mxu0 0.0
    %4304 = vmatprep.subr.mxu0 0.0
    %4305 = vmatpush1.msra.mxu0 0.0
    %4306 = vmatprep.subr.mxu0 0.0
    %4307 = vmatpush1.msra.mxu0 0.0
    %4308 = vmatprep.subr.mxu0 0.0
    %4309 = vmatpush1.msra.mxu0 0.0
    %4310 = vmatprep.mubr.f32.mxu0 0.0
    %4311 = vmatmul.mubr.f32.gmra.mrb[0].mxu0 %v4244
    %v4312 = vpop.f32.mrb[0].mxu0
    %v4313 = vadd.f32 0.0, %v4312
    %v4314 = vpop.f32.mrb[0].mxu0
    %v4315 = vadd.f32 0.0, %v4314
    %4316 = vdwg.mxu0
    %v4317 = vadd.f32 %v4239, %v4313
    %v4318 = vadd.f32 %v4240, %v4315
    %v4319 = vxor.u32 %v4317, 2147483648
    %v4320 = vxor.u32 %v4318, 2147483648
    %v4321 = vmul.f32 %v4319, 1.442695
    %v4322 = vpow.pop %v4321
    %v4323 = vmul.f32 %v4320, 1.442695
    %v4324 = vpow.pop %v4323
    %v4325 = vadd.f32 %v4322, 1.0
    %v4326 = vadd.f32 %v4324, 1.0
    %v4327 = vrcp.pop %v4325
    %v4328 = vmul.f32 1.0, %v4327
    %v4329 = vrcp.pop %v4326
    %v4330 = vmul.f32 1.0, %v4329
    %v4331 = vtanh.pop %v4318
    %v4332 = vmul.f32 %v4328, %v4216
    %v4333 = vmul.f32 %v4328, %v4331
    %4335 = vrot.lane.b32.xlu0 %v4333, 64
    %v4336 = vpop.permute.xlu0 %4335
    %v4338 = vadd.f32 %v4332, %v4336
    %v4339 = vtanh.pop %v4338
    %v4340 = vmul.f32 %v4330, %v4339
    %v4342 = vunpack.c.l.s4 1983009808
    %v4343 = vunpack.c.0.s8 %v4342
    %v4344 = vlaneseq
    %v4345 = vshrl.u32 %v4344, 7
    %v4346 = vsub.s32 %v4343, %v4345
    %v4347 = vrot.slane %v4032, %v4346
    %v4348 = vcombine.high %v4347, %v4347
    %v4352 = vunpack.c.l.s4 1983009808
    %v4353 = vunpack.c.0.s8 %v4352
    %v4354 = vlaneseq
    %v4355 = vshrl.u32 %v4354, 7
    %v4356 = vsub.s32 %v4353, %v4355
    %v4357 = vrot.slane %v4041, %v4356
    %v4358 = vcombine.high %v4357, %v4357
    %v4361 = vsel %vm856, %v4347, %v4357
    %v4362 = vsel %vm857, %v4348, %v4358
    %4364 = vrot.lane.b32.xlu0 %v4340, 64
    %v4365 = vpop.permute.xlu0 %4364
    %v4366 = vsel %vm933, %v4365, 0
    %4368 = vmatprep.subr.mxu0 %v3860
    %4369 = vmatpush1.msra.mxu0 %v3859
    %4370 = vmatprep.subr.mxu0 %v3862
    %4371 = vmatpush1.msra.mxu0 %v3861
    %4372 = vmatprep.subr.mxu0 %v3864
    %4373 = vmatpush1.msra.mxu0 %v3863
    %4374 = vmatprep.subr.mxu0 %v3866
    %4375 = vmatpush1.msra.mxu0 %v3865
    %4376 = vmatprep.subr.mxu0 %v3868
    %4377 = vmatpush1.msra.mxu0 %v3867
    %4378 = vmatprep.subr.mxu0 %v3870
    %4379 = vmatpush1.msra.mxu0 %v3869
    %4380 = vmatprep.subr.mxu0 %v3872
    %4381 = vmatpush1.msra.mxu0 %v3871
    %4382 = vmatprep.subr.mxu0 %v3874
    %4383 = vmatpush1.msra.mxu0 %v3873
    %4384 = vmatprep.subr.mxu0 0.0
    %4385 = vmatpush1.msra.mxu0 0.0
    %4386 = vmatprep.subr.mxu0 0.0
    %4387 = vmatpush1.msra.mxu0 0.0
    %4388 = vmatprep.subr.mxu0 0.0
    %4389 = vmatpush1.msra.mxu0 0.0
    %4390 = vmatprep.subr.mxu0 0.0
    %4391 = vmatpush1.msra.mxu0 0.0
    %4392 = vmatprep.subr.mxu0 0.0
    %4393 = vmatpush1.msra.mxu0 0.0
    %4394 = vmatprep.subr.mxu0 0.0
    %4395 = vmatpush1.msra.mxu0 0.0
    %4396 = vmatprep.subr.mxu0 0.0
    %4397 = vmatpush1.msra.mxu0 0.0
    %4398 = vmatprep.subr.mxu0 0.0
    %4399 = vmatpush1.msra.mxu0 0.0
    %4400 = vmatprep.subr.mxu0 0.0
    %4401 = vmatpush1.msra.mxu0 0.0
    %4402 = vmatprep.subr.mxu0 0.0
    %4403 = vmatpush1.msra.mxu0 0.0
    %4404 = vmatprep.subr.mxu0 0.0
    %4405 = vmatpush1.msra.mxu0 0.0
    %4406 = vmatprep.subr.mxu0 0.0
    %4407 = vmatpush1.msra.mxu0 0.0
    %4408 = vmatprep.subr.mxu0 0.0
    %4409 = vmatpush1.msra.mxu0 0.0
    %4410 = vmatprep.subr.mxu0 0.0
    %4411 = vmatpush1.msra.mxu0 0.0
    %4412 = vmatprep.subr.mxu0 0.0
    %4413 = vmatpush1.msra.mxu0 0.0
    %4414 = vmatprep.subr.mxu0 0.0
    %4415 = vmatpush1.msra.mxu0 0.0
    %4416 = vmatprep.subr.mxu0 0.0
    %4417 = vmatpush1.msra.mxu0 0.0
    %4418 = vmatprep.subr.mxu0 0.0
    %4419 = vmatpush1.msra.mxu0 0.0
    %4420 = vmatprep.subr.mxu0 0.0
    %4421 = vmatpush1.msra.mxu0 0.0
    %4422 = vmatprep.subr.mxu0 0.0
    %4423 = vmatpush1.msra.mxu0 0.0
    %4424 = vmatprep.subr.mxu0 0.0
    %4425 = vmatpush1.msra.mxu0 0.0
    %4426 = vmatprep.subr.mxu0 0.0
    %4427 = vmatpush1.msra.mxu0 0.0
    %4428 = vmatprep.subr.mxu0 0.0
    %4429 = vmatpush1.msra.mxu0 0.0
    %4430 = vmatprep.subr.mxu0 0.0
    %4431 = vmatpush1.msra.mxu0 0.0
    %4432 = vmatprep.mubr.f32.mxu0 0.0
    %4433 = vmatmul.mubr.f32.gmra.mrb[0].mxu0 %v4366
    %v4434 = vpop.f32.mrb[0].mxu0
    %v4435 = vadd.f32 0.0, %v4434
    %v4436 = vpop.f32.mrb[0].mxu0
    %v4437 = vadd.f32 0.0, %v4436
    %4438 = vdwg.mxu0
    %v4439 = vadd.f32 %v4361, %v4435
    %v4440 = vadd.f32 %v4362, %v4437
    %v4441 = vxor.u32 %v4439, 2147483648
    %v4442 = vxor.u32 %v4440, 2147483648
    %v4443 = vmul.f32 %v4441, 1.442695
    %v4444 = vpow.pop %v4443
    %v4445 = vmul.f32 %v4442, 1.442695
    %v4446 = vpow.pop %v4445
    %v4447 = vadd.f32 %v4444, 1.0
    %v4448 = vadd.f32 %v4446, 1.0
    %v4449 = vrcp.pop %v4447
    %v4450 = vmul.f32 1.0, %v4449
    %v4451 = vrcp.pop %v4448
    %v4452 = vmul.f32 1.0, %v4451
    %v4453 = vtanh.pop %v4440
    %v4454 = vmul.f32 %v4450, %v4338
    %v4455 = vmul.f32 %v4450, %v4453
    %4457 = vrot.lane.b32.xlu0 %v4455, 64
    %v4458 = vpop.permute.xlu0 %4457
    %v4460 = vadd.f32 %v4454, %v4458
    %v4461 = vtanh.pop %v4460
    %v4462 = vmul.f32 %v4452, %v4461
    %v4463 = vsel %vm856, %v4357, %v4347
    %v4464 = vsel %vm857, %v4358, %v4348
    %4466 = vrot.lane.b32.xlu0 %v4462, 64
    %v4467 = vpop.permute.xlu0 %4466
    %v4468 = vsel %vm933, %v4467, 0
    %4470 = vmatprep.subr.mxu0 %v3860
    %4471 = vmatpush1.msra.mxu0 %v3859
    %4472 = vmatprep.subr.mxu0 %v3862
    %4473 = vmatpush1.msra.mxu0 %v3861
    %4474 = vmatprep.subr.mxu0 %v3864
    %4475 = vmatpush1.msra.mxu0 %v3863
    %4476 = vmatprep.subr.mxu0 %v3866
    %4477 = vmatpush1.msra.mxu0 %v3865
    %4478 = vmatprep.subr.mxu0 %v3868
    %4479 = vmatpush1.msra.mxu0 %v3867
    %4480 = vmatprep.subr.mxu0 %v3870
    %4481 = vmatpush1.msra.mxu0 %v3869
    %4482 = vmatprep.subr.mxu0 %v3872
    %4483 = vmatpush1.msra.mxu0 %v3871
    %4484 = vmatprep.subr.mxu0 %v3874
    %4485 = vmatpush1.msra.mxu0 %v3873
    %4486 = vmatprep.subr.mxu0 0.0
    %4487 = vmatpush1.msra.mxu0 0.0
    %4488 = vmatprep.subr.mxu0 0.0
    %4489 = vmatpush1.msra.mxu0 0.0
    %4490 = vmatprep.subr.mxu0 0.0
    %4491 = vmatpush1.msra.mxu0 0.0
    %4492 = vmatprep.subr.mxu0 0.0
    %4493 = vmatpush1.msra.mxu0 0.0
    %4494 = vmatprep.subr.mxu0 0.0
    %4495 = vmatpush1.msra.mxu0 0.0
    %4496 = vmatprep.subr.mxu0 0.0
    %4497 = vmatpush1.msra.mxu0 0.0
    %4498 = vmatprep.subr.mxu0 0.0
    %4499 = vmatpush1.msra.mxu0 0.0
    %4500 = vmatprep.subr.mxu0 0.0
    %4501 = vmatpush1.msra.mxu0 0.0
    %4502 = vmatprep.subr.mxu0 0.0
    %4503 = vmatpush1.msra.mxu0 0.0
    %4504 = vmatprep.subr.mxu0 0.0
    %4505 = vmatpush1.msra.mxu0 0.0
    %4506 = vmatprep.subr.mxu0 0.0
    %4507 = vmatpush1.msra.mxu0 0.0
    %4508 = vmatprep.subr.mxu0 0.0
    %4509 = vmatpush1.msra.mxu0 0.0
    %4510 = vmatprep.subr.mxu0 0.0
    %4511 = vmatpush1.msra.mxu0 0.0
    %4512 = vmatprep.subr.mxu0 0.0
    %4513 = vmatpush1.msra.mxu0 0.0
    %4514 = vmatprep.subr.mxu0 0.0
    %4515 = vmatpush1.msra.mxu0 0.0
    %4516 = vmatprep.subr.mxu0 0.0
    %4517 = vmatpush1.msra.mxu0 0.0
    %4518 = vmatprep.subr.mxu0 0.0
    %4519 = vmatpush1.msra.mxu0 0.0
    %4520 = vmatprep.subr.mxu0 0.0
    %4521 = vmatpush1.msra.mxu0 0.0
    %4522 = vmatprep.subr.mxu0 0.0
    %4523 = vmatpush1.msra.mxu0 0.0
    %4524 = vmatprep.subr.mxu0 0.0
    %4525 = vmatpush1.msra.mxu0 0.0
    %4526 = vmatprep.subr.mxu0 0.0
    %4527 = vmatpush1.msra.mxu0 0.0
    %4528 = vmatprep.subr.mxu0 0.0
    %4529 = vmatpush1.msra.mxu0 0.0
    %4530 = vmatprep.subr.mxu0 0.0
    %4531 = vmatpush1.msra.mxu0 0.0
    %4532 = vmatprep.subr.mxu0 0.0
    %4533 = vmatpush1.msra.mxu0 0.0
    %4534 = vmatprep.mubr.f32.mxu0 0.0
    %4535 = vmatmul.mubr.f32.gmra.mrb[0].mxu0 %v4468
    %v4536 = vpop.f32.mrb[0].mxu0
    %v4537 = vadd.f32 0.0, %v4536
    %v4538 = vpop.f32.mrb[0].mxu0
    %v4539 = vadd.f32 0.0, %v4538
    %4540 = vdwg.mxu0
    %v4541 = vadd.f32 %v4463, %v4537
    %v4542 = vadd.f32 %v4464, %v4539
    %v4543 = vxor.u32 %v4541, 2147483648
    %v4544 = vxor.u32 %v4542, 2147483648
    %v4545 = vmul.f32 %v4543, 1.442695
    %v4546 = vpow.pop %v4545
    %v4547 = vmul.f32 %v4544, 1.442695
    %v4548 = vpow.pop %v4547
    %v4549 = vadd.f32 %v4546, 1.0
    %v4550 = vadd.f32 %v4548, 1.0
    %v4551 = vrcp.pop %v4549
    %v4552 = vmul.f32 1.0, %v4551
    %v4553 = vrcp.pop %v4550
    %v4554 = vmul.f32 1.0, %v4553
    %v4555 = vtanh.pop %v4542
    %v4556 = vmul.f32 %v4552, %v4460
    %v4557 = vmul.f32 %v4552, %v4555
    %4559 = vrot.lane.b32.xlu0 %v4557, 64
    %v4560 = vpop.permute.xlu0 %4559
    %v4562 = vadd.f32 %v4556, %v4560
    %v4563 = vtanh.pop %v4562
    %v4564 = vmul.f32 %v4554, %v4563
    %v4565 = vsel %vm856, %v4235, %v4225
    %v4566 = vsel %vm857, %v4236, %v4226
    %4568 = vrot.lane.b32.xlu0 %v4564, 64
    %v4569 = vpop.permute.xlu0 %4568
    %v4570 = vsel %vm933, %v4569, 0
    %4572 = vmatprep.subr.mxu0 %v3860
    %4573 = vmatpush1.msra.mxu0 %v3859
    %4574 = vmatprep.subr.mxu0 %v3862
    %4575 = vmatpush1.msra.mxu0 %v3861
    %4576 = vmatprep.subr.mxu0 %v3864
    %4577 = vmatpush1.msra.mxu0 %v3863
    %4578 = vmatprep.subr.mxu0 %v3866
    %4579 = vmatpush1.msra.mxu0 %v3865
    %4580 = vmatprep.subr.mxu0 %v3868
    %4581 = vmatpush1.msra.mxu0 %v3867
    %4582 = vmatprep.subr.mxu0 %v3870
    %4583 = vmatpush1.msra.mxu0 %v3869
    %4584 = vmatprep.subr.mxu0 %v3872
    %4585 = vmatpush1.msra.mxu0 %v3871
    %4586 = vmatprep.subr.mxu0 %v3874
    %4587 = vmatpush1.msra.mxu0 %v3873
    %4588 = vmatprep.subr.mxu0 0.0
    %4589 = vmatpush1.msra.mxu0 0.0
    %4590 = vmatprep.subr.mxu0 0.0
    %4591 = vmatpush1.msra.mxu0 0.0
    %4592 = vmatprep.subr.mxu0 0.0
    %4593 = vmatpush1.msra.mxu0 0.0
    %4594 = vmatprep.subr.mxu0 0.0
    %4595 = vmatpush1.msra.mxu0 0.0
    %4596 = vmatprep.subr.mxu0 0.0
    %4597 = vmatpush1.msra.mxu0 0.0
    %4598 = vmatprep.subr.mxu0 0.0
    %4599 = vmatpush1.msra.mxu0 0.0
    %4600 = vmatprep.subr.mxu0 0.0
    %4601 = vmatpush1.msra.mxu0 0.0
    %4602 = vmatprep.subr.mxu0 0.0
    %4603 = vmatpush1.msra.mxu0 0.0
    %4604 = vmatprep.subr.mxu0 0.0
    %4605 = vmatpush1.msra.mxu0 0.0
    %4606 = vmatprep.subr.mxu0 0.0
    %4607 = vmatpush1.msra.mxu0 0.0
    %4608 = vmatprep.subr.mxu0 0.0
    %4609 = vmatpush1.msra.mxu0 0.0
    %4610 = vmatprep.subr.mxu0 0.0
    %4611 = vmatpush1.msra.mxu0 0.0
    %4612 = vmatprep.subr.mxu0 0.0
    %4613 = vmatpush1.msra.mxu0 0.0
    %4614 = vmatprep.subr.mxu0 0.0
    %4615 = vmatpush1.msra.mxu0 0.0
    %4616 = vmatprep.subr.mxu0 0.0
    %4617 = vmatpush1.msra.mxu0 0.0
    %4618 = vmatprep.subr.mxu0 0.0
    %4619 = vmatpush1.msra.mxu0 0.0
    %4620 = vmatprep.subr.mxu0 0.0
    %4621 = vmatpush1.msra.mxu0 0.0
    %4622 = vmatprep.subr.mxu0 0.0
    %4623 = vmatpush1.msra.mxu0 0.0
    %4624 = vmatprep.subr.mxu0 0.0
    %4625 = vmatpush1.msra.mxu0 0.0
    %4626 = vmatprep.subr.mxu0 0.0
    %4627 = vmatpush1.msra.mxu0 0.0
    %4628 = vmatprep.subr.mxu0 0.0
    %4629 = vmatpush1.msra.mxu0 0.0
    %4630 = vmatprep.subr.mxu0 0.0
    %4631 = vmatpush1.msra.mxu0 0.0
    %4632 = vmatprep.subr.mxu0 0.0
    %4633 = vmatpush1.msra.mxu0 0.0
    %4634 = vmatprep.subr.mxu0 0.0
    %4635 = vmatpush1.msra.mxu0 0.0
    %4636 = vmatprep.mubr.f32.mxu0 0.0
    %4637 = vmatmul.mubr.f32.gmra.mrb[0].mxu0 %v4570
    %v4638 = vpop.f32.mrb[0].mxu0
    %v4639 = vadd.f32 0.0, %v4638
    %v4640 = vpop.f32.mrb[0].mxu0
    %v4641 = vadd.f32 0.0, %v4640
    %4642 = vdwg.mxu0
    %v4643 = vadd.f32 %v4565, %v4639
    %v4644 = vadd.f32 %v4566, %v4641
    %v4645 = vxor.u32 %v4643, 2147483648
    %v4646 = vxor.u32 %v4644, 2147483648
    %v4647 = vmul.f32 %v4645, 1.442695
    %v4648 = vpow.pop %v4647
    %v4649 = vmul.f32 %v4646, 1.442695
    %v4650 = vpow.pop %v4649
    %v4651 = vadd.f32 %v4648, 1.0
    %v4652 = vadd.f32 %v4650, 1.0
    %v4653 = vrcp.pop %v4651
    %v4654 = vmul.f32 1.0, %v4653
    %v4655 = vrcp.pop %v4652
    %v4656 = vmul.f32 1.0, %v4655
    %v4657 = vtanh.pop %v4644
    %v4658 = vmul.f32 %v4654, %v4562
    %v4659 = vmul.f32 %v4654, %v4657
    %4661 = vrot.lane.b32.xlu0 %v4659, 64
    %v4662 = vpop.permute.xlu0 %4661
    %v4664 = vadd.f32 %v4658, %v4662
    %v4665 = vtanh.pop %v4664
    %v4666 = vmul.f32 %v4656, %v4665
    %v4667 = vsel %vm856, %v4116, %v4106
    %v4668 = vsel %vm857, %v4117, %v4107
    %4670 = vrot.lane.b32.xlu0 %v4666, 64
    %v4671 = vpop.permute.xlu0 %4670
    %v4672 = vsel %vm933, %v4671, 0
    %4674 = vmatprep.subr.mxu0 %v3860
    %4675 = vmatpush1.msra.mxu0 %v3859
    %4676 = vmatprep.subr.mxu0 %v3862
    %4677 = vmatpush1.msra.mxu0 %v3861
    %4678 = vmatprep.subr.mxu0 %v3864
    %4679 = vmatpush1.msra.mxu0 %v3863
    %4680 = vmatprep.subr.mxu0 %v3866
    %4681 = vmatpush1.msra.mxu0 %v3865
    %4682 = vmatprep.subr.mxu0 %v3868
    %4683 = vmatpush1.msra.mxu0 %v3867
    %4684 = vmatprep.subr.mxu0 %v3870
    %4685 = vmatpush1.msra.mxu0 %v3869
    %4686 = vmatprep.subr.mxu0 %v3872
    %4687 = vmatpush1.msra.mxu0 %v3871
    %4688 = vmatprep.subr.mxu0 %v3874
    %4689 = vmatpush1.msra.mxu0 %v3873
    %4690 = vmatprep.subr.mxu0 0.0
    %4691 = vmatpush1.msra.mxu0 0.0
    %4692 = vmatprep.subr.mxu0 0.0
    %4693 = vmatpush1.msra.mxu0 0.0
    %4694 = vmatprep.subr.mxu0 0.0
    %4695 = vmatpush1.msra.mxu0 0.0
    %4696 = vmatprep.subr.mxu0 0.0
    %4697 = vmatpush1.msra.mxu0 0.0
    %4698 = vmatprep.subr.mxu0 0.0
    %4699 = vmatpush1.msra.mxu0 0.0
    %4700 = vmatprep.subr.mxu0 0.0
    %4701 = vmatpush1.msra.mxu0 0.0
    %4702 = vmatprep.subr.mxu0 0.0
    %4703 = vmatpush1.msra.mxu0 0.0
    %4704 = vmatprep.subr.mxu0 0.0
    %4705 = vmatpush1.msra.mxu0 0.0
    %4706 = vmatprep.subr.mxu0 0.0
    %4707 = vmatpush1.msra.mxu0 0.0
    %4708 = vmatprep.subr.mxu0 0.0
    %4709 = vmatpush1.msra.mxu0 0.0
    %4710 = vmatprep.subr.mxu0 0.0
    %4711 = vmatpush1.msra.mxu0 0.0
    %4712 = vmatprep.subr.mxu0 0.0
    %4713 = vmatpush1.msra.mxu0 0.0
    %4714 = vmatprep.subr.mxu0 0.0
    %4715 = vmatpush1.msra.mxu0 0.0
    %4716 = vmatprep.subr.mxu0 0.0
    %4717 = vmatpush1.msra.mxu0 0.0
    %4718 = vmatprep.subr.mxu0 0.0
    %4719 = vmatpush1.msra.mxu0 0.0
    %4720 = vmatprep.subr.mxu0 0.0
    %4721 = vmatpush1.msra.mxu0 0.0
    %4722 = vmatprep.subr.mxu0 0.0
    %4723 = vmatpush1.msra.mxu0 0.0
    %4724 = vmatprep.subr.mxu0 0.0
    %4725 = vmatpush1.msra.mxu0 0.0
    %4726 = vmatprep.subr.mxu0 0.0
    %4727 = vmatpush1.msra.mxu0 0.0
    %4728 = vmatprep.subr.mxu0 0.0
    %4729 = vmatpush1.msra.mxu0 0.0
    %4730 = vmatprep.subr.mxu0 0.0
    %4731 = vmatpush1.msra.mxu0 0.0
    %4732 = vmatprep.subr.mxu0 0.0
    %4733 = vmatpush1.msra.mxu0 0.0
    %4734 = vmatprep.subr.mxu0 0.0
    %4735 = vmatpush1.msra.mxu0 0.0
    %4736 = vmatprep.subr.mxu0 0.0
    %4737 = vmatpush1.msra.mxu0 0.0
    %4738 = vmatprep.mubr.f32.mxu0 0.0
    %4739 = vmatmul.mubr.f32.gmra.mrb[0].mxu0 %v4672
    %v4740 = vpop.f32.mrb[0].mxu0
    %v4741 = vadd.f32 0.0, %v4740
    %v4742 = vpop.f32.mrb[0].mxu0
    %v4743 = vadd.f32 0.0, %v4742
    %4744 = vdwg.mxu0
    %v4745 = vadd.f32 %v4667, %v4741
    %v4746 = vadd.f32 %v4668, %v4743
    %v4747 = vxor.u32 %v4745, 2147483648
    %v4748 = vxor.u32 %v4746, 2147483648
    %v4749 = vmul.f32 %v4747, 1.442695
    %v4750 = vpow.pop %v4749
    %v4751 = vmul.f32 %v4748, 1.442695
    %v4752 = vpow.pop %v4751
    %v4753 = vadd.f32 %v4750, 1.0
    %v4754 = vadd.f32 %v4752, 1.0
    %v4755 = vrcp.pop %v4753
    %v4756 = vmul.f32 1.0, %v4755
    %v4757 = vrcp.pop %v4754
    %v4758 = vmul.f32 1.0, %v4757
    %v4759 = vtanh.pop %v4746
    %v4760 = vmul.f32 %v4756, %v4664
    %v4761 = vmul.f32 %v4756, %v4759
    %4763 = vrot.lane.b32.xlu0 %v4761, 64
    %v4764 = vpop.permute.xlu0 %4763
    %v4766 = vadd.f32 %v4760, %v4764
    %v4767 = vtanh.pop %v4766
    %v4768 = vmul.f32 %v4758, %v4767
    %v4769 = vsel %vm856, %v4067, %v4057
    %v4770 = vsel %vm857, %v4068, %v4058
    %4772 = vrot.lane.b32.xlu0 %v4768, 64
    %v4773 = vpop.permute.xlu0 %4772
    %v4774 = vsel %vm933, %v4773, 0
    %4776 = vmatprep.subr.mxu0 %v3860
    %4777 = vmatpush1.msra.mxu0 %v3859
    %4778 = vmatprep.subr.mxu0 %v3862
    %4779 = vmatpush1.msra.mxu0 %v3861
    %4780 = vmatprep.subr.mxu0 %v3864
    %4781 = vmatpush1.msra.mxu0 %v3863
    %4782 = vmatprep.subr.mxu0 %v3866
    %4783 = vmatpush1.msra.mxu0 %v3865
    %4784 = vmatprep.subr.mxu0 %v3868
    %4785 = vmatpush1.msra.mxu0 %v3867
    %4786 = vmatprep.subr.mxu0 %v3870
    %4787 = vmatpush1.msra.mxu0 %v3869
    %4788 = vmatprep.subr.mxu0 %v3872
    %4789 = vmatpush1.msra.mxu0 %v3871
    %4790 = vmatprep.subr.mxu0 %v3874
    %4791 = vmatpush1.msra.mxu0 %v3873
    %4792 = vmatprep.subr.mxu0 0.0
    %4793 = vmatpush1.msra.mxu0 0.0
    %4794 = vmatprep.subr.mxu0 0.0
    %4795 = vmatpush1.msra.mxu0 0.0
    %4796 = vmatprep.subr.mxu0 0.0
    %4797 = vmatpush1.msra.mxu0 0.0
    %4798 = vmatprep.subr.mxu0 0.0
    %4799 = vmatpush1.msra.mxu0 0.0
    %4800 = vmatprep.subr.mxu0 0.0
    %4801 = vmatpush1.msra.mxu0 0.0
    %4802 = vmatprep.subr.mxu0 0.0
    %4803 = vmatpush1.msra.mxu0 0.0
    %4804 = vmatprep.subr.mxu0 0.0
    %4805 = vmatpush1.msra.mxu0 0.0
    %4806 = vmatprep.subr.mxu0 0.0
    %4807 = vmatpush1.msra.mxu0 0.0
    %4808 = vmatprep.subr.mxu0 0.0
    %4809 = vmatpush1.msra.mxu0 0.0
    %4810 = vmatprep.subr.mxu0 0.0
    %4811 = vmatpush1.msra.mxu0 0.0
    %4812 = vmatprep.subr.mxu0 0.0
    %4813 = vmatpush1.msra.mxu0 0.0
    %4814 = vmatprep.subr.mxu0 0.0
    %4815 = vmatpush1.msra.mxu0 0.0
    %4816 = vmatprep.subr.mxu0 0.0
    %4817 = vmatpush1.msra.mxu0 0.0
    %4818 = vmatprep.subr.mxu0 0.0
    %4819 = vmatpush1.msra.mxu0 0.0
    %4820 = vmatprep.subr.mxu0 0.0
    %4821 = vmatpush1.msra.mxu0 0.0
    %4822 = vmatprep.subr.mxu0 0.0
    %4823 = vmatpush1.msra.mxu0 0.0
    %4824 = vmatprep.subr.mxu0 0.0
    %4825 = vmatpush1.msra.mxu0 0.0
    %4826 = vmatprep.subr.mxu0 0.0
    %4827 = vmatpush1.msra.mxu0 0.0
    %4828 = vmatprep.subr.mxu0 0.0
    %4829 = vmatpush1.msra.mxu0 0.0
    %4830 = vmatprep.subr.mxu0 0.0
    %4831 = vmatpush1.msra.mxu0 0.0
    %4832 = vmatprep.subr.mxu0 0.0
    %4833 = vmatpush1.msra.mxu0 0.0
    %4834 = vmatprep.subr.mxu0 0.0
    %4835 = vmatpush1.msra.mxu0 0.0
    %4836 = vmatprep.subr.mxu0 0.0
    %4837 = vmatpush1.msra.mxu0 0.0
    %4838 = vmatprep.subr.mxu0 0.0
    %4839 = vmatpush1.msra.mxu0 0.0
    %4840 = vmatprep.mubr.f32.mxu0 0.0
    %4841 = vmatmul.mubr.f32.gmra.mrb[0].mxu0 %v4774
    %v4842 = vpop.f32.mrb[0].mxu0
    %v4843 = vadd.f32 0.0, %v4842
    %v4844 = vpop.f32.mrb[0].mxu0
    %v4845 = vadd.f32 0.0, %v4844
    %4846 = vdwg.mxu0
    %v4847 = vadd.f32 %v4769, %v4843
    %v4848 = vadd.f32 %v4770, %v4845
    %v4849 = vxor.u32 %v4847, 2147483648
    %v4850 = vxor.u32 %v4848, 2147483648
    %v4851 = vmul.f32 %v4849, 1.442695
    %v4852 = vpow.pop %v4851
    %v4853 = vmul.f32 %v4850, 1.442695
    %v4854 = vpow.pop %v4853
    %v4855 = vadd.f32 %v4852, 1.0
    %v4856 = vadd.f32 %v4854, 1.0
    %v4857 = vrcp.pop %v4855
    %v4858 = vmul.f32 1.0, %v4857
    %v4859 = vrcp.pop %v4856
    %v4860 = vmul.f32 1.0, %v4859
    %v4861 = vtanh.pop %v4848
    %v4862 = vmul.f32 %v4858, %v4766
    %v4863 = vmul.f32 %v4858, %v4861
    %4865 = vrot.lane.b32.xlu0 %v4863, 64
    %v4866 = vpop.permute.xlu0 %4865
    %v4868 = vadd.f32 %v4862, %v4866
    %v4869 = vtanh.pop %v4868
    %v4870 = vmul.f32 %v4860, %v4869
    %4872 = vrot.lane.b32.xlu0 %v4870, 64
    %v4873 = vpop.permute.xlu0 %4872
    %4875 = vst.msk [vmem:[%s908] sm:$0x3] %vm906, %v4873
    %v4876 = vld [vmem:[%s908] sm:$0x3]
    %vm4877 = vcmask 517120
    %4878 = vst.msk [vmem:[#allocation6] sm:$0x3] %vm4877, %v4876
    // Predicated region
    $region14: #{imunet_forward.1} parent=1 // pred_check
      _
    $region15: #{imunet_forward.1} parent=1 // pred_check_branch
      %4880 = sbr.rel (0) target = $region17
    $region16: #{imunet_forward.1} parent=1 // pred_region
      %s4882 = ssub.s32 32, 32
      %4883 = vsyncadd [#allocation5], %s4882
      %s4885 = sshll.u32 [#allocation6], 4
      %s4886 = int_to_ptr.vmem [resolvable:$true] %s4885
      %4888 = dma.vmem_to_hbm [thread:$0]  %s4886, 32, %s2, [#allocation5]
    $region17: #{imunet_forward.1} parent=1 // pred_fallthru
      _
    // Predicated region
    $region18: #{imunet_forward.1} parent=1 // pred_check
      _
    $region19: #{imunet_forward.1} parent=1 // pred_check_branch
      %4890 = sbr.rel (0) target = $region21
    $region20: #{imunet_forward.1} parent=1 // pred_region
      %4891 = dma.done [#allocation5], 32
    $region21: #{imunet_forward.1} parent=1 // pred_fallthru
      _
    %4892 = vsyncpa [#allocation4], 1
    %4893 = vsyncpa [#allocation5], 1

</llo_original>
